<compile_context>
chip_gen: v5e
topology: v5e:2x2
jax: 0.10.0
libtpu: 0.0.40
codegen_flags: <defaults>
</compile_context>

<pallas_src>
import functools

import jax
import jax.numpy as jnp
from jax.experimental import pallas as pl
from jax.experimental.pallas import tpu as pltpu


def _round_up(x, m):
    return (x + m - 1) // m * m


# --------------------------------------------------------------------------- #
# VMEM budgeting / row-block selection
# --------------------------------------------------------------------------- #
def _pick_vmem_limit_bytes():
    """Scoped-VMEM limit per generation (96 MiB on 128-MiB parts, 48 MiB on v7x)."""
    mib = 1024 * 1024
    cap = 128 * mib
    try:
        info = pltpu.get_tpu_info()
        for name in ("vmem_capacity_bytes", "vmem_size_bytes", "vmem_bytes"):
            val = getattr(info, name, None)
            if val:
                cap = int(val)
                break
    except Exception:
        pass
    return int(max(min(cap - 16 * mib, 96 * mib), cap // 2))


def _vmem_bytes_estimate(TH, W, Cp, act_itemsize):
    """Rough sum of live VMEM for a row block of height TH."""
    PW = _round_up(W + 2, 8) + 2
    A, B = TH + 2, PW - 2
    weights = 2 * 9 * Cp * Cp * 2                   # w1 + w2, bf16, single VMEM copy each
    bn = 4 * Cp * 4                                 # folded BN scale/bias
    x_buf = 2 * (TH + 4) * W * Cp * act_itemsize    # double-buffered halo input scratch
    pad_buf = (TH + 4) * PW * Cp * 2                # shared bf16 a1/a2 scratch
    out_buf = 2 * TH * W * Cp * act_itemsize        # Pallas double-buffers the output block
    temps = 3 * A * B * Cp * 4                      # acc / h1 / a2 f32 value temporaries
    return weights + bn + x_buf + pad_buf + out_buf + temps


def _choose_block_rows(H, W, Cp, act_itemsize, vmem_limit, requested=None):
    """Largest divisor of H (capped by `requested`) whose estimate fits the budget.

    No silent TH=H fallback: a non-dividing request is rounded DOWN to a divisor.
    """
    budget = int(0.7 * vmem_limit)
    divisors = [d for d in range(2, H + 1) if H % d == 0] or [H]
    if requested is not None:
        capped = [d for d in divisors if d <= requested]
        divisors = capped or [min(divisors)]
    for d in sorted(divisors, reverse=True):
        if _vmem_bytes_estimate(d, W, Cp, act_itemsize) <= budget:
            return d
    return min(divisors)


# --------------------------------------------------------------------------- #
# Kernel
# --------------------------------------------------------------------------- #
def _resblock_kernel(x_hbm, w1_ref, w2_ref, s1_ref, b1_ref, s2_ref, b2_ref,
                     out_ref, x_vmem, pad_ref, sem):
    """One (batch n, row-block h) tile of the fused ResBlock.

    x_hbm   : (N, H, W, Cp)      input in HBM (memory_space=ANY, manual halo DMA)
    w1_ref  : (3, 3, Cp, Cp)     conv1 weights, bf16, HWIO (single VMEM copy)
    w2_ref  : (3, 3, Cp, Cp)     conv2 weights, bf16, HWIO (single VMEM copy)
    s*,b*   : (1, Cp)            folded BatchNorm scale / bias, f32
    out_ref : (TH, W, Cp)        output row block (batch dim squeezed)
    x_vmem  : (2, TH+4, W, Cp)   double-buffered input rows (+2-row halo per side);
                                 x_vmem[slot, r] <-> image row h*TH + r - 2
    pad_ref : (TH+4, PW, Cp)     bf16 scratch reused for both convs' padded input
    sem     : (2, 3)             DMA sems: [slot, {body, top-halo, bottom-halo}]
    """
    TH, W, Cp = out_ref.shape
    PW = pad_ref.shape[1]          # round_up(W + 2, 8) + 2
    A = TH + 2                     # conv1 output rows: row block + 1-row ring for conv2
    B = PW - 2                     # conv1 output cols (sublane-aligned, >= W + 2)
    RW = PW - (W + 2)              # right zero-pad width of the a1 scratch

    n = pl.program_id(0)
    h = pl.program_id(1)
    HB = pl.num_programs(1)
    last_h = HB - 1
    slot = h % 2

    # ---------------- manual halo DMA, double-buffered across h ----------------
    # Rows for row block `h_idx` are fetched in up to three statically-sized pieces.
    # Top/bottom halos are skipped at the image borders; the matching pad_ref rows
    # are zeroed below, so x_vmem's unfetched border rows (garbage) never reach the
    # convs or the residual.
    def start_fetch(h_idx, s_idx):
        row0 = pl.multiple_of(h_idx * TH, TH)
        pltpu.make_async_copy(x_hbm.at[n, pl.ds(row0, TH)],
                              x_vmem.at[s_idx, pl.ds(2, TH)], sem.at[s_idx, 0]).start()

        @pl.when(h_idx > 0)
        def _():
            pltpu.make_async_copy(x_hbm.at[n, pl.ds(row0 - 2, 2)],
                                  x_vmem.at[s_idx, pl.ds(0, 2)], sem.at[s_idx, 1]).start()

        @pl.when(h_idx < last_h)
        def _():
            pltpu.make_async_copy(x_hbm.at[n, pl.ds(row0 + TH, 2)],
                                  x_vmem.at[s_idx, pl.ds(TH + 2, 2)], sem.at[s_idx, 2]).start()

    def wait_fetch(h_idx, s_idx):
        row0 = pl.multiple_of(h_idx * TH, TH)
        pltpu.make_async_copy(x_hbm.at[n, pl.ds(row0, TH)],
                              x_vmem.at[s_idx, pl.ds(2, TH)], sem.at[s_idx, 0]).wait()

        @pl.when(h_idx > 0)
        def _():
            pltpu.make_async_copy(x_hbm.at[n, pl.ds(row0, 2)],
                                  x_vmem.at[s_idx, pl.ds(0, 2)], sem.at[s_idx, 1]).wait()

        @pl.when(h_idx < last_h)
        def _():
            pltpu.make_async_copy(x_hbm.at[n, pl.ds(row0, 2)],
                                  x_vmem.at[s_idx, pl.ds(TH + 2, 2)], sem.at[s_idx, 2]).wait()

    @pl.when(h == 0)
    def _():
        start_fetch(h, slot)           # prime: the only exposed DMA, once per image per core

    @pl.when(h + 1 < HB)
    def _():
        start_fetch(h + 1, 1 - slot)   # prefetch the next row block behind this compute
        # TODO(synk): also prefetch across images to hide the h==0 DMA (requires the
        # batch axis to iterate sequentially on each core).

    wait_fetch(h, slot)

    # ---- BN1 (folded) + ReLU (f32), stored bf16 into the padded scratch interior ----
    a1 = jnp.maximum(x_vmem[slot].astype(jnp.float32) * s1_ref[0] + b1_ref[0], 0.0)
    pad_ref[:, 2:W + 2, :] = a1.astype(pad_ref.dtype)

    # conv1 zero padding: W halo always, H halo only at the image top / bottom.
    # Together with the a1 store this rewrites EVERY element of pad_ref each step,
    # so no stale / garbage data survives into conv1.
    pad_ref[:, 0:2, :] = jnp.zeros((TH + 4, 2, Cp), pad_ref.dtype)
    pad_ref[:, W + 2:PW, :] = jnp.zeros((TH + 4, RW, Cp), pad_ref.dtype)
    zrow2 = jnp.zeros((2, PW, Cp), pad_ref.dtype)

    @pl.when(h == 0)
    def _():
        pad_ref[0:2, :, :] = zrow2               # image rows -2, -1

    @pl.when(h == last_h)
    def _():
        pad_ref[TH + 2:TH + 4, :, :] = zrow2     # image rows H, H+1

    # ---- 3x3 conv as 9 shifted bf16 MXU matmuls, f32 accumulation ----
    # TODO(synk): on v6e/v7x pack the 3 dx taps into a K=3*Cp operand (3 matmuls fill
    # the 256-deep MXU) and/or build the dx shifts with pltpu.roll (XLU slot); on v7x
    # accumulate into a VMEM f32 ref to exploit the MRB.
    def conv3x3(rows, cols, w_ref):
        acc = None
        for dy in range(3):
            for dx in range(3):
                patch = pad_ref[dy:dy + rows, dx:dx + cols, :].reshape(rows * cols, Cp)
                term = jnp.dot(patch, w_ref[dy, dx], preferred_element_type=jnp.float32)
                acc = term if acc is None else acc + term   # first tap initializes acc
        return acc.reshape(rows, cols, Cp)

    # conv1 over the ring-extended (A, B) tile.
    h1 = conv3x3(A, B, w1_ref)

    # ---- BN2 (folded) + ReLU; reuse the SAME padded scratch as conv2 input ----
    a2 = jnp.maximum(h1 * s2_ref[0] + b2_ref[0], 0.0)
    pad_ref[0:A, 0:B, :] = a2.astype(pad_ref.dtype)
    # conv2 zero padding on the a2 ring: W edges always, H edges at image top/bottom.
    zcol1 = jnp.zeros((A, 1, Cp), pad_ref.dtype)
    pad_ref[0:A, 0:1, :] = zcol1                  # image col -1
    pad_ref[0:A, W + 1:W + 2, :] = zcol1          # image col W
    zrow1 = jnp.zeros((1, PW, Cp), pad_ref.dtype)

    @pl.when(h == 0)
    def _():
        pad_ref[0:1, :, :] = zrow1                # image row -1

    @pl.when(h == last_h)
    def _():
        pad_ref[A - 1:A, :, :] = zrow1            # image row H

    # ---- conv2 over the (TH, W) output tile ----
    y = conv3x3(TH, W, w2_ref)

    # ---- residual add (identity shortcut); re-read x_vmem so the full input block
    #      is not kept live across both convs ----
    identity = x_vmem[slot, 2:TH + 2, :, :].astype(jnp.float32)
    out_ref[...] = (y + identity).astype(out_ref.dtype)


# --------------------------------------------------------------------------- #
# Parameter preparation (one-time, outside the hot path)
# --------------------------------------------------------------------------- #
def _fold_bn(gamma, beta, mean, var, eps=1e-5):
    scale = gamma / jnp.sqrt(var + eps)
    bias = beta - mean * scale
    return scale, bias


def prepare_params(params, eps=1e-5):
    """OIHW->HWIO weight transpose, eval-mode BN folding, channel padding to the
    128-lane width, bf16 cast."""
    w1 = jnp.transpose(jnp.asarray(params["conv1_w"], jnp.float32), (2, 3, 1, 0))
    w2 = jnp.transpose(jnp.asarray(params["conv2_w"], jnp.float32), (2, 3, 1, 0))
    kh, kw, cin, cout = w1.shape
    assert (kh, kw) == (3, 3) and cin == cout, \
        "identity-shortcut kernel requires 3x3 convs with in_channel == out_channel"
    cp = _round_up(cout, 128)

    s1, b1 = _fold_bn(params["bn1_g"], params["bn1_b"], params["bn1_m"], params["bn1_v"], eps)
    s2, b2 = _fold_bn(params["bn2_g"], params["bn2_b"], params["bn2_m"], params["bn2_v"], eps)
    padc = lambda v: jnp.pad(v, (0, cp - v.shape[0])).reshape(1, cp).astype(jnp.float32)

    w1p = jnp.pad(w1, ((0, 0), (0, 0), (0, cp - cin), (0, cp - cout))).astype(jnp.bfloat16)
    w2p = jnp.pad(w2, ((0, 0), (0, 0), (0, cp - cout), (0, cp - cout))).astype(jnp.bfloat16)
    return {"w1": w1p, "w2": w2p,
            "s1": padc(s1), "b1": padc(b1), "s2": padc(s2), "b2": padc(b2)}


# --------------------------------------------------------------------------- #
# Wrapper
# --------------------------------------------------------------------------- #
def _resblock_nhwc(x_nhwc, w1, w2, s1, b1, s2, b2, *, block_rows=None):
    """Hot path: NHWC in, NHWC out.  Intended regime is C % 128 == 0 (lane-dense,
    no HBM padding copy, output written at exactly C channels); other C fall back
    to a one-time channel pad + slice at this boundary."""
    N, H, W, C = x_nhwc.shape
    Cp = w1.shape[-1]
    assert Cp % 128 == 0 and Cp >= C

    if C == Cp:
        x_in = x_nhwc                        # lane-dense path: no padding copy at all
    else:
        x_in = jnp.pad(x_nhwc, ((0, 0), (0, 0), (0, 0), (0, Cp - C)))

    act_itemsize = jnp.dtype(x_in.dtype).itemsize
    vmem_limit = _pick_vmem_limit_bytes()
    TH = _choose_block_rows(H, W, Cp, act_itemsize, vmem_limit, requested=block_rows)
    HB = H // TH
    PW = _round_up(W + 2, 8) + 2             # sublane-aligned padded-scratch width

    out = pl.pallas_call(
        _resblock_kernel,
        out_shape=jax.ShapeDtypeStruct((N, H, W, Cp), x_in.dtype),
        grid=(N, HB),
        in_specs=[
            pl.BlockSpec(memory_space=pl.ANY),                    # x: manual halo DMA
            pl.BlockSpec(memory_space=pltpu.MemorySpace.VMEM),    # w1 (single VMEM copy)
            pl.BlockSpec(memory_space=pltpu.MemorySpace.VMEM),    # w2 (single VMEM copy)
            pl.BlockSpec(memory_space=pltpu.MemorySpace.VMEM),    # s1
            pl.BlockSpec(memory_space=pltpu.MemorySpace.VMEM),    # b1
            pl.BlockSpec(memory_space=pltpu.MemorySpace.VMEM),    # s2
            pl.BlockSpec(memory_space=pltpu.MemorySpace.VMEM),    # b2
        ],
        out_specs=pl.BlockSpec((None, TH, W, Cp), lambda n, h: (n, h, 0, 0)),
        scratch_shapes=[
            pltpu.VMEM((2, TH + 4, W, Cp), x_in.dtype),   # double-buffered input rows
            pltpu.VMEM((TH + 4, PW, Cp), jnp.bfloat16),   # shared padded a1/a2 scratch
            pltpu.SemaphoreType.DMA((2, 3)),              # [slot, {body, top, bottom}]
        ],
        compiler_params=pltpu.CompilerParams(
            # n is independent (megacore-sharded); h must stay sequential per core
            # so the cross-step DMA prefetch into the other slot is valid.
            dimension_semantics=("parallel", "arbitrary"),
            vmem_limit_bytes=int(vmem_limit),
        ),
    )(x_in, w1, w2, s1, b1, s2, b2)

    return out if C == Cp else out[..., :C]


# NHWC entry point (no boundary transposes) for channels-last pipelines; accepts
# bf16 activations (halves halo-DMA / writeback bytes) and returns the same dtype.
resblock_forward_nhwc = jax.jit(_resblock_nhwc, static_argnames=("block_rows",))


@functools.partial(jax.jit, static_argnames=("block_rows",))
def resblock_forward(x_nchw, prepped, *, block_rows=None):
    """PyTorch-compatible entry: (N, Cin, H, W) -> (N, Cout, H, W).

    The NCHW<->NHWC transposes only exist at this compatibility boundary; use
    resblock_forward_nhwc to keep activations channels-last end-to-end.
    """
    x = jnp.transpose(x_nchw, (0, 2, 3, 1))
    y = _resblock_nhwc(x, prepped["w1"], prepped["w2"], prepped["s1"],
                       prepped["b1"], prepped["s2"], prepped["b2"],
                       block_rows=block_rows)
    return jnp.transpose(y, (0, 3, 1, 2))


# --------------------------------------------------------------------------- #
# Pure-JAX reference and test harness
# --------------------------------------------------------------------------- #
def resblock_reference(x_nchw, params, eps=1e-5):
    """Pure-JAX reference (eval-mode BN), NCHW like the PyTorch module."""
    def bn(x, g, b, m, v):
        g, b, m, v = (t[None, :, None, None] for t in (g, b, m, v))
        return (x - m) / jnp.sqrt(v + eps) * g + b

    conv = lambda x, w: jax.lax.conv_general_dilated(
        x, w, window_strides=(1, 1), padding="SAME",
        dimension_numbers=("NCHW", "OIHW", "NCHW"),
        precision=jax.lax.Precision.HIGHEST)

    identity = x_nchw
    a1 = jax.nn.relu(bn(x_nchw, params["bn1_g"], params["bn1_b"],
                        params["bn1_m"], params["bn1_v"]))
    h = conv(a1, params["conv1_w"])
    a2 = jax.nn.relu(bn(h, params["bn2_g"], params["bn2_b"],
                        params["bn2_m"], params["bn2_v"]))
    y = conv(a2, params["conv2_w"])
    return y + identity


def make_params(key, in_channel, out_channel):
    ks = jax.random.split(key, 10)
    return {
        "conv1_w": 0.1 * jax.random.normal(ks[0], (out_channel, in_channel, 3, 3), jnp.float32),
        "conv2_w": 0.1 * jax.random.normal(ks[1], (out_channel, out_channel, 3, 3), jnp.float32),
        "bn1_g": 1.0 + 0.1 * jax.random.normal(ks[2], (in_channel,), jnp.float32),
        "bn1_b": 0.1 * jax.random.normal(ks[3], (in_channel,), jnp.float32),
        "bn1_m": 0.1 * jax.random.normal(ks[4], (in_channel,), jnp.float32),
        "bn1_v": 0.5 + 0.5 * jnp.abs(jax.random.normal(ks[5], (in_channel,), jnp.float32)),
        "bn2_g": 1.0 + 0.1 * jax.random.normal(ks[6], (out_channel,), jnp.float32),
        "bn2_b": 0.1 * jax.random.normal(ks[7], (out_channel,), jnp.float32),
        "bn2_m": 0.1 * jax.random.normal(ks[8], (out_channel,), jnp.float32),
        "bn2_v": 0.5 + 0.5 * jnp.abs(jax.random.normal(ks[9], (out_channel,), jnp.float32)),
    }


if __name__ == "__main__":
    key = jax.random.PRNGKey(0)
    k_x1, k_p1, k_x2, k_p2 = jax.random.split(key, 4)

    # --- Test 1: PyTorch-shaped compat path (C=4, channel-padded to 128 lanes) ---
    N, C, H, W = 2, 4, 16, 16
    x = jax.random.normal(k_x1, (N, C, H, W), jnp.float32)
    params = make_params(k_p1, C, C)
    prepped = prepare_params(params)     # one-time: transpose / fold / pad weights

    # block_rows=8 -> grid (N=2, HB=2): exercises the top/bottom halo DMA pieces,
    # the cross-step DMA prefetch and the boundary zero-padding paths.
    out = jax.block_until_ready(resblock_forward(x, prepped, block_rows=8))
    ref = jax.block_until_ready(resblock_reference(x, params))
    assert out.shape == ref.shape == (N, C, H, W)
    if not bool(jnp.allclose(out, ref, atol=5e-2, rtol=5e-2)):
        max_err = float(jnp.max(jnp.abs(out - ref)))
        raise AssertionError(f"C={C} Pallas ResBlock mismatch, max abs err = {max_err}")

    # --- Test 2: lane-dense path (C=128: no HBM channel pad, no output slice) ---
    C2 = 128
    x2 = jax.random.normal(k_x2, (N, C2, H, W), jnp.float32)
    params2 = make_params(k_p2, C2, C2)
    prepped2 = prepare_params(params2)
    out2 = jax.block_until_ready(resblock_forward(x2, prepped2, block_rows=8))
    ref2 = jax.block_until_ready(resblock_reference(x2, params2))
    # bf16 MXU inputs at K = 9*128 accumulation depth vs an f32 HIGHEST reference:
    # check relative L2 error instead of a tight elementwise atol.
    rel = float(jnp.linalg.norm((out2 - ref2).ravel()) / jnp.linalg.norm(ref2.ravel()))
    if rel > 1.5e-2:
        raise AssertionError(f"C={C2} Pallas ResBlock relative L2 error too large: {rel}")

    print("KERNEL_OK")
</pallas_src>

<mosaic_0001>
module attributes {stable_mosaic.version = 11 : i64} {
  func.func @_resblock_kernel(%arg0: i32, %arg1: i32, %arg2: memref<2x16x16x128xf32, #tpu.memory_space<any>>, %arg3: memref<3x3x128x128xbf16, #tpu.memory_space<vmem>>, %arg4: memref<3x3x128x128xbf16, #tpu.memory_space<vmem>>, %arg5: memref<1x128xf32, #tpu.memory_space<vmem>>, %arg6: memref<1x128xf32, #tpu.memory_space<vmem>>, %arg7: memref<1x128xf32, #tpu.memory_space<vmem>>, %arg8: memref<1x128xf32, #tpu.memory_space<vmem>>, %arg9: memref<1x8x16x128xf32, #tpu.memory_space<vmem>>, %arg10: memref<2x12x16x128xf32, #tpu.memory_space<vmem>>, %arg11: memref<12x26x128xbf16, #tpu.memory_space<vmem>>, %arg12: memref<2x3x!tpu.dma_semaphore, #tpu.memory_space<semaphore_mem>>) attributes {dimension_semantics = [#tpu.dimension_semantics<parallel>, #tpu.dimension_semantics<arbitrary>], iteration_bounds = array<i64: 2, 2>, scalar_prefetch = 0 : i64, scratch_operands = 3 : i64, tpu.core_type = #tpu.core_type<tc>, window_params = [{}, {pipeline_mode = #tpu.pipeline_mode<synchronous>, transform_indices = @transform_1, window_bounds = array<i64: 3, 3, 128, 128>}, {pipeline_mode = #tpu.pipeline_mode<synchronous>, transform_indices = @transform_2, window_bounds = array<i64: 3, 3, 128, 128>}, {pipeline_mode = #tpu.pipeline_mode<synchronous>, transform_indices = @transform_3, window_bounds = array<i64: 1, 128>}, {pipeline_mode = #tpu.pipeline_mode<synchronous>, transform_indices = @transform_4, window_bounds = array<i64: 1, 128>}, {pipeline_mode = #tpu.pipeline_mode<synchronous>, transform_indices = @transform_5, window_bounds = array<i64: 1, 128>}, {pipeline_mode = #tpu.pipeline_mode<synchronous>, transform_indices = @transform_6, window_bounds = array<i64: 1, 128>}, {transform_indices = @transform_7, window_bounds = array<i64: 1, 8, 16, 128>}]} {
    %c2_i32 = arith.constant 2 : i32
    %c0_i32 = arith.constant 0 : i32
    %0 = arith.cmpi eq, %c2_i32, %c0_i32 : i32
    %c1_i32 = arith.constant 1 : i32
    %1 = arith.select %0, %c1_i32, %c2_i32 : i32
    %2 = arith.remsi %arg1, %1 : i32
    %c0_i32_0 = arith.constant 0 : i32
    %3 = arith.cmpi ne, %2, %c0_i32_0 : i32
    %c0_i32_1 = arith.constant 0 : i32
    %4 = arith.cmpi slt, %2, %c0_i32_1 : i32
    %c0_i32_2 = arith.constant 0 : i32
    %5 = arith.cmpi slt, %1, %c0_i32_2 : i32
    %6 = arith.xori %4, %5 : i1
    %7 = arith.andi %6, %3 : i1
    %8 = arith.addi %2, %1 : i32
    %9 = arith.select %7, %8, %2 : i32
    %c0_i32_3 = arith.constant 0 : i32
    %10 = arith.cmpi eq, %arg1, %c0_i32_3 : i32
    %11 = arith.extui %10 : i1 to i32
    %c0_i32_4 = arith.constant 0 : i32
    %12 = arith.cmpi ne, %11, %c0_i32_4 : i32
    scf.if %12 {
      %c8_i32_207 = arith.constant 8 : i32
      %198 = arith.muli %arg1, %c8_i32_207 : i32
      %199 = tpu.assume_multiple %198, 8 : i32
      %c0_i32_208 = arith.constant 0 : i32
      %c0_i32_209 = arith.constant 0 : i32
      %c0_i32_210 = arith.constant 0 : i32
      %200 = tpu.memref_slice %arg2[%arg0, %199, %c0_i32_209, %c0_i32_210] : memref<2x16x16x128xf32, #tpu.memory_space<any>> -> memref<1x8x16x128xf32, #tpu.memory_space<any>>
      %201 = tpu.memref_squeeze %200 : memref<1x8x16x128xf32, #tpu.memory_space<any>> -> memref<8x16x128xf32, #tpu.memory_space<any>>
      %c2_i32_211 = arith.constant 2 : i32
      %c0_i32_212 = arith.constant 0 : i32
      %c0_i32_213 = arith.constant 0 : i32
      %202 = tpu.memref_slice %arg10[%9, %c2_i32_211, %c0_i32_212, %c0_i32_213] : memref<2x12x16x128xf32, #tpu.memory_space<vmem>> -> memref<1x8x16x128xf32, #tpu.memory_space<vmem>>
      %203 = tpu.memref_squeeze %202 : memref<1x8x16x128xf32, #tpu.memory_space<vmem>> -> memref<8x16x128xf32, #tpu.memory_space<vmem>>
      %204 = tpu.memref_slice %arg12[%9, %c0_i32_208] : memref<2x3x!tpu.dma_semaphore, #tpu.memory_space<semaphore_mem>> -> memref<1x1x!tpu.dma_semaphore, #tpu.memory_space<semaphore_mem>>
      %205 = tpu.memref_squeeze %204 : memref<1x1x!tpu.dma_semaphore, #tpu.memory_space<semaphore_mem>> -> memref<!tpu.dma_semaphore, #tpu.memory_space<semaphore_mem>>
      tpu.enqueue_dma source(%201 : memref<8x16x128xf32, #tpu.memory_space<any>>) target(%203 : memref<8x16x128xf32, #tpu.memory_space<vmem>>) target_semaphore(%205 : memref<!tpu.dma_semaphore, #tpu.memory_space<semaphore_mem>>)
      %c0_i32_214 = arith.constant 0 : i32
      %206 = arith.cmpi sgt, %arg1, %c0_i32_214 : i32
      %207 = arith.extui %206 : i1 to i32
      %c0_i32_215 = arith.constant 0 : i32
      %208 = arith.cmpi ne, %207, %c0_i32_215 : i32
      scf.if %208 {
        %c2_i32_218 = arith.constant 2 : i32
        %212 = arith.subi %199, %c2_i32_218 : i32
        %c1_i32_219 = arith.constant 1 : i32
        %c0_i32_220 = arith.constant 0 : i32
        %c0_i32_221 = arith.constant 0 : i32
        %213 = tpu.memref_slice %arg2[%arg0, %212, %c0_i32_220, %c0_i32_221] : memref<2x16x16x128xf32, #tpu.memory_space<any>> -> memref<1x2x16x128xf32, #tpu.memory_space<any>>
        %214 = tpu.memref_squeeze %213 : memref<1x2x16x128xf32, #tpu.memory_space<any>> -> memref<2x16x128xf32, #tpu.memory_space<any>>
        %c0_i32_222 = arith.constant 0 : i32
        %c0_i32_223 = arith.constant 0 : i32
        %c0_i32_224 = arith.constant 0 : i32
        %215 = tpu.memref_slice %arg10[%9, %c0_i32_222, %c0_i32_223, %c0_i32_224] : memref<2x12x16x128xf32, #tpu.memory_space<vmem>> -> memref<1x2x16x128xf32, #tpu.memory_space<vmem>>
        %216 = tpu.memref_squeeze %215 : memref<1x2x16x128xf32, #tpu.memory_space<vmem>> -> memref<2x16x128xf32, #tpu.memory_space<vmem>>
        %217 = tpu.memref_slice %arg12[%9, %c1_i32_219] : memref<2x3x!tpu.dma_semaphore, #tpu.memory_space<semaphore_mem>> -> memref<1x1x!tpu.dma_semaphore, #tpu.memory_space<semaphore_mem>>
        %218 = tpu.memref_squeeze %217 : memref<1x1x!tpu.dma_semaphore, #tpu.memory_space<semaphore_mem>> -> memref<!tpu.dma_semaphore, #tpu.memory_space<semaphore_mem>>
        tpu.enqueue_dma source(%214 : memref<2x16x128xf32, #tpu.memory_space<any>>) target(%216 : memref<2x16x128xf32, #tpu.memory_space<vmem>>) target_semaphore(%218 : memref<!tpu.dma_semaphore, #tpu.memory_space<semaphore_mem>>)
      } else {
      }
      %c1_i32_216 = arith.constant 1 : i32
      %209 = arith.cmpi slt, %arg1, %c1_i32_216 : i32
      %210 = arith.extui %209 : i1 to i32
      %c0_i32_217 = arith.constant 0 : i32
      %211 = arith.cmpi ne, %210, %c0_i32_217 : i32
      scf.if %211 {
        %c8_i32_218 = arith.constant 8 : i32
        %212 = arith.addi %199, %c8_i32_218 : i32
        %c2_i32_219 = arith.constant 2 : i32
        %c0_i32_220 = arith.constant 0 : i32
        %c0_i32_221 = arith.constant 0 : i32
        %213 = tpu.memref_slice %arg2[%arg0, %212, %c0_i32_220, %c0_i32_221] : memref<2x16x16x128xf32, #tpu.memory_space<any>> -> memref<1x2x16x128xf32, #tpu.memory_space<any>>
        %214 = tpu.memref_squeeze %213 : memref<1x2x16x128xf32, #tpu.memory_space<any>> -> memref<2x16x128xf32, #tpu.memory_space<any>>
        %c10_i32 = arith.constant 10 : i32
        %c0_i32_222 = arith.constant 0 : i32
        %c0_i32_223 = arith.constant 0 : i32
        %215 = tpu.memref_slice %arg10[%9, %c10_i32, %c0_i32_222, %c0_i32_223] : memref<2x12x16x128xf32, #tpu.memory_space<vmem>> -> memref<1x2x16x128xf32, #tpu.memory_space<vmem>>
        %216 = tpu.memref_squeeze %215 : memref<1x2x16x128xf32, #tpu.memory_space<vmem>> -> memref<2x16x128xf32, #tpu.memory_space<vmem>>
        %217 = tpu.memref_slice %arg12[%9, %c2_i32_219] : memref<2x3x!tpu.dma_semaphore, #tpu.memory_space<semaphore_mem>> -> memref<1x1x!tpu.dma_semaphore, #tpu.memory_space<semaphore_mem>>
        %218 = tpu.memref_squeeze %217 : memref<1x1x!tpu.dma_semaphore, #tpu.memory_space<semaphore_mem>> -> memref<!tpu.dma_semaphore, #tpu.memory_space<semaphore_mem>>
        tpu.enqueue_dma source(%214 : memref<2x16x128xf32, #tpu.memory_space<any>>) target(%216 : memref<2x16x128xf32, #tpu.memory_space<vmem>>) target_semaphore(%218 : memref<!tpu.dma_semaphore, #tpu.memory_space<semaphore_mem>>)
      } else {
      }
    } else {
    }
    %c1_i32_5 = arith.constant 1 : i32
    %13 = arith.addi %arg1, %c1_i32_5 : i32
    %c2_i32_6 = arith.constant 2 : i32
    %14 = arith.cmpi slt, %13, %c2_i32_6 : i32
    %15 = arith.extui %14 : i1 to i32
    %c0_i32_7 = arith.constant 0 : i32
    %16 = arith.cmpi ne, %15, %c0_i32_7 : i32
    scf.if %16 {
      %c1_i32_207 = arith.constant 1 : i32
      %198 = arith.addi %arg1, %c1_i32_207 : i32
      %c1_i32_208 = arith.constant 1 : i32
      %199 = arith.subi %c1_i32_208, %9 : i32
      %c8_i32_209 = arith.constant 8 : i32
      %200 = arith.muli %198, %c8_i32_209 : i32
      %201 = tpu.assume_multiple %200, 8 : i32
      %c0_i32_210 = arith.constant 0 : i32
      %c0_i32_211 = arith.constant 0 : i32
      %c0_i32_212 = arith.constant 0 : i32
      %202 = tpu.memref_slice %arg2[%arg0, %201, %c0_i32_211, %c0_i32_212] : memref<2x16x16x128xf32, #tpu.memory_space<any>> -> memref<1x8x16x128xf32, #tpu.memory_space<any>>
      %203 = tpu.memref_squeeze %202 : memref<1x8x16x128xf32, #tpu.memory_space<any>> -> memref<8x16x128xf32, #tpu.memory_space<any>>
      %c2_i32_213 = arith.constant 2 : i32
      %c0_i32_214 = arith.constant 0 : i32
      %c0_i32_215 = arith.constant 0 : i32
      %204 = tpu.memref_slice %arg10[%199, %c2_i32_213, %c0_i32_214, %c0_i32_215] : memref<2x12x16x128xf32, #tpu.memory_space<vmem>> -> memref<1x8x16x128xf32, #tpu.memory_space<vmem>>
      %205 = tpu.memref_squeeze %204 : memref<1x8x16x128xf32, #tpu.memory_space<vmem>> -> memref<8x16x128xf32, #tpu.memory_space<vmem>>
      %206 = tpu.memref_slice %arg12[%199, %c0_i32_210] : memref<2x3x!tpu.dma_semaphore, #tpu.memory_space<semaphore_mem>> -> memref<1x1x!tpu.dma_semaphore, #tpu.memory_space<semaphore_mem>>
      %207 = tpu.memref_squeeze %206 : memref<1x1x!tpu.dma_semaphore, #tpu.memory_space<semaphore_mem>> -> memref<!tpu.dma_semaphore, #tpu.memory_space<semaphore_mem>>
      tpu.enqueue_dma source(%203 : memref<8x16x128xf32, #tpu.memory_space<any>>) target(%205 : memref<8x16x128xf32, #tpu.memory_space<vmem>>) target_semaphore(%207 : memref<!tpu.dma_semaphore, #tpu.memory_space<semaphore_mem>>)
      %c0_i32_216 = arith.constant 0 : i32
      %208 = arith.cmpi sgt, %198, %c0_i32_216 : i32
      %209 = arith.extui %208 : i1 to i32
      %c0_i32_217 = arith.constant 0 : i32
      %210 = arith.cmpi ne, %209, %c0_i32_217 : i32
      scf.if %210 {
        %c2_i32_220 = arith.constant 2 : i32
        %214 = arith.subi %201, %c2_i32_220 : i32
        %c1_i32_221 = arith.constant 1 : i32
        %c0_i32_222 = arith.constant 0 : i32
        %c0_i32_223 = arith.constant 0 : i32
        %215 = tpu.memref_slice %arg2[%arg0, %214, %c0_i32_222, %c0_i32_223] : memref<2x16x16x128xf32, #tpu.memory_space<any>> -> memref<1x2x16x128xf32, #tpu.memory_space<any>>
        %216 = tpu.memref_squeeze %215 : memref<1x2x16x128xf32, #tpu.memory_space<any>> -> memref<2x16x128xf32, #tpu.memory_space<any>>
        %c0_i32_224 = arith.constant 0 : i32
        %c0_i32_225 = arith.constant 0 : i32
        %c0_i32_226 = arith.constant 0 : i32
        %217 = tpu.memref_slice %arg10[%199, %c0_i32_224, %c0_i32_225, %c0_i32_226] : memref<2x12x16x128xf32, #tpu.memory_space<vmem>> -> memref<1x2x16x128xf32, #tpu.memory_space<vmem>>
        %218 = tpu.memref_squeeze %217 : memref<1x2x16x128xf32, #tpu.memory_space<vmem>> -> memref<2x16x128xf32, #tpu.memory_space<vmem>>
        %219 = tpu.memref_slice %arg12[%199, %c1_i32_221] : memref<2x3x!tpu.dma_semaphore, #tpu.memory_space<semaphore_mem>> -> memref<1x1x!tpu.dma_semaphore, #tpu.memory_space<semaphore_mem>>
        %220 = tpu.memref_squeeze %219 : memref<1x1x!tpu.dma_semaphore, #tpu.memory_space<semaphore_mem>> -> memref<!tpu.dma_semaphore, #tpu.memory_space<semaphore_mem>>
        tpu.enqueue_dma source(%216 : memref<2x16x128xf32, #tpu.memory_space<any>>) target(%218 : memref<2x16x128xf32, #tpu.memory_space<vmem>>) target_semaphore(%220 : memref<!tpu.dma_semaphore, #tpu.memory_space<semaphore_mem>>)
      } else {
      }
      %c1_i32_218 = arith.constant 1 : i32
      %211 = arith.cmpi slt, %198, %c1_i32_218 : i32
      %212 = arith.extui %211 : i1 to i32
      %c0_i32_219 = arith.constant 0 : i32
      %213 = arith.cmpi ne, %212, %c0_i32_219 : i32
      scf.if %213 {
        %c8_i32_220 = arith.constant 8 : i32
        %214 = arith.addi %201, %c8_i32_220 : i32
        %c2_i32_221 = arith.constant 2 : i32
        %c0_i32_222 = arith.constant 0 : i32
        %c0_i32_223 = arith.constant 0 : i32
        %215 = tpu.memref_slice %arg2[%arg0, %214, %c0_i32_222, %c0_i32_223] : memref<2x16x16x128xf32, #tpu.memory_space<any>> -> memref<1x2x16x128xf32, #tpu.memory_space<any>>
        %216 = tpu.memref_squeeze %215 : memref<1x2x16x128xf32, #tpu.memory_space<any>> -> memref<2x16x128xf32, #tpu.memory_space<any>>
        %c10_i32 = arith.constant 10 : i32
        %c0_i32_224 = arith.constant 0 : i32
        %c0_i32_225 = arith.constant 0 : i32
        %217 = tpu.memref_slice %arg10[%199, %c10_i32, %c0_i32_224, %c0_i32_225] : memref<2x12x16x128xf32, #tpu.memory_space<vmem>> -> memref<1x2x16x128xf32, #tpu.memory_space<vmem>>
        %218 = tpu.memref_squeeze %217 : memref<1x2x16x128xf32, #tpu.memory_space<vmem>> -> memref<2x16x128xf32, #tpu.memory_space<vmem>>
        %219 = tpu.memref_slice %arg12[%199, %c2_i32_221] : memref<2x3x!tpu.dma_semaphore, #tpu.memory_space<semaphore_mem>> -> memref<1x1x!tpu.dma_semaphore, #tpu.memory_space<semaphore_mem>>
        %220 = tpu.memref_squeeze %219 : memref<1x1x!tpu.dma_semaphore, #tpu.memory_space<semaphore_mem>> -> memref<!tpu.dma_semaphore, #tpu.memory_space<semaphore_mem>>
        tpu.enqueue_dma source(%216 : memref<2x16x128xf32, #tpu.memory_space<any>>) target(%218 : memref<2x16x128xf32, #tpu.memory_space<vmem>>) target_semaphore(%220 : memref<!tpu.dma_semaphore, #tpu.memory_space<semaphore_mem>>)
      } else {
      }
    } else {
    }
    %c8_i32 = arith.constant 8 : i32
    %17 = arith.muli %arg1, %c8_i32 : i32
    %18 = tpu.assume_multiple %17, 8 : i32
    %c0_i32_8 = arith.constant 0 : i32
    %c0_i32_9 = arith.constant 0 : i32
    %c0_i32_10 = arith.constant 0 : i32
    %19 = tpu.memref_slice %arg2[%arg0, %18, %c0_i32_9, %c0_i32_10] : memref<2x16x16x128xf32, #tpu.memory_space<any>> -> memref<1x8x16x128xf32, #tpu.memory_space<any>>
    %20 = tpu.memref_squeeze %19 : memref<1x8x16x128xf32, #tpu.memory_space<any>> -> memref<8x16x128xf32, #tpu.memory_space<any>>
    %c2_i32_11 = arith.constant 2 : i32
    %c0_i32_12 = arith.constant 0 : i32
    %c0_i32_13 = arith.constant 0 : i32
    %21 = tpu.memref_slice %arg10[%9, %c2_i32_11, %c0_i32_12, %c0_i32_13] : memref<2x12x16x128xf32, #tpu.memory_space<vmem>> -> memref<1x8x16x128xf32, #tpu.memory_space<vmem>>
    %22 = tpu.memref_squeeze %21 : memref<1x8x16x128xf32, #tpu.memory_space<vmem>> -> memref<8x16x128xf32, #tpu.memory_space<vmem>>
    %23 = tpu.memref_slice %arg12[%9, %c0_i32_8] : memref<2x3x!tpu.dma_semaphore, #tpu.memory_space<semaphore_mem>> -> memref<1x1x!tpu.dma_semaphore, #tpu.memory_space<semaphore_mem>>
    %24 = tpu.memref_squeeze %23 : memref<1x1x!tpu.dma_semaphore, #tpu.memory_space<semaphore_mem>> -> memref<!tpu.dma_semaphore, #tpu.memory_space<semaphore_mem>>
    tpu.wait_dma2 semaphore(%24 : memref<!tpu.dma_semaphore, #tpu.memory_space<semaphore_mem>>) src(%20 : memref<8x16x128xf32, #tpu.memory_space<any>>) dst(%22 : memref<8x16x128xf32, #tpu.memory_space<vmem>>)
    %c0_i32_14 = arith.constant 0 : i32
    %25 = arith.cmpi sgt, %arg1, %c0_i32_14 : i32
    %26 = arith.extui %25 : i1 to i32
    %c0_i32_15 = arith.constant 0 : i32
    %27 = arith.cmpi ne, %26, %c0_i32_15 : i32
    scf.if %27 {
      %c1_i32_207 = arith.constant 1 : i32
      %c0_i32_208 = arith.constant 0 : i32
      %c0_i32_209 = arith.constant 0 : i32
      %198 = tpu.memref_slice %arg2[%arg0, %18, %c0_i32_208, %c0_i32_209] : memref<2x16x16x128xf32, #tpu.memory_space<any>> -> memref<1x2x16x128xf32, #tpu.memory_space<any>>
      %199 = tpu.memref_squeeze %198 : memref<1x2x16x128xf32, #tpu.memory_space<any>> -> memref<2x16x128xf32, #tpu.memory_space<any>>
      %c0_i32_210 = arith.constant 0 : i32
      %c0_i32_211 = arith.constant 0 : i32
      %c0_i32_212 = arith.constant 0 : i32
      %200 = tpu.memref_slice %arg10[%9, %c0_i32_210, %c0_i32_211, %c0_i32_212] : memref<2x12x16x128xf32, #tpu.memory_space<vmem>> -> memref<1x2x16x128xf32, #tpu.memory_space<vmem>>
      %201 = tpu.memref_squeeze %200 : memref<1x2x16x128xf32, #tpu.memory_space<vmem>> -> memref<2x16x128xf32, #tpu.memory_space<vmem>>
      %202 = tpu.memref_slice %arg12[%9, %c1_i32_207] : memref<2x3x!tpu.dma_semaphore, #tpu.memory_space<semaphore_mem>> -> memref<1x1x!tpu.dma_semaphore, #tpu.memory_space<semaphore_mem>>
      %203 = tpu.memref_squeeze %202 : memref<1x1x!tpu.dma_semaphore, #tpu.memory_space<semaphore_mem>> -> memref<!tpu.dma_semaphore, #tpu.memory_space<semaphore_mem>>
      tpu.wait_dma2 semaphore(%203 : memref<!tpu.dma_semaphore, #tpu.memory_space<semaphore_mem>>) src(%199 : memref<2x16x128xf32, #tpu.memory_space<any>>) dst(%201 : memref<2x16x128xf32, #tpu.memory_space<vmem>>)
    } else {
    }
    %c1_i32_16 = arith.constant 1 : i32
    %28 = arith.cmpi slt, %arg1, %c1_i32_16 : i32
    %29 = arith.extui %28 : i1 to i32
    %c0_i32_17 = arith.constant 0 : i32
    %30 = arith.cmpi ne, %29, %c0_i32_17 : i32
    scf.if %30 {
      %c2_i32_207 = arith.constant 2 : i32
      %c0_i32_208 = arith.constant 0 : i32
      %c0_i32_209 = arith.constant 0 : i32
      %198 = tpu.memref_slice %arg2[%arg0, %18, %c0_i32_208, %c0_i32_209] : memref<2x16x16x128xf32, #tpu.memory_space<any>> -> memref<1x2x16x128xf32, #tpu.memory_space<any>>
      %199 = tpu.memref_squeeze %198 : memref<1x2x16x128xf32, #tpu.memory_space<any>> -> memref<2x16x128xf32, #tpu.memory_space<any>>
      %c10_i32 = arith.constant 10 : i32
      %c0_i32_210 = arith.constant 0 : i32
      %c0_i32_211 = arith.constant 0 : i32
      %200 = tpu.memref_slice %arg10[%9, %c10_i32, %c0_i32_210, %c0_i32_211] : memref<2x12x16x128xf32, #tpu.memory_space<vmem>> -> memref<1x2x16x128xf32, #tpu.memory_space<vmem>>
      %201 = tpu.memref_squeeze %200 : memref<1x2x16x128xf32, #tpu.memory_space<vmem>> -> memref<2x16x128xf32, #tpu.memory_space<vmem>>
      %202 = tpu.memref_slice %arg12[%9, %c2_i32_207] : memref<2x3x!tpu.dma_semaphore, #tpu.memory_space<semaphore_mem>> -> memref<1x1x!tpu.dma_semaphore, #tpu.memory_space<semaphore_mem>>
      %203 = tpu.memref_squeeze %202 : memref<1x1x!tpu.dma_semaphore, #tpu.memory_space<semaphore_mem>> -> memref<!tpu.dma_semaphore, #tpu.memory_space<semaphore_mem>>
      tpu.wait_dma2 semaphore(%203 : memref<!tpu.dma_semaphore, #tpu.memory_space<semaphore_mem>>) src(%199 : memref<2x16x128xf32, #tpu.memory_space<any>>) dst(%201 : memref<2x16x128xf32, #tpu.memory_space<vmem>>)
    } else {
    }
    %31 = arith.index_cast %9 : i32 to index
    %c0 = arith.constant 0 : index
    %c0_18 = arith.constant 0 : index
    %c0_19 = arith.constant 0 : index
    %32 = vector.load %arg10[%31, %c0, %c0_18, %c0_19] : memref<2x12x16x128xf32, #tpu.memory_space<vmem>>, vector<1x12x16x128xf32>
    %33 = vector.shape_cast %32 : vector<1x12x16x128xf32> to vector<12x16x128xf32>
    %c0_20 = arith.constant 0 : index
    %c0_21 = arith.constant 0 : index
    %34 = vector.load %arg5[%c0_20, %c0_21] : memref<1x128xf32, #tpu.memory_space<vmem>>, vector<1x128xf32>
    %35 = vector.shape_cast %34 : vector<1x128xf32> to vector<128xf32>
    %36 = vector.shape_cast %35 : vector<128xf32> to vector<1x1x128xf32>
    %37 = vector.broadcast %36 : vector<1x1x128xf32> to vector<12x16x128xf32>
    %38 = arith.mulf %33, %37 : vector<12x16x128xf32>
    %c0_22 = arith.constant 0 : index
    %c0_23 = arith.constant 0 : index
    %39 = vector.load %arg6[%c0_22, %c0_23] : memref<1x128xf32, #tpu.memory_space<vmem>>, vector<1x128xf32>
    %40 = vector.shape_cast %39 : vector<1x128xf32> to vector<128xf32>
    %41 = vector.shape_cast %40 : vector<128xf32> to vector<1x1x128xf32>
    %42 = vector.broadcast %41 : vector<1x1x128xf32> to vector<12x16x128xf32>
    %43 = arith.addf %38, %42 : vector<12x16x128xf32>
    %cst = arith.constant 0.000000e+00 : f32
    %44 = vector.broadcast %cst : f32 to vector<12x16x128xf32>
    %45 = arith.maximumf %43, %44 : vector<12x16x128xf32>
    %46 = arith.truncf %45 : vector<12x16x128xf32> to vector<12x16x128xbf16>
    %c0_24 = arith.constant 0 : index
    %c2 = arith.constant 2 : index
    %c0_25 = arith.constant 0 : index
    %47 = vector.load %arg11[%c0_24, %c2, %c0_25] : memref<12x26x128xbf16, #tpu.memory_space<vmem>>, vector<12x16x128xbf16>
    tpu.vector_store %arg11[%c0_24, %c2, %c0_25], %46 {strides = array<i32>} : memref<12x26x128xbf16, #tpu.memory_space<vmem>>, vector<12x16x128xbf16>,
    %cst_26 = arith.constant 0.000000e+00 : bf16
    %48 = vector.broadcast %cst_26 : bf16 to vector<12x2x128xbf16>
    %c0_27 = arith.constant 0 : index
    %c0_28 = arith.constant 0 : index
    %c0_29 = arith.constant 0 : index
    %49 = vector.load %arg11[%c0_27, %c0_28, %c0_29] : memref<12x26x128xbf16, #tpu.memory_space<vmem>>, vector<12x2x128xbf16>
    tpu.vector_store %arg11[%c0_27, %c0_28, %c0_29], %48 {strides = array<i32>} : memref<12x26x128xbf16, #tpu.memory_space<vmem>>, vector<12x2x128xbf16>,
    %cst_30 = arith.constant 0.000000e+00 : bf16
    %50 = vector.broadcast %cst_30 : bf16 to vector<12x8x128xbf16>
    %c0_31 = arith.constant 0 : index
    %c18 = arith.constant 18 : index
    %c0_32 = arith.constant 0 : index
    %51 = vector.load %arg11[%c0_31, %c18, %c0_32] : memref<12x26x128xbf16, #tpu.memory_space<vmem>>, vector<12x8x128xbf16>
    tpu.vector_store %arg11[%c0_31, %c18, %c0_32], %50 {strides = array<i32>} : memref<12x26x128xbf16, #tpu.memory_space<vmem>>, vector<12x8x128xbf16>,
    %cst_33 = arith.constant 0.000000e+00 : bf16
    %52 = vector.broadcast %cst_33 : bf16 to vector<2x26x128xbf16>
    %c0_i32_34 = arith.constant 0 : i32
    %53 = arith.cmpi eq, %arg1, %c0_i32_34 : i32
    %54 = arith.extui %53 : i1 to i32
    %c0_i32_35 = arith.constant 0 : i32
    %55 = arith.cmpi ne, %54, %c0_i32_35 : i32
    scf.if %55 {
      %c0_207 = arith.constant 0 : index
      %c0_208 = arith.constant 0 : index
      %c0_209 = arith.constant 0 : index
      %198 = vector.load %arg11[%c0_207, %c0_208, %c0_209] : memref<12x26x128xbf16, #tpu.memory_space<vmem>>, vector<2x26x128xbf16>
      tpu.vector_store %arg11[%c0_207, %c0_208, %c0_209], %52 {strides = array<i32>} : memref<12x26x128xbf16, #tpu.memory_space<vmem>>, vector<2x26x128xbf16>,
    } else {
    }
    %c1_i32_36 = arith.constant 1 : i32
    %56 = arith.cmpi eq, %arg1, %c1_i32_36 : i32
    %57 = arith.extui %56 : i1 to i32
    %c0_i32_37 = arith.constant 0 : i32
    %58 = arith.cmpi ne, %57, %c0_i32_37 : i32
    scf.if %58 {
      %c10 = arith.constant 10 : index
      %c0_207 = arith.constant 0 : index
      %c0_208 = arith.constant 0 : index
      %198 = vector.load %arg11[%c10, %c0_207, %c0_208] : memref<12x26x128xbf16, #tpu.memory_space<vmem>>, vector<2x26x128xbf16>
      tpu.vector_store %arg11[%c10, %c0_207, %c0_208], %52 {strides = array<i32>} : memref<12x26x128xbf16, #tpu.memory_space<vmem>>, vector<2x26x128xbf16>,
    } else {
    }
    %c0_38 = arith.constant 0 : index
    %c0_39 = arith.constant 0 : index
    %c0_40 = arith.constant 0 : index
    %59 = vector.load %arg11[%c0_38, %c0_39, %c0_40] : memref<12x26x128xbf16, #tpu.memory_space<vmem>>, vector<10x24x128xbf16>
    %60 = vector.shape_cast %59 : vector<10x24x128xbf16> to vector<240x128xbf16>
    %c0_41 = arith.constant 0 : index
    %c0_42 = arith.constant 0 : index
    %c0_43 = arith.constant 0 : index
    %c0_44 = arith.constant 0 : index
    %61 = vector.load %arg3[%c0_41, %c0_42, %c0_43, %c0_44] : memref<3x3x128x128xbf16, #tpu.memory_space<vmem>>, vector<1x1x128x128xbf16>
    %62 = vector.shape_cast %61 : vector<1x1x128x128xbf16> to vector<128x128xbf16>
    %cst_45 = arith.constant dense<0.000000e+00> : vector<240x128xf32>
    %63 = tpu.matmul %60, %62, %cst_45 {dimension_numbers = #tpu.dot_dimension_numbers<[1], [0], [0], [1], [0, 0, 1, 1], [], []>} : vector<240x128xbf16>, vector<128x128xbf16>, vector<240x128xf32> -> vector<240x128xf32>
    %c0_46 = arith.constant 0 : index
    %c1 = arith.constant 1 : index
    %c0_47 = arith.constant 0 : index
    %64 = vector.load %arg11[%c0_46, %c1, %c0_47] : memref<12x26x128xbf16, #tpu.memory_space<vmem>>, vector<10x24x128xbf16>
    %65 = vector.shape_cast %64 : vector<10x24x128xbf16> to vector<240x128xbf16>
    %c0_48 = arith.constant 0 : index
    %c1_49 = arith.constant 1 : index
    %c0_50 = arith.constant 0 : index
    %c0_51 = arith.constant 0 : index
    %66 = vector.load %arg3[%c0_48, %c1_49, %c0_50, %c0_51] : memref<3x3x128x128xbf16, #tpu.memory_space<vmem>>, vector<1x1x128x128xbf16>
    %67 = vector.shape_cast %66 : vector<1x1x128x128xbf16> to vector<128x128xbf16>
    %cst_52 = arith.constant dense<0.000000e+00> : vector<240x128xf32>
    %68 = tpu.matmul %65, %67, %cst_52 {dimension_numbers = #tpu.dot_dimension_numbers<[1], [0], [0], [1], [0, 0, 1, 1], [], []>} : vector<240x128xbf16>, vector<128x128xbf16>, vector<240x128xf32> -> vector<240x128xf32>
    %69 = arith.addf %63, %68 : vector<240x128xf32>
    %c0_53 = arith.constant 0 : index
    %c2_54 = arith.constant 2 : index
    %c0_55 = arith.constant 0 : index
    %70 = vector.load %arg11[%c0_53, %c2_54, %c0_55] : memref<12x26x128xbf16, #tpu.memory_space<vmem>>, vector<10x24x128xbf16>
    %71 = vector.shape_cast %70 : vector<10x24x128xbf16> to vector<240x128xbf16>
    %c0_56 = arith.constant 0 : index
    %c2_57 = arith.constant 2 : index
    %c0_58 = arith.constant 0 : index
    %c0_59 = arith.constant 0 : index
    %72 = vector.load %arg3[%c0_56, %c2_57, %c0_58, %c0_59] : memref<3x3x128x128xbf16, #tpu.memory_space<vmem>>, vector<1x1x128x128xbf16>
    %73 = vector.shape_cast %72 : vector<1x1x128x128xbf16> to vector<128x128xbf16>
    %cst_60 = arith.constant dense<0.000000e+00> : vector<240x128xf32>
    %74 = tpu.matmul %71, %73, %cst_60 {dimension_numbers = #tpu.dot_dimension_numbers<[1], [0], [0], [1], [0, 0, 1, 1], [], []>} : vector<240x128xbf16>, vector<128x128xbf16>, vector<240x128xf32> -> vector<240x128xf32>
    %75 = arith.addf %69, %74 : vector<240x128xf32>
    %c1_61 = arith.constant 1 : index
    %c0_62 = arith.constant 0 : index
    %c0_63 = arith.constant 0 : index
    %76 = vector.load %arg11[%c1_61, %c0_62, %c0_63] : memref<12x26x128xbf16, #tpu.memory_space<vmem>>, vector<10x24x128xbf16>
    %77 = vector.shape_cast %76 : vector<10x24x128xbf16> to vector<240x128xbf16>
    %c1_64 = arith.constant 1 : index
    %c0_65 = arith.constant 0 : index
    %c0_66 = arith.constant 0 : index
    %c0_67 = arith.constant 0 : index
    %78 = vector.load %arg3[%c1_64, %c0_65, %c0_66, %c0_67] : memref<3x3x128x128xbf16, #tpu.memory_space<vmem>>, vector<1x1x128x128xbf16>
    %79 = vector.shape_cast %78 : vector<1x1x128x128xbf16> to vector<128x128xbf16>
    %cst_68 = arith.constant dense<0.000000e+00> : vector<240x128xf32>
    %80 = tpu.matmul %77, %79, %cst_68 {dimension_numbers = #tpu.dot_dimension_numbers<[1], [0], [0], [1], [0, 0, 1, 1], [], []>} : vector<240x128xbf16>, vector<128x128xbf16>, vector<240x128xf32> -> vector<240x128xf32>
    %81 = arith.addf %75, %80 : vector<240x128xf32>
    %c1_69 = arith.constant 1 : index
    %c1_70 = arith.constant 1 : index
    %c0_71 = arith.constant 0 : index
    %82 = vector.load %arg11[%c1_69, %c1_70, %c0_71] : memref<12x26x128xbf16, #tpu.memory_space<vmem>>, vector<10x24x128xbf16>
    %83 = vector.shape_cast %82 : vector<10x24x128xbf16> to vector<240x128xbf16>
    %c1_72 = arith.constant 1 : index
    %c1_73 = arith.constant 1 : index
    %c0_74 = arith.constant 0 : index
    %c0_75 = arith.constant 0 : index
    %84 = vector.load %arg3[%c1_72, %c1_73, %c0_74, %c0_75] : memref<3x3x128x128xbf16, #tpu.memory_space<vmem>>, vector<1x1x128x128xbf16>
    %85 = vector.shape_cast %84 : vector<1x1x128x128xbf16> to vector<128x128xbf16>
    %cst_76 = arith.constant dense<0.000000e+00> : vector<240x128xf32>
    %86 = tpu.matmul %83, %85, %cst_76 {dimension_numbers = #tpu.dot_dimension_numbers<[1], [0], [0], [1], [0, 0, 1, 1], [], []>} : vector<240x128xbf16>, vector<128x128xbf16>, vector<240x128xf32> -> vector<240x128xf32>
    %87 = arith.addf %81, %86 : vector<240x128xf32>
    %c1_77 = arith.constant 1 : index
    %c2_78 = arith.constant 2 : index
    %c0_79 = arith.constant 0 : index
    %88 = vector.load %arg11[%c1_77, %c2_78, %c0_79] : memref<12x26x128xbf16, #tpu.memory_space<vmem>>, vector<10x24x128xbf16>
    %89 = vector.shape_cast %88 : vector<10x24x128xbf16> to vector<240x128xbf16>
    %c1_80 = arith.constant 1 : index
    %c2_81 = arith.constant 2 : index
    %c0_82 = arith.constant 0 : index
    %c0_83 = arith.constant 0 : index
    %90 = vector.load %arg3[%c1_80, %c2_81, %c0_82, %c0_83] : memref<3x3x128x128xbf16, #tpu.memory_space<vmem>>, vector<1x1x128x128xbf16>
    %91 = vector.shape_cast %90 : vector<1x1x128x128xbf16> to vector<128x128xbf16>
    %cst_84 = arith.constant dense<0.000000e+00> : vector<240x128xf32>
    %92 = tpu.matmul %89, %91, %cst_84 {dimension_numbers = #tpu.dot_dimension_numbers<[1], [0], [0], [1], [0, 0, 1, 1], [], []>} : vector<240x128xbf16>, vector<128x128xbf16>, vector<240x128xf32> -> vector<240x128xf32>
    %93 = arith.addf %87, %92 : vector<240x128xf32>
    %c2_85 = arith.constant 2 : index
    %c0_86 = arith.constant 0 : index
    %c0_87 = arith.constant 0 : index
    %94 = vector.load %arg11[%c2_85, %c0_86, %c0_87] : memref<12x26x128xbf16, #tpu.memory_space<vmem>>, vector<10x24x128xbf16>
    %95 = vector.shape_cast %94 : vector<10x24x128xbf16> to vector<240x128xbf16>
    %c2_88 = arith.constant 2 : index
    %c0_89 = arith.constant 0 : index
    %c0_90 = arith.constant 0 : index
    %c0_91 = arith.constant 0 : index
    %96 = vector.load %arg3[%c2_88, %c0_89, %c0_90, %c0_91] : memref<3x3x128x128xbf16, #tpu.memory_space<vmem>>, vector<1x1x128x128xbf16>
    %97 = vector.shape_cast %96 : vector<1x1x128x128xbf16> to vector<128x128xbf16>
    %cst_92 = arith.constant dense<0.000000e+00> : vector<240x128xf32>
    %98 = tpu.matmul %95, %97, %cst_92 {dimension_numbers = #tpu.dot_dimension_numbers<[1], [0], [0], [1], [0, 0, 1, 1], [], []>} : vector<240x128xbf16>, vector<128x128xbf16>, vector<240x128xf32> -> vector<240x128xf32>
    %99 = arith.addf %93, %98 : vector<240x128xf32>
    %c2_93 = arith.constant 2 : index
    %c1_94 = arith.constant 1 : index
    %c0_95 = arith.constant 0 : index
    %100 = vector.load %arg11[%c2_93, %c1_94, %c0_95] : memref<12x26x128xbf16, #tpu.memory_space<vmem>>, vector<10x24x128xbf16>
    %101 = vector.shape_cast %100 : vector<10x24x128xbf16> to vector<240x128xbf16>
    %c2_96 = arith.constant 2 : index
    %c1_97 = arith.constant 1 : index
    %c0_98 = arith.constant 0 : index
    %c0_99 = arith.constant 0 : index
    %102 = vector.load %arg3[%c2_96, %c1_97, %c0_98, %c0_99] : memref<3x3x128x128xbf16, #tpu.memory_space<vmem>>, vector<1x1x128x128xbf16>
    %103 = vector.shape_cast %102 : vector<1x1x128x128xbf16> to vector<128x128xbf16>
    %cst_100 = arith.constant dense<0.000000e+00> : vector<240x128xf32>
    %104 = tpu.matmul %101, %103, %cst_100 {dimension_numbers = #tpu.dot_dimension_numbers<[1], [0], [0], [1], [0, 0, 1, 1], [], []>} : vector<240x128xbf16>, vector<128x128xbf16>, vector<240x128xf32> -> vector<240x128xf32>
    %105 = arith.addf %99, %104 : vector<240x128xf32>
    %c2_101 = arith.constant 2 : index
    %c2_102 = arith.constant 2 : index
    %c0_103 = arith.constant 0 : index
    %106 = vector.load %arg11[%c2_101, %c2_102, %c0_103] : memref<12x26x128xbf16, #tpu.memory_space<vmem>>, vector<10x24x128xbf16>
    %107 = vector.shape_cast %106 : vector<10x24x128xbf16> to vector<240x128xbf16>
    %c2_104 = arith.constant 2 : index
    %c2_105 = arith.constant 2 : index
    %c0_106 = arith.constant 0 : index
    %c0_107 = arith.constant 0 : index
    %108 = vector.load %arg3[%c2_104, %c2_105, %c0_106, %c0_107] : memref<3x3x128x128xbf16, #tpu.memory_space<vmem>>, vector<1x1x128x128xbf16>
    %109 = vector.shape_cast %108 : vector<1x1x128x128xbf16> to vector<128x128xbf16>
    %cst_108 = arith.constant dense<0.000000e+00> : vector<240x128xf32>
    %110 = tpu.matmul %107, %109, %cst_108 {dimension_numbers = #tpu.dot_dimension_numbers<[1], [0], [0], [1], [0, 0, 1, 1], [], []>} : vector<240x128xbf16>, vector<128x128xbf16>, vector<240x128xf32> -> vector<240x128xf32>
    %111 = arith.addf %105, %110 : vector<240x128xf32>
    %112 = vector.shape_cast %111 : vector<240x128xf32> to vector<10x24x128xf32>
    %c0_109 = arith.constant 0 : index
    %c0_110 = arith.constant 0 : index
    %113 = vector.load %arg7[%c0_109, %c0_110] : memref<1x128xf32, #tpu.memory_space<vmem>>, vector<1x128xf32>
    %114 = vector.shape_cast %113 : vector<1x128xf32> to vector<128xf32>
    %115 = vector.shape_cast %114 : vector<128xf32> to vector<1x1x128xf32>
    %116 = vector.broadcast %115 : vector<1x1x128xf32> to vector<10x24x128xf32>
    %117 = arith.mulf %112, %116 : vector<10x24x128xf32>
    %c0_111 = arith.constant 0 : index
    %c0_112 = arith.constant 0 : index
    %118 = vector.load %arg8[%c0_111, %c0_112] : memref<1x128xf32, #tpu.memory_space<vmem>>, vector<1x128xf32>
    %119 = vector.shape_cast %118 : vector<1x128xf32> to vector<128xf32>
    %120 = vector.shape_cast %119 : vector<128xf32> to vector<1x1x128xf32>
    %121 = vector.broadcast %120 : vector<1x1x128xf32> to vector<10x24x128xf32>
    %122 = arith.addf %117, %121 : vector<10x24x128xf32>
    %cst_113 = arith.constant 0.000000e+00 : f32
    %123 = vector.broadcast %cst_113 : f32 to vector<10x24x128xf32>
    %124 = arith.maximumf %122, %123 : vector<10x24x128xf32>
    %125 = arith.truncf %124 : vector<10x24x128xf32> to vector<10x24x128xbf16>
    %c0_114 = arith.constant 0 : index
    %c0_115 = arith.constant 0 : index
    %c0_116 = arith.constant 0 : index
    %126 = vector.load %arg11[%c0_114, %c0_115, %c0_116] : memref<12x26x128xbf16, #tpu.memory_space<vmem>>, vector<10x24x128xbf16>
    tpu.vector_store %arg11[%c0_114, %c0_115, %c0_116], %125 {strides = array<i32>} : memref<12x26x128xbf16, #tpu.memory_space<vmem>>, vector<10x24x128xbf16>,
    %cst_117 = arith.constant 0.000000e+00 : bf16
    %127 = vector.broadcast %cst_117 : bf16 to vector<10x1x128xbf16>
    %c0_118 = arith.constant 0 : index
    %c0_119 = arith.constant 0 : index
    %c0_120 = arith.constant 0 : index
    %128 = vector.load %arg11[%c0_118, %c0_119, %c0_120] : memref<12x26x128xbf16, #tpu.memory_space<vmem>>, vector<10x1x128xbf16>
    tpu.vector_store %arg11[%c0_118, %c0_119, %c0_120], %127 {strides = array<i32>} : memref<12x26x128xbf16, #tpu.memory_space<vmem>>, vector<10x1x128xbf16>,
    %c0_121 = arith.constant 0 : index
    %c17 = arith.constant 17 : index
    %c0_122 = arith.constant 0 : index
    %129 = vector.load %arg11[%c0_121, %c17, %c0_122] : memref<12x26x128xbf16, #tpu.memory_space<vmem>>, vector<10x1x128xbf16>
    tpu.vector_store %arg11[%c0_121, %c17, %c0_122], %127 {strides = array<i32>} : memref<12x26x128xbf16, #tpu.memory_space<vmem>>, vector<10x1x128xbf16>,
    %cst_123 = arith.constant 0.000000e+00 : bf16
    %130 = vector.broadcast %cst_123 : bf16 to vector<1x26x128xbf16>
    %c0_i32_124 = arith.constant 0 : i32
    %131 = arith.cmpi eq, %arg1, %c0_i32_124 : i32
    %132 = arith.extui %131 : i1 to i32
    %c0_i32_125 = arith.constant 0 : i32
    %133 = arith.cmpi ne, %132, %c0_i32_125 : i32
    scf.if %133 {
      %c0_207 = arith.constant 0 : index
      %c0_208 = arith.constant 0 : index
      %c0_209 = arith.constant 0 : index
      %198 = vector.load %arg11[%c0_207, %c0_208, %c0_209] : memref<12x26x128xbf16, #tpu.memory_space<vmem>>, vector<1x26x128xbf16>
      tpu.vector_store %arg11[%c0_207, %c0_208, %c0_209], %130 {strides = array<i32>} : memref<12x26x128xbf16, #tpu.memory_space<vmem>>, vector<1x26x128xbf16>,
    } else {
    }
    %c1_i32_126 = arith.constant 1 : i32
    %134 = arith.cmpi eq, %arg1, %c1_i32_126 : i32
    %135 = arith.extui %134 : i1 to i32
    %c0_i32_127 = arith.constant 0 : i32
    %136 = arith.cmpi ne, %135, %c0_i32_127 : i32
    scf.if %136 {
      %c9 = arith.constant 9 : index
      %c0_207 = arith.constant 0 : index
      %c0_208 = arith.constant 0 : index
      %198 = vector.load %arg11[%c9, %c0_207, %c0_208] : memref<12x26x128xbf16, #tpu.memory_space<vmem>>, vector<1x26x128xbf16>
      tpu.vector_store %arg11[%c9, %c0_207, %c0_208], %130 {strides = array<i32>} : memref<12x26x128xbf16, #tpu.memory_space<vmem>>, vector<1x26x128xbf16>,
    } else {
    }
    %c0_128 = arith.constant 0 : index
    %c0_129 = arith.constant 0 : index
    %c0_130 = arith.constant 0 : index
    %137 = vector.load %arg11[%c0_128, %c0_129, %c0_130] : memref<12x26x128xbf16, #tpu.memory_space<vmem>>, vector<8x16x128xbf16>
    %138 = vector.shape_cast %137 : vector<8x16x128xbf16> to vector<128x128xbf16>
    %c0_131 = arith.constant 0 : index
    %c0_132 = arith.constant 0 : index
    %c0_133 = arith.constant 0 : index
    %c0_134 = arith.constant 0 : index
    %139 = vector.load %arg4[%c0_131, %c0_132, %c0_133, %c0_134] : memref<3x3x128x128xbf16, #tpu.memory_space<vmem>>, vector<1x1x128x128xbf16>
    %140 = vector.shape_cast %139 : vector<1x1x128x128xbf16> to vector<128x128xbf16>
    %cst_135 = arith.constant dense<0.000000e+00> : vector<128x128xf32>
    %141 = tpu.matmul %138, %140, %cst_135 {dimension_numbers = #tpu.dot_dimension_numbers<[1], [0], [0], [1], [0, 0, 1, 1], [], []>} : vector<128x128xbf16>, vector<128x128xbf16>, vector<128x128xf32> -> vector<128x128xf32>
    %c0_136 = arith.constant 0 : index
    %c1_137 = arith.constant 1 : index
    %c0_138 = arith.constant 0 : index
    %142 = vector.load %arg11[%c0_136, %c1_137, %c0_138] : memref<12x26x128xbf16, #tpu.memory_space<vmem>>, vector<8x16x128xbf16>
    %143 = vector.shape_cast %142 : vector<8x16x128xbf16> to vector<128x128xbf16>
    %c0_139 = arith.constant 0 : index
    %c1_140 = arith.constant 1 : index
    %c0_141 = arith.constant 0 : index
    %c0_142 = arith.constant 0 : index
    %144 = vector.load %arg4[%c0_139, %c1_140, %c0_141, %c0_142] : memref<3x3x128x128xbf16, #tpu.memory_space<vmem>>, vector<1x1x128x128xbf16>
    %145 = vector.shape_cast %144 : vector<1x1x128x128xbf16> to vector<128x128xbf16>
    %cst_143 = arith.constant dense<0.000000e+00> : vector<128x128xf32>
    %146 = tpu.matmul %143, %145, %cst_143 {dimension_numbers = #tpu.dot_dimension_numbers<[1], [0], [0], [1], [0, 0, 1, 1], [], []>} : vector<128x128xbf16>, vector<128x128xbf16>, vector<128x128xf32> -> vector<128x128xf32>
    %147 = arith.addf %141, %146 : vector<128x128xf32>
    %c0_144 = arith.constant 0 : index
    %c2_145 = arith.constant 2 : index
    %c0_146 = arith.constant 0 : index
    %148 = vector.load %arg11[%c0_144, %c2_145, %c0_146] : memref<12x26x128xbf16, #tpu.memory_space<vmem>>, vector<8x16x128xbf16>
    %149 = vector.shape_cast %148 : vector<8x16x128xbf16> to vector<128x128xbf16>
    %c0_147 = arith.constant 0 : index
    %c2_148 = arith.constant 2 : index
    %c0_149 = arith.constant 0 : index
    %c0_150 = arith.constant 0 : index
    %150 = vector.load %arg4[%c0_147, %c2_148, %c0_149, %c0_150] : memref<3x3x128x128xbf16, #tpu.memory_space<vmem>>, vector<1x1x128x128xbf16>
    %151 = vector.shape_cast %150 : vector<1x1x128x128xbf16> to vector<128x128xbf16>
    %cst_151 = arith.constant dense<0.000000e+00> : vector<128x128xf32>
    %152 = tpu.matmul %149, %151, %cst_151 {dimension_numbers = #tpu.dot_dimension_numbers<[1], [0], [0], [1], [0, 0, 1, 1], [], []>} : vector<128x128xbf16>, vector<128x128xbf16>, vector<128x128xf32> -> vector<128x128xf32>
    %153 = arith.addf %147, %152 : vector<128x128xf32>
    %c1_152 = arith.constant 1 : index
    %c0_153 = arith.constant 0 : index
    %c0_154 = arith.constant 0 : index
    %154 = vector.load %arg11[%c1_152, %c0_153, %c0_154] : memref<12x26x128xbf16, #tpu.memory_space<vmem>>, vector<8x16x128xbf16>
    %155 = vector.shape_cast %154 : vector<8x16x128xbf16> to vector<128x128xbf16>
    %c1_155 = arith.constant 1 : index
    %c0_156 = arith.constant 0 : index
    %c0_157 = arith.constant 0 : index
    %c0_158 = arith.constant 0 : index
    %156 = vector.load %arg4[%c1_155, %c0_156, %c0_157, %c0_158] : memref<3x3x128x128xbf16, #tpu.memory_space<vmem>>, vector<1x1x128x128xbf16>
    %157 = vector.shape_cast %156 : vector<1x1x128x128xbf16> to vector<128x128xbf16>
    %cst_159 = arith.constant dense<0.000000e+00> : vector<128x128xf32>
    %158 = tpu.matmul %155, %157, %cst_159 {dimension_numbers = #tpu.dot_dimension_numbers<[1], [0], [0], [1], [0, 0, 1, 1], [], []>} : vector<128x128xbf16>, vector<128x128xbf16>, vector<128x128xf32> -> vector<128x128xf32>
    %159 = arith.addf %153, %158 : vector<128x128xf32>
    %c1_160 = arith.constant 1 : index
    %c1_161 = arith.constant 1 : index
    %c0_162 = arith.constant 0 : index
    %160 = vector.load %arg11[%c1_160, %c1_161, %c0_162] : memref<12x26x128xbf16, #tpu.memory_space<vmem>>, vector<8x16x128xbf16>
    %161 = vector.shape_cast %160 : vector<8x16x128xbf16> to vector<128x128xbf16>
    %c1_163 = arith.constant 1 : index
    %c1_164 = arith.constant 1 : index
    %c0_165 = arith.constant 0 : index
    %c0_166 = arith.constant 0 : index
    %162 = vector.load %arg4[%c1_163, %c1_164, %c0_165, %c0_166] : memref<3x3x128x128xbf16, #tpu.memory_space<vmem>>, vector<1x1x128x128xbf16>
    %163 = vector.shape_cast %162 : vector<1x1x128x128xbf16> to vector<128x128xbf16>
    %cst_167 = arith.constant dense<0.000000e+00> : vector<128x128xf32>
    %164 = tpu.matmul %161, %163, %cst_167 {dimension_numbers = #tpu.dot_dimension_numbers<[1], [0], [0], [1], [0, 0, 1, 1], [], []>} : vector<128x128xbf16>, vector<128x128xbf16>, vector<128x128xf32> -> vector<128x128xf32>
    %165 = arith.addf %159, %164 : vector<128x128xf32>
    %c1_168 = arith.constant 1 : index
    %c2_169 = arith.constant 2 : index
    %c0_170 = arith.constant 0 : index
    %166 = vector.load %arg11[%c1_168, %c2_169, %c0_170] : memref<12x26x128xbf16, #tpu.memory_space<vmem>>, vector<8x16x128xbf16>
    %167 = vector.shape_cast %166 : vector<8x16x128xbf16> to vector<128x128xbf16>
    %c1_171 = arith.constant 1 : index
    %c2_172 = arith.constant 2 : index
    %c0_173 = arith.constant 0 : index
    %c0_174 = arith.constant 0 : index
    %168 = vector.load %arg4[%c1_171, %c2_172, %c0_173, %c0_174] : memref<3x3x128x128xbf16, #tpu.memory_space<vmem>>, vector<1x1x128x128xbf16>
    %169 = vector.shape_cast %168 : vector<1x1x128x128xbf16> to vector<128x128xbf16>
    %cst_175 = arith.constant dense<0.000000e+00> : vector<128x128xf32>
    %170 = tpu.matmul %167, %169, %cst_175 {dimension_numbers = #tpu.dot_dimension_numbers<[1], [0], [0], [1], [0, 0, 1, 1], [], []>} : vector<128x128xbf16>, vector<128x128xbf16>, vector<128x128xf32> -> vector<128x128xf32>
    %171 = arith.addf %165, %170 : vector<128x128xf32>
    %c2_176 = arith.constant 2 : index
    %c0_177 = arith.constant 0 : index
    %c0_178 = arith.constant 0 : index
    %172 = vector.load %arg11[%c2_176, %c0_177, %c0_178] : memref<12x26x128xbf16, #tpu.memory_space<vmem>>, vector<8x16x128xbf16>
    %173 = vector.shape_cast %172 : vector<8x16x128xbf16> to vector<128x128xbf16>
    %c2_179 = arith.constant 2 : index
    %c0_180 = arith.constant 0 : index
    %c0_181 = arith.constant 0 : index
    %c0_182 = arith.constant 0 : index
    %174 = vector.load %arg4[%c2_179, %c0_180, %c0_181, %c0_182] : memref<3x3x128x128xbf16, #tpu.memory_space<vmem>>, vector<1x1x128x128xbf16>
    %175 = vector.shape_cast %174 : vector<1x1x128x128xbf16> to vector<128x128xbf16>
    %cst_183 = arith.constant dense<0.000000e+00> : vector<128x128xf32>
    %176 = tpu.matmul %173, %175, %cst_183 {dimension_numbers = #tpu.dot_dimension_numbers<[1], [0], [0], [1], [0, 0, 1, 1], [], []>} : vector<128x128xbf16>, vector<128x128xbf16>, vector<128x128xf32> -> vector<128x128xf32>
    %177 = arith.addf %171, %176 : vector<128x128xf32>
    %c2_184 = arith.constant 2 : index
    %c1_185 = arith.constant 1 : index
    %c0_186 = arith.constant 0 : index
    %178 = vector.load %arg11[%c2_184, %c1_185, %c0_186] : memref<12x26x128xbf16, #tpu.memory_space<vmem>>, vector<8x16x128xbf16>
    %179 = vector.shape_cast %178 : vector<8x16x128xbf16> to vector<128x128xbf16>
    %c2_187 = arith.constant 2 : index
    %c1_188 = arith.constant 1 : index
    %c0_189 = arith.constant 0 : index
    %c0_190 = arith.constant 0 : index
    %180 = vector.load %arg4[%c2_187, %c1_188, %c0_189, %c0_190] : memref<3x3x128x128xbf16, #tpu.memory_space<vmem>>, vector<1x1x128x128xbf16>
    %181 = vector.shape_cast %180 : vector<1x1x128x128xbf16> to vector<128x128xbf16>
    %cst_191 = arith.constant dense<0.000000e+00> : vector<128x128xf32>
    %182 = tpu.matmul %179, %181, %cst_191 {dimension_numbers = #tpu.dot_dimension_numbers<[1], [0], [0], [1], [0, 0, 1, 1], [], []>} : vector<128x128xbf16>, vector<128x128xbf16>, vector<128x128xf32> -> vector<128x128xf32>
    %183 = arith.addf %177, %182 : vector<128x128xf32>
    %c2_192 = arith.constant 2 : index
    %c2_193 = arith.constant 2 : index
    %c0_194 = arith.constant 0 : index
    %184 = vector.load %arg11[%c2_192, %c2_193, %c0_194] : memref<12x26x128xbf16, #tpu.memory_space<vmem>>, vector<8x16x128xbf16>
    %185 = vector.shape_cast %184 : vector<8x16x128xbf16> to vector<128x128xbf16>
    %c2_195 = arith.constant 2 : index
    %c2_196 = arith.constant 2 : index
    %c0_197 = arith.constant 0 : index
    %c0_198 = arith.constant 0 : index
    %186 = vector.load %arg4[%c2_195, %c2_196, %c0_197, %c0_198] : memref<3x3x128x128xbf16, #tpu.memory_space<vmem>>, vector<1x1x128x128xbf16>
    %187 = vector.shape_cast %186 : vector<1x1x128x128xbf16> to vector<128x128xbf16>
    %cst_199 = arith.constant dense<0.000000e+00> : vector<128x128xf32>
    %188 = tpu.matmul %185, %187, %cst_199 {dimension_numbers = #tpu.dot_dimension_numbers<[1], [0], [0], [1], [0, 0, 1, 1], [], []>} : vector<128x128xbf16>, vector<128x128xbf16>, vector<128x128xf32> -> vector<128x128xf32>
    %189 = arith.addf %183, %188 : vector<128x128xf32>
    %190 = vector.shape_cast %189 : vector<128x128xf32> to vector<8x16x128xf32>
    %191 = arith.index_cast %9 : i32 to index
    %c2_200 = arith.constant 2 : index
    %c0_201 = arith.constant 0 : index
    %c0_202 = arith.constant 0 : index
    %192 = vector.load %arg10[%191, %c2_200, %c0_201, %c0_202] : memref<2x12x16x128xf32, #tpu.memory_space<vmem>>, vector<1x8x16x128xf32>
    %193 = vector.shape_cast %192 : vector<1x8x16x128xf32> to vector<8x16x128xf32>
    %194 = arith.addf %190, %193 : vector<8x16x128xf32>
    %c0_203 = arith.constant 0 : index
    %c0_204 = arith.constant 0 : index
    %c0_205 = arith.constant 0 : index
    %c0_206 = arith.constant 0 : index
    %195 = vector.load %arg9[%c0_203, %c0_204, %c0_205, %c0_206] : memref<1x8x16x128xf32, #tpu.memory_space<vmem>>, vector<1x8x16x128xf32>
    %196 = vector.shape_cast %195 : vector<1x8x16x128xf32> to vector<8x16x128xf32>
    %197 = vector.shape_cast %194 : vector<8x16x128xf32> to vector<1x8x16x128xf32>
    tpu.vector_store %arg9[%c0_203, %c0_204, %c0_205, %c0_206], %197 {strides = array<i32>} : memref<1x8x16x128xf32, #tpu.memory_space<vmem>>, vector<1x8x16x128xf32>,
    return
  }
  func.func @transform_1(%arg0: i32, %arg1: i32) -> (i32, i32, i32, i32) {
    %c0_i32 = arith.constant 0 : i32
    %c0_i32_0 = arith.constant 0 : i32
    %c0_i32_1 = arith.constant 0 : i32
    %c0_i32_2 = arith.constant 0 : i32
    %c0_i32_3 = arith.constant 0 : i32
    return %c0_i32, %c0_i32_0, %c0_i32_1, %c0_i32_2 : i32, i32, i32, i32
  }
  func.func @transform_2(%arg0: i32, %arg1: i32) -> (i32, i32, i32, i32) {
    %c0_i32 = arith.constant 0 : i32
    %c0_i32_0 = arith.constant 0 : i32
    %c0_i32_1 = arith.constant 0 : i32
    %c0_i32_2 = arith.constant 0 : i32
    %c0_i32_3 = arith.constant 0 : i32
    return %c0_i32, %c0_i32_0, %c0_i32_1, %c0_i32_2 : i32, i32, i32, i32
  }
  func.func @transform_3(%arg0: i32, %arg1: i32) -> (i32, i32) {
    %c0_i32 = arith.constant 0 : i32
    %c0_i32_0 = arith.constant 0 : i32
    %c0_i32_1 = arith.constant 0 : i32
    return %c0_i32, %c0_i32_0 : i32, i32
  }
  func.func @transform_4(%arg0: i32, %arg1: i32) -> (i32, i32) {
    %c0_i32 = arith.constant 0 : i32
    %c0_i32_0 = arith.constant 0 : i32
    %c0_i32_1 = arith.constant 0 : i32
    return %c0_i32, %c0_i32_0 : i32, i32
  }
  func.func @transform_5(%arg0: i32, %arg1: i32) -> (i32, i32) {
    %c0_i32 = arith.constant 0 : i32
    %c0_i32_0 = arith.constant 0 : i32
    %c0_i32_1 = arith.constant 0 : i32
    return %c0_i32, %c0_i32_0 : i32, i32
  }
  func.func @transform_6(%arg0: i32, %arg1: i32) -> (i32, i32) {
    %c0_i32 = arith.constant 0 : i32
    %c0_i32_0 = arith.constant 0 : i32
    %c0_i32_1 = arith.constant 0 : i32
    return %c0_i32, %c0_i32_0 : i32, i32
  }
  func.func @transform_7(%arg0: i32, %arg1: i32) -> (i32, i32, i32, i32) {
    %c0_i32 = arith.constant 0 : i32
    %c0_i32_0 = arith.constant 0 : i32
    %c0_i32_1 = arith.constant 0 : i32
    return %arg0, %arg1, %c0_i32, %c0_i32_0 : i32, i32, i32, i32
  }
}

</mosaic_0001>

<llo_original>
// kernel: resblock_forward.1
$region0: #{resblock_forward.1}
  #allocation0 [shape = 'u32[]', space=smem, size = 0x4, offset = 0x4, fixed_abs, tag = 'smem constant byte address 0x4 - core index']
  #allocation1 [shape = 'u32[72,128]{1,0:T(1,128)}', space=vmem, size = 0x9000, scoped, tag = 'internal scratch']
  #allocation2 [shape = 'f32[2,12,16,128]{3,2,1,0:T(8,128)}', space=vmem, size = 0x30000, scoped, tag = 'scratch operand']
  #allocation3 [shape = 'bf16[12,26,128]{2,1,0:T(8,128)(2,1)}', space=vmem, size = 0x18000, scoped, tag = 'scratch operand']
  #allocation4 [shape = 's32[6]{0}', space=sflag, size = 0x18, scoped, tag = 'scratch operand']
  #allocation5 [shape = 's32[]', space=sflag, size = 0x4, offset = 0, fixed_abs, tag = 'sflag constant byte address 0x0 - dummy sync flag']
  #allocation6 [shape = 's32[]', space=sflag, size = 0x4, offset = 0, fixed_abs, tag = 'sflag constant byte address 0x0 - dummy sync flag']
  #allocation7 [shape = 's32[]', space=sflag, size = 0x4, offset = 0, fixed_abs, tag = 'sflag constant byte address 0x0 - dummy sync flag']
  #allocation8 [shape = 's32[]', space=sflag, size = 0x4, offset = 0, fixed_abs, tag = 'sflag constant byte address 0x0 - dummy sync flag']
  #allocation9 [shape = 's32[]', space=sflag, size = 0x4, offset = 0, fixed_abs, tag = 'sflag constant byte address 0x0 - dummy sync flag']
  #allocation10 [shape = 's32[]', space=sflag, size = 0x4, offset = 0, fixed_abs, tag = 'sflag constant byte address 0x0 - dummy sync flag']
  %s0 = inlined_call_operand.vmem [shape: f32[2,16,16,128], index: 0, kind: input, shape index: {}]
  %s1 = inlined_call_operand.vmem [shape: bf16[3,3,128,128], index: 1, kind: input, shape index: {}]
  %s2 = inlined_call_operand.vmem [shape: bf16[3,3,128,128], index: 2, kind: input, shape index: {}]
  %s3 = inlined_call_operand.vmem [shape: f32[1,128], index: 3, kind: input, shape index: {}]
  %s4 = inlined_call_operand.vmem [shape: f32[1,128], index: 4, kind: input, shape index: {}]
  %s5 = inlined_call_operand.vmem [shape: f32[1,128], index: 5, kind: input, shape index: {}]
  %s6 = inlined_call_operand.vmem [shape: f32[1,128], index: 6, kind: input, shape index: {}]
  %s7 = inlined_call_operand.vmem [shape: f32[2,16,16,128], index: 7, kind: output, shape index: {}]
  %s8 = sld [smem:[#allocation0]]
  $region219: #{resblock_forward.1} parent=0
    _
  %s10 = ssub.s32 1, %s8
  %s11 = scalar_select 0, %s10, %s8
  loop: start=0, step=1, limit=6
  $region2: #{resblock_forward.1} parent=0 // loop_pre_header
    _
  $region3: #{resblock_forward.1} parent=0 // loop_header
    %s13 = sphi 0, %s17
    %p14 = scmp.ge.s32.totalorder %s13, 6
    %s20 = sphi 0, %s32
    %s21 = sphi 0, %s28
    %s22 = sphi 0, %s20
    %s23 = sphi 0, %s21
    %s24 = sphi 0, %s22
    %s25 = sphi 0, %s23
    %s33 = sphi 0, %s33
    %s35 = sphi 0, %s33
    %s36 = sphi 0, %s35
    %s50 = sphi 0, %s36
    %s54 = sphi 0, %s54
    %s56 = sphi 0, %s54
    %s57 = sphi 0, %s56
    %s71 = sphi 0, %s57
    %s75 = sphi 0, %s75
    %s77 = sphi 0, %s75
    %s78 = sphi 0, %s77
    %s92 = sphi 0, %s78
    %s96 = sphi 0, %s96
    %s98 = sphi 0, %s96
    %s99 = sphi 0, %s98
    %s113 = sphi 0, %s99
    %s117 = sphi 0, %s117
    %s119 = sphi 0, %s117
    %s120 = sphi 0, %s119
    %s134 = sphi 0, %s120
    %s138 = sphi 0, %s138
    %s140 = sphi 0, %s138
    %s141 = sphi 0, %s140
    %s155 = sphi 0, %s141
    %s163 = sphi 0, %s165
    %s166 = sphi 0, %s163
    %s167 = sphi 0, %s166
    %s183 = sphi 0, %s167
  $region4: #{resblock_forward.1} parent=0 // loop_header_branch
    %16 = sbr.rel (%p14) target = $region8
  $region5: #{resblock_forward.1} parent=0 // loop_body
    %s18 = ssub.s32 %s13, 1
    %s19 = ssub.s32 %s13, 2
    %s26 = sadd.s32 1, %s21
    %p27 = scmp.ge.s32.totalorder %s26, 2
    %s28 = scalar_select %p27, 0, %s26
    %s29 = sadd.s32 1, %s20
    %s30 = scalar_select %p27, %s29, %s20
    %p31 = scmp.ge.s32.totalorder %s30, 2
    %s32 = scalar_select %p31, 0, %s30
    %s34 = sadd.s32 %s33, 1
    %p37 = scmp.eq.s32.totalorder %s13, 3
    %p38 = scmp.ne.s32.totalorder %s33, %s35
    %p39 = scmp.eq.s32.totalorder %s13, 0
    %p40 = por %p38, %p39
    %p41 = scmp.ne.s32.totalorder %s33, %s35
    %p42 = scmp.eq.s32.totalorder %s18, 3
    %p43 = por %p41, %p42
    %p44 = scmp.ne.s32.totalorder %s35, %s36
    %p45 = scmp.eq.s32.totalorder %s18, 0
    %p46 = por %p44, %p45
    %p47 = scmp.ne.s32.totalorder %s35, %s36
    %p48 = scmp.eq.s32.totalorder %s19, 3
    %p49 = por %p47, %p48
    %p51 = scmp.ne.s32.totalorder %s36, %s50
    %p52 = scmp.eq.s32.totalorder %s19, 0
    %p53 = por %p51, %p52
    %s55 = sadd.s32 %s54, 1
    %p58 = scmp.eq.s32.totalorder %s13, 3
    %p59 = scmp.ne.s32.totalorder %s54, %s56
    %p60 = scmp.eq.s32.totalorder %s13, 0
    %p61 = por %p59, %p60
    %p62 = scmp.ne.s32.totalorder %s54, %s56
    %p63 = scmp.eq.s32.totalorder %s18, 3
    %p64 = por %p62, %p63
    %p65 = scmp.ne.s32.totalorder %s56, %s57
    %p66 = scmp.eq.s32.totalorder %s18, 0
    %p67 = por %p65, %p66
    %p68 = scmp.ne.s32.totalorder %s56, %s57
    %p69 = scmp.eq.s32.totalorder %s19, 3
    %p70 = por %p68, %p69
    %p72 = scmp.ne.s32.totalorder %s57, %s71
    %p73 = scmp.eq.s32.totalorder %s19, 0
    %p74 = por %p72, %p73
    %s76 = sadd.s32 %s75, 1
    %p79 = scmp.eq.s32.totalorder %s13, 3
    %p80 = scmp.ne.s32.totalorder %s75, %s77
    %p81 = scmp.eq.s32.totalorder %s13, 0
    %p82 = por %p80, %p81
    %p83 = scmp.ne.s32.totalorder %s75, %s77
    %p84 = scmp.eq.s32.totalorder %s18, 3
    %p85 = por %p83, %p84
    %p86 = scmp.ne.s32.totalorder %s77, %s78
    %p87 = scmp.eq.s32.totalorder %s18, 0
    %p88 = por %p86, %p87
    %p89 = scmp.ne.s32.totalorder %s77, %s78
    %p90 = scmp.eq.s32.totalorder %s19, 3
    %p91 = por %p89, %p90
    %p93 = scmp.ne.s32.totalorder %s78, %s92
    %p94 = scmp.eq.s32.totalorder %s19, 0
    %p95 = por %p93, %p94
    %s97 = sadd.s32 %s96, 1
    %p100 = scmp.eq.s32.totalorder %s13, 3
    %p101 = scmp.ne.s32.totalorder %s96, %s98
    %p102 = scmp.eq.s32.totalorder %s13, 0
    %p103 = por %p101, %p102
    %p104 = scmp.ne.s32.totalorder %s96, %s98
    %p105 = scmp.eq.s32.totalorder %s18, 3
    %p106 = por %p104, %p105
    %p107 = scmp.ne.s32.totalorder %s98, %s99
    %p108 = scmp.eq.s32.totalorder %s18, 0
    %p109 = por %p107, %p108
    %p110 = scmp.ne.s32.totalorder %s98, %s99
    %p111 = scmp.eq.s32.totalorder %s19, 3
    %p112 = por %p110, %p111
    %p114 = scmp.ne.s32.totalorder %s99, %s113
    %p115 = scmp.eq.s32.totalorder %s19, 0
    %p116 = por %p114, %p115
    %s118 = sadd.s32 %s117, 1
    %p121 = scmp.eq.s32.totalorder %s13, 3
    %p122 = scmp.ne.s32.totalorder %s117, %s119
    %p123 = scmp.eq.s32.totalorder %s13, 0
    %p124 = por %p122, %p123
    %p125 = scmp.ne.s32.totalorder %s117, %s119
    %p126 = scmp.eq.s32.totalorder %s18, 3
    %p127 = por %p125, %p126
    %p128 = scmp.ne.s32.totalorder %s119, %s120
    %p129 = scmp.eq.s32.totalorder %s18, 0
    %p130 = por %p128, %p129
    %p131 = scmp.ne.s32.totalorder %s119, %s120
    %p132 = scmp.eq.s32.totalorder %s19, 3
    %p133 = por %p131, %p132
    %p135 = scmp.ne.s32.totalorder %s120, %s134
    %p136 = scmp.eq.s32.totalorder %s19, 0
    %p137 = por %p135, %p136
    %s139 = sadd.s32 %s138, 1
    %p142 = scmp.eq.s32.totalorder %s13, 3
    %p143 = scmp.ne.s32.totalorder %s138, %s140
    %p144 = scmp.eq.s32.totalorder %s13, 0
    %p145 = por %p143, %p144
    %p146 = scmp.ne.s32.totalorder %s138, %s140
    %p147 = scmp.eq.s32.totalorder %s18, 3
    %p148 = por %p146, %p147
    %p149 = scmp.ne.s32.totalorder %s140, %s141
    %p150 = scmp.eq.s32.totalorder %s18, 0
    %p151 = por %p149, %p150
    %p152 = scmp.ne.s32.totalorder %s140, %s141
    %p153 = scmp.eq.s32.totalorder %s19, 3
    %p154 = por %p152, %p153
    %p156 = scmp.ne.s32.totalorder %s141, %s155
    %p157 = scmp.eq.s32.totalorder %s19, 0
    %p158 = por %p156, %p157
    %s159 = ssub.s32 %s20, %s32
    %s160 = ssub.s32 %s21, %s28
    %s161 = sor.u32 %s159, %s160
    %p162 = scmp.eq.s32.totalorder %s161, 0
    %s164 = sadd.s32 %s163, 1
    %s165 = scalar_select %p162, %s163, %s164
    %p168 = pneg %p162
    %p169 = scmp.eq.s32.totalorder %s13, 3
    %p170 = por %p168, %p169
    %p171 = scmp.ne.s32.totalorder %s163, %s166
    %p172 = scmp.eq.s32.totalorder %s13, 0
    %p173 = por %p171, %p172
    %p174 = scmp.ne.s32.totalorder %s163, %s166
    %p175 = scmp.eq.s32.totalorder %s18, 3
    %p176 = por %p174, %p175
    %p177 = scmp.ne.s32.totalorder %s166, %s167
    %p178 = scmp.eq.s32.totalorder %s18, 0
    %p179 = por %p177, %p178
    %p180 = scmp.ne.s32.totalorder %s166, %s167
    %p181 = scmp.eq.s32.totalorder %s19, 3
    %p182 = por %p180, %p181
    %p184 = scmp.ne.s32.totalorder %s167, %s183
    %p185 = scmp.eq.s32.totalorder %s19, 0
    %p186 = por %p184, %p185
    %p187 = scmp.le.s32.totalorder 1, %s13
    %p188 = scmp.lt.s32.totalorder %s13, 5
    %p189 = pnand %p187, %p188
    %p190 = pneg %p189
    // Predicated region
    $region9: #{resblock_forward.1} parent=5 // pred_check
      _
    $region10: #{resblock_forward.1} parent=5 // pred_check_branch
      %192 = sbr.rel (%p189) target = $region12
    $region11: #{resblock_forward.1} parent=5 // pred_region
      %s193 = ssub.s32 %s13, 1
      // Predicated region
      $region13: #{resblock_forward.1} parent=11 // pred_check
        %p194 = pneg %p46
      $region14: #{resblock_forward.1} parent=11 // pred_check_branch
        %196 = sbr.rel (%p194) target = $region16
      $region15: #{resblock_forward.1} parent=11 // pred_region
        _
      $region16: #{resblock_forward.1} parent=11 // pred_fallthru
        _
      // Predicated region
      $region17: #{resblock_forward.1} parent=11 // pred_check
        %p197 = pneg %p67
      $region18: #{resblock_forward.1} parent=11 // pred_check_branch
        %199 = sbr.rel (%p197) target = $region20
      $region19: #{resblock_forward.1} parent=11 // pred_region
        _
      $region20: #{resblock_forward.1} parent=11 // pred_fallthru
        _
      // Predicated region
      $region21: #{resblock_forward.1} parent=11 // pred_check
        %p200 = pneg %p88
      $region22: #{resblock_forward.1} parent=11 // pred_check_branch
        %202 = sbr.rel (%p200) target = $region24
      $region23: #{resblock_forward.1} parent=11 // pred_region
        _
      $region24: #{resblock_forward.1} parent=11 // pred_fallthru
        _
      // Predicated region
      $region25: #{resblock_forward.1} parent=11 // pred_check
        %p203 = pneg %p109
      $region26: #{resblock_forward.1} parent=11 // pred_check_branch
        %205 = sbr.rel (%p203) target = $region28
      $region27: #{resblock_forward.1} parent=11 // pred_region
        _
      $region28: #{resblock_forward.1} parent=11 // pred_fallthru
        _
      // Predicated region
      $region29: #{resblock_forward.1} parent=11 // pred_check
        %p206 = pneg %p130
      $region30: #{resblock_forward.1} parent=11 // pred_check_branch
        %208 = sbr.rel (%p206) target = $region32
      $region31: #{resblock_forward.1} parent=11 // pred_region
        _
      $region32: #{resblock_forward.1} parent=11 // pred_fallthru
        _
      // Predicated region
      $region33: #{resblock_forward.1} parent=11 // pred_check
        %p209 = pneg %p151
      $region34: #{resblock_forward.1} parent=11 // pred_check_branch
        %211 = sbr.rel (%p209) target = $region36
      $region35: #{resblock_forward.1} parent=11 // pred_region
        _
      $region36: #{resblock_forward.1} parent=11 // pred_fallthru
        _
    $region12: #{resblock_forward.1} parent=5 // pred_fallthru
      _
    %p212 = scmp.lt.s32.totalorder %s13, 4
    // Predicated region
    $region37: #{resblock_forward.1} parent=5 // pred_check
      %p213 = pneg %p212
    $region38: #{resblock_forward.1} parent=5 // pred_check_branch
      %215 = sbr.rel (%p213) target = $region40
    $region39: #{resblock_forward.1} parent=5 // pred_region
      _
    $region40: #{resblock_forward.1} parent=5 // pred_fallthru
      _
    %p216 = scmp.le.s32.totalorder 1, %s13
    %p217 = scmp.lt.s32.totalorder %s13, 5
    %p218 = pnand %p216, %p217
    %p219 = pneg %p218
    // Predicated region
    $region41: #{resblock_forward.1} parent=5 // pred_check
      _
    $region42: #{resblock_forward.1} parent=5 // pred_check_branch
      %221 = sbr.rel (%p218) target = $region44
    $region43: #{resblock_forward.1} parent=5 // pred_region
      %s222 = ssub.s32 %s13, 1
      %p223 = pneg %p46
      %p224 = pneg %p43
      %p225 = pneg %p67
      %p226 = pneg %p64
      %p227 = pneg %p88
      %p228 = pneg %p85
      %p229 = pneg %p109
      %p230 = pneg %p106
      %p231 = pneg %p130
      %p232 = pneg %p127
      %p233 = pneg %p151
      %p234 = pneg %p148
      %p235 = pneg %p179
      %p236 = pneg %p176
      %s237 = smul.u32 8, %s23
      %p238 = scmp.lt.s32.totalorder %s22, 1
      %s239 = scalar_select %p238, %s22, 1
      %p240 = scmp.lt.s32.totalorder %s237, 15
      %s241 = scalar_select %p240, %s237, 15
      %s242 = smul.addr %s241, 2
      %s243 = smul.addr %s239, 32
      %s244 = sadd.s32 %s242, %s243
      %s245 = smul.addr %s244, 8
      %s246 = scalar_lea.vmem %s7, %s245
      %s247 = smul.u32 8, %s23
      %p248 = scmp.lt.s32.totalorder %s22, 1
      %s249 = scalar_select %p248, %s22, 1
      %p250 = scmp.lt.s32.totalorder %s247, 15
      %s251 = scalar_select %p250, %s247, 15
      %s252 = smul.addr %s251, 2
      %s253 = smul.addr %s249, 32
      %s254 = sadd.s32 %s252, %s253
      %s255 = smul.addr %s254, 8
      %s256 = scalar_lea.vmem %s7, %s255
      %s257 = smul.u32 8, %s23
      %p259 = scmp.lt.s32.totalorder %s23, 0
      %s260 = ssub.s32 0, %s23
      %s261 = scalar_select %p259, %s260, %s23
      %s262 = sand.u32 %s261, 1
      %s263 = ssub.s32 0, %s262
      %s264 = scalar_select %p259, %s263, %s262
      %p265 = scmp.ne.s32.totalorder %s264, 0
      %p266 = scmp.lt.s32.totalorder %s264, 0
      %p267 = pnand %p266, %p265
      %p268 = pneg %p267
      %s269 = sadd.s32 %s264, 2
      %s270 = scalar_select %p268, %s269, %s264
      %p271 = scmp.eq.s32.totalorder %s23, 0
      // Predicated region
      $region45: #{resblock_forward.1} parent=43 // pred_check
        %p272 = pneg %p271
      $region46: #{resblock_forward.1} parent=43 // pred_check_branch
        %274 = sbr.rel (%p272) target = $region48
      $region47: #{resblock_forward.1} parent=43 // pred_region
        %s275 = smul.u32 %s23, 8
        %s276 = smul.u32 %s275, 16
        %s277 = smul.u32 %s22, 256
        %s278 = sadd.s32 %s276, %s277
        %s279 = scalar_lea.vmem %s0, %s278
        %s280 = smul.u32 %s270, 192
        %s281 = sadd.s32 32, %s280
        %s282 = scalar_lea.vmem [#allocation2], %s281
        %s283 = smul.u32 %s270, 3
        %s284 = scalar_lea.sflag [#allocation4], %s283
        // Predicated region
        $region49: #{resblock_forward.1} parent=47 // pred_check
          _
        $region50: #{resblock_forward.1} parent=47 // pred_check_branch
          %286 = sbr.rel (0) target = $region52
        $region51: #{resblock_forward.1} parent=47 // pred_region
          loop: start=0, step=1, limit=1
          $region53: #{resblock_forward.1} parent=51 // loop_pre_header
            _
          $region54: #{resblock_forward.1} parent=51 // loop_header
            %s288 = sphi 0, %s292
            %p289 = scmp.ge.s32.totalorder %s288, 1
            %s293 = sphi %s279, %s279
            %s294 = sphi %s282, %s282
          $region55: #{resblock_forward.1} parent=51 // loop_header_branch
            %291 = sbr.rel (%p289) target = $region59
          $region56: #{resblock_forward.1} parent=51 // loop_body
            %v295 = vld [vmem:[%s293] sm:$0xff]
            %296 = vst [vmem:[%s294] sm:$0xff] %v295
            %v297 = vld [vmem:[%s293 + $0x8] sm:$0xff]
            %298 = vst [vmem:[%s294 + $0x8] sm:$0xff] %v297
            %v299 = vld [vmem:[%s293 + $0x10] sm:$0xff]
            %300 = vst [vmem:[%s294 + $0x10] sm:$0xff] %v299
            %v301 = vld [vmem:[%s293 + $0x18] sm:$0xff]
            %302 = vst [vmem:[%s294 + $0x18] sm:$0xff] %v301
            %v303 = vld [vmem:[%s293 + $0x20] sm:$0xff]
            %304 = vst [vmem:[%s294 + $0x20] sm:$0xff] %v303
            %v305 = vld [vmem:[%s293 + $0x28] sm:$0xff]
            %306 = vst [vmem:[%s294 + $0x28] sm:$0xff] %v305
            %v307 = vld [vmem:[%s293 + $0x30] sm:$0xff]
            %308 = vst [vmem:[%s294 + $0x30] sm:$0xff] %v307
            %v309 = vld [vmem:[%s293 + $0x38] sm:$0xff]
            %310 = vst [vmem:[%s294 + $0x38] sm:$0xff] %v309
            %v311 = vld [vmem:[%s293 + $0x40] sm:$0xff]
            %312 = vst [vmem:[%s294 + $0x40] sm:$0xff] %v311
            %v313 = vld [vmem:[%s293 + $0x48] sm:$0xff]
            %314 = vst [vmem:[%s294 + $0x48] sm:$0xff] %v313
            %v315 = vld [vmem:[%s293 + $0x50] sm:$0xff]
            %316 = vst [vmem:[%s294 + $0x50] sm:$0xff] %v315
            %v317 = vld [vmem:[%s293 + $0x58] sm:$0xff]
            %318 = vst [vmem:[%s294 + $0x58] sm:$0xff] %v317
            %v319 = vld [vmem:[%s293 + $0x60] sm:$0xff]
            %320 = vst [vmem:[%s294 + $0x60] sm:$0xff] %v319
            %v321 = vld [vmem:[%s293 + $0x68] sm:$0xff]
            %322 = vst [vmem:[%s294 + $0x68] sm:$0xff] %v321
            %v323 = vld [vmem:[%s293 + $0x70] sm:$0xff]
            %324 = vst [vmem:[%s294 + $0x70] sm:$0xff] %v323
            %v325 = vld [vmem:[%s293 + $0x78] sm:$0xff]
            %326 = vst [vmem:[%s294 + $0x78] sm:$0xff] %v325
          $region57: #{resblock_forward.1} parent=51 // loop_footer
            %s292 = sadd.s32 1, %s288
          $region58: #{resblock_forward.1} parent=51 // loop_footer_branch
            %287 = sbr.rel target = $region54
          $region59: #{resblock_forward.1} parent=51 // loop_exit
            _
        $region52: #{resblock_forward.1} parent=47 // pred_fallthru
          _
        // Predicated region
        $region60: #{resblock_forward.1} parent=47 // pred_check
          _
        $region61: #{resblock_forward.1} parent=47 // pred_check_branch
          %328 = sbr.rel target = $region63
        $region62: #{resblock_forward.1} parent=47 // pred_region
          _
        $region63: #{resblock_forward.1} parent=47 // pred_fallthru
          _
        // Predicated region
        $region64: #{resblock_forward.1} parent=47 // pred_check
          _
        $region65: #{resblock_forward.1} parent=47 // pred_check_branch
          %331 = sbr.rel (0) target = $region67
        $region66: #{resblock_forward.1} parent=47 // pred_region
          %332 = vsyncadd %s284, 2048
        $region67: #{resblock_forward.1} parent=47 // pred_fallthru
          _
        %p333 = scmp.gt.s32.totalorder %s23, 0
        // Predicated region
        $region68: #{resblock_forward.1} parent=47 // pred_check
          %p334 = pneg %p333
        $region69: #{resblock_forward.1} parent=47 // pred_check_branch
          %336 = sbr.rel (%p334) target = $region71
        $region70: #{resblock_forward.1} parent=47 // pred_region
          %s337 = ssub.s32 %s275, 2
          %s338 = smul.u32 %s337, 16
          %s339 = sadd.s32 %s338, %s277
          %s340 = scalar_lea.vmem %s0, %s339
          %s341 = scalar_lea.vmem [#allocation2], %s280
          %s342 = sadd.s32 1, %s283
          %s343 = scalar_lea.sflag [#allocation4], %s342
          // Predicated region
          $region72: #{resblock_forward.1} parent=70 // pred_check
            _
          $region73: #{resblock_forward.1} parent=70 // pred_check_branch
            %345 = sbr.rel (0) target = $region75
          $region74: #{resblock_forward.1} parent=70 // pred_region
            loop: start=0, step=1, limit=1
            $region76: #{resblock_forward.1} parent=74 // loop_pre_header
              _
            $region77: #{resblock_forward.1} parent=74 // loop_header
              %s347 = sphi 0, %s351
              %p348 = scmp.ge.s32.totalorder %s347, 1
              %s352 = sphi %s340, %s340
              %s353 = sphi %s341, %s341
            $region78: #{resblock_forward.1} parent=74 // loop_header_branch
              %350 = sbr.rel (%p348) target = $region82
            $region79: #{resblock_forward.1} parent=74 // loop_body
              %v354 = vld [vmem:[%s352] sm:$0xff]
              %355 = vst [vmem:[%s353] sm:$0xff] %v354
              %v356 = vld [vmem:[%s352 + $0x8] sm:$0xff]
              %357 = vst [vmem:[%s353 + $0x8] sm:$0xff] %v356
              %v358 = vld [vmem:[%s352 + $0x10] sm:$0xff]
              %359 = vst [vmem:[%s353 + $0x10] sm:$0xff] %v358
              %v360 = vld [vmem:[%s352 + $0x18] sm:$0xff]
              %361 = vst [vmem:[%s353 + $0x18] sm:$0xff] %v360
            $region80: #{resblock_forward.1} parent=74 // loop_footer
              %s351 = sadd.s32 1, %s347
            $region81: #{resblock_forward.1} parent=74 // loop_footer_branch
              %346 = sbr.rel target = $region77
            $region82: #{resblock_forward.1} parent=74 // loop_exit
              _
          $region75: #{resblock_forward.1} parent=70 // pred_fallthru
            _
          // Predicated region
          $region83: #{resblock_forward.1} parent=70 // pred_check
            _
          $region84: #{resblock_forward.1} parent=70 // pred_check_branch
            %363 = sbr.rel target = $region86
          $region85: #{resblock_forward.1} parent=70 // pred_region
            _
          $region86: #{resblock_forward.1} parent=70 // pred_fallthru
            _
          // Predicated region
          $region87: #{resblock_forward.1} parent=70 // pred_check
            _
          $region88: #{resblock_forward.1} parent=70 // pred_check_branch
            %366 = sbr.rel (0) target = $region90
          $region89: #{resblock_forward.1} parent=70 // pred_region
            %367 = vsyncadd %s343, 512
          $region90: #{resblock_forward.1} parent=70 // pred_fallthru
            _
        $region71: #{resblock_forward.1} parent=47 // pred_fallthru
          _
        %p368 = scmp.lt.s32.totalorder %s23, 1
        // Predicated region
        $region91: #{resblock_forward.1} parent=47 // pred_check
          %p369 = pneg %p368
        $region92: #{resblock_forward.1} parent=47 // pred_check_branch
          %371 = sbr.rel (%p369) target = $region94
        $region93: #{resblock_forward.1} parent=47 // pred_region
          %s372 = sadd.s32 %s275, 8
          %s373 = smul.u32 %s372, 16
          %s374 = sadd.s32 %s373, %s277
          %s375 = scalar_lea.vmem %s0, %s374
          %s376 = sadd.s32 160, %s280
          %s377 = scalar_lea.vmem [#allocation2], %s376
          %s378 = sadd.s32 2, %s283
          %s379 = scalar_lea.sflag [#allocation4], %s378
          // Predicated region
          $region95: #{resblock_forward.1} parent=93 // pred_check
            _
          $region96: #{resblock_forward.1} parent=93 // pred_check_branch
            %381 = sbr.rel (0) target = $region98
          $region97: #{resblock_forward.1} parent=93 // pred_region
            loop: start=0, step=1, limit=1
            $region99: #{resblock_forward.1} parent=97 // loop_pre_header
              _
            $region100: #{resblock_forward.1} parent=97 // loop_header
              %s383 = sphi 0, %s387
              %p384 = scmp.ge.s32.totalorder %s383, 1
              %s388 = sphi %s375, %s375
              %s389 = sphi %s377, %s377
            $region101: #{resblock_forward.1} parent=97 // loop_header_branch
              %386 = sbr.rel (%p384) target = $region105
            $region102: #{resblock_forward.1} parent=97 // loop_body
              %v390 = vld [vmem:[%s388] sm:$0xff]
              %391 = vst [vmem:[%s389] sm:$0xff] %v390
              %v392 = vld [vmem:[%s388 + $0x8] sm:$0xff]
              %393 = vst [vmem:[%s389 + $0x8] sm:$0xff] %v392
              %v394 = vld [vmem:[%s388 + $0x10] sm:$0xff]
              %395 = vst [vmem:[%s389 + $0x10] sm:$0xff] %v394
              %v396 = vld [vmem:[%s388 + $0x18] sm:$0xff]
              %397 = vst [vmem:[%s389 + $0x18] sm:$0xff] %v396
            $region103: #{resblock_forward.1} parent=97 // loop_footer
              %s387 = sadd.s32 1, %s383
            $region104: #{resblock_forward.1} parent=97 // loop_footer_branch
              %382 = sbr.rel target = $region100
            $region105: #{resblock_forward.1} parent=97 // loop_exit
              _
          $region98: #{resblock_forward.1} parent=93 // pred_fallthru
            _
          // Predicated region
          $region106: #{resblock_forward.1} parent=93 // pred_check
            _
          $region107: #{resblock_forward.1} parent=93 // pred_check_branch
            %399 = sbr.rel target = $region109
          $region108: #{resblock_forward.1} parent=93 // pred_region
            _
          $region109: #{resblock_forward.1} parent=93 // pred_fallthru
            _
          // Predicated region
          $region110: #{resblock_forward.1} parent=93 // pred_check
            _
          $region111: #{resblock_forward.1} parent=93 // pred_check_branch
            %402 = sbr.rel (0) target = $region113
          $region112: #{resblock_forward.1} parent=93 // pred_region
            %403 = vsyncadd %s379, 512
          $region113: #{resblock_forward.1} parent=93 // pred_fallthru
            _
        $region94: #{resblock_forward.1} parent=47 // pred_fallthru
          _
      $region48: #{resblock_forward.1} parent=43 // pred_fallthru
        _
      %s404 = sadd.s32 %s23, 1
      %p405 = scmp.lt.s32.totalorder %s404, 2
      // Predicated region
      $region114: #{resblock_forward.1} parent=43 // pred_check
        %p406 = pneg %p405
      $region115: #{resblock_forward.1} parent=43 // pred_check_branch
        %408 = sbr.rel (%p406) target = $region117
      $region116: #{resblock_forward.1} parent=43 // pred_region
        %s409 = ssub.s32 1, %s270
        %s410 = smul.u32 %s404, 8
        %s411 = smul.u32 %s410, 16
        %s412 = smul.u32 %s22, 256
        %s413 = sadd.s32 %s411, %s412
        %s414 = scalar_lea.vmem %s0, %s413
        %s415 = smul.u32 %s409, 192
        %s416 = sadd.s32 32, %s415
        %s417 = scalar_lea.vmem [#allocation2], %s416
        %s418 = smul.u32 %s409, 3
        %s419 = scalar_lea.sflag [#allocation4], %s418
        // Predicated region
        $region118: #{resblock_forward.1} parent=116 // pred_check
          _
        $region119: #{resblock_forward.1} parent=116 // pred_check_branch
          %421 = sbr.rel (0) target = $region121
        $region120: #{resblock_forward.1} parent=116 // pred_region
          loop: start=0, step=1, limit=1
          $region122: #{resblock_forward.1} parent=120 // loop_pre_header
            _
          $region123: #{resblock_forward.1} parent=120 // loop_header
            %s423 = sphi 0, %s427
            %p424 = scmp.ge.s32.totalorder %s423, 1
            %s428 = sphi %s414, %s414
            %s429 = sphi %s417, %s417
          $region124: #{resblock_forward.1} parent=120 // loop_header_branch
            %426 = sbr.rel (%p424) target = $region128
          $region125: #{resblock_forward.1} parent=120 // loop_body
            %v430 = vld [vmem:[%s428] sm:$0xff]
            %431 = vst [vmem:[%s429] sm:$0xff] %v430
            %v432 = vld [vmem:[%s428 + $0x8] sm:$0xff]
            %433 = vst [vmem:[%s429 + $0x8] sm:$0xff] %v432
            %v434 = vld [vmem:[%s428 + $0x10] sm:$0xff]
            %435 = vst [vmem:[%s429 + $0x10] sm:$0xff] %v434
            %v436 = vld [vmem:[%s428 + $0x18] sm:$0xff]
            %437 = vst [vmem:[%s429 + $0x18] sm:$0xff] %v436
            %v438 = vld [vmem:[%s428 + $0x20] sm:$0xff]
            %439 = vst [vmem:[%s429 + $0x20] sm:$0xff] %v438
            %v440 = vld [vmem:[%s428 + $0x28] sm:$0xff]
            %441 = vst [vmem:[%s429 + $0x28] sm:$0xff] %v440
            %v442 = vld [vmem:[%s428 + $0x30] sm:$0xff]
            %443 = vst [vmem:[%s429 + $0x30] sm:$0xff] %v442
            %v444 = vld [vmem:[%s428 + $0x38] sm:$0xff]
            %445 = vst [vmem:[%s429 + $0x38] sm:$0xff] %v444
            %v446 = vld [vmem:[%s428 + $0x40] sm:$0xff]
            %447 = vst [vmem:[%s429 + $0x40] sm:$0xff] %v446
            %v448 = vld [vmem:[%s428 + $0x48] sm:$0xff]
            %449 = vst [vmem:[%s429 + $0x48] sm:$0xff] %v448
            %v450 = vld [vmem:[%s428 + $0x50] sm:$0xff]
            %451 = vst [vmem:[%s429 + $0x50] sm:$0xff] %v450
            %v452 = vld [vmem:[%s428 + $0x58] sm:$0xff]
            %453 = vst [vmem:[%s429 + $0x58] sm:$0xff] %v452
            %v454 = vld [vmem:[%s428 + $0x60] sm:$0xff]
            %455 = vst [vmem:[%s429 + $0x60] sm:$0xff] %v454
            %v456 = vld [vmem:[%s428 + $0x68] sm:$0xff]
            %457 = vst [vmem:[%s429 + $0x68] sm:$0xff] %v456
            %v458 = vld [vmem:[%s428 + $0x70] sm:$0xff]
            %459 = vst [vmem:[%s429 + $0x70] sm:$0xff] %v458
            %v460 = vld [vmem:[%s428 + $0x78] sm:$0xff]
            %461 = vst [vmem:[%s429 + $0x78] sm:$0xff] %v460
          $region126: #{resblock_forward.1} parent=120 // loop_footer
            %s427 = sadd.s32 1, %s423
          $region127: #{resblock_forward.1} parent=120 // loop_footer_branch
            %422 = sbr.rel target = $region123
          $region128: #{resblock_forward.1} parent=120 // loop_exit
            _
        $region121: #{resblock_forward.1} parent=116 // pred_fallthru
          _
        // Predicated region
        $region129: #{resblock_forward.1} parent=116 // pred_check
          _
        $region130: #{resblock_forward.1} parent=116 // pred_check_branch
          %463 = sbr.rel target = $region132
        $region131: #{resblock_forward.1} parent=116 // pred_region
          _
        $region132: #{resblock_forward.1} parent=116 // pred_fallthru
          _
        // Predicated region
        $region133: #{resblock_forward.1} parent=116 // pred_check
          _
        $region134: #{resblock_forward.1} parent=116 // pred_check_branch
          %466 = sbr.rel (0) target = $region136
        $region135: #{resblock_forward.1} parent=116 // pred_region
          %467 = vsyncadd %s419, 2048
        $region136: #{resblock_forward.1} parent=116 // pred_fallthru
          _
        %p468 = scmp.gt.s32.totalorder %s404, 0
        // Predicated region
        $region137: #{resblock_forward.1} parent=116 // pred_check
          %p469 = pneg %p468
        $region138: #{resblock_forward.1} parent=116 // pred_check_branch
          %471 = sbr.rel (%p469) target = $region140
        $region139: #{resblock_forward.1} parent=116 // pred_region
          %s472 = ssub.s32 %s410, 2
          %s473 = smul.u32 %s472, 16
          %s474 = sadd.s32 %s473, %s412
          %s475 = scalar_lea.vmem %s0, %s474
          %s476 = scalar_lea.vmem [#allocation2], %s415
          %s477 = sadd.s32 1, %s418
          %s478 = scalar_lea.sflag [#allocation4], %s477
          // Predicated region
          $region141: #{resblock_forward.1} parent=139 // pred_check
            _
          $region142: #{resblock_forward.1} parent=139 // pred_check_branch
            %480 = sbr.rel (0) target = $region144
          $region143: #{resblock_forward.1} parent=139 // pred_region
            loop: start=0, step=1, limit=1
            $region145: #{resblock_forward.1} parent=143 // loop_pre_header
              _
            $region146: #{resblock_forward.1} parent=143 // loop_header
              %s482 = sphi 0, %s486
              %p483 = scmp.ge.s32.totalorder %s482, 1
              %s487 = sphi %s475, %s475
              %s488 = sphi %s476, %s476
            $region147: #{resblock_forward.1} parent=143 // loop_header_branch
              %485 = sbr.rel (%p483) target = $region151
            $region148: #{resblock_forward.1} parent=143 // loop_body
              %v489 = vld [vmem:[%s487] sm:$0xff]
              %490 = vst [vmem:[%s488] sm:$0xff] %v489
              %v491 = vld [vmem:[%s487 + $0x8] sm:$0xff]
              %492 = vst [vmem:[%s488 + $0x8] sm:$0xff] %v491
              %v493 = vld [vmem:[%s487 + $0x10] sm:$0xff]
              %494 = vst [vmem:[%s488 + $0x10] sm:$0xff] %v493
              %v495 = vld [vmem:[%s487 + $0x18] sm:$0xff]
              %496 = vst [vmem:[%s488 + $0x18] sm:$0xff] %v495
            $region149: #{resblock_forward.1} parent=143 // loop_footer
              %s486 = sadd.s32 1, %s482
            $region150: #{resblock_forward.1} parent=143 // loop_footer_branch
              %481 = sbr.rel target = $region146
            $region151: #{resblock_forward.1} parent=143 // loop_exit
              _
          $region144: #{resblock_forward.1} parent=139 // pred_fallthru
            _
          // Predicated region
          $region152: #{resblock_forward.1} parent=139 // pred_check
            _
          $region153: #{resblock_forward.1} parent=139 // pred_check_branch
            %498 = sbr.rel target = $region155
          $region154: #{resblock_forward.1} parent=139 // pred_region
            _
          $region155: #{resblock_forward.1} parent=139 // pred_fallthru
            _
          // Predicated region
          $region156: #{resblock_forward.1} parent=139 // pred_check
            _
          $region157: #{resblock_forward.1} parent=139 // pred_check_branch
            %501 = sbr.rel (0) target = $region159
          $region158: #{resblock_forward.1} parent=139 // pred_region
            %502 = vsyncadd %s478, 512
          $region159: #{resblock_forward.1} parent=139 // pred_fallthru
            _
        $region140: #{resblock_forward.1} parent=116 // pred_fallthru
          _
        %p503 = scmp.lt.s32.totalorder %s404, 1
        // Predicated region
        $region160: #{resblock_forward.1} parent=116 // pred_check
          %p504 = pneg %p503
        $region161: #{resblock_forward.1} parent=116 // pred_check_branch
          %506 = sbr.rel (%p504) target = $region163
        $region162: #{resblock_forward.1} parent=116 // pred_region
          %s507 = sadd.s32 %s410, 8
          %s508 = smul.u32 %s507, 16
          %s509 = sadd.s32 %s508, %s412
          %s510 = scalar_lea.vmem %s0, %s509
          %s511 = sadd.s32 160, %s415
          %s512 = scalar_lea.vmem [#allocation2], %s511
          %s513 = sadd.s32 2, %s418
          %s514 = scalar_lea.sflag [#allocation4], %s513
          // Predicated region
          $region164: #{resblock_forward.1} parent=162 // pred_check
            _
          $region165: #{resblock_forward.1} parent=162 // pred_check_branch
            %516 = sbr.rel (0) target = $region167
          $region166: #{resblock_forward.1} parent=162 // pred_region
            loop: start=0, step=1, limit=1
            $region168: #{resblock_forward.1} parent=166 // loop_pre_header
              _
            $region169: #{resblock_forward.1} parent=166 // loop_header
              %s518 = sphi 0, %s522
              %p519 = scmp.ge.s32.totalorder %s518, 1
              %s523 = sphi %s510, %s510
              %s524 = sphi %s512, %s512
            $region170: #{resblock_forward.1} parent=166 // loop_header_branch
              %521 = sbr.rel (%p519) target = $region174
            $region171: #{resblock_forward.1} parent=166 // loop_body
              %v525 = vld [vmem:[%s523] sm:$0xff]
              %526 = vst [vmem:[%s524] sm:$0xff] %v525
              %v527 = vld [vmem:[%s523 + $0x8] sm:$0xff]
              %528 = vst [vmem:[%s524 + $0x8] sm:$0xff] %v527
              %v529 = vld [vmem:[%s523 + $0x10] sm:$0xff]
              %530 = vst [vmem:[%s524 + $0x10] sm:$0xff] %v529
              %v531 = vld [vmem:[%s523 + $0x18] sm:$0xff]
              %532 = vst [vmem:[%s524 + $0x18] sm:$0xff] %v531
            $region172: #{resblock_forward.1} parent=166 // loop_footer
              %s522 = sadd.s32 1, %s518
            $region173: #{resblock_forward.1} parent=166 // loop_footer_branch
              %517 = sbr.rel target = $region169
            $region174: #{resblock_forward.1} parent=166 // loop_exit
              _
          $region167: #{resblock_forward.1} parent=162 // pred_fallthru
            _
          // Predicated region
          $region175: #{resblock_forward.1} parent=162 // pred_check
            _
          $region176: #{resblock_forward.1} parent=162 // pred_check_branch
            %534 = sbr.rel target = $region178
          $region177: #{resblock_forward.1} parent=162 // pred_region
            _
          $region178: #{resblock_forward.1} parent=162 // pred_fallthru
            _
          // Predicated region
          $region179: #{resblock_forward.1} parent=162 // pred_check
            _
          $region180: #{resblock_forward.1} parent=162 // pred_check_branch
            %537 = sbr.rel (0) target = $region182
          $region181: #{resblock_forward.1} parent=162 // pred_region
            %538 = vsyncadd %s514, 512
          $region182: #{resblock_forward.1} parent=162 // pred_fallthru
            _
        $region163: #{resblock_forward.1} parent=116 // pred_fallthru
          _
      $region117: #{resblock_forward.1} parent=43 // pred_fallthru
        _
      %s539 = smul.u32 %s23, 8
      %s540 = smul.u32 %s270, 192
      %s541 = sadd.s32 32, %s540
      %s542 = scalar_lea.vmem [#allocation2], %s541
      %s543 = smul.u32 %s270, 3
      %s544 = scalar_lea.sflag [#allocation4], %s543
      %s545 = smul.u32 8, 16
      %s546 = smul.u32 %s545, 1
      %s547 = sshll.u32 %s546, 4
      %548 = dma.done %s544, %s547
      %p549 = scmp.gt.s32.totalorder %s23, 0
      // Predicated region
      $region183: #{resblock_forward.1} parent=43 // pred_check
        %p550 = pneg %p549
      $region184: #{resblock_forward.1} parent=43 // pred_check_branch
        %552 = sbr.rel (%p550) target = $region186
      $region185: #{resblock_forward.1} parent=43 // pred_region
        %s553 = sadd.s32 1, %s543
        %s554 = scalar_lea.sflag [#allocation4], %s553
        %s555 = smul.u32 2, 16
        %s556 = smul.u32 %s555, 1
        %s557 = sshll.u32 %s556, 4
        %558 = dma.done %s554, %s557
      $region186: #{resblock_forward.1} parent=43 // pred_fallthru
        _
      %p559 = scmp.lt.s32.totalorder %s23, 1
      // Predicated region
      $region187: #{resblock_forward.1} parent=43 // pred_check
        %p560 = pneg %p559
      $region188: #{resblock_forward.1} parent=43 // pred_check_branch
        %562 = sbr.rel (%p560) target = $region190
      $region189: #{resblock_forward.1} parent=43 // pred_region
        %s563 = sadd.s32 2, %s543
        %s564 = scalar_lea.sflag [#allocation4], %s563
        %s565 = smul.u32 2, 16
        %s566 = smul.u32 %s565, 1
        %s567 = sshll.u32 %s566, 4
        %568 = dma.done %s564, %s567
      $region190: #{resblock_forward.1} parent=43 // pred_fallthru
        _
      %s569 = scalar_lea.vmem [#allocation2], %s540
      %v570 = vld [vmem:[%s569] sm:$0xff]
      %v571 = vld [vmem:[%s569 + $0x8] sm:$0xff]
      %v572 = vld [vmem:[%s569 + $0x10] sm:$0xff]
      %v573 = vld [vmem:[%s569 + $0x18] sm:$0xff]
      %v574 = vld [vmem:[%s569 + $0x20] sm:$0xff]
      %v575 = vld [vmem:[%s569 + $0x28] sm:$0xff]
      %v576 = vld [vmem:[%s569 + $0x30] sm:$0xff]
      %v577 = vld [vmem:[%s569 + $0x38] sm:$0xff]
      %v578 = vld [vmem:[%s569 + $0x40] sm:$0xff]
      %v579 = vld [vmem:[%s569 + $0x48] sm:$0xff]
      %v580 = vld [vmem:[%s569 + $0x50] sm:$0xff]
      %v581 = vld [vmem:[%s569 + $0x58] sm:$0xff]
      %v582 = vld [vmem:[%s569 + $0x60] sm:$0xff]
      %v583 = vld [vmem:[%s569 + $0x68] sm:$0xff]
      %v584 = vld [vmem:[%s569 + $0x70] sm:$0xff]
      %v585 = vld [vmem:[%s569 + $0x78] sm:$0xff]
      %v586 = vld [vmem:[%s569 + $0x80] sm:$0xff]
      %v587 = vld [vmem:[%s569 + $0x88] sm:$0xff]
      %v588 = vld [vmem:[%s569 + $0x90] sm:$0xff]
      %v589 = vld [vmem:[%s569 + $0x98] sm:$0xff]
      %v590 = vld [vmem:[%s569 + $0xa0] sm:$0xff]
      %v591 = vld [vmem:[%s569 + $0xa8] sm:$0xff]
      %v592 = vld [vmem:[%s569 + $0xb0] sm:$0xff]
      %v593 = vld [vmem:[%s569 + $0xb8] sm:$0xff]
      %v594 = vld [vmem:[%s3] sm:$0x1]
      %v596 = vperm.slane %v594, 0
      %v598 = vmul.f32 %v570, %v596
      %v599 = vmul.f32 %v571, %v596
      %v600 = vmul.f32 %v572, %v596
      %v601 = vmul.f32 %v573, %v596
      %v602 = vmul.f32 %v574, %v596
      %v603 = vmul.f32 %v575, %v596
      %v604 = vmul.f32 %v576, %v596
      %v605 = vmul.f32 %v577, %v596
      %v606 = vmul.f32 %v578, %v596
      %v607 = vmul.f32 %v579, %v596
      %v608 = vmul.f32 %v580, %v596
      %v609 = vmul.f32 %v581, %v596
      %v610 = vmul.f32 %v582, %v596
      %v611 = vmul.f32 %v583, %v596
      %v612 = vmul.f32 %v584, %v596
      %v613 = vmul.f32 %v585, %v596
      %v614 = vmul.f32 %v586, %v596
      %v615 = vmul.f32 %v587, %v596
      %v616 = vmul.f32 %v588, %v596
      %v617 = vmul.f32 %v589, %v596
      %v618 = vmul.f32 %v590, %v596
      %v619 = vmul.f32 %v591, %v596
      %v620 = vmul.f32 %v592, %v596
      %v621 = vmul.f32 %v593, %v596
      %v622 = vld [vmem:[%s4] sm:$0x1]
      %v624 = vperm.slane %v622, 0
      %v626 = vadd.f32 %v598, %v624
      %v627 = vadd.f32 %v599, %v624
      %v628 = vadd.f32 %v600, %v624
      %v629 = vadd.f32 %v601, %v624
      %v630 = vadd.f32 %v602, %v624
      %v631 = vadd.f32 %v603, %v624
      %v632 = vadd.f32 %v604, %v624
      %v633 = vadd.f32 %v605, %v624
      %v634 = vadd.f32 %v606, %v624
      %v635 = vadd.f32 %v607, %v624
      %v636 = vadd.f32 %v608, %v624
      %v637 = vadd.f32 %v609, %v624
      %v638 = vadd.f32 %v610, %v624
      %v639 = vadd.f32 %v611, %v624
      %v640 = vadd.f32 %v612, %v624
      %v641 = vadd.f32 %v613, %v624
      %v642 = vadd.f32 %v614, %v624
      %v643 = vadd.f32 %v615, %v624
      %v644 = vadd.f32 %v616, %v624
      %v645 = vadd.f32 %v617, %v624
      %v646 = vadd.f32 %v618, %v624
      %v647 = vadd.f32 %v619, %v624
      %v648 = vadd.f32 %v620, %v624
      %v649 = vadd.f32 %v621, %v624
      %v650 = vmax.f32 %v626, 0.0
      %v651 = vmax.f32 %v627, 0.0
      %v652 = vmax.f32 %v628, 0.0
      %v653 = vmax.f32 %v629, 0.0
      %v654 = vmax.f32 %v630, 0.0
      %v655 = vmax.f32 %v631, 0.0
      %v656 = vmax.f32 %v632, 0.0
      %v657 = vmax.f32 %v633, 0.0
      %v658 = vmax.f32 %v634, 0.0
      %v659 = vmax.f32 %v635, 0.0
      %v660 = vmax.f32 %v636, 0.0
      %v661 = vmax.f32 %v637, 0.0
      %v662 = vmax.f32 %v638, 0.0
      %v663 = vmax.f32 %v639, 0.0
      %v664 = vmax.f32 %v640, 0.0
      %v665 = vmax.f32 %v641, 0.0
      %v666 = vmax.f32 %v642, 0.0
      %v667 = vmax.f32 %v643, 0.0
      %v668 = vmax.f32 %v644, 0.0
      %v669 = vmax.f32 %v645, 0.0
      %v670 = vmax.f32 %v646, 0.0
      %v671 = vmax.f32 %v647, 0.0
      %v672 = vmax.f32 %v648, 0.0
      %v673 = vmax.f32 %v649, 0.0
      %v674 = vpack.c.bf16 %v650, %v650
      %v675 = vpack.c.bf16 %v651, %v651
      %v676 = vpack.c.bf16 %v652, %v652
      %v677 = vpack.c.bf16 %v653, %v653
      %v678 = vpack.c.bf16 %v654, %v654
      %v679 = vpack.c.bf16 %v655, %v655
      %v680 = vpack.c.bf16 %v656, %v656
      %v681 = vpack.c.bf16 %v657, %v657
      %v682 = vpack.c.bf16 %v658, %v658
      %v683 = vpack.c.bf16 %v659, %v659
      %v684 = vpack.c.bf16 %v660, %v660
      %v685 = vpack.c.bf16 %v661, %v661
      %v686 = vpack.c.bf16 %v662, %v662
      %v687 = vpack.c.bf16 %v663, %v663
      %v688 = vpack.c.bf16 %v664, %v664
      %v689 = vpack.c.bf16 %v665, %v665
      %v690 = vpack.c.bf16 %v666, %v666
      %v691 = vpack.c.bf16 %v667, %v667
      %v692 = vpack.c.bf16 %v668, %v668
      %v693 = vpack.c.bf16 %v669, %v669
      %v694 = vpack.c.bf16 %v670, %v670
      %v695 = vpack.c.bf16 %v671, %v671
      %v696 = vpack.c.bf16 %v672, %v672
      %v697 = vpack.c.bf16 %v673, %v673
      %vm722 = vcmask 1040384
      %vm723 = vcmask 1044484
      %vm724 = vmor %vm722, %vm723
      %v725 = vrot.slane %v674, 7
      %v726 = vrot.slane %v725, 4
      %v727 = vrot.slane %v675, 7
      %v728 = vsel %vm724, %v726, %v727
      %v729 = vrot.slane %v727, 4
      %v730 = vrot.slane %v676, 7
      %v731 = vrot.slane %v730, 4
      %v732 = vrot.slane %v677, 7
      %v733 = vsel %vm724, %v731, %v732
      %v734 = vrot.slane %v732, 4
      %v735 = vrot.slane %v678, 7
      %v736 = vrot.slane %v735, 4
      %v737 = vrot.slane %v679, 7
      %v738 = vsel %vm724, %v736, %v737
      %v739 = vrot.slane %v737, 4
      %v740 = vrot.slane %v680, 7
      %v741 = vrot.slane %v740, 4
      %v742 = vrot.slane %v681, 7
      %v743 = vsel %vm724, %v741, %v742
      %v744 = vrot.slane %v742, 4
      %v745 = vrot.slane %v682, 7
      %v746 = vrot.slane %v745, 4
      %v747 = vrot.slane %v683, 7
      %v748 = vsel %vm724, %v746, %v747
      %v749 = vrot.slane %v747, 4
      %v750 = vrot.slane %v684, 7
      %v751 = vrot.slane %v750, 4
      %v752 = vrot.slane %v685, 7
      %v753 = vsel %vm724, %v751, %v752
      %v754 = vrot.slane %v752, 4
      %v755 = vrot.slane %v686, 7
      %v756 = vrot.slane %v755, 4
      %v757 = vrot.slane %v687, 7
      %v758 = vsel %vm724, %v756, %v757
      %v759 = vrot.slane %v757, 4
      %v760 = vrot.slane %v688, 7
      %v761 = vrot.slane %v760, 4
      %v762 = vrot.slane %v689, 7
      %v763 = vsel %vm724, %v761, %v762
      %v764 = vrot.slane %v762, 4
      %v765 = vrot.slane %v690, 7
      %v766 = vrot.slane %v765, 4
      %v767 = vrot.slane %v691, 7
      %v768 = vsel %vm724, %v766, %v767
      %v769 = vrot.slane %v767, 4
      %v770 = vrot.slane %v692, 7
      %v771 = vrot.slane %v770, 4
      %v772 = vrot.slane %v693, 7
      %v773 = vsel %vm724, %v771, %v772
      %v774 = vrot.slane %v772, 4
      %v775 = vrot.slane %v694, 7
      %v776 = vrot.slane %v775, 4
      %v777 = vrot.slane %v695, 7
      %v778 = vsel %vm724, %v776, %v777
      %v779 = vrot.slane %v777, 4
      %v780 = vrot.slane %v696, 7
      %v781 = vrot.slane %v780, 4
      %v782 = vrot.slane %v697, 7
      %v783 = vsel %vm724, %v781, %v782
      %v784 = vrot.slane %v782, 4
      %821 = vst [vmem:[#allocation3] sm:$0xe] %v725
      %822 = vst [vmem:[#allocation3 + $0x4] sm:$0xf] %v728
      %823 = vst [vmem:[#allocation3 + $0x8] sm:$0x1] %v729
      %824 = vst [vmem:[#allocation3 + $0x10] sm:$0xe] %v730
      %825 = vst [vmem:[#allocation3 + $0x14] sm:$0xf] %v733
      %826 = vst [vmem:[#allocation3 + $0x18] sm:$0x1] %v734
      %827 = vst [vmem:[#allocation3 + $0x20] sm:$0xe] %v735
      %828 = vst [vmem:[#allocation3 + $0x24] sm:$0xf] %v738
      %829 = vst [vmem:[#allocation3 + $0x28] sm:$0x1] %v739
      %830 = vst [vmem:[#allocation3 + $0x30] sm:$0xe] %v740
      %831 = vst [vmem:[#allocation3 + $0x34] sm:$0xf] %v743
      %832 = vst [vmem:[#allocation3 + $0x38] sm:$0x1] %v744
      %833 = vst [vmem:[#allocation3 + $0x40] sm:$0xe] %v745
      %834 = vst [vmem:[#allocation3 + $0x44] sm:$0xf] %v748
      %835 = vst [vmem:[#allocation3 + $0x48] sm:$0x1] %v749
      %836 = vst [vmem:[#allocation3 + $0x50] sm:$0xe] %v750
      %837 = vst [vmem:[#allocation3 + $0x54] sm:$0xf] %v753
      %838 = vst [vmem:[#allocation3 + $0x58] sm:$0x1] %v754
      %839 = vst [vmem:[#allocation3 + $0x60] sm:$0xe] %v755
      %840 = vst [vmem:[#allocation3 + $0x64] sm:$0xf] %v758
      %841 = vst [vmem:[#allocation3 + $0x68] sm:$0x1] %v759
      %842 = vst [vmem:[#allocation3 + $0x70] sm:$0xe] %v760
      %843 = vst [vmem:[#allocation3 + $0x74] sm:$0xf] %v763
      %844 = vst [vmem:[#allocation3 + $0x78] sm:$0x1] %v764
      %845 = vst [vmem:[#allocation3 + $0x80] sm:$0xe] %v765
      %846 = vst [vmem:[#allocation3 + $0x84] sm:$0xf] %v768
      %847 = vst [vmem:[#allocation3 + $0x88] sm:$0x1] %v769
      %848 = vst [vmem:[#allocation3 + $0x90] sm:$0xe] %v770
      %849 = vst [vmem:[#allocation3 + $0x94] sm:$0xf] %v773
      %850 = vst [vmem:[#allocation3 + $0x98] sm:$0x1] %v774
      %851 = vst [vmem:[#allocation3 + $0xa0] sm:$0xe] %v775
      %852 = vst [vmem:[#allocation3 + $0xa4] sm:$0xf] %v778
      %853 = vst [vmem:[#allocation3 + $0xa8] sm:$0x1] %v779
      %854 = vst [vmem:[#allocation3 + $0xb0] sm:$0xe] %v780
      %855 = vst [vmem:[#allocation3 + $0xb4] sm:$0xf] %v783
      %856 = vst [vmem:[#allocation3 + $0xb8] sm:$0x1] %v784
      %857 = vst [vmem:[#allocation3] sm:$0x1] 0
      %858 = vst [vmem:[#allocation3 + $0x10] sm:$0x1] 0
      %859 = vst [vmem:[#allocation3 + $0x20] sm:$0x1] 0
      %860 = vst [vmem:[#allocation3 + $0x30] sm:$0x1] 0
      %861 = vst [vmem:[#allocation3 + $0x40] sm:$0x1] 0
      %862 = vst [vmem:[#allocation3 + $0x50] sm:$0x1] 0
      %863 = vst [vmem:[#allocation3 + $0x60] sm:$0x1] 0
      %864 = vst [vmem:[#allocation3 + $0x70] sm:$0x1] 0
      %865 = vst [vmem:[#allocation3 + $0x80] sm:$0x1] 0
      %866 = vst [vmem:[#allocation3 + $0x90] sm:$0x1] 0
      %867 = vst [vmem:[#allocation3 + $0xa0] sm:$0x1] 0
      %868 = vst [vmem:[#allocation3 + $0xb0] sm:$0x1] 0
      %869 = vst [vmem:[#allocation3 + $0x8] sm:$0xe] 0
      %870 = vst [vmem:[#allocation3 + $0xc] sm:$0x1] 0
      %871 = vst [vmem:[#allocation3 + $0x18] sm:$0xe] 0
      %872 = vst [vmem:[#allocation3 + $0x1c] sm:$0x1] 0
      %873 = vst [vmem:[#allocation3 + $0x28] sm:$0xe] 0
      %874 = vst [vmem:[#allocation3 + $0x2c] sm:$0x1] 0
      %875 = vst [vmem:[#allocation3 + $0x38] sm:$0xe] 0
      %876 = vst [vmem:[#allocation3 + $0x3c] sm:$0x1] 0
      %877 = vst [vmem:[#allocation3 + $0x48] sm:$0xe] 0
      %878 = vst [vmem:[#allocation3 + $0x4c] sm:$0x1] 0
      %879 = vst [vmem:[#allocation3 + $0x58] sm:$0xe] 0
      %880 = vst [vmem:[#allocation3 + $0x5c] sm:$0x1] 0
      %881 = vst [vmem:[#allocation3 + $0x68] sm:$0xe] 0
      %882 = vst [vmem:[#allocation3 + $0x6c] sm:$0x1] 0
      %883 = vst [vmem:[#allocation3 + $0x78] sm:$0xe] 0
      %884 = vst [vmem:[#allocation3 + $0x7c] sm:$0x1] 0
      %885 = vst [vmem:[#allocation3 + $0x88] sm:$0xe] 0
      %886 = vst [vmem:[#allocation3 + $0x8c] sm:$0x1] 0
      %887 = vst [vmem:[#allocation3 + $0x98] sm:$0xe] 0
      %888 = vst [vmem:[#allocation3 + $0x9c] sm:$0x1] 0
      %889 = vst [vmem:[#allocation3 + $0xa8] sm:$0xe] 0
      %890 = vst [vmem:[#allocation3 + $0xac] sm:$0x1] 0
      %891 = vst [vmem:[#allocation3 + $0xb8] sm:$0xe] 0
      %892 = vst [vmem:[#allocation3 + $0xbc] sm:$0x1] 0
      // Predicated region
      $region191: #{resblock_forward.1} parent=43 // pred_check
        %p893 = pneg %p271
      $region192: #{resblock_forward.1} parent=43 // pred_check_branch
        %895 = sbr.rel (%p893) target = $region194
      $region193: #{resblock_forward.1} parent=43 // pred_region
        %896 = vst [vmem:[#allocation3] sm:$0xf] 0
        %897 = vst [vmem:[#allocation3 + $0x4] sm:$0xf] 0
        %898 = vst [vmem:[#allocation3 + $0x8] sm:$0xf] 0
        %899 = vst [vmem:[#allocation3 + $0xc] sm:$0x1] 0
        %900 = vst [vmem:[#allocation3 + $0x10] sm:$0xf] 0
        %901 = vst [vmem:[#allocation3 + $0x14] sm:$0xf] 0
        %902 = vst [vmem:[#allocation3 + $0x18] sm:$0xf] 0
        %903 = vst [vmem:[#allocation3 + $0x1c] sm:$0x1] 0
      $region194: #{resblock_forward.1} parent=43 // pred_fallthru
        _
      %p904 = scmp.eq.s32.totalorder %s23, 1
      // Predicated region
      $region195: #{resblock_forward.1} parent=43 // pred_check
        %p905 = pneg %p904
      $region196: #{resblock_forward.1} parent=43 // pred_check_branch
        %907 = sbr.rel (%p905) target = $region198
      $region197: #{resblock_forward.1} parent=43 // pred_region
        %s908 = scalar_lea.vmem [#allocation3], 160
        %909 = vst [vmem:[%s908] sm:$0xf] 0
        %910 = vst [vmem:[%s908 + $0x4] sm:$0xf] 0
        %911 = vst [vmem:[%s908 + $0x8] sm:$0xf] 0
        %912 = vst [vmem:[%s908 + $0xc] sm:$0x1] 0
        %913 = vst [vmem:[%s908 + $0x10] sm:$0xf] 0
        %914 = vst [vmem:[%s908 + $0x14] sm:$0xf] 0
        %915 = vst [vmem:[%s908 + $0x18] sm:$0xf] 0
        %916 = vst [vmem:[%s908 + $0x1c] sm:$0x1] 0
      $region198: #{resblock_forward.1} parent=43 // pred_fallthru
        _
      %v917 = vld [vmem:[#allocation3] sm:$0xf]
      %v918 = vld [vmem:[#allocation3 + $0x4] sm:$0xf]
      %v919 = vld [vmem:[#allocation3 + $0x8] sm:$0xf]
      %v920 = vld [vmem:[#allocation3 + $0x10] sm:$0xf]
      %v921 = vld [vmem:[#allocation3 + $0x14] sm:$0xf]
      %v922 = vld [vmem:[#allocation3 + $0x18] sm:$0xf]
      %v923 = vld [vmem:[#allocation3 + $0x20] sm:$0xf]
      %v924 = vld [vmem:[#allocation3 + $0x24] sm:$0xf]
      %v925 = vld [vmem:[#allocation3 + $0x28] sm:$0xf]
      %v926 = vld [vmem:[#allocation3 + $0x30] sm:$0xf]
      %v927 = vld [vmem:[#allocation3 + $0x34] sm:$0xf]
      %v928 = vld [vmem:[#allocation3 + $0x38] sm:$0xf]
      %v929 = vld [vmem:[#allocation3 + $0x40] sm:$0xf]
      %v930 = vld [vmem:[#allocation3 + $0x44] sm:$0xf]
      %v931 = vld [vmem:[#allocation3 + $0x48] sm:$0xf]
      %v932 = vld [vmem:[#allocation3 + $0x50] sm:$0xf]
      %v933 = vld [vmem:[#allocation3 + $0x54] sm:$0xf]
      %v934 = vld [vmem:[#allocation3 + $0x58] sm:$0xf]
      %v935 = vld [vmem:[#allocation3 + $0x60] sm:$0xf]
      %v936 = vld [vmem:[#allocation3 + $0x64] sm:$0xf]
      %v937 = vld [vmem:[#allocation3 + $0x68] sm:$0xf]
      %v938 = vld [vmem:[#allocation3 + $0x70] sm:$0xf]
      %v939 = vld [vmem:[#allocation3 + $0x74] sm:$0xf]
      %v940 = vld [vmem:[#allocation3 + $0x78] sm:$0xf]
      %v941 = vld [vmem:[#allocation3 + $0x80] sm:$0xf]
      %v942 = vld [vmem:[#allocation3 + $0x84] sm:$0xf]
      %v943 = vld [vmem:[#allocation3 + $0x88] sm:$0xf]
      %v944 = vld [vmem:[#allocation3 + $0x90] sm:$0xf]
      %v945 = vld [vmem:[#allocation3 + $0x94] sm:$0xf]
      %v946 = vld [vmem:[#allocation3 + $0x98] sm:$0xf]
      %v947 = vld [vmem:[%s1] sm:$0xf]
      %v948 = vld [vmem:[%s1 + $0x4] sm:$0xf]
      %v949 = vld [vmem:[%s1 + $0x8] sm:$0xf]
      %v950 = vld [vmem:[%s1 + $0xc] sm:$0xf]
      %v951 = vld [vmem:[%s1 + $0x10] sm:$0xf]
      %v952 = vld [vmem:[%s1 + $0x14] sm:$0xf]
      %v953 = vld [vmem:[%s1 + $0x18] sm:$0xf]
      %v954 = vld [vmem:[%s1 + $0x1c] sm:$0xf]
      %v955 = vld [vmem:[%s1 + $0x20] sm:$0xf]
      %v956 = vld [vmem:[%s1 + $0x24] sm:$0xf]
      %v957 = vld [vmem:[%s1 + $0x28] sm:$0xf]
      %v958 = vld [vmem:[%s1 + $0x2c] sm:$0xf]
      %v959 = vld [vmem:[%s1 + $0x30] sm:$0xf]
      %v960 = vld [vmem:[%s1 + $0x34] sm:$0xf]
      %v961 = vld [vmem:[%s1 + $0x38] sm:$0xf]
      %v962 = vld [vmem:[%s1 + $0x3c] sm:$0xf]
      %v963 = vld [vmem:[#allocation3 + $0xc] sm:$0x1]
      %v964 = vld [vmem:[#allocation3 + $0x1c] sm:$0x1]
      %v965 = vld [vmem:[#allocation3 + $0x2c] sm:$0x1]
      %v966 = vld [vmem:[#allocation3 + $0x3c] sm:$0x1]
      %v967 = vld [vmem:[#allocation3 + $0x4c] sm:$0x1]
      %v968 = vld [vmem:[#allocation3 + $0x5c] sm:$0x1]
      %v969 = vld [vmem:[#allocation3 + $0x6c] sm:$0x1]
      %v970 = vld [vmem:[#allocation3 + $0x7c] sm:$0x1]
      %v971 = vld [vmem:[#allocation3 + $0x8c] sm:$0x1]
      %v972 = vld [vmem:[#allocation3 + $0x9c] sm:$0x1]
      %vm973 = vsmask.f32 3328
      %vm974 = vsmask.f32 7440
      %vm975 = vmor %vm973, %vm974
      %v977 = vshrl.u32 %v917, 16
      %v979 = vrot.slane %v977, 4
      %v980 = vshll.u32 %v917, 16
      %v982 = vrot.slane %v980, 5
      %v983 = vor.u32 %v979, %v982
      %v984 = vrot.slane %v983, 4
      %v986 = vshll.u32 %v918, 16
      %v988 = vrot.slane %v986, 5
      %v989 = vsel %vm975, %v984, %v988
      %v990 = vshrl.u32 %v918, 16
      %v992 = vrot.slane %v990, 4
      %v993 = vor.u32 %v992, %v988
      %v994 = vrot.slane %v993, 4
      %v996 = vshll.u32 %v919, 16
      %v998 = vrot.slane %v996, 5
      %v999 = vsel %vm975, %v994, %v998
      %v1000 = vshrl.u32 %v919, 16
      %v1002 = vrot.slane %v1000, 4
      %v1003 = vor.u32 %v1002, %v998
      %v1004 = vrot.slane %v1003, 4
      %v1006 = vshll.u32 %v963, 16
      %v1008 = vrot.slane %v1006, 5
      %v1009 = vsel %vm975, %v1004, %v1008
      %v1011 = vshrl.u32 %v920, 16
      %v1013 = vrot.slane %v1011, 4
      %v1014 = vshll.u32 %v920, 16
      %v1016 = vrot.slane %v1014, 5
      %v1017 = vor.u32 %v1013, %v1016
      %v1018 = vrot.slane %v1017, 4
      %v1020 = vshll.u32 %v921, 16
      %v1022 = vrot.slane %v1020, 5
      %v1023 = vsel %vm975, %v1018, %v1022
      %v1024 = vshrl.u32 %v921, 16
      %v1026 = vrot.slane %v1024, 4
      %v1027 = vor.u32 %v1026, %v1022
      %v1028 = vrot.slane %v1027, 4
      %v1030 = vshll.u32 %v922, 16
      %v1032 = vrot.slane %v1030, 5
      %v1033 = vsel %vm975, %v1028, %v1032
      %v1034 = vshrl.u32 %v922, 16
      %v1036 = vrot.slane %v1034, 4
      %v1037 = vor.u32 %v1036, %v1032
      %v1038 = vrot.slane %v1037, 4
      %v1040 = vshll.u32 %v964, 16
      %v1042 = vrot.slane %v1040, 5
      %v1043 = vsel %vm975, %v1038, %v1042
      %v1045 = vshrl.u32 %v923, 16
      %v1047 = vrot.slane %v1045, 4
      %v1048 = vshll.u32 %v923, 16
      %v1050 = vrot.slane %v1048, 5
      %v1051 = vor.u32 %v1047, %v1050
      %v1052 = vrot.slane %v1051, 4
      %v1054 = vshll.u32 %v924, 16
      %v1056 = vrot.slane %v1054, 5
      %v1057 = vsel %vm975, %v1052, %v1056
      %v1058 = vshrl.u32 %v924, 16
      %v1060 = vrot.slane %v1058, 4
      %v1061 = vor.u32 %v1060, %v1056
      %v1062 = vrot.slane %v1061, 4
      %v1064 = vshll.u32 %v925, 16
      %v1066 = vrot.slane %v1064, 5
      %v1067 = vsel %vm975, %v1062, %v1066
      %v1068 = vshrl.u32 %v925, 16
      %v1070 = vrot.slane %v1068, 4
      %v1071 = vor.u32 %v1070, %v1066
      %v1072 = vrot.slane %v1071, 4
      %v1074 = vshll.u32 %v965, 16
      %v1076 = vrot.slane %v1074, 5
      %v1077 = vsel %vm975, %v1072, %v1076
      %v1079 = vshrl.u32 %v926, 16
      %v1081 = vrot.slane %v1079, 4
      %v1082 = vshll.u32 %v926, 16
      %v1084 = vrot.slane %v1082, 5
      %v1085 = vor.u32 %v1081, %v1084
      %v1086 = vrot.slane %v1085, 4
      %v1088 = vshll.u32 %v927, 16
      %v1090 = vrot.slane %v1088, 5
      %v1091 = vsel %vm975, %v1086, %v1090
      %v1092 = vshrl.u32 %v927, 16
      %v1094 = vrot.slane %v1092, 4
      %v1095 = vor.u32 %v1094, %v1090
      %v1096 = vrot.slane %v1095, 4
      %v1098 = vshll.u32 %v928, 16
      %v1100 = vrot.slane %v1098, 5
      %v1101 = vsel %vm975, %v1096, %v1100
      %v1102 = vshrl.u32 %v928, 16
      %v1104 = vrot.slane %v1102, 4
      %v1105 = vor.u32 %v1104, %v1100
      %v1106 = vrot.slane %v1105, 4
      %v1108 = vshll.u32 %v966, 16
      %v1110 = vrot.slane %v1108, 5
      %v1111 = vsel %vm975, %v1106, %v1110
      %v1113 = vshrl.u32 %v929, 16
      %v1115 = vrot.slane %v1113, 4
      %v1116 = vshll.u32 %v929, 16
      %v1118 = vrot.slane %v1116, 5
      %v1119 = vor.u32 %v1115, %v1118
      %v1120 = vrot.slane %v1119, 4
      %v1122 = vshll.u32 %v930, 16
      %v1124 = vrot.slane %v1122, 5
      %v1125 = vsel %vm975, %v1120, %v1124
      %v1126 = vshrl.u32 %v930, 16
      %v1128 = vrot.slane %v1126, 4
      %v1129 = vor.u32 %v1128, %v1124
      %v1130 = vrot.slane %v1129, 4
      %v1132 = vshll.u32 %v931, 16
      %v1134 = vrot.slane %v1132, 5
      %v1135 = vsel %vm975, %v1130, %v1134
      %v1136 = vshrl.u32 %v931, 16
      %v1138 = vrot.slane %v1136, 4
      %v1139 = vor.u32 %v1138, %v1134
      %v1140 = vrot.slane %v1139, 4
      %v1142 = vshll.u32 %v967, 16
      %v1144 = vrot.slane %v1142, 5
      %v1145 = vsel %vm975, %v1140, %v1144
      %v1147 = vshrl.u32 %v932, 16
      %v1149 = vrot.slane %v1147, 4
      %v1150 = vshll.u32 %v932, 16
      %v1152 = vrot.slane %v1150, 5
      %v1153 = vor.u32 %v1149, %v1152
      %v1154 = vrot.slane %v1153, 4
      %v1156 = vshll.u32 %v933, 16
      %v1158 = vrot.slane %v1156, 5
      %v1159 = vsel %vm975, %v1154, %v1158
      %v1160 = vshrl.u32 %v933, 16
      %v1162 = vrot.slane %v1160, 4
      %v1163 = vor.u32 %v1162, %v1158
      %v1164 = vrot.slane %v1163, 4
      %v1166 = vshll.u32 %v934, 16
      %v1168 = vrot.slane %v1166, 5
      %v1169 = vsel %vm975, %v1164, %v1168
      %v1170 = vshrl.u32 %v934, 16
      %v1172 = vrot.slane %v1170, 4
      %v1173 = vor.u32 %v1172, %v1168
      %v1174 = vrot.slane %v1173, 4
      %v1176 = vshll.u32 %v968, 16
      %v1178 = vrot.slane %v1176, 5
      %v1179 = vsel %vm975, %v1174, %v1178
      %v1181 = vshrl.u32 %v935, 16
      %v1183 = vrot.slane %v1181, 4
      %v1184 = vshll.u32 %v935, 16
      %v1186 = vrot.slane %v1184, 5
      %v1187 = vor.u32 %v1183, %v1186
      %v1188 = vrot.slane %v1187, 4
      %v1190 = vshll.u32 %v936, 16
      %v1192 = vrot.slane %v1190, 5
      %v1193 = vsel %vm975, %v1188, %v1192
      %v1194 = vshrl.u32 %v936, 16
      %v1196 = vrot.slane %v1194, 4
      %v1197 = vor.u32 %v1196, %v1192
      %v1198 = vrot.slane %v1197, 4
      %v1200 = vshll.u32 %v937, 16
      %v1202 = vrot.slane %v1200, 5
      %v1203 = vsel %vm975, %v1198, %v1202
      %v1204 = vshrl.u32 %v937, 16
      %v1206 = vrot.slane %v1204, 4
      %v1207 = vor.u32 %v1206, %v1202
      %v1208 = vrot.slane %v1207, 4
      %v1210 = vshll.u32 %v969, 16
      %v1212 = vrot.slane %v1210, 5
      %v1213 = vsel %vm975, %v1208, %v1212
      %v1215 = vshrl.u32 %v938, 16
      %v1217 = vrot.slane %v1215, 4
      %v1218 = vshll.u32 %v938, 16
      %v1220 = vrot.slane %v1218, 5
      %v1221 = vor.u32 %v1217, %v1220
      %v1222 = vrot.slane %v1221, 4
      %v1224 = vshll.u32 %v939, 16
      %v1226 = vrot.slane %v1224, 5
      %v1227 = vsel %vm975, %v1222, %v1226
      %v1228 = vshrl.u32 %v939, 16
      %v1230 = vrot.slane %v1228, 4
      %v1231 = vor.u32 %v1230, %v1226
      %v1232 = vrot.slane %v1231, 4
      %v1234 = vshll.u32 %v940, 16
      %v1236 = vrot.slane %v1234, 5
      %v1237 = vsel %vm975, %v1232, %v1236
      %v1238 = vshrl.u32 %v940, 16
      %v1240 = vrot.slane %v1238, 4
      %v1241 = vor.u32 %v1240, %v1236
      %v1242 = vrot.slane %v1241, 4
      %v1244 = vshll.u32 %v970, 16
      %v1246 = vrot.slane %v1244, 5
      %v1247 = vsel %vm975, %v1242, %v1246
      %v1249 = vshrl.u32 %v941, 16
      %v1251 = vrot.slane %v1249, 4
      %v1252 = vshll.u32 %v941, 16
      %v1254 = vrot.slane %v1252, 5
      %v1255 = vor.u32 %v1251, %v1254
      %v1256 = vrot.slane %v1255, 4
      %v1258 = vshll.u32 %v942, 16
      %v1260 = vrot.slane %v1258, 5
      %v1261 = vsel %vm975, %v1256, %v1260
      %v1262 = vshrl.u32 %v942, 16
      %v1264 = vrot.slane %v1262, 4
      %v1265 = vor.u32 %v1264, %v1260
      %v1266 = vrot.slane %v1265, 4
      %v1268 = vshll.u32 %v943, 16
      %v1270 = vrot.slane %v1268, 5
      %v1271 = vsel %vm975, %v1266, %v1270
      %v1272 = vshrl.u32 %v943, 16
      %v1274 = vrot.slane %v1272, 4
      %v1275 = vor.u32 %v1274, %v1270
      %v1276 = vrot.slane %v1275, 4
      %v1278 = vshll.u32 %v971, 16
      %v1280 = vrot.slane %v1278, 5
      %v1281 = vsel %vm975, %v1276, %v1280
      %v1283 = vshrl.u32 %v944, 16
      %v1285 = vrot.slane %v1283, 4
      %v1286 = vshll.u32 %v944, 16
      %v1288 = vrot.slane %v1286, 5
      %v1289 = vor.u32 %v1285, %v1288
      %v1290 = vrot.slane %v1289, 4
      %v1292 = vshll.u32 %v945, 16
      %v1294 = vrot.slane %v1292, 5
      %v1295 = vsel %vm975, %v1290, %v1294
      %v1296 = vshrl.u32 %v945, 16
      %v1298 = vrot.slane %v1296, 4
      %v1299 = vor.u32 %v1298, %v1294
      %v1300 = vrot.slane %v1299, 4
      %v1302 = vshll.u32 %v946, 16
      %v1304 = vrot.slane %v1302, 5
      %v1305 = vsel %vm975, %v1300, %v1304
      %v1306 = vshrl.u32 %v946, 16
      %v1308 = vrot.slane %v1306, 4
      %v1309 = vor.u32 %v1308, %v1304
      %v1310 = vrot.slane %v1309, 4
      %v1312 = vshll.u32 %v972, 16
      %v1314 = vrot.slane %v1312, 5
      %v1315 = vsel %vm975, %v1310, %v1314
      %s1316 = scalar_lea.vmem %s1, 64
      %v1317 = vld [vmem:[%s1316] sm:$0xf]
      %v1318 = vld [vmem:[%s1316 + $0x4] sm:$0xf]
      %v1319 = vld [vmem:[%s1316 + $0x8] sm:$0xf]
      %v1320 = vld [vmem:[%s1316 + $0xc] sm:$0xf]
      %v1321 = vld [vmem:[%s1316 + $0x10] sm:$0xf]
      %v1322 = vld [vmem:[%s1316 + $0x14] sm:$0xf]
      %v1323 = vld [vmem:[%s1316 + $0x18] sm:$0xf]
      %v1324 = vld [vmem:[%s1316 + $0x1c] sm:$0xf]
      %v1325 = vld [vmem:[%s1316 + $0x20] sm:$0xf]
      %v1326 = vld [vmem:[%s1316 + $0x24] sm:$0xf]
      %v1327 = vld [vmem:[%s1316 + $0x28] sm:$0xf]
      %v1328 = vld [vmem:[%s1316 + $0x2c] sm:$0xf]
      %v1329 = vld [vmem:[%s1316 + $0x30] sm:$0xf]
      %v1330 = vld [vmem:[%s1316 + $0x34] sm:$0xf]
      %v1331 = vld [vmem:[%s1316 + $0x38] sm:$0xf]
      %v1332 = vld [vmem:[%s1316 + $0x3c] sm:$0xf]
      %v1333 = vunpack.c.l.b16 %v989
      %v1334 = vunpack.c.l.b16 %v999
      %v1335 = vunpack.c.l.b16 %v1009
      %v1336 = vunpack.c.l.b16 %v1023
      %v1337 = vunpack.c.l.b16 %v1033
      %v1338 = vunpack.c.l.b16 %v1043
      %v1339 = vunpack.c.l.b16 %v1057
      %v1340 = vunpack.c.l.b16 %v1067
      %v1341 = vunpack.c.l.b16 %v1077
      %v1342 = vunpack.c.l.b16 %v1091
      %v1343 = vunpack.c.l.b16 %v1101
      %v1344 = vunpack.c.l.b16 %v1111
      %v1345 = vunpack.c.l.b16 %v1125
      %v1346 = vunpack.c.l.b16 %v1135
      %v1347 = vunpack.c.l.b16 %v1145
      %v1348 = vunpack.c.l.b16 %v1159
      %v1349 = vunpack.c.l.b16 %v1169
      %v1350 = vunpack.c.l.b16 %v1179
      %v1351 = vunpack.c.l.b16 %v1193
      %v1352 = vunpack.c.l.b16 %v1203
      %v1353 = vunpack.c.l.b16 %v1213
      %v1354 = vunpack.c.l.b16 %v1227
      %v1355 = vunpack.c.l.b16 %v1237
      %v1356 = vunpack.c.l.b16 %v1247
      %v1357 = vunpack.c.l.b16 %v1261
      %v1358 = vunpack.c.l.b16 %v1271
      %v1359 = vunpack.c.l.b16 %v1281
      %v1360 = vunpack.c.l.b16 %v1295
      %v1361 = vunpack.c.l.b16 %v1305
      %v1362 = vunpack.c.l.b16 %v1315
      %v1363 = vpack.c.b16 %v1334, %v1333
      %v1364 = vpack.c.b16 %v1336, %v1335
      %v1365 = vpack.c.b16 %v1338, %v1337
      %v1366 = vpack.c.b16 %v1340, %v1339
      %v1367 = vpack.c.b16 %v1342, %v1341
      %v1368 = vpack.c.b16 %v1344, %v1343
      %v1369 = vpack.c.b16 %v1346, %v1345
      %v1370 = vpack.c.b16 %v1348, %v1347
      %v1371 = vpack.c.b16 %v1350, %v1349
      %v1372 = vpack.c.b16 %v1352, %v1351
      %v1373 = vpack.c.b16 %v1354, %v1353
      %v1374 = vpack.c.b16 %v1356, %v1355
      %v1375 = vpack.c.b16 %v1358, %v1357
      %v1376 = vpack.c.b16 %v1360, %v1359
      %v1377 = vpack.c.b16 %v1362, %v1361
      %v1409 = vunpack.c.l.b16 %v1317
      %v1410 = vunpack.c.l.b16 %v1318
      %v1411 = vunpack.c.l.b16 %v1319
      %v1412 = vunpack.c.l.b16 %v1320
      %v1413 = vunpack.c.l.b16 %v1321
      %v1414 = vunpack.c.l.b16 %v1322
      %v1415 = vunpack.c.l.b16 %v1323
      %v1416 = vunpack.c.l.b16 %v1324
      %v1417 = vunpack.c.l.b16 %v1325
      %v1418 = vunpack.c.l.b16 %v1326
      %v1419 = vunpack.c.l.b16 %v1327
      %v1420 = vunpack.c.l.b16 %v1328
      %v1421 = vunpack.c.l.b16 %v1329
      %v1422 = vunpack.c.l.b16 %v1330
      %v1423 = vunpack.c.l.b16 %v1331
      %v1424 = vunpack.c.l.b16 %v1332
      %v1425 = vpack.c.b16 %v1410, %v1409
      %v1426 = vpack.c.b16 %v1412, %v1411
      %v1427 = vpack.c.b16 %v1414, %v1413
      %v1428 = vpack.c.b16 %v1416, %v1415
      %v1429 = vpack.c.b16 %v1418, %v1417
      %v1430 = vpack.c.b16 %v1420, %v1419
      %v1431 = vpack.c.b16 %v1422, %v1421
      %v1432 = vpack.c.b16 %v1424, %v1423
      %1441 = vmatpush.bf16.msra.mxu0 %v1432
      %1442 = vmatpush.bf16.msra.mxu0 %v1431
      %1443 = vmatpush.bf16.msra.mxu0 %v1430
      %1444 = vmatpush.bf16.msra.mxu0 %v1429
      %1445 = vmatpush.bf16.msra.mxu0 %v1428
      %1446 = vmatpush.bf16.msra.mxu0 %v1427
      %1447 = vmatpush.bf16.msra.mxu0 %v1426
      %1448 = vmatpush.bf16.msra.mxu0 %v1425
      %1449 = vmatmul.bf16.gmra.mxu0 %v1363
      %v1450 = vpop.f32.mrf.mxu0
      %v1451 = vadd.f32 0.0, %v1450
      %v1452 = vpop.f32.mrf.mxu0
      %v1453 = vadd.f32 0.0, %v1452
      %1454 = vmatmul.bf16.gmra.mxu0 %v1364
      %v1455 = vpop.f32.mrf.mxu0
      %v1456 = vadd.f32 0.0, %v1455
      %v1457 = vpop.f32.mrf.mxu0
      %v1458 = vadd.f32 0.0, %v1457
      %1459 = vmatmul.bf16.gmra.mxu0 %v1365
      %v1460 = vpop.f32.mrf.mxu0
      %v1461 = vadd.f32 0.0, %v1460
      %v1462 = vpop.f32.mrf.mxu0
      %v1463 = vadd.f32 0.0, %v1462
      %1464 = vmatmul.bf16.gmra.mxu0 %v1366
      %v1465 = vpop.f32.mrf.mxu0
      %v1466 = vadd.f32 0.0, %v1465
      %v1467 = vpop.f32.mrf.mxu0
      %v1468 = vadd.f32 0.0, %v1467
      %1469 = vmatmul.bf16.gmra.mxu0 %v1367
      %v1470 = vpop.f32.mrf.mxu0
      %v1471 = vadd.f32 0.0, %v1470
      %v1472 = vpop.f32.mrf.mxu0
      %v1473 = vadd.f32 0.0, %v1472
      %1474 = vmatmul.bf16.gmra.mxu0 %v1368
      %v1475 = vpop.f32.mrf.mxu0
      %v1476 = vadd.f32 0.0, %v1475
      %v1477 = vpop.f32.mrf.mxu0
      %v1478 = vadd.f32 0.0, %v1477
      %1479 = vmatmul.bf16.gmra.mxu0 %v1369
      %v1480 = vpop.f32.mrf.mxu0
      %v1481 = vadd.f32 0.0, %v1480
      %v1482 = vpop.f32.mrf.mxu0
      %v1483 = vadd.f32 0.0, %v1482
      %1484 = vmatmul.bf16.gmra.mxu0 %v1370
      %v1485 = vpop.f32.mrf.mxu0
      %v1486 = vadd.f32 0.0, %v1485
      %v1487 = vpop.f32.mrf.mxu0
      %v1488 = vadd.f32 0.0, %v1487
      %1489 = vmatmul.bf16.gmra.mxu0 %v1371
      %v1490 = vpop.f32.mrf.mxu0
      %v1491 = vadd.f32 0.0, %v1490
      %v1492 = vpop.f32.mrf.mxu0
      %v1493 = vadd.f32 0.0, %v1492
      %1494 = vmatmul.bf16.gmra.mxu0 %v1372
      %v1495 = vpop.f32.mrf.mxu0
      %v1496 = vadd.f32 0.0, %v1495
      %v1497 = vpop.f32.mrf.mxu0
      %v1498 = vadd.f32 0.0, %v1497
      %1499 = vmatmul.bf16.gmra.mxu0 %v1373
      %v1500 = vpop.f32.mrf.mxu0
      %v1501 = vadd.f32 0.0, %v1500
      %v1502 = vpop.f32.mrf.mxu0
      %v1503 = vadd.f32 0.0, %v1502
      %1504 = vmatmul.bf16.gmra.mxu0 %v1374
      %v1505 = vpop.f32.mrf.mxu0
      %v1506 = vadd.f32 0.0, %v1505
      %v1507 = vpop.f32.mrf.mxu0
      %v1508 = vadd.f32 0.0, %v1507
      %1509 = vmatmul.bf16.gmra.mxu0 %v1375
      %v1510 = vpop.f32.mrf.mxu0
      %v1511 = vadd.f32 0.0, %v1510
      %v1512 = vpop.f32.mrf.mxu0
      %v1513 = vadd.f32 0.0, %v1512
      %1514 = vmatmul.bf16.gmra.mxu0 %v1376
      %v1515 = vpop.f32.mrf.mxu0
      %v1516 = vadd.f32 0.0, %v1515
      %v1517 = vpop.f32.mrf.mxu0
      %v1518 = vadd.f32 0.0, %v1517
      %1519 = vmatmul.bf16.gmra.mxu0 %v1377
      %v1520 = vpop.f32.mrf.mxu0
      %v1521 = vadd.f32 0.0, %v1520
      %v1522 = vpop.f32.mrf.mxu0
      %v1523 = vadd.f32 0.0, %v1522
      %1524 = vdwg.mxu0
      %v1555 = vunpack.c.l.b16 %v917
      %v1556 = vunpack.c.l.b16 %v918
      %v1557 = vunpack.c.l.b16 %v919
      %v1558 = vunpack.c.l.b16 %v920
      %v1559 = vunpack.c.l.b16 %v921
      %v1560 = vunpack.c.l.b16 %v922
      %v1561 = vunpack.c.l.b16 %v923
      %v1562 = vunpack.c.l.b16 %v924
      %v1563 = vunpack.c.l.b16 %v925
      %v1564 = vunpack.c.l.b16 %v926
      %v1565 = vunpack.c.l.b16 %v927
      %v1566 = vunpack.c.l.b16 %v928
      %v1567 = vunpack.c.l.b16 %v929
      %v1568 = vunpack.c.l.b16 %v930
      %v1569 = vunpack.c.l.b16 %v931
      %v1570 = vunpack.c.l.b16 %v932
      %v1571 = vunpack.c.l.b16 %v933
      %v1572 = vunpack.c.l.b16 %v934
      %v1573 = vunpack.c.l.b16 %v935
      %v1574 = vunpack.c.l.b16 %v936
      %v1575 = vunpack.c.l.b16 %v937
      %v1576 = vunpack.c.l.b16 %v938
      %v1577 = vunpack.c.l.b16 %v939
      %v1578 = vunpack.c.l.b16 %v940
      %v1579 = vunpack.c.l.b16 %v941
      %v1580 = vunpack.c.l.b16 %v942
      %v1581 = vunpack.c.l.b16 %v943
      %v1582 = vunpack.c.l.b16 %v944
      %v1583 = vunpack.c.l.b16 %v945
      %v1584 = vunpack.c.l.b16 %v946
      %v1585 = vpack.c.b16 %v1556, %v1555
      %v1586 = vpack.c.b16 %v1558, %v1557
      %v1587 = vpack.c.b16 %v1560, %v1559
      %v1588 = vpack.c.b16 %v1562, %v1561
      %v1589 = vpack.c.b16 %v1564, %v1563
      %v1590 = vpack.c.b16 %v1566, %v1565
      %v1591 = vpack.c.b16 %v1568, %v1567
      %v1592 = vpack.c.b16 %v1570, %v1569
      %v1593 = vpack.c.b16 %v1572, %v1571
      %v1594 = vpack.c.b16 %v1574, %v1573
      %v1595 = vpack.c.b16 %v1576, %v1575
      %v1596 = vpack.c.b16 %v1578, %v1577
      %v1597 = vpack.c.b16 %v1580, %v1579
      %v1598 = vpack.c.b16 %v1582, %v1581
      %v1599 = vpack.c.b16 %v1584, %v1583
      %v1631 = vunpack.c.l.b16 %v947
      %v1632 = vunpack.c.l.b16 %v948
      %v1633 = vunpack.c.l.b16 %v949
      %v1634 = vunpack.c.l.b16 %v950
      %v1635 = vunpack.c.l.b16 %v951
      %v1636 = vunpack.c.l.b16 %v952
      %v1637 = vunpack.c.l.b16 %v953
      %v1638 = vunpack.c.l.b16 %v954
      %v1639 = vunpack.c.l.b16 %v955
      %v1640 = vunpack.c.l.b16 %v956
      %v1641 = vunpack.c.l.b16 %v957
      %v1642 = vunpack.c.l.b16 %v958
      %v1643 = vunpack.c.l.b16 %v959
      %v1644 = vunpack.c.l.b16 %v960
      %v1645 = vunpack.c.l.b16 %v961
      %v1646 = vunpack.c.l.b16 %v962
      %v1647 = vpack.c.b16 %v1632, %v1631
      %v1648 = vpack.c.b16 %v1634, %v1633
      %v1649 = vpack.c.b16 %v1636, %v1635
      %v1650 = vpack.c.b16 %v1638, %v1637
      %v1651 = vpack.c.b16 %v1640, %v1639
      %v1652 = vpack.c.b16 %v1642, %v1641
      %v1653 = vpack.c.b16 %v1644, %v1643
      %v1654 = vpack.c.b16 %v1646, %v1645
      %1663 = vmatpush.bf16.msra.mxu0 %v1654
      %1664 = vmatpush.bf16.msra.mxu0 %v1653
      %1665 = vmatpush.bf16.msra.mxu0 %v1652
      %1666 = vmatpush.bf16.msra.mxu0 %v1651
      %1667 = vmatpush.bf16.msra.mxu0 %v1650
      %1668 = vmatpush.bf16.msra.mxu0 %v1649
      %1669 = vmatpush.bf16.msra.mxu0 %v1648
      %1670 = vmatpush.bf16.msra.mxu0 %v1647
      %1671 = vmatmul.bf16.gmra.mxu0 %v1585
      %v1672 = vpop.f32.mrf.mxu0
      %v1673 = vadd.f32 %v1451, %v1672
      %v1674 = vpop.f32.mrf.mxu0
      %v1675 = vadd.f32 %v1453, %v1674
      %1676 = vmatmul.bf16.gmra.mxu0 %v1586
      %v1677 = vpop.f32.mrf.mxu0
      %v1678 = vadd.f32 %v1456, %v1677
      %v1679 = vpop.f32.mrf.mxu0
      %v1680 = vadd.f32 %v1458, %v1679
      %1681 = vmatmul.bf16.gmra.mxu0 %v1587
      %v1682 = vpop.f32.mrf.mxu0
      %v1683 = vadd.f32 %v1461, %v1682
      %v1684 = vpop.f32.mrf.mxu0
      %v1685 = vadd.f32 %v1463, %v1684
      %1686 = vmatmul.bf16.gmra.mxu0 %v1588
      %v1687 = vpop.f32.mrf.mxu0
      %v1688 = vadd.f32 %v1466, %v1687
      %v1689 = vpop.f32.mrf.mxu0
      %v1690 = vadd.f32 %v1468, %v1689
      %1691 = vmatmul.bf16.gmra.mxu0 %v1589
      %v1692 = vpop.f32.mrf.mxu0
      %v1693 = vadd.f32 %v1471, %v1692
      %v1694 = vpop.f32.mrf.mxu0
      %v1695 = vadd.f32 %v1473, %v1694
      %1696 = vmatmul.bf16.gmra.mxu0 %v1590
      %v1697 = vpop.f32.mrf.mxu0
      %v1698 = vadd.f32 %v1476, %v1697
      %v1699 = vpop.f32.mrf.mxu0
      %v1700 = vadd.f32 %v1478, %v1699
      %1701 = vmatmul.bf16.gmra.mxu0 %v1591
      %v1702 = vpop.f32.mrf.mxu0
      %v1703 = vadd.f32 %v1481, %v1702
      %v1704 = vpop.f32.mrf.mxu0
      %v1705 = vadd.f32 %v1483, %v1704
      %1706 = vmatmul.bf16.gmra.mxu0 %v1592
      %v1707 = vpop.f32.mrf.mxu0
      %v1708 = vadd.f32 %v1486, %v1707
      %v1709 = vpop.f32.mrf.mxu0
      %v1710 = vadd.f32 %v1488, %v1709
      %1711 = vmatmul.bf16.gmra.mxu0 %v1593
      %v1712 = vpop.f32.mrf.mxu0
      %v1713 = vadd.f32 %v1491, %v1712
      %v1714 = vpop.f32.mrf.mxu0
      %v1715 = vadd.f32 %v1493, %v1714
      %1716 = vmatmul.bf16.gmra.mxu0 %v1594
      %v1717 = vpop.f32.mrf.mxu0
      %v1718 = vadd.f32 %v1496, %v1717
      %v1719 = vpop.f32.mrf.mxu0
      %v1720 = vadd.f32 %v1498, %v1719
      %1721 = vmatmul.bf16.gmra.mxu0 %v1595
      %v1722 = vpop.f32.mrf.mxu0
      %v1723 = vadd.f32 %v1501, %v1722
      %v1724 = vpop.f32.mrf.mxu0
      %v1725 = vadd.f32 %v1503, %v1724
      %1726 = vmatmul.bf16.gmra.mxu0 %v1596
      %v1727 = vpop.f32.mrf.mxu0
      %v1728 = vadd.f32 %v1506, %v1727
      %v1729 = vpop.f32.mrf.mxu0
      %v1730 = vadd.f32 %v1508, %v1729
      %1731 = vmatmul.bf16.gmra.mxu0 %v1597
      %v1732 = vpop.f32.mrf.mxu0
      %v1733 = vadd.f32 %v1511, %v1732
      %v1734 = vpop.f32.mrf.mxu0
      %v1735 = vadd.f32 %v1513, %v1734
      %1736 = vmatmul.bf16.gmra.mxu0 %v1598
      %v1737 = vpop.f32.mrf.mxu0
      %v1738 = vadd.f32 %v1516, %v1737
      %v1739 = vpop.f32.mrf.mxu0
      %v1740 = vadd.f32 %v1518, %v1739
      %1741 = vmatmul.bf16.gmra.mxu0 %v1599
      %v1742 = vpop.f32.mrf.mxu0
      %v1743 = vadd.f32 %v1521, %v1742
      %v1744 = vpop.f32.mrf.mxu0
      %v1745 = vadd.f32 %v1523, %v1744
      %1746 = vdwg.mxu0
      %v1747 = vld [vmem:[#allocation3] sm:$0xe]
      %v1748 = vld [vmem:[#allocation3 + $0x10] sm:$0xe]
      %v1749 = vld [vmem:[#allocation3 + $0x20] sm:$0xe]
      %v1750 = vld [vmem:[#allocation3 + $0x30] sm:$0xe]
      %v1751 = vld [vmem:[#allocation3 + $0x40] sm:$0xe]
      %v1752 = vld [vmem:[#allocation3 + $0x50] sm:$0xe]
      %v1753 = vld [vmem:[#allocation3 + $0x60] sm:$0xe]
      %v1754 = vld [vmem:[#allocation3 + $0x70] sm:$0xe]
      %v1755 = vld [vmem:[#allocation3 + $0x80] sm:$0xe]
      %v1756 = vld [vmem:[#allocation3 + $0x90] sm:$0xe]
      %vm1777 = vcmask 1042432
      %vm1778 = vcmask 1046532
      %vm1779 = vmor %vm1777, %vm1778
      %v1780 = vrot.slane %v1747, 5
      %v1781 = vrot.slane %v1780, 4
      %v1782 = vrot.slane %v918, 5
      %v1783 = vsel %vm1779, %v1781, %v1782
      %v1784 = vrot.slane %v1782, 4
      %v1785 = vrot.slane %v919, 5
      %v1786 = vsel %vm1779, %v1784, %v1785
      %v1787 = vrot.slane %v1785, 4
      %v1788 = vrot.slane %v963, 5
      %v1789 = vsel %vm1779, %v1787, %v1788
      %v1790 = vrot.slane %v1748, 5
      %v1791 = vrot.slane %v1790, 4
      %v1792 = vrot.slane %v921, 5
      %v1793 = vsel %vm1779, %v1791, %v1792
      %v1794 = vrot.slane %v1792, 4
      %v1795 = vrot.slane %v922, 5
      %v1796 = vsel %vm1779, %v1794, %v1795
      %v1797 = vrot.slane %v1795, 4
      %v1798 = vrot.slane %v964, 5
      %v1799 = vsel %vm1779, %v1797, %v1798
      %v1800 = vrot.slane %v1749, 5
      %v1801 = vrot.slane %v1800, 4
      %v1802 = vrot.slane %v924, 5
      %v1803 = vsel %vm1779, %v1801, %v1802
      %v1804 = vrot.slane %v1802, 4
      %v1805 = vrot.slane %v925, 5
      %v1806 = vsel %vm1779, %v1804, %v1805
      %v1807 = vrot.slane %v1805, 4
      %v1808 = vrot.slane %v965, 5
      %v1809 = vsel %vm1779, %v1807, %v1808
      %v1810 = vrot.slane %v1750, 5
      %v1811 = vrot.slane %v1810, 4
      %v1812 = vrot.slane %v927, 5
      %v1813 = vsel %vm1779, %v1811, %v1812
      %v1814 = vrot.slane %v1812, 4
      %v1815 = vrot.slane %v928, 5
      %v1816 = vsel %vm1779, %v1814, %v1815
      %v1817 = vrot.slane %v1815, 4
      %v1818 = vrot.slane %v966, 5
      %v1819 = vsel %vm1779, %v1817, %v1818
      %v1820 = vrot.slane %v1751, 5
      %v1821 = vrot.slane %v1820, 4
      %v1822 = vrot.slane %v930, 5
      %v1823 = vsel %vm1779, %v1821, %v1822
      %v1824 = vrot.slane %v1822, 4
      %v1825 = vrot.slane %v931, 5
      %v1826 = vsel %vm1779, %v1824, %v1825
      %v1827 = vrot.slane %v1825, 4
      %v1828 = vrot.slane %v967, 5
      %v1829 = vsel %vm1779, %v1827, %v1828
      %v1830 = vrot.slane %v1752, 5
      %v1831 = vrot.slane %v1830, 4
      %v1832 = vrot.slane %v933, 5
      %v1833 = vsel %vm1779, %v1831, %v1832
      %v1834 = vrot.slane %v1832, 4
      %v1835 = vrot.slane %v934, 5
      %v1836 = vsel %vm1779, %v1834, %v1835
      %v1837 = vrot.slane %v1835, 4
      %v1838 = vrot.slane %v968, 5
      %v1839 = vsel %vm1779, %v1837, %v1838
      %v1840 = vrot.slane %v1753, 5
      %v1841 = vrot.slane %v1840, 4
      %v1842 = vrot.slane %v936, 5
      %v1843 = vsel %vm1779, %v1841, %v1842
      %v1844 = vrot.slane %v1842, 4
      %v1845 = vrot.slane %v937, 5
      %v1846 = vsel %vm1779, %v1844, %v1845
      %v1847 = vrot.slane %v1845, 4
      %v1848 = vrot.slane %v969, 5
      %v1849 = vsel %vm1779, %v1847, %v1848
      %v1850 = vrot.slane %v1754, 5
      %v1851 = vrot.slane %v1850, 4
      %v1852 = vrot.slane %v939, 5
      %v1853 = vsel %vm1779, %v1851, %v1852
      %v1854 = vrot.slane %v1852, 4
      %v1855 = vrot.slane %v940, 5
      %v1856 = vsel %vm1779, %v1854, %v1855
      %v1857 = vrot.slane %v1855, 4
      %v1858 = vrot.slane %v970, 5
      %v1859 = vsel %vm1779, %v1857, %v1858
      %v1860 = vrot.slane %v1755, 5
      %v1861 = vrot.slane %v1860, 4
      %v1862 = vrot.slane %v942, 5
      %v1863 = vsel %vm1779, %v1861, %v1862
      %v1864 = vrot.slane %v1862, 4
      %v1865 = vrot.slane %v943, 5
      %v1866 = vsel %vm1779, %v1864, %v1865
      %v1867 = vrot.slane %v1865, 4
      %v1868 = vrot.slane %v971, 5
      %v1869 = vsel %vm1779, %v1867, %v1868
      %v1870 = vrot.slane %v1756, 5
      %v1871 = vrot.slane %v1870, 4
      %v1872 = vrot.slane %v945, 5
      %v1873 = vsel %vm1779, %v1871, %v1872
      %v1874 = vrot.slane %v1872, 4
      %v1875 = vrot.slane %v946, 5
      %v1876 = vsel %vm1779, %v1874, %v1875
      %v1877 = vrot.slane %v1875, 4
      %v1878 = vrot.slane %v972, 5
      %v1879 = vsel %vm1779, %v1877, %v1878
      %s1880 = scalar_lea.vmem %s1, 128
      %v1881 = vld [vmem:[%s1880] sm:$0xf]
      %v1882 = vld [vmem:[%s1880 + $0x4] sm:$0xf]
      %v1883 = vld [vmem:[%s1880 + $0x8] sm:$0xf]
      %v1884 = vld [vmem:[%s1880 + $0xc] sm:$0xf]
      %v1885 = vld [vmem:[%s1880 + $0x10] sm:$0xf]
      %v1886 = vld [vmem:[%s1880 + $0x14] sm:$0xf]
      %v1887 = vld [vmem:[%s1880 + $0x18] sm:$0xf]
      %v1888 = vld [vmem:[%s1880 + $0x1c] sm:$0xf]
      %v1889 = vld [vmem:[%s1880 + $0x20] sm:$0xf]
      %v1890 = vld [vmem:[%s1880 + $0x24] sm:$0xf]
      %v1891 = vld [vmem:[%s1880 + $0x28] sm:$0xf]
      %v1892 = vld [vmem:[%s1880 + $0x2c] sm:$0xf]
      %v1893 = vld [vmem:[%s1880 + $0x30] sm:$0xf]
      %v1894 = vld [vmem:[%s1880 + $0x34] sm:$0xf]
      %v1895 = vld [vmem:[%s1880 + $0x38] sm:$0xf]
      %v1896 = vld [vmem:[%s1880 + $0x3c] sm:$0xf]
      %v1897 = vunpack.c.l.b16 %v1783
      %v1898 = vunpack.c.l.b16 %v1786
      %v1899 = vunpack.c.l.b16 %v1789
      %v1900 = vunpack.c.l.b16 %v1793
      %v1901 = vunpack.c.l.b16 %v1796
      %v1902 = vunpack.c.l.b16 %v1799
      %v1903 = vunpack.c.l.b16 %v1803
      %v1904 = vunpack.c.l.b16 %v1806
      %v1905 = vunpack.c.l.b16 %v1809
      %v1906 = vunpack.c.l.b16 %v1813
      %v1907 = vunpack.c.l.b16 %v1816
      %v1908 = vunpack.c.l.b16 %v1819
      %v1909 = vunpack.c.l.b16 %v1823
      %v1910 = vunpack.c.l.b16 %v1826
      %v1911 = vunpack.c.l.b16 %v1829
      %v1912 = vunpack.c.l.b16 %v1833
      %v1913 = vunpack.c.l.b16 %v1836
      %v1914 = vunpack.c.l.b16 %v1839
      %v1915 = vunpack.c.l.b16 %v1843
      %v1916 = vunpack.c.l.b16 %v1846
      %v1917 = vunpack.c.l.b16 %v1849
      %v1918 = vunpack.c.l.b16 %v1853
      %v1919 = vunpack.c.l.b16 %v1856
      %v1920 = vunpack.c.l.b16 %v1859
      %v1921 = vunpack.c.l.b16 %v1863
      %v1922 = vunpack.c.l.b16 %v1866
      %v1923 = vunpack.c.l.b16 %v1869
      %v1924 = vunpack.c.l.b16 %v1873
      %v1925 = vunpack.c.l.b16 %v1876
      %v1926 = vunpack.c.l.b16 %v1879
      %v1927 = vpack.c.b16 %v1898, %v1897
      %v1928 = vpack.c.b16 %v1900, %v1899
      %v1929 = vpack.c.b16 %v1902, %v1901
      %v1930 = vpack.c.b16 %v1904, %v1903
      %v1931 = vpack.c.b16 %v1906, %v1905
      %v1932 = vpack.c.b16 %v1908, %v1907
      %v1933 = vpack.c.b16 %v1910, %v1909
      %v1934 = vpack.c.b16 %v1912, %v1911
      %v1935 = vpack.c.b16 %v1914, %v1913
      %v1936 = vpack.c.b16 %v1916, %v1915
      %v1937 = vpack.c.b16 %v1918, %v1917
      %v1938 = vpack.c.b16 %v1920, %v1919
      %v1939 = vpack.c.b16 %v1922, %v1921
      %v1940 = vpack.c.b16 %v1924, %v1923
      %v1941 = vpack.c.b16 %v1926, %v1925
      %v1973 = vunpack.c.l.b16 %v1881
      %v1974 = vunpack.c.l.b16 %v1882
      %v1975 = vunpack.c.l.b16 %v1883
      %v1976 = vunpack.c.l.b16 %v1884
      %v1977 = vunpack.c.l.b16 %v1885
      %v1978 = vunpack.c.l.b16 %v1886
      %v1979 = vunpack.c.l.b16 %v1887
      %v1980 = vunpack.c.l.b16 %v1888
      %v1981 = vunpack.c.l.b16 %v1889
      %v1982 = vunpack.c.l.b16 %v1890
      %v1983 = vunpack.c.l.b16 %v1891
      %v1984 = vunpack.c.l.b16 %v1892
      %v1985 = vunpack.c.l.b16 %v1893
      %v1986 = vunpack.c.l.b16 %v1894
      %v1987 = vunpack.c.l.b16 %v1895
      %v1988 = vunpack.c.l.b16 %v1896
      %v1989 = vpack.c.b16 %v1974, %v1973
      %v1990 = vpack.c.b16 %v1976, %v1975
      %v1991 = vpack.c.b16 %v1978, %v1977
      %v1992 = vpack.c.b16 %v1980, %v1979
      %v1993 = vpack.c.b16 %v1982, %v1981
      %v1994 = vpack.c.b16 %v1984, %v1983
      %v1995 = vpack.c.b16 %v1986, %v1985
      %v1996 = vpack.c.b16 %v1988, %v1987
      %2005 = vmatpush.bf16.msra.mxu0 %v1996
      %2006 = vmatpush.bf16.msra.mxu0 %v1995
      %2007 = vmatpush.bf16.msra.mxu0 %v1994
      %2008 = vmatpush.bf16.msra.mxu0 %v1993
      %2009 = vmatpush.bf16.msra.mxu0 %v1992
      %2010 = vmatpush.bf16.msra.mxu0 %v1991
      %2011 = vmatpush.bf16.msra.mxu0 %v1990
      %2012 = vmatpush.bf16.msra.mxu0 %v1989
      %2013 = vmatmul.bf16.gmra.mxu0 %v1927
      %v2014 = vpop.f32.mrf.mxu0
      %v2015 = vadd.f32 0.0, %v2014
      %v2016 = vpop.f32.mrf.mxu0
      %v2017 = vadd.f32 0.0, %v2016
      %2018 = vmatmul.bf16.gmra.mxu0 %v1928
      %v2019 = vpop.f32.mrf.mxu0
      %v2020 = vadd.f32 0.0, %v2019
      %v2021 = vpop.f32.mrf.mxu0
      %v2022 = vadd.f32 0.0, %v2021
      %2023 = vmatmul.bf16.gmra.mxu0 %v1929
      %v2024 = vpop.f32.mrf.mxu0
      %v2025 = vadd.f32 0.0, %v2024
      %v2026 = vpop.f32.mrf.mxu0
      %v2027 = vadd.f32 0.0, %v2026
      %2028 = vmatmul.bf16.gmra.mxu0 %v1930
      %v2029 = vpop.f32.mrf.mxu0
      %v2030 = vadd.f32 0.0, %v2029
      %v2031 = vpop.f32.mrf.mxu0
      %v2032 = vadd.f32 0.0, %v2031
      %2033 = vmatmul.bf16.gmra.mxu0 %v1931
      %v2034 = vpop.f32.mrf.mxu0
      %v2035 = vadd.f32 0.0, %v2034
      %v2036 = vpop.f32.mrf.mxu0
      %v2037 = vadd.f32 0.0, %v2036
      %2038 = vmatmul.bf16.gmra.mxu0 %v1932
      %v2039 = vpop.f32.mrf.mxu0
      %v2040 = vadd.f32 0.0, %v2039
      %v2041 = vpop.f32.mrf.mxu0
      %v2042 = vadd.f32 0.0, %v2041
      %2043 = vmatmul.bf16.gmra.mxu0 %v1933
      %v2044 = vpop.f32.mrf.mxu0
      %v2045 = vadd.f32 0.0, %v2044
      %v2046 = vpop.f32.mrf.mxu0
      %v2047 = vadd.f32 0.0, %v2046
      %2048 = vmatmul.bf16.gmra.mxu0 %v1934
      %v2049 = vpop.f32.mrf.mxu0
      %v2050 = vadd.f32 0.0, %v2049
      %v2051 = vpop.f32.mrf.mxu0
      %v2052 = vadd.f32 0.0, %v2051
      %2053 = vmatmul.bf16.gmra.mxu0 %v1935
      %v2054 = vpop.f32.mrf.mxu0
      %v2055 = vadd.f32 0.0, %v2054
      %v2056 = vpop.f32.mrf.mxu0
      %v2057 = vadd.f32 0.0, %v2056
      %2058 = vmatmul.bf16.gmra.mxu0 %v1936
      %v2059 = vpop.f32.mrf.mxu0
      %v2060 = vadd.f32 0.0, %v2059
      %v2061 = vpop.f32.mrf.mxu0
      %v2062 = vadd.f32 0.0, %v2061
      %2063 = vmatmul.bf16.gmra.mxu0 %v1937
      %v2064 = vpop.f32.mrf.mxu0
      %v2065 = vadd.f32 0.0, %v2064
      %v2066 = vpop.f32.mrf.mxu0
      %v2067 = vadd.f32 0.0, %v2066
      %2068 = vmatmul.bf16.gmra.mxu0 %v1938
      %v2069 = vpop.f32.mrf.mxu0
      %v2070 = vadd.f32 0.0, %v2069
      %v2071 = vpop.f32.mrf.mxu0
      %v2072 = vadd.f32 0.0, %v2071
      %2073 = vmatmul.bf16.gmra.mxu0 %v1939
      %v2074 = vpop.f32.mrf.mxu0
      %v2075 = vadd.f32 0.0, %v2074
      %v2076 = vpop.f32.mrf.mxu0
      %v2077 = vadd.f32 0.0, %v2076
      %2078 = vmatmul.bf16.gmra.mxu0 %v1940
      %v2079 = vpop.f32.mrf.mxu0
      %v2080 = vadd.f32 0.0, %v2079
      %v2081 = vpop.f32.mrf.mxu0
      %v2082 = vadd.f32 0.0, %v2081
      %2083 = vmatmul.bf16.gmra.mxu0 %v1941
      %v2084 = vpop.f32.mrf.mxu0
      %v2085 = vadd.f32 0.0, %v2084
      %v2086 = vpop.f32.mrf.mxu0
      %v2087 = vadd.f32 0.0, %v2086
      %2088 = vdwg.mxu0
      %v2089 = vadd.f32 %v1673, %v2015
      %v2090 = vadd.f32 %v1675, %v2017
      %v2091 = vadd.f32 %v1678, %v2020
      %v2092 = vadd.f32 %v1680, %v2022
      %v2093 = vadd.f32 %v1683, %v2025
      %v2094 = vadd.f32 %v1685, %v2027
      %v2095 = vadd.f32 %v1688, %v2030
      %v2096 = vadd.f32 %v1690, %v2032
      %v2097 = vadd.f32 %v1693, %v2035
      %v2098 = vadd.f32 %v1695, %v2037
      %v2099 = vadd.f32 %v1698, %v2040
      %v2100 = vadd.f32 %v1700, %v2042
      %v2101 = vadd.f32 %v1703, %v2045
      %v2102 = vadd.f32 %v1705, %v2047
      %v2103 = vadd.f32 %v1708, %v2050
      %v2104 = vadd.f32 %v1710, %v2052
      %v2105 = vadd.f32 %v1713, %v2055
      %v2106 = vadd.f32 %v1715, %v2057
      %v2107 = vadd.f32 %v1718, %v2060
      %v2108 = vadd.f32 %v1720, %v2062
      %v2109 = vadd.f32 %v1723, %v2065
      %v2110 = vadd.f32 %v1725, %v2067
      %v2111 = vadd.f32 %v1728, %v2070
      %v2112 = vadd.f32 %v1730, %v2072
      %v2113 = vadd.f32 %v1733, %v2075
      %v2114 = vadd.f32 %v1735, %v2077
      %v2115 = vadd.f32 %v1738, %v2080
      %v2116 = vadd.f32 %v1740, %v2082
      %v2117 = vadd.f32 %v1743, %v2085
      %v2118 = vadd.f32 %v1745, %v2087
      %s2119 = scalar_lea.vmem [#allocation3], 16
      %v2120 = vld [vmem:[%s2119] sm:$0xf]
      %v2121 = vld [vmem:[%s2119 + $0x4] sm:$0xf]
      %v2122 = vld [vmem:[%s2119 + $0x8] sm:$0xf]
      %v2123 = vld [vmem:[%s2119 + $0x10] sm:$0xf]
      %v2124 = vld [vmem:[%s2119 + $0x14] sm:$0xf]
      %v2125 = vld [vmem:[%s2119 + $0x18] sm:$0xf]
      %v2126 = vld [vmem:[%s2119 + $0x20] sm:$0xf]
      %v2127 = vld [vmem:[%s2119 + $0x24] sm:$0xf]
      %v2128 = vld [vmem:[%s2119 + $0x28] sm:$0xf]
      %v2129 = vld [vmem:[%s2119 + $0x30] sm:$0xf]
      %v2130 = vld [vmem:[%s2119 + $0x34] sm:$0xf]
      %v2131 = vld [vmem:[%s2119 + $0x38] sm:$0xf]
      %v2132 = vld [vmem:[%s2119 + $0x40] sm:$0xf]
      %v2133 = vld [vmem:[%s2119 + $0x44] sm:$0xf]
      %v2134 = vld [vmem:[%s2119 + $0x48] sm:$0xf]
      %v2135 = vld [vmem:[%s2119 + $0x50] sm:$0xf]
      %v2136 = vld [vmem:[%s2119 + $0x54] sm:$0xf]
      %v2137 = vld [vmem:[%s2119 + $0x58] sm:$0xf]
      %v2138 = vld [vmem:[%s2119 + $0x60] sm:$0xf]
      %v2139 = vld [vmem:[%s2119 + $0x64] sm:$0xf]
      %v2140 = vld [vmem:[%s2119 + $0x68] sm:$0xf]
      %v2141 = vld [vmem:[%s2119 + $0x70] sm:$0xf]
      %v2142 = vld [vmem:[%s2119 + $0x74] sm:$0xf]
      %v2143 = vld [vmem:[%s2119 + $0x78] sm:$0xf]
      %v2144 = vld [vmem:[%s2119 + $0x80] sm:$0xf]
      %v2145 = vld [vmem:[%s2119 + $0x84] sm:$0xf]
      %v2146 = vld [vmem:[%s2119 + $0x88] sm:$0xf]
      %v2147 = vld [vmem:[%s2119 + $0x90] sm:$0xf]
      %v2148 = vld [vmem:[%s2119 + $0x94] sm:$0xf]
      %v2149 = vld [vmem:[%s2119 + $0x98] sm:$0xf]
      %s2150 = scalar_lea.vmem %s1, 192
      %v2151 = vld [vmem:[%s2150] sm:$0xf]
      %v2152 = vld [vmem:[%s2150 + $0x4] sm:$0xf]
      %v2153 = vld [vmem:[%s2150 + $0x8] sm:$0xf]
      %v2154 = vld [vmem:[%s2150 + $0xc] sm:$0xf]
      %v2155 = vld [vmem:[%s2150 + $0x10] sm:$0xf]
      %v2156 = vld [vmem:[%s2150 + $0x14] sm:$0xf]
      %v2157 = vld [vmem:[%s2150 + $0x18] sm:$0xf]
      %v2158 = vld [vmem:[%s2150 + $0x1c] sm:$0xf]
      %v2159 = vld [vmem:[%s2150 + $0x20] sm:$0xf]
      %v2160 = vld [vmem:[%s2150 + $0x24] sm:$0xf]
      %v2161 = vld [vmem:[%s2150 + $0x28] sm:$0xf]
      %v2162 = vld [vmem:[%s2150 + $0x2c] sm:$0xf]
      %v2163 = vld [vmem:[%s2150 + $0x30] sm:$0xf]
      %v2164 = vld [vmem:[%s2150 + $0x34] sm:$0xf]
      %v2165 = vld [vmem:[%s2150 + $0x38] sm:$0xf]
      %v2166 = vld [vmem:[%s2150 + $0x3c] sm:$0xf]
      %v2197 = vunpack.c.l.b16 %v2120
      %v2198 = vunpack.c.l.b16 %v2121
      %v2199 = vunpack.c.l.b16 %v2122
      %v2200 = vunpack.c.l.b16 %v2123
      %v2201 = vunpack.c.l.b16 %v2124
      %v2202 = vunpack.c.l.b16 %v2125
      %v2203 = vunpack.c.l.b16 %v2126
      %v2204 = vunpack.c.l.b16 %v2127
      %v2205 = vunpack.c.l.b16 %v2128
      %v2206 = vunpack.c.l.b16 %v2129
      %v2207 = vunpack.c.l.b16 %v2130
      %v2208 = vunpack.c.l.b16 %v2131
      %v2209 = vunpack.c.l.b16 %v2132
      %v2210 = vunpack.c.l.b16 %v2133
      %v2211 = vunpack.c.l.b16 %v2134
      %v2212 = vunpack.c.l.b16 %v2135
      %v2213 = vunpack.c.l.b16 %v2136
      %v2214 = vunpack.c.l.b16 %v2137
      %v2215 = vunpack.c.l.b16 %v2138
      %v2216 = vunpack.c.l.b16 %v2139
      %v2217 = vunpack.c.l.b16 %v2140
      %v2218 = vunpack.c.l.b16 %v2141
      %v2219 = vunpack.c.l.b16 %v2142
      %v2220 = vunpack.c.l.b16 %v2143
      %v2221 = vunpack.c.l.b16 %v2144
      %v2222 = vunpack.c.l.b16 %v2145
      %v2223 = vunpack.c.l.b16 %v2146
      %v2224 = vunpack.c.l.b16 %v2147
      %v2225 = vunpack.c.l.b16 %v2148
      %v2226 = vunpack.c.l.b16 %v2149
      %v2227 = vpack.c.b16 %v2198, %v2197
      %v2228 = vpack.c.b16 %v2200, %v2199
      %v2229 = vpack.c.b16 %v2202, %v2201
      %v2230 = vpack.c.b16 %v2204, %v2203
      %v2231 = vpack.c.b16 %v2206, %v2205
      %v2232 = vpack.c.b16 %v2208, %v2207
      %v2233 = vpack.c.b16 %v2210, %v2209
      %v2234 = vpack.c.b16 %v2212, %v2211
      %v2235 = vpack.c.b16 %v2214, %v2213
      %v2236 = vpack.c.b16 %v2216, %v2215
      %v2237 = vpack.c.b16 %v2218, %v2217
      %v2238 = vpack.c.b16 %v2220, %v2219
      %v2239 = vpack.c.b16 %v2222, %v2221
      %v2240 = vpack.c.b16 %v2224, %v2223
      %v2241 = vpack.c.b16 %v2226, %v2225
      %v2273 = vunpack.c.l.b16 %v2151
      %v2274 = vunpack.c.l.b16 %v2152
      %v2275 = vunpack.c.l.b16 %v2153
      %v2276 = vunpack.c.l.b16 %v2154
      %v2277 = vunpack.c.l.b16 %v2155
      %v2278 = vunpack.c.l.b16 %v2156
      %v2279 = vunpack.c.l.b16 %v2157
      %v2280 = vunpack.c.l.b16 %v2158
      %v2281 = vunpack.c.l.b16 %v2159
      %v2282 = vunpack.c.l.b16 %v2160
      %v2283 = vunpack.c.l.b16 %v2161
      %v2284 = vunpack.c.l.b16 %v2162
      %v2285 = vunpack.c.l.b16 %v2163
      %v2286 = vunpack.c.l.b16 %v2164
      %v2287 = vunpack.c.l.b16 %v2165
      %v2288 = vunpack.c.l.b16 %v2166
      %v2289 = vpack.c.b16 %v2274, %v2273
      %v2290 = vpack.c.b16 %v2276, %v2275
      %v2291 = vpack.c.b16 %v2278, %v2277
      %v2292 = vpack.c.b16 %v2280, %v2279
      %v2293 = vpack.c.b16 %v2282, %v2281
      %v2294 = vpack.c.b16 %v2284, %v2283
      %v2295 = vpack.c.b16 %v2286, %v2285
      %v2296 = vpack.c.b16 %v2288, %v2287
      %2305 = vmatpush.bf16.msra.mxu0 %v2296
      %2306 = vmatpush.bf16.msra.mxu0 %v2295
      %2307 = vmatpush.bf16.msra.mxu0 %v2294
      %2308 = vmatpush.bf16.msra.mxu0 %v2293
      %2309 = vmatpush.bf16.msra.mxu0 %v2292
      %2310 = vmatpush.bf16.msra.mxu0 %v2291
      %2311 = vmatpush.bf16.msra.mxu0 %v2290
      %2312 = vmatpush.bf16.msra.mxu0 %v2289
      %2313 = vmatmul.bf16.gmra.mxu0 %v2227
      %v2314 = vpop.f32.mrf.mxu0
      %v2315 = vadd.f32 0.0, %v2314
      %v2316 = vpop.f32.mrf.mxu0
      %v2317 = vadd.f32 0.0, %v2316
      %2318 = vmatmul.bf16.gmra.mxu0 %v2228
      %v2319 = vpop.f32.mrf.mxu0
      %v2320 = vadd.f32 0.0, %v2319
      %v2321 = vpop.f32.mrf.mxu0
      %v2322 = vadd.f32 0.0, %v2321
      %2323 = vmatmul.bf16.gmra.mxu0 %v2229
      %v2324 = vpop.f32.mrf.mxu0
      %v2325 = vadd.f32 0.0, %v2324
      %v2326 = vpop.f32.mrf.mxu0
      %v2327 = vadd.f32 0.0, %v2326
      %2328 = vmatmul.bf16.gmra.mxu0 %v2230
      %v2329 = vpop.f32.mrf.mxu0
      %v2330 = vadd.f32 0.0, %v2329
      %v2331 = vpop.f32.mrf.mxu0
      %v2332 = vadd.f32 0.0, %v2331
      %2333 = vmatmul.bf16.gmra.mxu0 %v2231
      %v2334 = vpop.f32.mrf.mxu0
      %v2335 = vadd.f32 0.0, %v2334
      %v2336 = vpop.f32.mrf.mxu0
      %v2337 = vadd.f32 0.0, %v2336
      %2338 = vmatmul.bf16.gmra.mxu0 %v2232
      %v2339 = vpop.f32.mrf.mxu0
      %v2340 = vadd.f32 0.0, %v2339
      %v2341 = vpop.f32.mrf.mxu0
      %v2342 = vadd.f32 0.0, %v2341
      %2343 = vmatmul.bf16.gmra.mxu0 %v2233
      %v2344 = vpop.f32.mrf.mxu0
      %v2345 = vadd.f32 0.0, %v2344
      %v2346 = vpop.f32.mrf.mxu0
      %v2347 = vadd.f32 0.0, %v2346
      %2348 = vmatmul.bf16.gmra.mxu0 %v2234
      %v2349 = vpop.f32.mrf.mxu0
      %v2350 = vadd.f32 0.0, %v2349
      %v2351 = vpop.f32.mrf.mxu0
      %v2352 = vadd.f32 0.0, %v2351
      %2353 = vmatmul.bf16.gmra.mxu0 %v2235
      %v2354 = vpop.f32.mrf.mxu0
      %v2355 = vadd.f32 0.0, %v2354
      %v2356 = vpop.f32.mrf.mxu0
      %v2357 = vadd.f32 0.0, %v2356
      %2358 = vmatmul.bf16.gmra.mxu0 %v2236
      %v2359 = vpop.f32.mrf.mxu0
      %v2360 = vadd.f32 0.0, %v2359
      %v2361 = vpop.f32.mrf.mxu0
      %v2362 = vadd.f32 0.0, %v2361
      %2363 = vmatmul.bf16.gmra.mxu0 %v2237
      %v2364 = vpop.f32.mrf.mxu0
      %v2365 = vadd.f32 0.0, %v2364
      %v2366 = vpop.f32.mrf.mxu0
      %v2367 = vadd.f32 0.0, %v2366
      %2368 = vmatmul.bf16.gmra.mxu0 %v2238
      %v2369 = vpop.f32.mrf.mxu0
      %v2370 = vadd.f32 0.0, %v2369
      %v2371 = vpop.f32.mrf.mxu0
      %v2372 = vadd.f32 0.0, %v2371
      %2373 = vmatmul.bf16.gmra.mxu0 %v2239
      %v2374 = vpop.f32.mrf.mxu0
      %v2375 = vadd.f32 0.0, %v2374
      %v2376 = vpop.f32.mrf.mxu0
      %v2377 = vadd.f32 0.0, %v2376
      %2378 = vmatmul.bf16.gmra.mxu0 %v2240
      %v2379 = vpop.f32.mrf.mxu0
      %v2380 = vadd.f32 0.0, %v2379
      %v2381 = vpop.f32.mrf.mxu0
      %v2382 = vadd.f32 0.0, %v2381
      %2383 = vmatmul.bf16.gmra.mxu0 %v2241
      %v2384 = vpop.f32.mrf.mxu0
      %v2385 = vadd.f32 0.0, %v2384
      %v2386 = vpop.f32.mrf.mxu0
      %v2387 = vadd.f32 0.0, %v2386
      %2388 = vdwg.mxu0
      %v2389 = vadd.f32 %v2089, %v2315
      %v2390 = vadd.f32 %v2090, %v2317
      %v2391 = vadd.f32 %v2091, %v2320
      %v2392 = vadd.f32 %v2092, %v2322
      %v2393 = vadd.f32 %v2093, %v2325
      %v2394 = vadd.f32 %v2094, %v2327
      %v2395 = vadd.f32 %v2095, %v2330
      %v2396 = vadd.f32 %v2096, %v2332
      %v2397 = vadd.f32 %v2097, %v2335
      %v2398 = vadd.f32 %v2098, %v2337
      %v2399 = vadd.f32 %v2099, %v2340
      %v2400 = vadd.f32 %v2100, %v2342
      %v2401 = vadd.f32 %v2101, %v2345
      %v2402 = vadd.f32 %v2102, %v2347
      %v2403 = vadd.f32 %v2103, %v2350
      %v2404 = vadd.f32 %v2104, %v2352
      %v2405 = vadd.f32 %v2105, %v2355
      %v2406 = vadd.f32 %v2106, %v2357
      %v2407 = vadd.f32 %v2107, %v2360
      %v2408 = vadd.f32 %v2108, %v2362
      %v2409 = vadd.f32 %v2109, %v2365
      %v2410 = vadd.f32 %v2110, %v2367
      %v2411 = vadd.f32 %v2111, %v2370
      %v2412 = vadd.f32 %v2112, %v2372
      %v2413 = vadd.f32 %v2113, %v2375
      %v2414 = vadd.f32 %v2114, %v2377
      %v2415 = vadd.f32 %v2115, %v2380
      %v2416 = vadd.f32 %v2116, %v2382
      %v2417 = vadd.f32 %v2117, %v2385
      %v2418 = vadd.f32 %v2118, %v2387
      %v2419 = vld [vmem:[%s2119] sm:$0xf]
      %v2420 = vld [vmem:[%s2119 + $0x4] sm:$0xf]
      %v2421 = vld [vmem:[%s2119 + $0x8] sm:$0xf]
      %v2422 = vld [vmem:[%s2119 + $0xc] sm:$0x1]
      %v2423 = vld [vmem:[%s2119 + $0x10] sm:$0xf]
      %v2424 = vld [vmem:[%s2119 + $0x14] sm:$0xf]
      %v2425 = vld [vmem:[%s2119 + $0x18] sm:$0xf]
      %v2426 = vld [vmem:[%s2119 + $0x1c] sm:$0x1]
      %v2427 = vld [vmem:[%s2119 + $0x20] sm:$0xf]
      %v2428 = vld [vmem:[%s2119 + $0x24] sm:$0xf]
      %v2429 = vld [vmem:[%s2119 + $0x28] sm:$0xf]
      %v2430 = vld [vmem:[%s2119 + $0x2c] sm:$0x1]
      %v2431 = vld [vmem:[%s2119 + $0x30] sm:$0xf]
      %v2432 = vld [vmem:[%s2119 + $0x34] sm:$0xf]
      %v2433 = vld [vmem:[%s2119 + $0x38] sm:$0xf]
      %v2434 = vld [vmem:[%s2119 + $0x3c] sm:$0x1]
      %v2435 = vld [vmem:[%s2119 + $0x40] sm:$0xf]
      %v2436 = vld [vmem:[%s2119 + $0x44] sm:$0xf]
      %v2437 = vld [vmem:[%s2119 + $0x48] sm:$0xf]
      %v2438 = vld [vmem:[%s2119 + $0x4c] sm:$0x1]
      %v2439 = vld [vmem:[%s2119 + $0x50] sm:$0xf]
      %v2440 = vld [vmem:[%s2119 + $0x54] sm:$0xf]
      %v2441 = vld [vmem:[%s2119 + $0x58] sm:$0xf]
      %v2442 = vld [vmem:[%s2119 + $0x5c] sm:$0x1]
      %v2443 = vld [vmem:[%s2119 + $0x60] sm:$0xf]
      %v2444 = vld [vmem:[%s2119 + $0x64] sm:$0xf]
      %v2445 = vld [vmem:[%s2119 + $0x68] sm:$0xf]
      %v2446 = vld [vmem:[%s2119 + $0x6c] sm:$0x1]
      %v2447 = vld [vmem:[%s2119 + $0x70] sm:$0xf]
      %v2448 = vld [vmem:[%s2119 + $0x74] sm:$0xf]
      %v2449 = vld [vmem:[%s2119 + $0x78] sm:$0xf]
      %v2450 = vld [vmem:[%s2119 + $0x7c] sm:$0x1]
      %v2451 = vld [vmem:[%s2119 + $0x80] sm:$0xf]
      %v2452 = vld [vmem:[%s2119 + $0x84] sm:$0xf]
      %v2453 = vld [vmem:[%s2119 + $0x88] sm:$0xf]
      %v2454 = vld [vmem:[%s2119 + $0x8c] sm:$0x1]
      %v2455 = vld [vmem:[%s2119 + $0x90] sm:$0xf]
      %v2456 = vld [vmem:[%s2119 + $0x94] sm:$0xf]
      %v2457 = vld [vmem:[%s2119 + $0x98] sm:$0xf]
      %v2458 = vld [vmem:[%s2119 + $0x9c] sm:$0x1]
      %v2460 = vshrl.u32 %v2419, 16
      %v2462 = vrot.slane %v2460, 4
      %v2463 = vshll.u32 %v2419, 16
      %v2465 = vrot.slane %v2463, 5
      %v2466 = vor.u32 %v2462, %v2465
      %v2467 = vrot.slane %v2466, 4
      %v2469 = vshll.u32 %v2420, 16
      %v2471 = vrot.slane %v2469, 5
      %v2472 = vsel %vm975, %v2467, %v2471
      %v2473 = vshrl.u32 %v2420, 16
      %v2475 = vrot.slane %v2473, 4
      %v2476 = vor.u32 %v2475, %v2471
      %v2477 = vrot.slane %v2476, 4
      %v2479 = vshll.u32 %v2421, 16
      %v2481 = vrot.slane %v2479, 5
      %v2482 = vsel %vm975, %v2477, %v2481
      %v2483 = vshrl.u32 %v2421, 16
      %v2485 = vrot.slane %v2483, 4
      %v2486 = vor.u32 %v2485, %v2481
      %v2487 = vrot.slane %v2486, 4
      %v2489 = vshll.u32 %v2422, 16
      %v2491 = vrot.slane %v2489, 5
      %v2492 = vsel %vm975, %v2487, %v2491
      %v2494 = vshrl.u32 %v2423, 16
      %v2496 = vrot.slane %v2494, 4
      %v2497 = vshll.u32 %v2423, 16
      %v2499 = vrot.slane %v2497, 5
      %v2500 = vor.u32 %v2496, %v2499
      %v2501 = vrot.slane %v2500, 4
      %v2503 = vshll.u32 %v2424, 16
      %v2505 = vrot.slane %v2503, 5
      %v2506 = vsel %vm975, %v2501, %v2505
      %v2507 = vshrl.u32 %v2424, 16
      %v2509 = vrot.slane %v2507, 4
      %v2510 = vor.u32 %v2509, %v2505
      %v2511 = vrot.slane %v2510, 4
      %v2513 = vshll.u32 %v2425, 16
      %v2515 = vrot.slane %v2513, 5
      %v2516 = vsel %vm975, %v2511, %v2515
      %v2517 = vshrl.u32 %v2425, 16
      %v2519 = vrot.slane %v2517, 4
      %v2520 = vor.u32 %v2519, %v2515
      %v2521 = vrot.slane %v2520, 4
      %v2523 = vshll.u32 %v2426, 16
      %v2525 = vrot.slane %v2523, 5
      %v2526 = vsel %vm975, %v2521, %v2525
      %v2528 = vshrl.u32 %v2427, 16
      %v2530 = vrot.slane %v2528, 4
      %v2531 = vshll.u32 %v2427, 16
      %v2533 = vrot.slane %v2531, 5
      %v2534 = vor.u32 %v2530, %v2533
      %v2535 = vrot.slane %v2534, 4
      %v2537 = vshll.u32 %v2428, 16
      %v2539 = vrot.slane %v2537, 5
      %v2540 = vsel %vm975, %v2535, %v2539
      %v2541 = vshrl.u32 %v2428, 16
      %v2543 = vrot.slane %v2541, 4
      %v2544 = vor.u32 %v2543, %v2539
      %v2545 = vrot.slane %v2544, 4
      %v2547 = vshll.u32 %v2429, 16
      %v2549 = vrot.slane %v2547, 5
      %v2550 = vsel %vm975, %v2545, %v2549
      %v2551 = vshrl.u32 %v2429, 16
      %v2553 = vrot.slane %v2551, 4
      %v2554 = vor.u32 %v2553, %v2549
      %v2555 = vrot.slane %v2554, 4
      %v2557 = vshll.u32 %v2430, 16
      %v2559 = vrot.slane %v2557, 5
      %v2560 = vsel %vm975, %v2555, %v2559
      %v2562 = vshrl.u32 %v2431, 16
      %v2564 = vrot.slane %v2562, 4
      %v2565 = vshll.u32 %v2431, 16
      %v2567 = vrot.slane %v2565, 5
      %v2568 = vor.u32 %v2564, %v2567
      %v2569 = vrot.slane %v2568, 4
      %v2571 = vshll.u32 %v2432, 16
      %v2573 = vrot.slane %v2571, 5
      %v2574 = vsel %vm975, %v2569, %v2573
      %v2575 = vshrl.u32 %v2432, 16
      %v2577 = vrot.slane %v2575, 4
      %v2578 = vor.u32 %v2577, %v2573
      %v2579 = vrot.slane %v2578, 4
      %v2581 = vshll.u32 %v2433, 16
      %v2583 = vrot.slane %v2581, 5
      %v2584 = vsel %vm975, %v2579, %v2583
      %v2585 = vshrl.u32 %v2433, 16
      %v2587 = vrot.slane %v2585, 4
      %v2588 = vor.u32 %v2587, %v2583
      %v2589 = vrot.slane %v2588, 4
      %v2591 = vshll.u32 %v2434, 16
      %v2593 = vrot.slane %v2591, 5
      %v2594 = vsel %vm975, %v2589, %v2593
      %v2596 = vshrl.u32 %v2435, 16
      %v2598 = vrot.slane %v2596, 4
      %v2599 = vshll.u32 %v2435, 16
      %v2601 = vrot.slane %v2599, 5
      %v2602 = vor.u32 %v2598, %v2601
      %v2603 = vrot.slane %v2602, 4
      %v2605 = vshll.u32 %v2436, 16
      %v2607 = vrot.slane %v2605, 5
      %v2608 = vsel %vm975, %v2603, %v2607
      %v2609 = vshrl.u32 %v2436, 16
      %v2611 = vrot.slane %v2609, 4
      %v2612 = vor.u32 %v2611, %v2607
      %v2613 = vrot.slane %v2612, 4
      %v2615 = vshll.u32 %v2437, 16
      %v2617 = vrot.slane %v2615, 5
      %v2618 = vsel %vm975, %v2613, %v2617
      %v2619 = vshrl.u32 %v2437, 16
      %v2621 = vrot.slane %v2619, 4
      %v2622 = vor.u32 %v2621, %v2617
      %v2623 = vrot.slane %v2622, 4
      %v2625 = vshll.u32 %v2438, 16
      %v2627 = vrot.slane %v2625, 5
      %v2628 = vsel %vm975, %v2623, %v2627
      %v2630 = vshrl.u32 %v2439, 16
      %v2632 = vrot.slane %v2630, 4
      %v2633 = vshll.u32 %v2439, 16
      %v2635 = vrot.slane %v2633, 5
      %v2636 = vor.u32 %v2632, %v2635
      %v2637 = vrot.slane %v2636, 4
      %v2639 = vshll.u32 %v2440, 16
      %v2641 = vrot.slane %v2639, 5
      %v2642 = vsel %vm975, %v2637, %v2641
      %v2643 = vshrl.u32 %v2440, 16
      %v2645 = vrot.slane %v2643, 4
      %v2646 = vor.u32 %v2645, %v2641
      %v2647 = vrot.slane %v2646, 4
      %v2649 = vshll.u32 %v2441, 16
      %v2651 = vrot.slane %v2649, 5
      %v2652 = vsel %vm975, %v2647, %v2651
      %v2653 = vshrl.u32 %v2441, 16
      %v2655 = vrot.slane %v2653, 4
      %v2656 = vor.u32 %v2655, %v2651
      %v2657 = vrot.slane %v2656, 4
      %v2659 = vshll.u32 %v2442, 16
      %v2661 = vrot.slane %v2659, 5
      %v2662 = vsel %vm975, %v2657, %v2661
      %v2664 = vshrl.u32 %v2443, 16
      %v2666 = vrot.slane %v2664, 4
      %v2667 = vshll.u32 %v2443, 16
      %v2669 = vrot.slane %v2667, 5
      %v2670 = vor.u32 %v2666, %v2669
      %v2671 = vrot.slane %v2670, 4
      %v2673 = vshll.u32 %v2444, 16
      %v2675 = vrot.slane %v2673, 5
      %v2676 = vsel %vm975, %v2671, %v2675
      %v2677 = vshrl.u32 %v2444, 16
      %v2679 = vrot.slane %v2677, 4
      %v2680 = vor.u32 %v2679, %v2675
      %v2681 = vrot.slane %v2680, 4
      %v2683 = vshll.u32 %v2445, 16
      %v2685 = vrot.slane %v2683, 5
      %v2686 = vsel %vm975, %v2681, %v2685
      %v2687 = vshrl.u32 %v2445, 16
      %v2689 = vrot.slane %v2687, 4
      %v2690 = vor.u32 %v2689, %v2685
      %v2691 = vrot.slane %v2690, 4
      %v2693 = vshll.u32 %v2446, 16
      %v2695 = vrot.slane %v2693, 5
      %v2696 = vsel %vm975, %v2691, %v2695
      %v2698 = vshrl.u32 %v2447, 16
      %v2700 = vrot.slane %v2698, 4
      %v2701 = vshll.u32 %v2447, 16
      %v2703 = vrot.slane %v2701, 5
      %v2704 = vor.u32 %v2700, %v2703
      %v2705 = vrot.slane %v2704, 4
      %v2707 = vshll.u32 %v2448, 16
      %v2709 = vrot.slane %v2707, 5
      %v2710 = vsel %vm975, %v2705, %v2709
      %v2711 = vshrl.u32 %v2448, 16
      %v2713 = vrot.slane %v2711, 4
      %v2714 = vor.u32 %v2713, %v2709
      %v2715 = vrot.slane %v2714, 4
      %v2717 = vshll.u32 %v2449, 16
      %v2719 = vrot.slane %v2717, 5
      %v2720 = vsel %vm975, %v2715, %v2719
      %v2721 = vshrl.u32 %v2449, 16
      %v2723 = vrot.slane %v2721, 4
      %v2724 = vor.u32 %v2723, %v2719
      %v2725 = vrot.slane %v2724, 4
      %v2727 = vshll.u32 %v2450, 16
      %v2729 = vrot.slane %v2727, 5
      %v2730 = vsel %vm975, %v2725, %v2729
      %v2732 = vshrl.u32 %v2451, 16
      %v2734 = vrot.slane %v2732, 4
      %v2735 = vshll.u32 %v2451, 16
      %v2737 = vrot.slane %v2735, 5
      %v2738 = vor.u32 %v2734, %v2737
      %v2739 = vrot.slane %v2738, 4
      %v2741 = vshll.u32 %v2452, 16
      %v2743 = vrot.slane %v2741, 5
      %v2744 = vsel %vm975, %v2739, %v2743
      %v2745 = vshrl.u32 %v2452, 16
      %v2747 = vrot.slane %v2745, 4
      %v2748 = vor.u32 %v2747, %v2743
      %v2749 = vrot.slane %v2748, 4
      %v2751 = vshll.u32 %v2453, 16
      %v2753 = vrot.slane %v2751, 5
      %v2754 = vsel %vm975, %v2749, %v2753
      %v2755 = vshrl.u32 %v2453, 16
      %v2757 = vrot.slane %v2755, 4
      %v2758 = vor.u32 %v2757, %v2753
      %v2759 = vrot.slane %v2758, 4
      %v2761 = vshll.u32 %v2454, 16
      %v2763 = vrot.slane %v2761, 5
      %v2764 = vsel %vm975, %v2759, %v2763
      %v2766 = vshrl.u32 %v2455, 16
      %v2768 = vrot.slane %v2766, 4
      %v2769 = vshll.u32 %v2455, 16
      %v2771 = vrot.slane %v2769, 5
      %v2772 = vor.u32 %v2768, %v2771
      %v2773 = vrot.slane %v2772, 4
      %v2775 = vshll.u32 %v2456, 16
      %v2777 = vrot.slane %v2775, 5
      %v2778 = vsel %vm975, %v2773, %v2777
      %v2779 = vshrl.u32 %v2456, 16
      %v2781 = vrot.slane %v2779, 4
      %v2782 = vor.u32 %v2781, %v2777
      %v2783 = vrot.slane %v2782, 4
      %v2785 = vshll.u32 %v2457, 16
      %v2787 = vrot.slane %v2785, 5
      %v2788 = vsel %vm975, %v2783, %v2787
      %v2789 = vshrl.u32 %v2457, 16
      %v2791 = vrot.slane %v2789, 4
      %v2792 = vor.u32 %v2791, %v2787
      %v2793 = vrot.slane %v2792, 4
      %v2795 = vshll.u32 %v2458, 16
      %v2797 = vrot.slane %v2795, 5
      %v2798 = vsel %vm975, %v2793, %v2797
      %s2799 = scalar_lea.vmem %s1, 256
      %v2800 = vld [vmem:[%s2799] sm:$0xf]
      %v2801 = vld [vmem:[%s2799 + $0x4] sm:$0xf]
      %v2802 = vld [vmem:[%s2799 + $0x8] sm:$0xf]
      %v2803 = vld [vmem:[%s2799 + $0xc] sm:$0xf]
      %v2804 = vld [vmem:[%s2799 + $0x10] sm:$0xf]
      %v2805 = vld [vmem:[%s2799 + $0x14] sm:$0xf]
      %v2806 = vld [vmem:[%s2799 + $0x18] sm:$0xf]
      %v2807 = vld [vmem:[%s2799 + $0x1c] sm:$0xf]
      %v2808 = vld [vmem:[%s2799 + $0x20] sm:$0xf]
      %v2809 = vld [vmem:[%s2799 + $0x24] sm:$0xf]
      %v2810 = vld [vmem:[%s2799 + $0x28] sm:$0xf]
      %v2811 = vld [vmem:[%s2799 + $0x2c] sm:$0xf]
      %v2812 = vld [vmem:[%s2799 + $0x30] sm:$0xf]
      %v2813 = vld [vmem:[%s2799 + $0x34] sm:$0xf]
      %v2814 = vld [vmem:[%s2799 + $0x38] sm:$0xf]
      %v2815 = vld [vmem:[%s2799 + $0x3c] sm:$0xf]
      %v2816 = vunpack.c.l.b16 %v2472
      %v2817 = vunpack.c.l.b16 %v2482
      %v2818 = vunpack.c.l.b16 %v2492
      %v2819 = vunpack.c.l.b16 %v2506
      %v2820 = vunpack.c.l.b16 %v2516
      %v2821 = vunpack.c.l.b16 %v2526
      %v2822 = vunpack.c.l.b16 %v2540
      %v2823 = vunpack.c.l.b16 %v2550
      %v2824 = vunpack.c.l.b16 %v2560
      %v2825 = vunpack.c.l.b16 %v2574
      %v2826 = vunpack.c.l.b16 %v2584
      %v2827 = vunpack.c.l.b16 %v2594
      %v2828 = vunpack.c.l.b16 %v2608
      %v2829 = vunpack.c.l.b16 %v2618
      %v2830 = vunpack.c.l.b16 %v2628
      %v2831 = vunpack.c.l.b16 %v2642
      %v2832 = vunpack.c.l.b16 %v2652
      %v2833 = vunpack.c.l.b16 %v2662
      %v2834 = vunpack.c.l.b16 %v2676
      %v2835 = vunpack.c.l.b16 %v2686
      %v2836 = vunpack.c.l.b16 %v2696
      %v2837 = vunpack.c.l.b16 %v2710
      %v2838 = vunpack.c.l.b16 %v2720
      %v2839 = vunpack.c.l.b16 %v2730
      %v2840 = vunpack.c.l.b16 %v2744
      %v2841 = vunpack.c.l.b16 %v2754
      %v2842 = vunpack.c.l.b16 %v2764
      %v2843 = vunpack.c.l.b16 %v2778
      %v2844 = vunpack.c.l.b16 %v2788
      %v2845 = vunpack.c.l.b16 %v2798
      %v2846 = vpack.c.b16 %v2817, %v2816
      %v2847 = vpack.c.b16 %v2819, %v2818
      %v2848 = vpack.c.b16 %v2821, %v2820
      %v2849 = vpack.c.b16 %v2823, %v2822
      %v2850 = vpack.c.b16 %v2825, %v2824
      %v2851 = vpack.c.b16 %v2827, %v2826
      %v2852 = vpack.c.b16 %v2829, %v2828
      %v2853 = vpack.c.b16 %v2831, %v2830
      %v2854 = vpack.c.b16 %v2833, %v2832
      %v2855 = vpack.c.b16 %v2835, %v2834
      %v2856 = vpack.c.b16 %v2837, %v2836
      %v2857 = vpack.c.b16 %v2839, %v2838
      %v2858 = vpack.c.b16 %v2841, %v2840
      %v2859 = vpack.c.b16 %v2843, %v2842
      %v2860 = vpack.c.b16 %v2845, %v2844
      %v2892 = vunpack.c.l.b16 %v2800
      %v2893 = vunpack.c.l.b16 %v2801
      %v2894 = vunpack.c.l.b16 %v2802
      %v2895 = vunpack.c.l.b16 %v2803
      %v2896 = vunpack.c.l.b16 %v2804
      %v2897 = vunpack.c.l.b16 %v2805
      %v2898 = vunpack.c.l.b16 %v2806
      %v2899 = vunpack.c.l.b16 %v2807
      %v2900 = vunpack.c.l.b16 %v2808
      %v2901 = vunpack.c.l.b16 %v2809
      %v2902 = vunpack.c.l.b16 %v2810
      %v2903 = vunpack.c.l.b16 %v2811
      %v2904 = vunpack.c.l.b16 %v2812
      %v2905 = vunpack.c.l.b16 %v2813
      %v2906 = vunpack.c.l.b16 %v2814
      %v2907 = vunpack.c.l.b16 %v2815
      %v2908 = vpack.c.b16 %v2893, %v2892
      %v2909 = vpack.c.b16 %v2895, %v2894
      %v2910 = vpack.c.b16 %v2897, %v2896
      %v2911 = vpack.c.b16 %v2899, %v2898
      %v2912 = vpack.c.b16 %v2901, %v2900
      %v2913 = vpack.c.b16 %v2903, %v2902
      %v2914 = vpack.c.b16 %v2905, %v2904
      %v2915 = vpack.c.b16 %v2907, %v2906
      %2924 = vmatpush.bf16.msra.mxu0 %v2915
      %2925 = vmatpush.bf16.msra.mxu0 %v2914
      %2926 = vmatpush.bf16.msra.mxu0 %v2913
      %2927 = vmatpush.bf16.msra.mxu0 %v2912
      %2928 = vmatpush.bf16.msra.mxu0 %v2911
      %2929 = vmatpush.bf16.msra.mxu0 %v2910
      %2930 = vmatpush.bf16.msra.mxu0 %v2909
      %2931 = vmatpush.bf16.msra.mxu0 %v2908
      %2932 = vmatmul.bf16.gmra.mxu0 %v2846
      %v2933 = vpop.f32.mrf.mxu0
      %v2934 = vadd.f32 0.0, %v2933
      %v2935 = vpop.f32.mrf.mxu0
      %v2936 = vadd.f32 0.0, %v2935
      %2937 = vmatmul.bf16.gmra.mxu0 %v2847
      %v2938 = vpop.f32.mrf.mxu0
      %v2939 = vadd.f32 0.0, %v2938
      %v2940 = vpop.f32.mrf.mxu0
      %v2941 = vadd.f32 0.0, %v2940
      %2942 = vmatmul.bf16.gmra.mxu0 %v2848
      %v2943 = vpop.f32.mrf.mxu0
      %v2944 = vadd.f32 0.0, %v2943
      %v2945 = vpop.f32.mrf.mxu0
      %v2946 = vadd.f32 0.0, %v2945
      %2947 = vmatmul.bf16.gmra.mxu0 %v2849
      %v2948 = vpop.f32.mrf.mxu0
      %v2949 = vadd.f32 0.0, %v2948
      %v2950 = vpop.f32.mrf.mxu0
      %v2951 = vadd.f32 0.0, %v2950
      %2952 = vmatmul.bf16.gmra.mxu0 %v2850
      %v2953 = vpop.f32.mrf.mxu0
      %v2954 = vadd.f32 0.0, %v2953
      %v2955 = vpop.f32.mrf.mxu0
      %v2956 = vadd.f32 0.0, %v2955
      %2957 = vmatmul.bf16.gmra.mxu0 %v2851
      %v2958 = vpop.f32.mrf.mxu0
      %v2959 = vadd.f32 0.0, %v2958
      %v2960 = vpop.f32.mrf.mxu0
      %v2961 = vadd.f32 0.0, %v2960
      %2962 = vmatmul.bf16.gmra.mxu0 %v2852
      %v2963 = vpop.f32.mrf.mxu0
      %v2964 = vadd.f32 0.0, %v2963
      %v2965 = vpop.f32.mrf.mxu0
      %v2966 = vadd.f32 0.0, %v2965
      %2967 = vmatmul.bf16.gmra.mxu0 %v2853
      %v2968 = vpop.f32.mrf.mxu0
      %v2969 = vadd.f32 0.0, %v2968
      %v2970 = vpop.f32.mrf.mxu0
      %v2971 = vadd.f32 0.0, %v2970
      %2972 = vmatmul.bf16.gmra.mxu0 %v2854
      %v2973 = vpop.f32.mrf.mxu0
      %v2974 = vadd.f32 0.0, %v2973
      %v2975 = vpop.f32.mrf.mxu0
      %v2976 = vadd.f32 0.0, %v2975
      %2977 = vmatmul.bf16.gmra.mxu0 %v2855
      %v2978 = vpop.f32.mrf.mxu0
      %v2979 = vadd.f32 0.0, %v2978
      %v2980 = vpop.f32.mrf.mxu0
      %v2981 = vadd.f32 0.0, %v2980
      %2982 = vmatmul.bf16.gmra.mxu0 %v2856
      %v2983 = vpop.f32.mrf.mxu0
      %v2984 = vadd.f32 0.0, %v2983
      %v2985 = vpop.f32.mrf.mxu0
      %v2986 = vadd.f32 0.0, %v2985
      %2987 = vmatmul.bf16.gmra.mxu0 %v2857
      %v2988 = vpop.f32.mrf.mxu0
      %v2989 = vadd.f32 0.0, %v2988
      %v2990 = vpop.f32.mrf.mxu0
      %v2991 = vadd.f32 0.0, %v2990
      %2992 = vmatmul.bf16.gmra.mxu0 %v2858
      %v2993 = vpop.f32.mrf.mxu0
      %v2994 = vadd.f32 0.0, %v2993
      %v2995 = vpop.f32.mrf.mxu0
      %v2996 = vadd.f32 0.0, %v2995
      %2997 = vmatmul.bf16.gmra.mxu0 %v2859
      %v2998 = vpop.f32.mrf.mxu0
      %v2999 = vadd.f32 0.0, %v2998
      %v3000 = vpop.f32.mrf.mxu0
      %v3001 = vadd.f32 0.0, %v3000
      %3002 = vmatmul.bf16.gmra.mxu0 %v2860
      %v3003 = vpop.f32.mrf.mxu0
      %v3004 = vadd.f32 0.0, %v3003
      %v3005 = vpop.f32.mrf.mxu0
      %v3006 = vadd.f32 0.0, %v3005
      %3007 = vdwg.mxu0
      %v3008 = vadd.f32 %v2389, %v2934
      %v3009 = vadd.f32 %v2390, %v2936
      %v3010 = vadd.f32 %v2391, %v2939
      %v3011 = vadd.f32 %v2392, %v2941
      %v3012 = vadd.f32 %v2393, %v2944
      %v3013 = vadd.f32 %v2394, %v2946
      %v3014 = vadd.f32 %v2395, %v2949
      %v3015 = vadd.f32 %v2396, %v2951
      %v3016 = vadd.f32 %v2397, %v2954
      %v3017 = vadd.f32 %v2398, %v2956
      %v3018 = vadd.f32 %v2399, %v2959
      %v3019 = vadd.f32 %v2400, %v2961
      %v3020 = vadd.f32 %v2401, %v2964
      %v3021 = vadd.f32 %v2402, %v2966
      %v3022 = vadd.f32 %v2403, %v2969
      %v3023 = vadd.f32 %v2404, %v2971
      %v3024 = vadd.f32 %v2405, %v2974
      %v3025 = vadd.f32 %v2406, %v2976
      %v3026 = vadd.f32 %v2407, %v2979
      %v3027 = vadd.f32 %v2408, %v2981
      %v3028 = vadd.f32 %v2409, %v2984
      %v3029 = vadd.f32 %v2410, %v2986
      %v3030 = vadd.f32 %v2411, %v2989
      %v3031 = vadd.f32 %v2412, %v2991
      %v3032 = vadd.f32 %v2413, %v2994
      %v3033 = vadd.f32 %v2414, %v2996
      %v3034 = vadd.f32 %v2415, %v2999
      %v3035 = vadd.f32 %v2416, %v3001
      %v3036 = vadd.f32 %v2417, %v3004
      %v3037 = vadd.f32 %v2418, %v3006
      %v3038 = vld [vmem:[%s2119] sm:$0xe]
      %v3039 = vld [vmem:[%s2119 + $0x10] sm:$0xe]
      %v3040 = vld [vmem:[%s2119 + $0x20] sm:$0xe]
      %v3041 = vld [vmem:[%s2119 + $0x30] sm:$0xe]
      %v3042 = vld [vmem:[%s2119 + $0x40] sm:$0xe]
      %v3043 = vld [vmem:[%s2119 + $0x50] sm:$0xe]
      %v3044 = vld [vmem:[%s2119 + $0x60] sm:$0xe]
      %v3045 = vld [vmem:[%s2119 + $0x70] sm:$0xe]
      %v3046 = vld [vmem:[%s2119 + $0x80] sm:$0xe]
      %v3047 = vld [vmem:[%s2119 + $0x90] sm:$0xe]
      %v3088 = vrot.slane %v3038, 5
      %v3089 = vrot.slane %v3088, 4
      %v3090 = vrot.slane %v2420, 5
      %v3091 = vsel %vm1779, %v3089, %v3090
      %v3092 = vrot.slane %v3090, 4
      %v3093 = vrot.slane %v2421, 5
      %v3094 = vsel %vm1779, %v3092, %v3093
      %v3095 = vrot.slane %v3093, 4
      %v3096 = vrot.slane %v2422, 5
      %v3097 = vsel %vm1779, %v3095, %v3096
      %v3098 = vrot.slane %v3039, 5
      %v3099 = vrot.slane %v3098, 4
      %v3100 = vrot.slane %v2424, 5
      %v3101 = vsel %vm1779, %v3099, %v3100
      %v3102 = vrot.slane %v3100, 4
      %v3103 = vrot.slane %v2425, 5
      %v3104 = vsel %vm1779, %v3102, %v3103
      %v3105 = vrot.slane %v3103, 4
      %v3106 = vrot.slane %v2426, 5
      %v3107 = vsel %vm1779, %v3105, %v3106
      %v3108 = vrot.slane %v3040, 5
      %v3109 = vrot.slane %v3108, 4
      %v3110 = vrot.slane %v2428, 5
      %v3111 = vsel %vm1779, %v3109, %v3110
      %v3112 = vrot.slane %v3110, 4
      %v3113 = vrot.slane %v2429, 5
      %v3114 = vsel %vm1779, %v3112, %v3113
      %v3115 = vrot.slane %v3113, 4
      %v3116 = vrot.slane %v2430, 5
      %v3117 = vsel %vm1779, %v3115, %v3116
      %v3118 = vrot.slane %v3041, 5
      %v3119 = vrot.slane %v3118, 4
      %v3120 = vrot.slane %v2432, 5
      %v3121 = vsel %vm1779, %v3119, %v3120
      %v3122 = vrot.slane %v3120, 4
      %v3123 = vrot.slane %v2433, 5
      %v3124 = vsel %vm1779, %v3122, %v3123
      %v3125 = vrot.slane %v3123, 4
      %v3126 = vrot.slane %v2434, 5
      %v3127 = vsel %vm1779, %v3125, %v3126
      %v3128 = vrot.slane %v3042, 5
      %v3129 = vrot.slane %v3128, 4
      %v3130 = vrot.slane %v2436, 5
      %v3131 = vsel %vm1779, %v3129, %v3130
      %v3132 = vrot.slane %v3130, 4
      %v3133 = vrot.slane %v2437, 5
      %v3134 = vsel %vm1779, %v3132, %v3133
      %v3135 = vrot.slane %v3133, 4
      %v3136 = vrot.slane %v2438, 5
      %v3137 = vsel %vm1779, %v3135, %v3136
      %v3138 = vrot.slane %v3043, 5
      %v3139 = vrot.slane %v3138, 4
      %v3140 = vrot.slane %v2440, 5
      %v3141 = vsel %vm1779, %v3139, %v3140
      %v3142 = vrot.slane %v3140, 4
      %v3143 = vrot.slane %v2441, 5
      %v3144 = vsel %vm1779, %v3142, %v3143
      %v3145 = vrot.slane %v3143, 4
      %v3146 = vrot.slane %v2442, 5
      %v3147 = vsel %vm1779, %v3145, %v3146
      %v3148 = vrot.slane %v3044, 5
      %v3149 = vrot.slane %v3148, 4
      %v3150 = vrot.slane %v2444, 5
      %v3151 = vsel %vm1779, %v3149, %v3150
      %v3152 = vrot.slane %v3150, 4
      %v3153 = vrot.slane %v2445, 5
      %v3154 = vsel %vm1779, %v3152, %v3153
      %v3155 = vrot.slane %v3153, 4
      %v3156 = vrot.slane %v2446, 5
      %v3157 = vsel %vm1779, %v3155, %v3156
      %v3158 = vrot.slane %v3045, 5
      %v3159 = vrot.slane %v3158, 4
      %v3160 = vrot.slane %v2448, 5
      %v3161 = vsel %vm1779, %v3159, %v3160
      %v3162 = vrot.slane %v3160, 4
      %v3163 = vrot.slane %v2449, 5
      %v3164 = vsel %vm1779, %v3162, %v3163
      %v3165 = vrot.slane %v3163, 4
      %v3166 = vrot.slane %v2450, 5
      %v3167 = vsel %vm1779, %v3165, %v3166
      %v3168 = vrot.slane %v3046, 5
      %v3169 = vrot.slane %v3168, 4
      %v3170 = vrot.slane %v2452, 5
      %v3171 = vsel %vm1779, %v3169, %v3170
      %v3172 = vrot.slane %v3170, 4
      %v3173 = vrot.slane %v2453, 5
      %v3174 = vsel %vm1779, %v3172, %v3173
      %v3175 = vrot.slane %v3173, 4
      %v3176 = vrot.slane %v2454, 5
      %v3177 = vsel %vm1779, %v3175, %v3176
      %v3178 = vrot.slane %v3047, 5
      %v3179 = vrot.slane %v3178, 4
      %v3180 = vrot.slane %v2456, 5
      %v3181 = vsel %vm1779, %v3179, %v3180
      %v3182 = vrot.slane %v3180, 4
      %v3183 = vrot.slane %v2457, 5
      %v3184 = vsel %vm1779, %v3182, %v3183
      %v3185 = vrot.slane %v3183, 4
      %v3186 = vrot.slane %v2458, 5
      %v3187 = vsel %vm1779, %v3185, %v3186
      %s3188 = scalar_lea.vmem %s1, 320
      %v3189 = vld [vmem:[%s3188] sm:$0xf]
      %v3190 = vld [vmem:[%s3188 + $0x4] sm:$0xf]
      %v3191 = vld [vmem:[%s3188 + $0x8] sm:$0xf]
      %v3192 = vld [vmem:[%s3188 + $0xc] sm:$0xf]
      %v3193 = vld [vmem:[%s3188 + $0x10] sm:$0xf]
      %v3194 = vld [vmem:[%s3188 + $0x14] sm:$0xf]
      %v3195 = vld [vmem:[%s3188 + $0x18] sm:$0xf]
      %v3196 = vld [vmem:[%s3188 + $0x1c] sm:$0xf]
      %v3197 = vld [vmem:[%s3188 + $0x20] sm:$0xf]
      %v3198 = vld [vmem:[%s3188 + $0x24] sm:$0xf]
      %v3199 = vld [vmem:[%s3188 + $0x28] sm:$0xf]
      %v3200 = vld [vmem:[%s3188 + $0x2c] sm:$0xf]
      %v3201 = vld [vmem:[%s3188 + $0x30] sm:$0xf]
      %v3202 = vld [vmem:[%s3188 + $0x34] sm:$0xf]
      %v3203 = vld [vmem:[%s3188 + $0x38] sm:$0xf]
      %v3204 = vld [vmem:[%s3188 + $0x3c] sm:$0xf]
      %v3205 = vunpack.c.l.b16 %v3091
      %v3206 = vunpack.c.l.b16 %v3094
      %v3207 = vunpack.c.l.b16 %v3097
      %v3208 = vunpack.c.l.b16 %v3101
      %v3209 = vunpack.c.l.b16 %v3104
      %v3210 = vunpack.c.l.b16 %v3107
      %v3211 = vunpack.c.l.b16 %v3111
      %v3212 = vunpack.c.l.b16 %v3114
      %v3213 = vunpack.c.l.b16 %v3117
      %v3214 = vunpack.c.l.b16 %v3121
      %v3215 = vunpack.c.l.b16 %v3124
      %v3216 = vunpack.c.l.b16 %v3127
      %v3217 = vunpack.c.l.b16 %v3131
      %v3218 = vunpack.c.l.b16 %v3134
      %v3219 = vunpack.c.l.b16 %v3137
      %v3220 = vunpack.c.l.b16 %v3141
      %v3221 = vunpack.c.l.b16 %v3144
      %v3222 = vunpack.c.l.b16 %v3147
      %v3223 = vunpack.c.l.b16 %v3151
      %v3224 = vunpack.c.l.b16 %v3154
      %v3225 = vunpack.c.l.b16 %v3157
      %v3226 = vunpack.c.l.b16 %v3161
      %v3227 = vunpack.c.l.b16 %v3164
      %v3228 = vunpack.c.l.b16 %v3167
      %v3229 = vunpack.c.l.b16 %v3171
      %v3230 = vunpack.c.l.b16 %v3174
      %v3231 = vunpack.c.l.b16 %v3177
      %v3232 = vunpack.c.l.b16 %v3181
      %v3233 = vunpack.c.l.b16 %v3184
      %v3234 = vunpack.c.l.b16 %v3187
      %v3235 = vpack.c.b16 %v3206, %v3205
      %v3236 = vpack.c.b16 %v3208, %v3207
      %v3237 = vpack.c.b16 %v3210, %v3209
      %v3238 = vpack.c.b16 %v3212, %v3211
      %v3239 = vpack.c.b16 %v3214, %v3213
      %v3240 = vpack.c.b16 %v3216, %v3215
      %v3241 = vpack.c.b16 %v3218, %v3217
      %v3242 = vpack.c.b16 %v3220, %v3219
      %v3243 = vpack.c.b16 %v3222, %v3221
      %v3244 = vpack.c.b16 %v3224, %v3223
      %v3245 = vpack.c.b16 %v3226, %v3225
      %v3246 = vpack.c.b16 %v3228, %v3227
      %v3247 = vpack.c.b16 %v3230, %v3229
      %v3248 = vpack.c.b16 %v3232, %v3231
      %v3249 = vpack.c.b16 %v3234, %v3233
      %v3281 = vunpack.c.l.b16 %v3189
      %v3282 = vunpack.c.l.b16 %v3190
      %v3283 = vunpack.c.l.b16 %v3191
      %v3284 = vunpack.c.l.b16 %v3192
      %v3285 = vunpack.c.l.b16 %v3193
      %v3286 = vunpack.c.l.b16 %v3194
      %v3287 = vunpack.c.l.b16 %v3195
      %v3288 = vunpack.c.l.b16 %v3196
      %v3289 = vunpack.c.l.b16 %v3197
      %v3290 = vunpack.c.l.b16 %v3198
      %v3291 = vunpack.c.l.b16 %v3199
      %v3292 = vunpack.c.l.b16 %v3200
      %v3293 = vunpack.c.l.b16 %v3201
      %v3294 = vunpack.c.l.b16 %v3202
      %v3295 = vunpack.c.l.b16 %v3203
      %v3296 = vunpack.c.l.b16 %v3204
      %v3297 = vpack.c.b16 %v3282, %v3281
      %v3298 = vpack.c.b16 %v3284, %v3283
      %v3299 = vpack.c.b16 %v3286, %v3285
      %v3300 = vpack.c.b16 %v3288, %v3287
      %v3301 = vpack.c.b16 %v3290, %v3289
      %v3302 = vpack.c.b16 %v3292, %v3291
      %v3303 = vpack.c.b16 %v3294, %v3293
      %v3304 = vpack.c.b16 %v3296, %v3295
      %3313 = vmatpush.bf16.msra.mxu0 %v3304
      %3314 = vmatpush.bf16.msra.mxu0 %v3303
      %3315 = vmatpush.bf16.msra.mxu0 %v3302
      %3316 = vmatpush.bf16.msra.mxu0 %v3301
      %3317 = vmatpush.bf16.msra.mxu0 %v3300
      %3318 = vmatpush.bf16.msra.mxu0 %v3299
      %3319 = vmatpush.bf16.msra.mxu0 %v3298
      %3320 = vmatpush.bf16.msra.mxu0 %v3297
      %3321 = vmatmul.bf16.gmra.mxu0 %v3235
      %v3322 = vpop.f32.mrf.mxu0
      %v3323 = vadd.f32 0.0, %v3322
      %v3324 = vpop.f32.mrf.mxu0
      %v3325 = vadd.f32 0.0, %v3324
      %3326 = vmatmul.bf16.gmra.mxu0 %v3236
      %v3327 = vpop.f32.mrf.mxu0
      %v3328 = vadd.f32 0.0, %v3327
      %v3329 = vpop.f32.mrf.mxu0
      %v3330 = vadd.f32 0.0, %v3329
      %3331 = vmatmul.bf16.gmra.mxu0 %v3237
      %v3332 = vpop.f32.mrf.mxu0
      %v3333 = vadd.f32 0.0, %v3332
      %v3334 = vpop.f32.mrf.mxu0
      %v3335 = vadd.f32 0.0, %v3334
      %3336 = vmatmul.bf16.gmra.mxu0 %v3238
      %v3337 = vpop.f32.mrf.mxu0
      %v3338 = vadd.f32 0.0, %v3337
      %v3339 = vpop.f32.mrf.mxu0
      %v3340 = vadd.f32 0.0, %v3339
      %3341 = vmatmul.bf16.gmra.mxu0 %v3239
      %v3342 = vpop.f32.mrf.mxu0
      %v3343 = vadd.f32 0.0, %v3342
      %v3344 = vpop.f32.mrf.mxu0
      %v3345 = vadd.f32 0.0, %v3344
      %3346 = vmatmul.bf16.gmra.mxu0 %v3240
      %v3347 = vpop.f32.mrf.mxu0
      %v3348 = vadd.f32 0.0, %v3347
      %v3349 = vpop.f32.mrf.mxu0
      %v3350 = vadd.f32 0.0, %v3349
      %3351 = vmatmul.bf16.gmra.mxu0 %v3241
      %v3352 = vpop.f32.mrf.mxu0
      %v3353 = vadd.f32 0.0, %v3352
      %v3354 = vpop.f32.mrf.mxu0
      %v3355 = vadd.f32 0.0, %v3354
      %3356 = vmatmul.bf16.gmra.mxu0 %v3242
      %v3357 = vpop.f32.mrf.mxu0
      %v3358 = vadd.f32 0.0, %v3357
      %v3359 = vpop.f32.mrf.mxu0
      %v3360 = vadd.f32 0.0, %v3359
      %3361 = vmatmul.bf16.gmra.mxu0 %v3243
      %v3362 = vpop.f32.mrf.mxu0
      %v3363 = vadd.f32 0.0, %v3362
      %v3364 = vpop.f32.mrf.mxu0
      %v3365 = vadd.f32 0.0, %v3364
      %3366 = vmatmul.bf16.gmra.mxu0 %v3244
      %v3367 = vpop.f32.mrf.mxu0
      %v3368 = vadd.f32 0.0, %v3367
      %v3369 = vpop.f32.mrf.mxu0
      %v3370 = vadd.f32 0.0, %v3369
      %3371 = vmatmul.bf16.gmra.mxu0 %v3245
      %v3372 = vpop.f32.mrf.mxu0
      %v3373 = vadd.f32 0.0, %v3372
      %v3374 = vpop.f32.mrf.mxu0
      %v3375 = vadd.f32 0.0, %v3374
      %3376 = vmatmul.bf16.gmra.mxu0 %v3246
      %v3377 = vpop.f32.mrf.mxu0
      %v3378 = vadd.f32 0.0, %v3377
      %v3379 = vpop.f32.mrf.mxu0
      %v3380 = vadd.f32 0.0, %v3379
      %3381 = vmatmul.bf16.gmra.mxu0 %v3247
      %v3382 = vpop.f32.mrf.mxu0
      %v3383 = vadd.f32 0.0, %v3382
      %v3384 = vpop.f32.mrf.mxu0
      %v3385 = vadd.f32 0.0, %v3384
      %3386 = vmatmul.bf16.gmra.mxu0 %v3248
      %v3387 = vpop.f32.mrf.mxu0
      %v3388 = vadd.f32 0.0, %v3387
      %v3389 = vpop.f32.mrf.mxu0
      %v3390 = vadd.f32 0.0, %v3389
      %3391 = vmatmul.bf16.gmra.mxu0 %v3249
      %v3392 = vpop.f32.mrf.mxu0
      %v3393 = vadd.f32 0.0, %v3392
      %v3394 = vpop.f32.mrf.mxu0
      %v3395 = vadd.f32 0.0, %v3394
      %3396 = vdwg.mxu0
      %v3397 = vadd.f32 %v3008, %v3323
      %v3398 = vadd.f32 %v3009, %v3325
      %v3399 = vadd.f32 %v3010, %v3328
      %v3400 = vadd.f32 %v3011, %v3330
      %v3401 = vadd.f32 %v3012, %v3333
      %v3402 = vadd.f32 %v3013, %v3335
      %v3403 = vadd.f32 %v3014, %v3338
      %v3404 = vadd.f32 %v3015, %v3340
      %v3405 = vadd.f32 %v3016, %v3343
      %v3406 = vadd.f32 %v3017, %v3345
      %v3407 = vadd.f32 %v3018, %v3348
      %v3408 = vadd.f32 %v3019, %v3350
      %v3409 = vadd.f32 %v3020, %v3353
      %v3410 = vadd.f32 %v3021, %v3355
      %v3411 = vadd.f32 %v3022, %v3358
      %v3412 = vadd.f32 %v3023, %v3360
      %v3413 = vadd.f32 %v3024, %v3363
      %v3414 = vadd.f32 %v3025, %v3365
      %v3415 = vadd.f32 %v3026, %v3368
      %v3416 = vadd.f32 %v3027, %v3370
      %v3417 = vadd.f32 %v3028, %v3373
      %v3418 = vadd.f32 %v3029, %v3375
      %v3419 = vadd.f32 %v3030, %v3378
      %v3420 = vadd.f32 %v3031, %v3380
      %v3421 = vadd.f32 %v3032, %v3383
      %v3422 = vadd.f32 %v3033, %v3385
      %v3423 = vadd.f32 %v3034, %v3388
      %v3424 = vadd.f32 %v3035, %v3390
      %v3425 = vadd.f32 %v3036, %v3393
      %v3426 = vadd.f32 %v3037, %v3395
      %s3427 = scalar_lea.vmem [#allocation3], 32
      %v3428 = vld [vmem:[%s3427] sm:$0xf]
      %v3429 = vld [vmem:[%s3427 + $0x4] sm:$0xf]
      %v3430 = vld [vmem:[%s3427 + $0x8] sm:$0xf]
      %v3431 = vld [vmem:[%s3427 + $0x10] sm:$0xf]
      %v3432 = vld [vmem:[%s3427 + $0x14] sm:$0xf]
      %v3433 = vld [vmem:[%s3427 + $0x18] sm:$0xf]
      %v3434 = vld [vmem:[%s3427 + $0x20] sm:$0xf]
      %v3435 = vld [vmem:[%s3427 + $0x24] sm:$0xf]
      %v3436 = vld [vmem:[%s3427 + $0x28] sm:$0xf]
      %v3437 = vld [vmem:[%s3427 + $0x30] sm:$0xf]
      %v3438 = vld [vmem:[%s3427 + $0x34] sm:$0xf]
      %v3439 = vld [vmem:[%s3427 + $0x38] sm:$0xf]
      %v3440 = vld [vmem:[%s3427 + $0x40] sm:$0xf]
      %v3441 = vld [vmem:[%s3427 + $0x44] sm:$0xf]
      %v3442 = vld [vmem:[%s3427 + $0x48] sm:$0xf]
      %v3443 = vld [vmem:[%s3427 + $0x50] sm:$0xf]
      %v3444 = vld [vmem:[%s3427 + $0x54] sm:$0xf]
      %v3445 = vld [vmem:[%s3427 + $0x58] sm:$0xf]
      %v3446 = vld [vmem:[%s3427 + $0x60] sm:$0xf]
      %v3447 = vld [vmem:[%s3427 + $0x64] sm:$0xf]
      %v3448 = vld [vmem:[%s3427 + $0x68] sm:$0xf]
      %v3449 = vld [vmem:[%s3427 + $0x70] sm:$0xf]
      %v3450 = vld [vmem:[%s3427 + $0x74] sm:$0xf]
      %v3451 = vld [vmem:[%s3427 + $0x78] sm:$0xf]
      %v3452 = vld [vmem:[%s3427 + $0x80] sm:$0xf]
      %v3453 = vld [vmem:[%s3427 + $0x84] sm:$0xf]
      %v3454 = vld [vmem:[%s3427 + $0x88] sm:$0xf]
      %v3455 = vld [vmem:[%s3427 + $0x90] sm:$0xf]
      %v3456 = vld [vmem:[%s3427 + $0x94] sm:$0xf]
      %v3457 = vld [vmem:[%s3427 + $0x98] sm:$0xf]
      %s3458 = scalar_lea.vmem %s1, 384
      %v3459 = vld [vmem:[%s3458] sm:$0xf]
      %v3460 = vld [vmem:[%s3458 + $0x4] sm:$0xf]
      %v3461 = vld [vmem:[%s3458 + $0x8] sm:$0xf]
      %v3462 = vld [vmem:[%s3458 + $0xc] sm:$0xf]
      %v3463 = vld [vmem:[%s3458 + $0x10] sm:$0xf]
      %v3464 = vld [vmem:[%s3458 + $0x14] sm:$0xf]
      %v3465 = vld [vmem:[%s3458 + $0x18] sm:$0xf]
      %v3466 = vld [vmem:[%s3458 + $0x1c] sm:$0xf]
      %v3467 = vld [vmem:[%s3458 + $0x20] sm:$0xf]
      %v3468 = vld [vmem:[%s3458 + $0x24] sm:$0xf]
      %v3469 = vld [vmem:[%s3458 + $0x28] sm:$0xf]
      %v3470 = vld [vmem:[%s3458 + $0x2c] sm:$0xf]
      %v3471 = vld [vmem:[%s3458 + $0x30] sm:$0xf]
      %v3472 = vld [vmem:[%s3458 + $0x34] sm:$0xf]
      %v3473 = vld [vmem:[%s3458 + $0x38] sm:$0xf]
      %v3474 = vld [vmem:[%s3458 + $0x3c] sm:$0xf]
      %v3505 = vunpack.c.l.b16 %v3428
      %v3506 = vunpack.c.l.b16 %v3429
      %v3507 = vunpack.c.l.b16 %v3430
      %v3508 = vunpack.c.l.b16 %v3431
      %v3509 = vunpack.c.l.b16 %v3432
      %v3510 = vunpack.c.l.b16 %v3433
      %v3511 = vunpack.c.l.b16 %v3434
      %v3512 = vunpack.c.l.b16 %v3435
      %v3513 = vunpack.c.l.b16 %v3436
      %v3514 = vunpack.c.l.b16 %v3437
      %v3515 = vunpack.c.l.b16 %v3438
      %v3516 = vunpack.c.l.b16 %v3439
      %v3517 = vunpack.c.l.b16 %v3440
      %v3518 = vunpack.c.l.b16 %v3441
      %v3519 = vunpack.c.l.b16 %v3442
      %v3520 = vunpack.c.l.b16 %v3443
      %v3521 = vunpack.c.l.b16 %v3444
      %v3522 = vunpack.c.l.b16 %v3445
      %v3523 = vunpack.c.l.b16 %v3446
      %v3524 = vunpack.c.l.b16 %v3447
      %v3525 = vunpack.c.l.b16 %v3448
      %v3526 = vunpack.c.l.b16 %v3449
      %v3527 = vunpack.c.l.b16 %v3450
      %v3528 = vunpack.c.l.b16 %v3451
      %v3529 = vunpack.c.l.b16 %v3452
      %v3530 = vunpack.c.l.b16 %v3453
      %v3531 = vunpack.c.l.b16 %v3454
      %v3532 = vunpack.c.l.b16 %v3455
      %v3533 = vunpack.c.l.b16 %v3456
      %v3534 = vunpack.c.l.b16 %v3457
      %v3535 = vpack.c.b16 %v3506, %v3505
      %v3536 = vpack.c.b16 %v3508, %v3507
      %v3537 = vpack.c.b16 %v3510, %v3509
      %v3538 = vpack.c.b16 %v3512, %v3511
      %v3539 = vpack.c.b16 %v3514, %v3513
      %v3540 = vpack.c.b16 %v3516, %v3515
      %v3541 = vpack.c.b16 %v3518, %v3517
      %v3542 = vpack.c.b16 %v3520, %v3519
      %v3543 = vpack.c.b16 %v3522, %v3521
      %v3544 = vpack.c.b16 %v3524, %v3523
      %v3545 = vpack.c.b16 %v3526, %v3525
      %v3546 = vpack.c.b16 %v3528, %v3527
      %v3547 = vpack.c.b16 %v3530, %v3529
      %v3548 = vpack.c.b16 %v3532, %v3531
      %v3549 = vpack.c.b16 %v3534, %v3533
      %v3581 = vunpack.c.l.b16 %v3459
      %v3582 = vunpack.c.l.b16 %v3460
      %v3583 = vunpack.c.l.b16 %v3461
      %v3584 = vunpack.c.l.b16 %v3462
      %v3585 = vunpack.c.l.b16 %v3463
      %v3586 = vunpack.c.l.b16 %v3464
      %v3587 = vunpack.c.l.b16 %v3465
      %v3588 = vunpack.c.l.b16 %v3466
      %v3589 = vunpack.c.l.b16 %v3467
      %v3590 = vunpack.c.l.b16 %v3468
      %v3591 = vunpack.c.l.b16 %v3469
      %v3592 = vunpack.c.l.b16 %v3470
      %v3593 = vunpack.c.l.b16 %v3471
      %v3594 = vunpack.c.l.b16 %v3472
      %v3595 = vunpack.c.l.b16 %v3473
      %v3596 = vunpack.c.l.b16 %v3474
      %v3597 = vpack.c.b16 %v3582, %v3581
      %v3598 = vpack.c.b16 %v3584, %v3583
      %v3599 = vpack.c.b16 %v3586, %v3585
      %v3600 = vpack.c.b16 %v3588, %v3587
      %v3601 = vpack.c.b16 %v3590, %v3589
      %v3602 = vpack.c.b16 %v3592, %v3591
      %v3603 = vpack.c.b16 %v3594, %v3593
      %v3604 = vpack.c.b16 %v3596, %v3595
      %3613 = vmatpush.bf16.msra.mxu0 %v3604
      %3614 = vmatpush.bf16.msra.mxu0 %v3603
      %3615 = vmatpush.bf16.msra.mxu0 %v3602
      %3616 = vmatpush.bf16.msra.mxu0 %v3601
      %3617 = vmatpush.bf16.msra.mxu0 %v3600
      %3618 = vmatpush.bf16.msra.mxu0 %v3599
      %3619 = vmatpush.bf16.msra.mxu0 %v3598
      %3620 = vmatpush.bf16.msra.mxu0 %v3597
      %3621 = vmatmul.bf16.gmra.mxu0 %v3535
      %v3622 = vpop.f32.mrf.mxu0
      %v3623 = vadd.f32 0.0, %v3622
      %v3624 = vpop.f32.mrf.mxu0
      %v3625 = vadd.f32 0.0, %v3624
      %3626 = vmatmul.bf16.gmra.mxu0 %v3536
      %v3627 = vpop.f32.mrf.mxu0
      %v3628 = vadd.f32 0.0, %v3627
      %v3629 = vpop.f32.mrf.mxu0
      %v3630 = vadd.f32 0.0, %v3629
      %3631 = vmatmul.bf16.gmra.mxu0 %v3537
      %v3632 = vpop.f32.mrf.mxu0
      %v3633 = vadd.f32 0.0, %v3632
      %v3634 = vpop.f32.mrf.mxu0
      %v3635 = vadd.f32 0.0, %v3634
      %3636 = vmatmul.bf16.gmra.mxu0 %v3538
      %v3637 = vpop.f32.mrf.mxu0
      %v3638 = vadd.f32 0.0, %v3637
      %v3639 = vpop.f32.mrf.mxu0
      %v3640 = vadd.f32 0.0, %v3639
      %3641 = vmatmul.bf16.gmra.mxu0 %v3539
      %v3642 = vpop.f32.mrf.mxu0
      %v3643 = vadd.f32 0.0, %v3642
      %v3644 = vpop.f32.mrf.mxu0
      %v3645 = vadd.f32 0.0, %v3644
      %3646 = vmatmul.bf16.gmra.mxu0 %v3540
      %v3647 = vpop.f32.mrf.mxu0
      %v3648 = vadd.f32 0.0, %v3647
      %v3649 = vpop.f32.mrf.mxu0
      %v3650 = vadd.f32 0.0, %v3649
      %3651 = vmatmul.bf16.gmra.mxu0 %v3541
      %v3652 = vpop.f32.mrf.mxu0
      %v3653 = vadd.f32 0.0, %v3652
      %v3654 = vpop.f32.mrf.mxu0
      %v3655 = vadd.f32 0.0, %v3654
      %3656 = vmatmul.bf16.gmra.mxu0 %v3542
      %v3657 = vpop.f32.mrf.mxu0
      %v3658 = vadd.f32 0.0, %v3657
      %v3659 = vpop.f32.mrf.mxu0
      %v3660 = vadd.f32 0.0, %v3659
      %3661 = vmatmul.bf16.gmra.mxu0 %v3543
      %v3662 = vpop.f32.mrf.mxu0
      %v3663 = vadd.f32 0.0, %v3662
      %v3664 = vpop.f32.mrf.mxu0
      %v3665 = vadd.f32 0.0, %v3664
      %3666 = vmatmul.bf16.gmra.mxu0 %v3544
      %v3667 = vpop.f32.mrf.mxu0
      %v3668 = vadd.f32 0.0, %v3667
      %v3669 = vpop.f32.mrf.mxu0
      %v3670 = vadd.f32 0.0, %v3669
      %3671 = vmatmul.bf16.gmra.mxu0 %v3545
      %v3672 = vpop.f32.mrf.mxu0
      %v3673 = vadd.f32 0.0, %v3672
      %v3674 = vpop.f32.mrf.mxu0
      %v3675 = vadd.f32 0.0, %v3674
      %3676 = vmatmul.bf16.gmra.mxu0 %v3546
      %v3677 = vpop.f32.mrf.mxu0
      %v3678 = vadd.f32 0.0, %v3677
      %v3679 = vpop.f32.mrf.mxu0
      %v3680 = vadd.f32 0.0, %v3679
      %3681 = vmatmul.bf16.gmra.mxu0 %v3547
      %v3682 = vpop.f32.mrf.mxu0
      %v3683 = vadd.f32 0.0, %v3682
      %v3684 = vpop.f32.mrf.mxu0
      %v3685 = vadd.f32 0.0, %v3684
      %3686 = vmatmul.bf16.gmra.mxu0 %v3548
      %v3687 = vpop.f32.mrf.mxu0
      %v3688 = vadd.f32 0.0, %v3687
      %v3689 = vpop.f32.mrf.mxu0
      %v3690 = vadd.f32 0.0, %v3689
      %3691 = vmatmul.bf16.gmra.mxu0 %v3549
      %v3692 = vpop.f32.mrf.mxu0
      %v3693 = vadd.f32 0.0, %v3692
      %v3694 = vpop.f32.mrf.mxu0
      %v3695 = vadd.f32 0.0, %v3694
      %3696 = vdwg.mxu0
      %v3697 = vadd.f32 %v3397, %v3623
      %v3698 = vadd.f32 %v3398, %v3625
      %v3699 = vadd.f32 %v3399, %v3628
      %v3700 = vadd.f32 %v3400, %v3630
      %v3701 = vadd.f32 %v3401, %v3633
      %v3702 = vadd.f32 %v3402, %v3635
      %v3703 = vadd.f32 %v3403, %v3638
      %v3704 = vadd.f32 %v3404, %v3640
      %v3705 = vadd.f32 %v3405, %v3643
      %v3706 = vadd.f32 %v3406, %v3645
      %v3707 = vadd.f32 %v3407, %v3648
      %v3708 = vadd.f32 %v3408, %v3650
      %v3709 = vadd.f32 %v3409, %v3653
      %v3710 = vadd.f32 %v3410, %v3655
      %v3711 = vadd.f32 %v3411, %v3658
      %v3712 = vadd.f32 %v3412, %v3660
      %v3713 = vadd.f32 %v3413, %v3663
      %v3714 = vadd.f32 %v3414, %v3665
      %v3715 = vadd.f32 %v3415, %v3668
      %v3716 = vadd.f32 %v3416, %v3670
      %v3717 = vadd.f32 %v3417, %v3673
      %v3718 = vadd.f32 %v3418, %v3675
      %v3719 = vadd.f32 %v3419, %v3678
      %v3720 = vadd.f32 %v3420, %v3680
      %v3721 = vadd.f32 %v3421, %v3683
      %v3722 = vadd.f32 %v3422, %v3685
      %v3723 = vadd.f32 %v3423, %v3688
      %v3724 = vadd.f32 %v3424, %v3690
      %v3725 = vadd.f32 %v3425, %v3693
      %v3726 = vadd.f32 %v3426, %v3695
      %v3727 = vld [vmem:[%s3427] sm:$0xf]
      %v3728 = vld [vmem:[%s3427 + $0x4] sm:$0xf]
      %v3729 = vld [vmem:[%s3427 + $0x8] sm:$0xf]
      %v3730 = vld [vmem:[%s3427 + $0xc] sm:$0x1]
      %v3731 = vld [vmem:[%s3427 + $0x10] sm:$0xf]
      %v3732 = vld [vmem:[%s3427 + $0x14] sm:$0xf]
      %v3733 = vld [vmem:[%s3427 + $0x18] sm:$0xf]
      %v3734 = vld [vmem:[%s3427 + $0x1c] sm:$0x1]
      %v3735 = vld [vmem:[%s3427 + $0x20] sm:$0xf]
      %v3736 = vld [vmem:[%s3427 + $0x24] sm:$0xf]
      %v3737 = vld [vmem:[%s3427 + $0x28] sm:$0xf]
      %v3738 = vld [vmem:[%s3427 + $0x2c] sm:$0x1]
      %v3739 = vld [vmem:[%s3427 + $0x30] sm:$0xf]
      %v3740 = vld [vmem:[%s3427 + $0x34] sm:$0xf]
      %v3741 = vld [vmem:[%s3427 + $0x38] sm:$0xf]
      %v3742 = vld [vmem:[%s3427 + $0x3c] sm:$0x1]
      %v3743 = vld [vmem:[%s3427 + $0x40] sm:$0xf]
      %v3744 = vld [vmem:[%s3427 + $0x44] sm:$0xf]
      %v3745 = vld [vmem:[%s3427 + $0x48] sm:$0xf]
      %v3746 = vld [vmem:[%s3427 + $0x4c] sm:$0x1]
      %v3747 = vld [vmem:[%s3427 + $0x50] sm:$0xf]
      %v3748 = vld [vmem:[%s3427 + $0x54] sm:$0xf]
      %v3749 = vld [vmem:[%s3427 + $0x58] sm:$0xf]
      %v3750 = vld [vmem:[%s3427 + $0x5c] sm:$0x1]
      %v3751 = vld [vmem:[%s3427 + $0x60] sm:$0xf]
      %v3752 = vld [vmem:[%s3427 + $0x64] sm:$0xf]
      %v3753 = vld [vmem:[%s3427 + $0x68] sm:$0xf]
      %v3754 = vld [vmem:[%s3427 + $0x6c] sm:$0x1]
      %v3755 = vld [vmem:[%s3427 + $0x70] sm:$0xf]
      %v3756 = vld [vmem:[%s3427 + $0x74] sm:$0xf]
      %v3757 = vld [vmem:[%s3427 + $0x78] sm:$0xf]
      %v3758 = vld [vmem:[%s3427 + $0x7c] sm:$0x1]
      %v3759 = vld [vmem:[%s3427 + $0x80] sm:$0xf]
      %v3760 = vld [vmem:[%s3427 + $0x84] sm:$0xf]
      %v3761 = vld [vmem:[%s3427 + $0x88] sm:$0xf]
      %v3762 = vld [vmem:[%s3427 + $0x8c] sm:$0x1]
      %v3763 = vld [vmem:[%s3427 + $0x90] sm:$0xf]
      %v3764 = vld [vmem:[%s3427 + $0x94] sm:$0xf]
      %v3765 = vld [vmem:[%s3427 + $0x98] sm:$0xf]
      %v3766 = vld [vmem:[%s3427 + $0x9c] sm:$0x1]
      %v3768 = vshrl.u32 %v3727, 16
      %v3770 = vrot.slane %v3768, 4
      %v3771 = vshll.u32 %v3727, 16
      %v3773 = vrot.slane %v3771, 5
      %v3774 = vor.u32 %v3770, %v3773
      %v3775 = vrot.slane %v3774, 4
      %v3777 = vshll.u32 %v3728, 16
      %v3779 = vrot.slane %v3777, 5
      %v3780 = vsel %vm975, %v3775, %v3779
      %v3781 = vshrl.u32 %v3728, 16
      %v3783 = vrot.slane %v3781, 4
      %v3784 = vor.u32 %v3783, %v3779
      %v3785 = vrot.slane %v3784, 4
      %v3787 = vshll.u32 %v3729, 16
      %v3789 = vrot.slane %v3787, 5
      %v3790 = vsel %vm975, %v3785, %v3789
      %v3791 = vshrl.u32 %v3729, 16
      %v3793 = vrot.slane %v3791, 4
      %v3794 = vor.u32 %v3793, %v3789
      %v3795 = vrot.slane %v3794, 4
      %v3797 = vshll.u32 %v3730, 16
      %v3799 = vrot.slane %v3797, 5
      %v3800 = vsel %vm975, %v3795, %v3799
      %v3802 = vshrl.u32 %v3731, 16
      %v3804 = vrot.slane %v3802, 4
      %v3805 = vshll.u32 %v3731, 16
      %v3807 = vrot.slane %v3805, 5
      %v3808 = vor.u32 %v3804, %v3807
      %v3809 = vrot.slane %v3808, 4
      %v3811 = vshll.u32 %v3732, 16
      %v3813 = vrot.slane %v3811, 5
      %v3814 = vsel %vm975, %v3809, %v3813
      %v3815 = vshrl.u32 %v3732, 16
      %v3817 = vrot.slane %v3815, 4
      %v3818 = vor.u32 %v3817, %v3813
      %v3819 = vrot.slane %v3818, 4
      %v3821 = vshll.u32 %v3733, 16
      %v3823 = vrot.slane %v3821, 5
      %v3824 = vsel %vm975, %v3819, %v3823
      %v3825 = vshrl.u32 %v3733, 16
      %v3827 = vrot.slane %v3825, 4
      %v3828 = vor.u32 %v3827, %v3823
      %v3829 = vrot.slane %v3828, 4
      %v3831 = vshll.u32 %v3734, 16
      %v3833 = vrot.slane %v3831, 5
      %v3834 = vsel %vm975, %v3829, %v3833
      %v3836 = vshrl.u32 %v3735, 16
      %v3838 = vrot.slane %v3836, 4
      %v3839 = vshll.u32 %v3735, 16
      %v3841 = vrot.slane %v3839, 5
      %v3842 = vor.u32 %v3838, %v3841
      %v3843 = vrot.slane %v3842, 4
      %v3845 = vshll.u32 %v3736, 16
      %v3847 = vrot.slane %v3845, 5
      %v3848 = vsel %vm975, %v3843, %v3847
      %v3849 = vshrl.u32 %v3736, 16
      %v3851 = vrot.slane %v3849, 4
      %v3852 = vor.u32 %v3851, %v3847
      %v3853 = vrot.slane %v3852, 4
      %v3855 = vshll.u32 %v3737, 16
      %v3857 = vrot.slane %v3855, 5
      %v3858 = vsel %vm975, %v3853, %v3857
      %v3859 = vshrl.u32 %v3737, 16
      %v3861 = vrot.slane %v3859, 4
      %v3862 = vor.u32 %v3861, %v3857
      %v3863 = vrot.slane %v3862, 4
      %v3865 = vshll.u32 %v3738, 16
      %v3867 = vrot.slane %v3865, 5
      %v3868 = vsel %vm975, %v3863, %v3867
      %v3870 = vshrl.u32 %v3739, 16
      %v3872 = vrot.slane %v3870, 4
      %v3873 = vshll.u32 %v3739, 16
      %v3875 = vrot.slane %v3873, 5
      %v3876 = vor.u32 %v3872, %v3875
      %v3877 = vrot.slane %v3876, 4
      %v3879 = vshll.u32 %v3740, 16
      %v3881 = vrot.slane %v3879, 5
      %v3882 = vsel %vm975, %v3877, %v3881
      %v3883 = vshrl.u32 %v3740, 16
      %v3885 = vrot.slane %v3883, 4
      %v3886 = vor.u32 %v3885, %v3881
      %v3887 = vrot.slane %v3886, 4
      %v3889 = vshll.u32 %v3741, 16
      %v3891 = vrot.slane %v3889, 5
      %v3892 = vsel %vm975, %v3887, %v3891
      %v3893 = vshrl.u32 %v3741, 16
      %v3895 = vrot.slane %v3893, 4
      %v3896 = vor.u32 %v3895, %v3891
      %v3897 = vrot.slane %v3896, 4
      %v3899 = vshll.u32 %v3742, 16
      %v3901 = vrot.slane %v3899, 5
      %v3902 = vsel %vm975, %v3897, %v3901
      %v3904 = vshrl.u32 %v3743, 16
      %v3906 = vrot.slane %v3904, 4
      %v3907 = vshll.u32 %v3743, 16
      %v3909 = vrot.slane %v3907, 5
      %v3910 = vor.u32 %v3906, %v3909
      %v3911 = vrot.slane %v3910, 4
      %v3913 = vshll.u32 %v3744, 16
      %v3915 = vrot.slane %v3913, 5
      %v3916 = vsel %vm975, %v3911, %v3915
      %v3917 = vshrl.u32 %v3744, 16
      %v3919 = vrot.slane %v3917, 4
      %v3920 = vor.u32 %v3919, %v3915
      %v3921 = vrot.slane %v3920, 4
      %v3923 = vshll.u32 %v3745, 16
      %v3925 = vrot.slane %v3923, 5
      %v3926 = vsel %vm975, %v3921, %v3925
      %v3927 = vshrl.u32 %v3745, 16
      %v3929 = vrot.slane %v3927, 4
      %v3930 = vor.u32 %v3929, %v3925
      %v3931 = vrot.slane %v3930, 4
      %v3933 = vshll.u32 %v3746, 16
      %v3935 = vrot.slane %v3933, 5
      %v3936 = vsel %vm975, %v3931, %v3935
      %v3938 = vshrl.u32 %v3747, 16
      %v3940 = vrot.slane %v3938, 4
      %v3941 = vshll.u32 %v3747, 16
      %v3943 = vrot.slane %v3941, 5
      %v3944 = vor.u32 %v3940, %v3943
      %v3945 = vrot.slane %v3944, 4
      %v3947 = vshll.u32 %v3748, 16
      %v3949 = vrot.slane %v3947, 5
      %v3950 = vsel %vm975, %v3945, %v3949
      %v3951 = vshrl.u32 %v3748, 16
      %v3953 = vrot.slane %v3951, 4
      %v3954 = vor.u32 %v3953, %v3949
      %v3955 = vrot.slane %v3954, 4
      %v3957 = vshll.u32 %v3749, 16
      %v3959 = vrot.slane %v3957, 5
      %v3960 = vsel %vm975, %v3955, %v3959
      %v3961 = vshrl.u32 %v3749, 16
      %v3963 = vrot.slane %v3961, 4
      %v3964 = vor.u32 %v3963, %v3959
      %v3965 = vrot.slane %v3964, 4
      %v3967 = vshll.u32 %v3750, 16
      %v3969 = vrot.slane %v3967, 5
      %v3970 = vsel %vm975, %v3965, %v3969
      %v3972 = vshrl.u32 %v3751, 16
      %v3974 = vrot.slane %v3972, 4
      %v3975 = vshll.u32 %v3751, 16
      %v3977 = vrot.slane %v3975, 5
      %v3978 = vor.u32 %v3974, %v3977
      %v3979 = vrot.slane %v3978, 4
      %v3981 = vshll.u32 %v3752, 16
      %v3983 = vrot.slane %v3981, 5
      %v3984 = vsel %vm975, %v3979, %v3983
      %v3985 = vshrl.u32 %v3752, 16
      %v3987 = vrot.slane %v3985, 4
      %v3988 = vor.u32 %v3987, %v3983
      %v3989 = vrot.slane %v3988, 4
      %v3991 = vshll.u32 %v3753, 16
      %v3993 = vrot.slane %v3991, 5
      %v3994 = vsel %vm975, %v3989, %v3993
      %v3995 = vshrl.u32 %v3753, 16
      %v3997 = vrot.slane %v3995, 4
      %v3998 = vor.u32 %v3997, %v3993
      %v3999 = vrot.slane %v3998, 4
      %v4001 = vshll.u32 %v3754, 16
      %v4003 = vrot.slane %v4001, 5
      %v4004 = vsel %vm975, %v3999, %v4003
      %v4006 = vshrl.u32 %v3755, 16
      %v4008 = vrot.slane %v4006, 4
      %v4009 = vshll.u32 %v3755, 16
      %v4011 = vrot.slane %v4009, 5
      %v4012 = vor.u32 %v4008, %v4011
      %v4013 = vrot.slane %v4012, 4
      %v4015 = vshll.u32 %v3756, 16
      %v4017 = vrot.slane %v4015, 5
      %v4018 = vsel %vm975, %v4013, %v4017
      %v4019 = vshrl.u32 %v3756, 16
      %v4021 = vrot.slane %v4019, 4
      %v4022 = vor.u32 %v4021, %v4017
      %v4023 = vrot.slane %v4022, 4
      %v4025 = vshll.u32 %v3757, 16
      %v4027 = vrot.slane %v4025, 5
      %v4028 = vsel %vm975, %v4023, %v4027
      %v4029 = vshrl.u32 %v3757, 16
      %v4031 = vrot.slane %v4029, 4
      %v4032 = vor.u32 %v4031, %v4027
      %v4033 = vrot.slane %v4032, 4
      %v4035 = vshll.u32 %v3758, 16
      %v4037 = vrot.slane %v4035, 5
      %v4038 = vsel %vm975, %v4033, %v4037
      %v4040 = vshrl.u32 %v3759, 16
      %v4042 = vrot.slane %v4040, 4
      %v4043 = vshll.u32 %v3759, 16
      %v4045 = vrot.slane %v4043, 5
      %v4046 = vor.u32 %v4042, %v4045
      %v4047 = vrot.slane %v4046, 4
      %v4049 = vshll.u32 %v3760, 16
      %v4051 = vrot.slane %v4049, 5
      %v4052 = vsel %vm975, %v4047, %v4051
      %v4053 = vshrl.u32 %v3760, 16
      %v4055 = vrot.slane %v4053, 4
      %v4056 = vor.u32 %v4055, %v4051
      %v4057 = vrot.slane %v4056, 4
      %v4059 = vshll.u32 %v3761, 16
      %v4061 = vrot.slane %v4059, 5
      %v4062 = vsel %vm975, %v4057, %v4061
      %v4063 = vshrl.u32 %v3761, 16
      %v4065 = vrot.slane %v4063, 4
      %v4066 = vor.u32 %v4065, %v4061
      %v4067 = vrot.slane %v4066, 4
      %v4069 = vshll.u32 %v3762, 16
      %v4071 = vrot.slane %v4069, 5
      %v4072 = vsel %vm975, %v4067, %v4071
      %v4074 = vshrl.u32 %v3763, 16
      %v4076 = vrot.slane %v4074, 4
      %v4077 = vshll.u32 %v3763, 16
      %v4079 = vrot.slane %v4077, 5
      %v4080 = vor.u32 %v4076, %v4079
      %v4081 = vrot.slane %v4080, 4
      %v4083 = vshll.u32 %v3764, 16
      %v4085 = vrot.slane %v4083, 5
      %v4086 = vsel %vm975, %v4081, %v4085
      %v4087 = vshrl.u32 %v3764, 16
      %v4089 = vrot.slane %v4087, 4
      %v4090 = vor.u32 %v4089, %v4085
      %v4091 = vrot.slane %v4090, 4
      %v4093 = vshll.u32 %v3765, 16
      %v4095 = vrot.slane %v4093, 5
      %v4096 = vsel %vm975, %v4091, %v4095
      %v4097 = vshrl.u32 %v3765, 16
      %v4099 = vrot.slane %v4097, 4
      %v4100 = vor.u32 %v4099, %v4095
      %v4101 = vrot.slane %v4100, 4
      %v4103 = vshll.u32 %v3766, 16
      %v4105 = vrot.slane %v4103, 5
      %v4106 = vsel %vm975, %v4101, %v4105
      %s4107 = scalar_lea.vmem %s1, 448
      %v4108 = vld [vmem:[%s4107] sm:$0xf]
      %v4109 = vld [vmem:[%s4107 + $0x4] sm:$0xf]
      %v4110 = vld [vmem:[%s4107 + $0x8] sm:$0xf]
      %v4111 = vld [vmem:[%s4107 + $0xc] sm:$0xf]
      %v4112 = vld [vmem:[%s4107 + $0x10] sm:$0xf]
      %v4113 = vld [vmem:[%s4107 + $0x14] sm:$0xf]
      %v4114 = vld [vmem:[%s4107 + $0x18] sm:$0xf]
      %v4115 = vld [vmem:[%s4107 + $0x1c] sm:$0xf]
      %v4116 = vld [vmem:[%s4107 + $0x20] sm:$0xf]
      %v4117 = vld [vmem:[%s4107 + $0x24] sm:$0xf]
      %v4118 = vld [vmem:[%s4107 + $0x28] sm:$0xf]
      %v4119 = vld [vmem:[%s4107 + $0x2c] sm:$0xf]
      %v4120 = vld [vmem:[%s4107 + $0x30] sm:$0xf]
      %v4121 = vld [vmem:[%s4107 + $0x34] sm:$0xf]
      %v4122 = vld [vmem:[%s4107 + $0x38] sm:$0xf]
      %v4123 = vld [vmem:[%s4107 + $0x3c] sm:$0xf]
      %v4124 = vunpack.c.l.b16 %v3780
      %v4125 = vunpack.c.l.b16 %v3790
      %v4126 = vunpack.c.l.b16 %v3800
      %v4127 = vunpack.c.l.b16 %v3814
      %v4128 = vunpack.c.l.b16 %v3824
      %v4129 = vunpack.c.l.b16 %v3834
      %v4130 = vunpack.c.l.b16 %v3848
      %v4131 = vunpack.c.l.b16 %v3858
      %v4132 = vunpack.c.l.b16 %v3868
      %v4133 = vunpack.c.l.b16 %v3882
      %v4134 = vunpack.c.l.b16 %v3892
      %v4135 = vunpack.c.l.b16 %v3902
      %v4136 = vunpack.c.l.b16 %v3916
      %v4137 = vunpack.c.l.b16 %v3926
      %v4138 = vunpack.c.l.b16 %v3936
      %v4139 = vunpack.c.l.b16 %v3950
      %v4140 = vunpack.c.l.b16 %v3960
      %v4141 = vunpack.c.l.b16 %v3970
      %v4142 = vunpack.c.l.b16 %v3984
      %v4143 = vunpack.c.l.b16 %v3994
      %v4144 = vunpack.c.l.b16 %v4004
      %v4145 = vunpack.c.l.b16 %v4018
      %v4146 = vunpack.c.l.b16 %v4028
      %v4147 = vunpack.c.l.b16 %v4038
      %v4148 = vunpack.c.l.b16 %v4052
      %v4149 = vunpack.c.l.b16 %v4062
      %v4150 = vunpack.c.l.b16 %v4072
      %v4151 = vunpack.c.l.b16 %v4086
      %v4152 = vunpack.c.l.b16 %v4096
      %v4153 = vunpack.c.l.b16 %v4106
      %v4154 = vpack.c.b16 %v4125, %v4124
      %v4155 = vpack.c.b16 %v4127, %v4126
      %v4156 = vpack.c.b16 %v4129, %v4128
      %v4157 = vpack.c.b16 %v4131, %v4130
      %v4158 = vpack.c.b16 %v4133, %v4132
      %v4159 = vpack.c.b16 %v4135, %v4134
      %v4160 = vpack.c.b16 %v4137, %v4136
      %v4161 = vpack.c.b16 %v4139, %v4138
      %v4162 = vpack.c.b16 %v4141, %v4140
      %v4163 = vpack.c.b16 %v4143, %v4142
      %v4164 = vpack.c.b16 %v4145, %v4144
      %v4165 = vpack.c.b16 %v4147, %v4146
      %v4166 = vpack.c.b16 %v4149, %v4148
      %v4167 = vpack.c.b16 %v4151, %v4150
      %v4168 = vpack.c.b16 %v4153, %v4152
      %v4200 = vunpack.c.l.b16 %v4108
      %v4201 = vunpack.c.l.b16 %v4109
      %v4202 = vunpack.c.l.b16 %v4110
      %v4203 = vunpack.c.l.b16 %v4111
      %v4204 = vunpack.c.l.b16 %v4112
      %v4205 = vunpack.c.l.b16 %v4113
      %v4206 = vunpack.c.l.b16 %v4114
      %v4207 = vunpack.c.l.b16 %v4115
      %v4208 = vunpack.c.l.b16 %v4116
      %v4209 = vunpack.c.l.b16 %v4117
      %v4210 = vunpack.c.l.b16 %v4118
      %v4211 = vunpack.c.l.b16 %v4119
      %v4212 = vunpack.c.l.b16 %v4120
      %v4213 = vunpack.c.l.b16 %v4121
      %v4214 = vunpack.c.l.b16 %v4122
      %v4215 = vunpack.c.l.b16 %v4123
      %v4216 = vpack.c.b16 %v4201, %v4200
      %v4217 = vpack.c.b16 %v4203, %v4202
      %v4218 = vpack.c.b16 %v4205, %v4204
      %v4219 = vpack.c.b16 %v4207, %v4206
      %v4220 = vpack.c.b16 %v4209, %v4208
      %v4221 = vpack.c.b16 %v4211, %v4210
      %v4222 = vpack.c.b16 %v4213, %v4212
      %v4223 = vpack.c.b16 %v4215, %v4214
      %4232 = vmatpush.bf16.msra.mxu0 %v4223
      %4233 = vmatpush.bf16.msra.mxu0 %v4222
      %4234 = vmatpush.bf16.msra.mxu0 %v4221
      %4235 = vmatpush.bf16.msra.mxu0 %v4220
      %4236 = vmatpush.bf16.msra.mxu0 %v4219
      %4237 = vmatpush.bf16.msra.mxu0 %v4218
      %4238 = vmatpush.bf16.msra.mxu0 %v4217
      %4239 = vmatpush.bf16.msra.mxu0 %v4216
      %4240 = vmatmul.bf16.gmra.mxu0 %v4154
      %v4241 = vpop.f32.mrf.mxu0
      %v4242 = vadd.f32 0.0, %v4241
      %v4243 = vpop.f32.mrf.mxu0
      %v4244 = vadd.f32 0.0, %v4243
      %4245 = vmatmul.bf16.gmra.mxu0 %v4155
      %v4246 = vpop.f32.mrf.mxu0
      %v4247 = vadd.f32 0.0, %v4246
      %v4248 = vpop.f32.mrf.mxu0
      %v4249 = vadd.f32 0.0, %v4248
      %4250 = vmatmul.bf16.gmra.mxu0 %v4156
      %v4251 = vpop.f32.mrf.mxu0
      %v4252 = vadd.f32 0.0, %v4251
      %v4253 = vpop.f32.mrf.mxu0
      %v4254 = vadd.f32 0.0, %v4253
      %4255 = vmatmul.bf16.gmra.mxu0 %v4157
      %v4256 = vpop.f32.mrf.mxu0
      %v4257 = vadd.f32 0.0, %v4256
      %v4258 = vpop.f32.mrf.mxu0
      %v4259 = vadd.f32 0.0, %v4258
      %4260 = vmatmul.bf16.gmra.mxu0 %v4158
      %v4261 = vpop.f32.mrf.mxu0
      %v4262 = vadd.f32 0.0, %v4261
      %v4263 = vpop.f32.mrf.mxu0
      %v4264 = vadd.f32 0.0, %v4263
      %4265 = vmatmul.bf16.gmra.mxu0 %v4159
      %v4266 = vpop.f32.mrf.mxu0
      %v4267 = vadd.f32 0.0, %v4266
      %v4268 = vpop.f32.mrf.mxu0
      %v4269 = vadd.f32 0.0, %v4268
      %4270 = vmatmul.bf16.gmra.mxu0 %v4160
      %v4271 = vpop.f32.mrf.mxu0
      %v4272 = vadd.f32 0.0, %v4271
      %v4273 = vpop.f32.mrf.mxu0
      %v4274 = vadd.f32 0.0, %v4273
      %4275 = vmatmul.bf16.gmra.mxu0 %v4161
      %v4276 = vpop.f32.mrf.mxu0
      %v4277 = vadd.f32 0.0, %v4276
      %v4278 = vpop.f32.mrf.mxu0
      %v4279 = vadd.f32 0.0, %v4278
      %4280 = vmatmul.bf16.gmra.mxu0 %v4162
      %v4281 = vpop.f32.mrf.mxu0
      %v4282 = vadd.f32 0.0, %v4281
      %v4283 = vpop.f32.mrf.mxu0
      %v4284 = vadd.f32 0.0, %v4283
      %4285 = vmatmul.bf16.gmra.mxu0 %v4163
      %v4286 = vpop.f32.mrf.mxu0
      %v4287 = vadd.f32 0.0, %v4286
      %v4288 = vpop.f32.mrf.mxu0
      %v4289 = vadd.f32 0.0, %v4288
      %4290 = vmatmul.bf16.gmra.mxu0 %v4164
      %v4291 = vpop.f32.mrf.mxu0
      %v4292 = vadd.f32 0.0, %v4291
      %v4293 = vpop.f32.mrf.mxu0
      %v4294 = vadd.f32 0.0, %v4293
      %4295 = vmatmul.bf16.gmra.mxu0 %v4165
      %v4296 = vpop.f32.mrf.mxu0
      %v4297 = vadd.f32 0.0, %v4296
      %v4298 = vpop.f32.mrf.mxu0
      %v4299 = vadd.f32 0.0, %v4298
      %4300 = vmatmul.bf16.gmra.mxu0 %v4166
      %v4301 = vpop.f32.mrf.mxu0
      %v4302 = vadd.f32 0.0, %v4301
      %v4303 = vpop.f32.mrf.mxu0
      %v4304 = vadd.f32 0.0, %v4303
      %4305 = vmatmul.bf16.gmra.mxu0 %v4167
      %v4306 = vpop.f32.mrf.mxu0
      %v4307 = vadd.f32 0.0, %v4306
      %v4308 = vpop.f32.mrf.mxu0
      %v4309 = vadd.f32 0.0, %v4308
      %4310 = vmatmul.bf16.gmra.mxu0 %v4168
      %v4311 = vpop.f32.mrf.mxu0
      %v4312 = vadd.f32 0.0, %v4311
      %v4313 = vpop.f32.mrf.mxu0
      %v4314 = vadd.f32 0.0, %v4313
      %4315 = vdwg.mxu0
      %v4316 = vadd.f32 %v3697, %v4242
      %v4317 = vadd.f32 %v3698, %v4244
      %v4318 = vadd.f32 %v3699, %v4247
      %v4319 = vadd.f32 %v3700, %v4249
      %v4320 = vadd.f32 %v3701, %v4252
      %v4321 = vadd.f32 %v3702, %v4254
      %v4322 = vadd.f32 %v3703, %v4257
      %v4323 = vadd.f32 %v3704, %v4259
      %v4324 = vadd.f32 %v3705, %v4262
      %v4325 = vadd.f32 %v3706, %v4264
      %v4326 = vadd.f32 %v3707, %v4267
      %v4327 = vadd.f32 %v3708, %v4269
      %v4328 = vadd.f32 %v3709, %v4272
      %v4329 = vadd.f32 %v3710, %v4274
      %v4330 = vadd.f32 %v3711, %v4277
      %v4331 = vadd.f32 %v3712, %v4279
      %v4332 = vadd.f32 %v3713, %v4282
      %v4333 = vadd.f32 %v3714, %v4284
      %v4334 = vadd.f32 %v3715, %v4287
      %v4335 = vadd.f32 %v3716, %v4289
      %v4336 = vadd.f32 %v3717, %v4292
      %v4337 = vadd.f32 %v3718, %v4294
      %v4338 = vadd.f32 %v3719, %v4297
      %v4339 = vadd.f32 %v3720, %v4299
      %v4340 = vadd.f32 %v3721, %v4302
      %v4341 = vadd.f32 %v3722, %v4304
      %v4342 = vadd.f32 %v3723, %v4307
      %v4343 = vadd.f32 %v3724, %v4309
      %v4344 = vadd.f32 %v3725, %v4312
      %v4345 = vadd.f32 %v3726, %v4314
      %v4346 = vld [vmem:[%s3427] sm:$0xe]
      %v4347 = vld [vmem:[%s3427 + $0x10] sm:$0xe]
      %v4348 = vld [vmem:[%s3427 + $0x20] sm:$0xe]
      %v4349 = vld [vmem:[%s3427 + $0x30] sm:$0xe]
      %v4350 = vld [vmem:[%s3427 + $0x40] sm:$0xe]
      %v4351 = vld [vmem:[%s3427 + $0x50] sm:$0xe]
      %v4352 = vld [vmem:[%s3427 + $0x60] sm:$0xe]
      %v4353 = vld [vmem:[%s3427 + $0x70] sm:$0xe]
      %v4354 = vld [vmem:[%s3427 + $0x80] sm:$0xe]
      %v4355 = vld [vmem:[%s3427 + $0x90] sm:$0xe]
      %v4396 = vrot.slane %v4346, 5
      %v4397 = vrot.slane %v4396, 4
      %v4398 = vrot.slane %v3728, 5
      %v4399 = vsel %vm1779, %v4397, %v4398
      %v4400 = vrot.slane %v4398, 4
      %v4401 = vrot.slane %v3729, 5
      %v4402 = vsel %vm1779, %v4400, %v4401
      %v4403 = vrot.slane %v4401, 4
      %v4404 = vrot.slane %v3730, 5
      %v4405 = vsel %vm1779, %v4403, %v4404
      %v4406 = vrot.slane %v4347, 5
      %v4407 = vrot.slane %v4406, 4
      %v4408 = vrot.slane %v3732, 5
      %v4409 = vsel %vm1779, %v4407, %v4408
      %v4410 = vrot.slane %v4408, 4
      %v4411 = vrot.slane %v3733, 5
      %v4412 = vsel %vm1779, %v4410, %v4411
      %v4413 = vrot.slane %v4411, 4
      %v4414 = vrot.slane %v3734, 5
      %v4415 = vsel %vm1779, %v4413, %v4414
      %v4416 = vrot.slane %v4348, 5
      %v4417 = vrot.slane %v4416, 4
      %v4418 = vrot.slane %v3736, 5
      %v4419 = vsel %vm1779, %v4417, %v4418
      %v4420 = vrot.slane %v4418, 4
      %v4421 = vrot.slane %v3737, 5
      %v4422 = vsel %vm1779, %v4420, %v4421
      %v4423 = vrot.slane %v4421, 4
      %v4424 = vrot.slane %v3738, 5
      %v4425 = vsel %vm1779, %v4423, %v4424
      %v4426 = vrot.slane %v4349, 5
      %v4427 = vrot.slane %v4426, 4
      %v4428 = vrot.slane %v3740, 5
      %v4429 = vsel %vm1779, %v4427, %v4428
      %v4430 = vrot.slane %v4428, 4
      %v4431 = vrot.slane %v3741, 5
      %v4432 = vsel %vm1779, %v4430, %v4431
      %v4433 = vrot.slane %v4431, 4
      %v4434 = vrot.slane %v3742, 5
      %v4435 = vsel %vm1779, %v4433, %v4434
      %v4436 = vrot.slane %v4350, 5
      %v4437 = vrot.slane %v4436, 4
      %v4438 = vrot.slane %v3744, 5
      %v4439 = vsel %vm1779, %v4437, %v4438
      %v4440 = vrot.slane %v4438, 4
      %v4441 = vrot.slane %v3745, 5
      %v4442 = vsel %vm1779, %v4440, %v4441
      %v4443 = vrot.slane %v4441, 4
      %v4444 = vrot.slane %v3746, 5
      %v4445 = vsel %vm1779, %v4443, %v4444
      %v4446 = vrot.slane %v4351, 5
      %v4447 = vrot.slane %v4446, 4
      %v4448 = vrot.slane %v3748, 5
      %v4449 = vsel %vm1779, %v4447, %v4448
      %v4450 = vrot.slane %v4448, 4
      %v4451 = vrot.slane %v3749, 5
      %v4452 = vsel %vm1779, %v4450, %v4451
      %v4453 = vrot.slane %v4451, 4
      %v4454 = vrot.slane %v3750, 5
      %v4455 = vsel %vm1779, %v4453, %v4454
      %v4456 = vrot.slane %v4352, 5
      %v4457 = vrot.slane %v4456, 4
      %v4458 = vrot.slane %v3752, 5
      %v4459 = vsel %vm1779, %v4457, %v4458
      %v4460 = vrot.slane %v4458, 4
      %v4461 = vrot.slane %v3753, 5
      %v4462 = vsel %vm1779, %v4460, %v4461
      %v4463 = vrot.slane %v4461, 4
      %v4464 = vrot.slane %v3754, 5
      %v4465 = vsel %vm1779, %v4463, %v4464
      %v4466 = vrot.slane %v4353, 5
      %v4467 = vrot.slane %v4466, 4
      %v4468 = vrot.slane %v3756, 5
      %v4469 = vsel %vm1779, %v4467, %v4468
      %v4470 = vrot.slane %v4468, 4
      %v4471 = vrot.slane %v3757, 5
      %v4472 = vsel %vm1779, %v4470, %v4471
      %v4473 = vrot.slane %v4471, 4
      %v4474 = vrot.slane %v3758, 5
      %v4475 = vsel %vm1779, %v4473, %v4474
      %v4476 = vrot.slane %v4354, 5
      %v4477 = vrot.slane %v4476, 4
      %v4478 = vrot.slane %v3760, 5
      %v4479 = vsel %vm1779, %v4477, %v4478
      %v4480 = vrot.slane %v4478, 4
      %v4481 = vrot.slane %v3761, 5
      %v4482 = vsel %vm1779, %v4480, %v4481
      %v4483 = vrot.slane %v4481, 4
      %v4484 = vrot.slane %v3762, 5
      %v4485 = vsel %vm1779, %v4483, %v4484
      %v4486 = vrot.slane %v4355, 5
      %v4487 = vrot.slane %v4486, 4
      %v4488 = vrot.slane %v3764, 5
      %v4489 = vsel %vm1779, %v4487, %v4488
      %v4490 = vrot.slane %v4488, 4
      %v4491 = vrot.slane %v3765, 5
      %v4492 = vsel %vm1779, %v4490, %v4491
      %v4493 = vrot.slane %v4491, 4
      %v4494 = vrot.slane %v3766, 5
      %v4495 = vsel %vm1779, %v4493, %v4494
      %s4496 = scalar_lea.vmem %s1, 512
      %v4497 = vld [vmem:[%s4496] sm:$0xf]
      %v4498 = vld [vmem:[%s4496 + $0x4] sm:$0xf]
      %v4499 = vld [vmem:[%s4496 + $0x8] sm:$0xf]
      %v4500 = vld [vmem:[%s4496 + $0xc] sm:$0xf]
      %v4501 = vld [vmem:[%s4496 + $0x10] sm:$0xf]
      %v4502 = vld [vmem:[%s4496 + $0x14] sm:$0xf]
      %v4503 = vld [vmem:[%s4496 + $0x18] sm:$0xf]
      %v4504 = vld [vmem:[%s4496 + $0x1c] sm:$0xf]
      %v4505 = vld [vmem:[%s4496 + $0x20] sm:$0xf]
      %v4506 = vld [vmem:[%s4496 + $0x24] sm:$0xf]
      %v4507 = vld [vmem:[%s4496 + $0x28] sm:$0xf]
      %v4508 = vld [vmem:[%s4496 + $0x2c] sm:$0xf]
      %v4509 = vld [vmem:[%s4496 + $0x30] sm:$0xf]
      %v4510 = vld [vmem:[%s4496 + $0x34] sm:$0xf]
      %v4511 = vld [vmem:[%s4496 + $0x38] sm:$0xf]
      %v4512 = vld [vmem:[%s4496 + $0x3c] sm:$0xf]
      %v4513 = vunpack.c.l.b16 %v4399
      %v4514 = vunpack.c.l.b16 %v4402
      %v4515 = vunpack.c.l.b16 %v4405
      %v4516 = vunpack.c.l.b16 %v4409
      %v4517 = vunpack.c.l.b16 %v4412
      %v4518 = vunpack.c.l.b16 %v4415
      %v4519 = vunpack.c.l.b16 %v4419
      %v4520 = vunpack.c.l.b16 %v4422
      %v4521 = vunpack.c.l.b16 %v4425
      %v4522 = vunpack.c.l.b16 %v4429
      %v4523 = vunpack.c.l.b16 %v4432
      %v4524 = vunpack.c.l.b16 %v4435
      %v4525 = vunpack.c.l.b16 %v4439
      %v4526 = vunpack.c.l.b16 %v4442
      %v4527 = vunpack.c.l.b16 %v4445
      %v4528 = vunpack.c.l.b16 %v4449
      %v4529 = vunpack.c.l.b16 %v4452
      %v4530 = vunpack.c.l.b16 %v4455
      %v4531 = vunpack.c.l.b16 %v4459
      %v4532 = vunpack.c.l.b16 %v4462
      %v4533 = vunpack.c.l.b16 %v4465
      %v4534 = vunpack.c.l.b16 %v4469
      %v4535 = vunpack.c.l.b16 %v4472
      %v4536 = vunpack.c.l.b16 %v4475
      %v4537 = vunpack.c.l.b16 %v4479
      %v4538 = vunpack.c.l.b16 %v4482
      %v4539 = vunpack.c.l.b16 %v4485
      %v4540 = vunpack.c.l.b16 %v4489
      %v4541 = vunpack.c.l.b16 %v4492
      %v4542 = vunpack.c.l.b16 %v4495
      %v4543 = vpack.c.b16 %v4514, %v4513
      %v4544 = vpack.c.b16 %v4516, %v4515
      %v4545 = vpack.c.b16 %v4518, %v4517
      %v4546 = vpack.c.b16 %v4520, %v4519
      %v4547 = vpack.c.b16 %v4522, %v4521
      %v4548 = vpack.c.b16 %v4524, %v4523
      %v4549 = vpack.c.b16 %v4526, %v4525
      %v4550 = vpack.c.b16 %v4528, %v4527
      %v4551 = vpack.c.b16 %v4530, %v4529
      %v4552 = vpack.c.b16 %v4532, %v4531
      %v4553 = vpack.c.b16 %v4534, %v4533
      %v4554 = vpack.c.b16 %v4536, %v4535
      %v4555 = vpack.c.b16 %v4538, %v4537
      %v4556 = vpack.c.b16 %v4540, %v4539
      %v4557 = vpack.c.b16 %v4542, %v4541
      %v4589 = vunpack.c.l.b16 %v4497
      %v4590 = vunpack.c.l.b16 %v4498
      %v4591 = vunpack.c.l.b16 %v4499
      %v4592 = vunpack.c.l.b16 %v4500
      %v4593 = vunpack.c.l.b16 %v4501
      %v4594 = vunpack.c.l.b16 %v4502
      %v4595 = vunpack.c.l.b16 %v4503
      %v4596 = vunpack.c.l.b16 %v4504
      %v4597 = vunpack.c.l.b16 %v4505
      %v4598 = vunpack.c.l.b16 %v4506
      %v4599 = vunpack.c.l.b16 %v4507
      %v4600 = vunpack.c.l.b16 %v4508
      %v4601 = vunpack.c.l.b16 %v4509
      %v4602 = vunpack.c.l.b16 %v4510
      %v4603 = vunpack.c.l.b16 %v4511
      %v4604 = vunpack.c.l.b16 %v4512
      %v4605 = vpack.c.b16 %v4590, %v4589
      %v4606 = vpack.c.b16 %v4592, %v4591
      %v4607 = vpack.c.b16 %v4594, %v4593
      %v4608 = vpack.c.b16 %v4596, %v4595
      %v4609 = vpack.c.b16 %v4598, %v4597
      %v4610 = vpack.c.b16 %v4600, %v4599
      %v4611 = vpack.c.b16 %v4602, %v4601
      %v4612 = vpack.c.b16 %v4604, %v4603
      %4621 = vmatpush.bf16.msra.mxu0 %v4612
      %4622 = vmatpush.bf16.msra.mxu0 %v4611
      %4623 = vmatpush.bf16.msra.mxu0 %v4610
      %4624 = vmatpush.bf16.msra.mxu0 %v4609
      %4625 = vmatpush.bf16.msra.mxu0 %v4608
      %4626 = vmatpush.bf16.msra.mxu0 %v4607
      %4627 = vmatpush.bf16.msra.mxu0 %v4606
      %4628 = vmatpush.bf16.msra.mxu0 %v4605
      %4629 = vmatmul.bf16.gmra.mxu0 %v4543
      %v4630 = vpop.f32.mrf.mxu0
      %v4631 = vadd.f32 0.0, %v4630
      %v4632 = vpop.f32.mrf.mxu0
      %v4633 = vadd.f32 0.0, %v4632
      %4634 = vmatmul.bf16.gmra.mxu0 %v4544
      %v4635 = vpop.f32.mrf.mxu0
      %v4636 = vadd.f32 0.0, %v4635
      %v4637 = vpop.f32.mrf.mxu0
      %v4638 = vadd.f32 0.0, %v4637
      %4639 = vmatmul.bf16.gmra.mxu0 %v4545
      %v4640 = vpop.f32.mrf.mxu0
      %v4641 = vadd.f32 0.0, %v4640
      %v4642 = vpop.f32.mrf.mxu0
      %v4643 = vadd.f32 0.0, %v4642
      %4644 = vmatmul.bf16.gmra.mxu0 %v4546
      %v4645 = vpop.f32.mrf.mxu0
      %v4646 = vadd.f32 0.0, %v4645
      %v4647 = vpop.f32.mrf.mxu0
      %v4648 = vadd.f32 0.0, %v4647
      %4649 = vmatmul.bf16.gmra.mxu0 %v4547
      %v4650 = vpop.f32.mrf.mxu0
      %v4651 = vadd.f32 0.0, %v4650
      %v4652 = vpop.f32.mrf.mxu0
      %v4653 = vadd.f32 0.0, %v4652
      %4654 = vmatmul.bf16.gmra.mxu0 %v4548
      %v4655 = vpop.f32.mrf.mxu0
      %v4656 = vadd.f32 0.0, %v4655
      %v4657 = vpop.f32.mrf.mxu0
      %v4658 = vadd.f32 0.0, %v4657
      %4659 = vmatmul.bf16.gmra.mxu0 %v4549
      %v4660 = vpop.f32.mrf.mxu0
      %v4661 = vadd.f32 0.0, %v4660
      %v4662 = vpop.f32.mrf.mxu0
      %v4663 = vadd.f32 0.0, %v4662
      %4664 = vmatmul.bf16.gmra.mxu0 %v4550
      %v4665 = vpop.f32.mrf.mxu0
      %v4666 = vadd.f32 0.0, %v4665
      %v4667 = vpop.f32.mrf.mxu0
      %v4668 = vadd.f32 0.0, %v4667
      %4669 = vmatmul.bf16.gmra.mxu0 %v4551
      %v4670 = vpop.f32.mrf.mxu0
      %v4671 = vadd.f32 0.0, %v4670
      %v4672 = vpop.f32.mrf.mxu0
      %v4673 = vadd.f32 0.0, %v4672
      %4674 = vmatmul.bf16.gmra.mxu0 %v4552
      %v4675 = vpop.f32.mrf.mxu0
      %v4676 = vadd.f32 0.0, %v4675
      %v4677 = vpop.f32.mrf.mxu0
      %v4678 = vadd.f32 0.0, %v4677
      %4679 = vmatmul.bf16.gmra.mxu0 %v4553
      %v4680 = vpop.f32.mrf.mxu0
      %v4681 = vadd.f32 0.0, %v4680
      %v4682 = vpop.f32.mrf.mxu0
      %v4683 = vadd.f32 0.0, %v4682
      %4684 = vmatmul.bf16.gmra.mxu0 %v4554
      %v4685 = vpop.f32.mrf.mxu0
      %v4686 = vadd.f32 0.0, %v4685
      %v4687 = vpop.f32.mrf.mxu0
      %v4688 = vadd.f32 0.0, %v4687
      %4689 = vmatmul.bf16.gmra.mxu0 %v4555
      %v4690 = vpop.f32.mrf.mxu0
      %v4691 = vadd.f32 0.0, %v4690
      %v4692 = vpop.f32.mrf.mxu0
      %v4693 = vadd.f32 0.0, %v4692
      %4694 = vmatmul.bf16.gmra.mxu0 %v4556
      %v4695 = vpop.f32.mrf.mxu0
      %v4696 = vadd.f32 0.0, %v4695
      %v4697 = vpop.f32.mrf.mxu0
      %v4698 = vadd.f32 0.0, %v4697
      %4699 = vmatmul.bf16.gmra.mxu0 %v4557
      %v4700 = vpop.f32.mrf.mxu0
      %v4701 = vadd.f32 0.0, %v4700
      %v4702 = vpop.f32.mrf.mxu0
      %v4703 = vadd.f32 0.0, %v4702
      %4704 = vdwg.mxu0
      %v4705 = vadd.f32 %v4316, %v4631
      %v4706 = vadd.f32 %v4317, %v4633
      %v4707 = vadd.f32 %v4318, %v4636
      %v4708 = vadd.f32 %v4319, %v4638
      %v4709 = vadd.f32 %v4320, %v4641
      %v4710 = vadd.f32 %v4321, %v4643
      %v4711 = vadd.f32 %v4322, %v4646
      %v4712 = vadd.f32 %v4323, %v4648
      %v4713 = vadd.f32 %v4324, %v4651
      %v4714 = vadd.f32 %v4325, %v4653
      %v4715 = vadd.f32 %v4326, %v4656
      %v4716 = vadd.f32 %v4327, %v4658
      %v4717 = vadd.f32 %v4328, %v4661
      %v4718 = vadd.f32 %v4329, %v4663
      %v4719 = vadd.f32 %v4330, %v4666
      %v4720 = vadd.f32 %v4331, %v4668
      %v4721 = vadd.f32 %v4332, %v4671
      %v4722 = vadd.f32 %v4333, %v4673
      %v4723 = vadd.f32 %v4334, %v4676
      %v4724 = vadd.f32 %v4335, %v4678
      %v4725 = vadd.f32 %v4336, %v4681
      %v4726 = vadd.f32 %v4337, %v4683
      %v4727 = vadd.f32 %v4338, %v4686
      %v4728 = vadd.f32 %v4339, %v4688
      %v4729 = vadd.f32 %v4340, %v4691
      %v4730 = vadd.f32 %v4341, %v4693
      %v4731 = vadd.f32 %v4342, %v4696
      %v4732 = vadd.f32 %v4343, %v4698
      %v4733 = vadd.f32 %v4344, %v4701
      %v4734 = vadd.f32 %v4345, %v4703
      %v4735 = vld [vmem:[%s5] sm:$0x1]
      %v4737 = vperm.slane %v4735, 0
      %v4739 = vmul.f32 %v4705, %v4737
      %v4740 = vmul.f32 %v4706, %v4737
      %v4741 = vmul.f32 %v4707, %v4737
      %v4742 = vmul.f32 %v4708, %v4737
      %v4743 = vmul.f32 %v4709, %v4737
      %v4744 = vmul.f32 %v4710, %v4737
      %v4745 = vmul.f32 %v4711, %v4737
      %v4746 = vmul.f32 %v4712, %v4737
      %v4747 = vmul.f32 %v4713, %v4737
      %v4748 = vmul.f32 %v4714, %v4737
      %v4749 = vmul.f32 %v4715, %v4737
      %v4750 = vmul.f32 %v4716, %v4737
      %v4751 = vmul.f32 %v4717, %v4737
      %v4752 = vmul.f32 %v4718, %v4737
      %v4753 = vmul.f32 %v4719, %v4737
      %v4754 = vmul.f32 %v4720, %v4737
      %v4755 = vmul.f32 %v4721, %v4737
      %v4756 = vmul.f32 %v4722, %v4737
      %v4757 = vmul.f32 %v4723, %v4737
      %v4758 = vmul.f32 %v4724, %v4737
      %v4759 = vmul.f32 %v4725, %v4737
      %v4760 = vmul.f32 %v4726, %v4737
      %v4761 = vmul.f32 %v4727, %v4737
      %v4762 = vmul.f32 %v4728, %v4737
      %v4763 = vmul.f32 %v4729, %v4737
      %v4764 = vmul.f32 %v4730, %v4737
      %v4765 = vmul.f32 %v4731, %v4737
      %v4766 = vmul.f32 %v4732, %v4737
      %v4767 = vmul.f32 %v4733, %v4737
      %v4768 = vmul.f32 %v4734, %v4737
      %v4769 = vld [vmem:[%s6] sm:$0x1]
      %v4771 = vperm.slane %v4769, 0
      %v4773 = vadd.f32 %v4739, %v4771
      %v4774 = vadd.f32 %v4740, %v4771
      %v4775 = vadd.f32 %v4741, %v4771
      %v4776 = vadd.f32 %v4742, %v4771
      %v4777 = vadd.f32 %v4743, %v4771
      %v4778 = vadd.f32 %v4744, %v4771
      %v4779 = vadd.f32 %v4745, %v4771
      %v4780 = vadd.f32 %v4746, %v4771
      %v4781 = vadd.f32 %v4747, %v4771
      %v4782 = vadd.f32 %v4748, %v4771
      %v4783 = vadd.f32 %v4749, %v4771
      %v4784 = vadd.f32 %v4750, %v4771
      %v4785 = vadd.f32 %v4751, %v4771
      %v4786 = vadd.f32 %v4752, %v4771
      %v4787 = vadd.f32 %v4753, %v4771
      %v4788 = vadd.f32 %v4754, %v4771
      %v4789 = vadd.f32 %v4755, %v4771
      %v4790 = vadd.f32 %v4756, %v4771
      %v4791 = vadd.f32 %v4757, %v4771
      %v4792 = vadd.f32 %v4758, %v4771
      %v4793 = vadd.f32 %v4759, %v4771
      %v4794 = vadd.f32 %v4760, %v4771
      %v4795 = vadd.f32 %v4761, %v4771
      %v4796 = vadd.f32 %v4762, %v4771
      %v4797 = vadd.f32 %v4763, %v4771
      %v4798 = vadd.f32 %v4764, %v4771
      %v4799 = vadd.f32 %v4765, %v4771
      %v4800 = vadd.f32 %v4766, %v4771
      %v4801 = vadd.f32 %v4767, %v4771
      %v4802 = vadd.f32 %v4768, %v4771
      %v4803 = vmax.f32 %v4773, 0.0
      %v4804 = vmax.f32 %v4774, 0.0
      %v4805 = vmax.f32 %v4775, 0.0
      %v4806 = vmax.f32 %v4776, 0.0
      %v4807 = vmax.f32 %v4777, 0.0
      %v4808 = vmax.f32 %v4778, 0.0
      %v4809 = vmax.f32 %v4779, 0.0
      %v4810 = vmax.f32 %v4780, 0.0
      %v4811 = vmax.f32 %v4781, 0.0
      %v4812 = vmax.f32 %v4782, 0.0
      %v4813 = vmax.f32 %v4783, 0.0
      %v4814 = vmax.f32 %v4784, 0.0
      %v4815 = vmax.f32 %v4785, 0.0
      %v4816 = vmax.f32 %v4786, 0.0
      %v4817 = vmax.f32 %v4787, 0.0
      %v4818 = vmax.f32 %v4788, 0.0
      %v4819 = vmax.f32 %v4789, 0.0
      %v4820 = vmax.f32 %v4790, 0.0
      %v4821 = vmax.f32 %v4791, 0.0
      %v4822 = vmax.f32 %v4792, 0.0
      %v4823 = vmax.f32 %v4793, 0.0
      %v4824 = vmax.f32 %v4794, 0.0
      %v4825 = vmax.f32 %v4795, 0.0
      %v4826 = vmax.f32 %v4796, 0.0
      %v4827 = vmax.f32 %v4797, 0.0
      %v4828 = vmax.f32 %v4798, 0.0
      %v4829 = vmax.f32 %v4799, 0.0
      %v4830 = vmax.f32 %v4800, 0.0
      %v4831 = vmax.f32 %v4801, 0.0
      %v4832 = vmax.f32 %v4802, 0.0
      %v4833 = vpack.c.bf16 %v4803, %v4803
      %v4834 = vpack.c.bf16 %v4804, %v4804
      %v4835 = vpack.c.bf16 %v4805, %v4805
      %v4836 = vpack.c.bf16 %v4806, %v4806
      %v4837 = vpack.c.bf16 %v4807, %v4807
      %v4838 = vpack.c.bf16 %v4808, %v4808
      %v4839 = vpack.c.bf16 %v4809, %v4809
      %v4840 = vpack.c.bf16 %v4810, %v4810
      %v4841 = vpack.c.bf16 %v4811, %v4811
      %v4842 = vpack.c.bf16 %v4812, %v4812
      %v4843 = vpack.c.bf16 %v4813, %v4813
      %v4844 = vpack.c.bf16 %v4814, %v4814
      %v4845 = vpack.c.bf16 %v4815, %v4815
      %v4846 = vpack.c.bf16 %v4816, %v4816
      %v4847 = vpack.c.bf16 %v4817, %v4817
      %v4848 = vpack.c.bf16 %v4818, %v4818
      %v4849 = vpack.c.bf16 %v4819, %v4819
      %v4850 = vpack.c.bf16 %v4820, %v4820
      %v4851 = vpack.c.bf16 %v4821, %v4821
      %v4852 = vpack.c.bf16 %v4822, %v4822
      %v4853 = vpack.c.bf16 %v4823, %v4823
      %v4854 = vpack.c.bf16 %v4824, %v4824
      %v4855 = vpack.c.bf16 %v4825, %v4825
      %v4856 = vpack.c.bf16 %v4826, %v4826
      %v4857 = vpack.c.bf16 %v4827, %v4827
      %v4858 = vpack.c.bf16 %v4828, %v4828
      %v4859 = vpack.c.bf16 %v4829, %v4829
      %v4860 = vpack.c.bf16 %v4830, %v4830
      %v4861 = vpack.c.bf16 %v4831, %v4831
      %v4862 = vpack.c.bf16 %v4832, %v4832
      %4863 = vst [vmem:[#allocation3] sm:$0xf] %v4833
      %4864 = vst [vmem:[#allocation3 + $0x4] sm:$0xf] %v4834
      %4865 = vst [vmem:[#allocation3 + $0x8] sm:$0xf] %v4835
      %4866 = vst [vmem:[#allocation3 + $0x10] sm:$0xf] %v4836
      %4867 = vst [vmem:[#allocation3 + $0x14] sm:$0xf] %v4837
      %4868 = vst [vmem:[#allocation3 + $0x18] sm:$0xf] %v4838
      %4869 = vst [vmem:[#allocation3 + $0x20] sm:$0xf] %v4839
      %4870 = vst [vmem:[#allocation3 + $0x24] sm:$0xf] %v4840
      %4871 = vst [vmem:[#allocation3 + $0x28] sm:$0xf] %v4841
      %4872 = vst [vmem:[#allocation3 + $0x30] sm:$0xf] %v4842
      %4873 = vst [vmem:[#allocation3 + $0x34] sm:$0xf] %v4843
      %4874 = vst [vmem:[#allocation3 + $0x38] sm:$0xf] %v4844
      %4875 = vst [vmem:[#allocation3 + $0x40] sm:$0xf] %v4845
      %4876 = vst [vmem:[#allocation3 + $0x44] sm:$0xf] %v4846
      %4877 = vst [vmem:[#allocation3 + $0x48] sm:$0xf] %v4847
      %4878 = vst [vmem:[#allocation3 + $0x50] sm:$0xf] %v4848
      %4879 = vst [vmem:[#allocation3 + $0x54] sm:$0xf] %v4849
      %4880 = vst [vmem:[#allocation3 + $0x58] sm:$0xf] %v4850
      %4881 = vst [vmem:[#allocation3 + $0x60] sm:$0xf] %v4851
      %4882 = vst [vmem:[#allocation3 + $0x64] sm:$0xf] %v4852
      %4883 = vst [vmem:[#allocation3 + $0x68] sm:$0xf] %v4853
      %4884 = vst [vmem:[#allocation3 + $0x70] sm:$0xf] %v4854
      %4885 = vst [vmem:[#allocation3 + $0x74] sm:$0xf] %v4855
      %4886 = vst [vmem:[#allocation3 + $0x78] sm:$0xf] %v4856
      %4887 = vst [vmem:[#allocation3 + $0x80] sm:$0xf] %v4857
      %4888 = vst [vmem:[#allocation3 + $0x84] sm:$0xf] %v4858
      %4889 = vst [vmem:[#allocation3 + $0x88] sm:$0xf] %v4859
      %4890 = vst [vmem:[#allocation3 + $0x90] sm:$0xf] %v4860
      %4891 = vst [vmem:[#allocation3 + $0x94] sm:$0xf] %v4861
      %4892 = vst [vmem:[#allocation3 + $0x98] sm:$0xf] %v4862
      %vm4893 = vsmask.f32 256
      %vm4894 = vmand %vm722, %vm4893
      %v4895 = vld [vmem:[#allocation3] sm:$0x1]
      %v4896 = vsel %vm4894, 0, %v4895
      %4897 = vst [vmem:[#allocation3] sm:$0x1] %v4896
      %v4898 = vld [vmem:[#allocation3 + $0x10] sm:$0x1]
      %v4899 = vsel %vm4894, 0, %v4898
      %4900 = vst [vmem:[#allocation3 + $0x10] sm:$0x1] %v4899
      %v4901 = vld [vmem:[#allocation3 + $0x20] sm:$0x1]
      %v4902 = vsel %vm4894, 0, %v4901
      %4903 = vst [vmem:[#allocation3 + $0x20] sm:$0x1] %v4902
      %v4904 = vld [vmem:[#allocation3 + $0x30] sm:$0x1]
      %v4905 = vsel %vm4894, 0, %v4904
      %4906 = vst [vmem:[#allocation3 + $0x30] sm:$0x1] %v4905
      %v4907 = vld [vmem:[#allocation3 + $0x40] sm:$0x1]
      %v4908 = vsel %vm4894, 0, %v4907
      %4909 = vst [vmem:[#allocation3 + $0x40] sm:$0x1] %v4908
      %v4910 = vld [vmem:[#allocation3 + $0x50] sm:$0x1]
      %v4911 = vsel %vm4894, 0, %v4910
      %4912 = vst [vmem:[#allocation3 + $0x50] sm:$0x1] %v4911
      %v4913 = vld [vmem:[#allocation3 + $0x60] sm:$0x1]
      %v4914 = vsel %vm4894, 0, %v4913
      %4915 = vst [vmem:[#allocation3 + $0x60] sm:$0x1] %v4914
      %v4916 = vld [vmem:[#allocation3 + $0x70] sm:$0x1]
      %v4917 = vsel %vm4894, 0, %v4916
      %4918 = vst [vmem:[#allocation3 + $0x70] sm:$0x1] %v4917
      %v4919 = vld [vmem:[#allocation3 + $0x80] sm:$0x1]
      %v4920 = vsel %vm4894, 0, %v4919
      %4921 = vst [vmem:[#allocation3 + $0x80] sm:$0x1] %v4920
      %v4922 = vld [vmem:[#allocation3 + $0x90] sm:$0x1]
      %v4923 = vsel %vm4894, 0, %v4922
      %4924 = vst [vmem:[#allocation3 + $0x90] sm:$0x1] %v4923
      %vm4925 = vsmask.f32 7938
      %vm4926 = vmand %vm722, %vm4925
      %v4927 = vld [vmem:[#allocation3 + $0x8] sm:$0x1]
      %v4928 = vsel %vm4926, 0, %v4927
      %4929 = vst [vmem:[#allocation3 + $0x8] sm:$0x1] %v4928
      %v4930 = vld [vmem:[#allocation3 + $0x18] sm:$0x1]
      %v4931 = vsel %vm4926, 0, %v4930
      %4932 = vst [vmem:[#allocation3 + $0x18] sm:$0x1] %v4931
      %v4933 = vld [vmem:[#allocation3 + $0x28] sm:$0x1]
      %v4934 = vsel %vm4926, 0, %v4933
      %4935 = vst [vmem:[#allocation3 + $0x28] sm:$0x1] %v4934
      %v4936 = vld [vmem:[#allocation3 + $0x38] sm:$0x1]
      %v4937 = vsel %vm4926, 0, %v4936
      %4938 = vst [vmem:[#allocation3 + $0x38] sm:$0x1] %v4937
      %v4939 = vld [vmem:[#allocation3 + $0x48] sm:$0x1]
      %v4940 = vsel %vm4926, 0, %v4939
      %4941 = vst [vmem:[#allocation3 + $0x48] sm:$0x1] %v4940
      %v4942 = vld [vmem:[#allocation3 + $0x58] sm:$0x1]
      %v4943 = vsel %vm4926, 0, %v4942
      %4944 = vst [vmem:[#allocation3 + $0x58] sm:$0x1] %v4943
      %v4945 = vld [vmem:[#allocation3 + $0x68] sm:$0x1]
      %v4946 = vsel %vm4926, 0, %v4945
      %4947 = vst [vmem:[#allocation3 + $0x68] sm:$0x1] %v4946
      %v4948 = vld [vmem:[#allocation3 + $0x78] sm:$0x1]
      %v4949 = vsel %vm4926, 0, %v4948
      %4950 = vst [vmem:[#allocation3 + $0x78] sm:$0x1] %v4949
      %v4951 = vld [vmem:[#allocation3 + $0x88] sm:$0x1]
      %v4952 = vsel %vm4926, 0, %v4951
      %4953 = vst [vmem:[#allocation3 + $0x88] sm:$0x1] %v4952
      %v4954 = vld [vmem:[#allocation3 + $0x98] sm:$0x1]
      %v4955 = vsel %vm4926, 0, %v4954
      %4956 = vst [vmem:[#allocation3 + $0x98] sm:$0x1] %v4955
      // Predicated region
      $region199: #{resblock_forward.1} parent=43 // pred_check
        %p4957 = pneg %p271
      $region200: #{resblock_forward.1} parent=43 // pred_check_branch
        %4959 = sbr.rel (%p4957) target = $region202
      $region201: #{resblock_forward.1} parent=43 // pred_region
        %4960 = vst [vmem:[#allocation3] sm:$0xf] 0
        %4961 = vst [vmem:[#allocation3 + $0x4] sm:$0xf] 0
        %4962 = vst [vmem:[#allocation3 + $0x8] sm:$0xf] 0
        %4963 = vst [vmem:[#allocation3 + $0xc] sm:$0x1] 0
      $region202: #{resblock_forward.1} parent=43 // pred_fallthru
        _
      // Predicated region
      $region203: #{resblock_forward.1} parent=43 // pred_check
        %p4964 = pneg %p904
      $region204: #{resblock_forward.1} parent=43 // pred_check_branch
        %4966 = sbr.rel (%p4964) target = $region206
      $region205: #{resblock_forward.1} parent=43 // pred_region
        %s4967 = scalar_lea.vmem [#allocation3], 144
        %4968 = vst [vmem:[%s4967] sm:$0xf] 0
        %4969 = vst [vmem:[%s4967 + $0x4] sm:$0xf] 0
        %4970 = vst [vmem:[%s4967 + $0x8] sm:$0xf] 0
        %4971 = vst [vmem:[%s4967 + $0xc] sm:$0x1] 0
      $region206: #{resblock_forward.1} parent=43 // pred_fallthru
        _
      %v4972 = vld [vmem:[#allocation3] sm:$0xf]
      %v4973 = vld [vmem:[#allocation3 + $0x4] sm:$0xf]
      %v4974 = vld [vmem:[#allocation3 + $0x10] sm:$0xf]
      %v4975 = vld [vmem:[#allocation3 + $0x14] sm:$0xf]
      %v4976 = vld [vmem:[#allocation3 + $0x20] sm:$0xf]
      %v4977 = vld [vmem:[#allocation3 + $0x24] sm:$0xf]
      %v4978 = vld [vmem:[#allocation3 + $0x30] sm:$0xf]
      %v4979 = vld [vmem:[#allocation3 + $0x34] sm:$0xf]
      %v4980 = vld [vmem:[#allocation3 + $0x40] sm:$0xf]
      %v4981 = vld [vmem:[#allocation3 + $0x44] sm:$0xf]
      %v4982 = vld [vmem:[#allocation3 + $0x50] sm:$0xf]
      %v4983 = vld [vmem:[#allocation3 + $0x54] sm:$0xf]
      %v4984 = vld [vmem:[#allocation3 + $0x60] sm:$0xf]
      %v4985 = vld [vmem:[#allocation3 + $0x64] sm:$0xf]
      %v4986 = vld [vmem:[#allocation3 + $0x70] sm:$0xf]
      %v4987 = vld [vmem:[#allocation3 + $0x74] sm:$0xf]
      %v4988 = vld [vmem:[%s2] sm:$0xf]
      %v4989 = vld [vmem:[%s2 + $0x4] sm:$0xf]
      %v4990 = vld [vmem:[%s2 + $0x8] sm:$0xf]
      %v4991 = vld [vmem:[%s2 + $0xc] sm:$0xf]
      %v4992 = vld [vmem:[%s2 + $0x10] sm:$0xf]
      %v4993 = vld [vmem:[%s2 + $0x14] sm:$0xf]
      %v4994 = vld [vmem:[%s2 + $0x18] sm:$0xf]
      %v4995 = vld [vmem:[%s2 + $0x1c] sm:$0xf]
      %v4996 = vld [vmem:[%s2 + $0x20] sm:$0xf]
      %v4997 = vld [vmem:[%s2 + $0x24] sm:$0xf]
      %v4998 = vld [vmem:[%s2 + $0x28] sm:$0xf]
      %v4999 = vld [vmem:[%s2 + $0x2c] sm:$0xf]
      %v5000 = vld [vmem:[%s2 + $0x30] sm:$0xf]
      %v5001 = vld [vmem:[%s2 + $0x34] sm:$0xf]
      %v5002 = vld [vmem:[%s2 + $0x38] sm:$0xf]
      %v5003 = vld [vmem:[%s2 + $0x3c] sm:$0xf]
      %v5004 = vld [vmem:[#allocation3 + $0x8] sm:$0x1]
      %v5005 = vld [vmem:[#allocation3 + $0x18] sm:$0x1]
      %v5006 = vld [vmem:[#allocation3 + $0x28] sm:$0x1]
      %v5007 = vld [vmem:[#allocation3 + $0x38] sm:$0x1]
      %v5008 = vld [vmem:[#allocation3 + $0x48] sm:$0x1]
      %v5009 = vld [vmem:[#allocation3 + $0x58] sm:$0x1]
      %v5010 = vld [vmem:[#allocation3 + $0x68] sm:$0x1]
      %v5011 = vld [vmem:[#allocation3 + $0x78] sm:$0x1]
      %v5013 = vshrl.u32 %v4972, 16
      %v5015 = vrot.slane %v5013, 4
      %v5016 = vshll.u32 %v4972, 16
      %v5018 = vrot.slane %v5016, 5
      %v5019 = vor.u32 %v5015, %v5018
      %v5020 = vrot.slane %v5019, 4
      %v5022 = vshll.u32 %v4973, 16
      %v5024 = vrot.slane %v5022, 5
      %v5025 = vsel %vm975, %v5020, %v5024
      %v5026 = vshrl.u32 %v4973, 16
      %v5028 = vrot.slane %v5026, 4
      %v5029 = vor.u32 %v5028, %v5024
      %v5030 = vrot.slane %v5029, 4
      %v5032 = vshll.u32 %v5004, 16
      %v5034 = vrot.slane %v5032, 5
      %v5035 = vsel %vm975, %v5030, %v5034
      %v5037 = vshrl.u32 %v4974, 16
      %v5039 = vrot.slane %v5037, 4
      %v5040 = vshll.u32 %v4974, 16
      %v5042 = vrot.slane %v5040, 5
      %v5043 = vor.u32 %v5039, %v5042
      %v5044 = vrot.slane %v5043, 4
      %v5046 = vshll.u32 %v4975, 16
      %v5048 = vrot.slane %v5046, 5
      %v5049 = vsel %vm975, %v5044, %v5048
      %v5050 = vshrl.u32 %v4975, 16
      %v5052 = vrot.slane %v5050, 4
      %v5053 = vor.u32 %v5052, %v5048
      %v5054 = vrot.slane %v5053, 4
      %v5056 = vshll.u32 %v5005, 16
      %v5058 = vrot.slane %v5056, 5
      %v5059 = vsel %vm975, %v5054, %v5058
      %v5061 = vshrl.u32 %v4976, 16
      %v5063 = vrot.slane %v5061, 4
      %v5064 = vshll.u32 %v4976, 16
      %v5066 = vrot.slane %v5064, 5
      %v5067 = vor.u32 %v5063, %v5066
      %v5068 = vrot.slane %v5067, 4
      %v5070 = vshll.u32 %v4977, 16
      %v5072 = vrot.slane %v5070, 5
      %v5073 = vsel %vm975, %v5068, %v5072
      %v5074 = vshrl.u32 %v4977, 16
      %v5076 = vrot.slane %v5074, 4
      %v5077 = vor.u32 %v5076, %v5072
      %v5078 = vrot.slane %v5077, 4
      %v5080 = vshll.u32 %v5006, 16
      %v5082 = vrot.slane %v5080, 5
      %v5083 = vsel %vm975, %v5078, %v5082
      %v5085 = vshrl.u32 %v4978, 16
      %v5087 = vrot.slane %v5085, 4
      %v5088 = vshll.u32 %v4978, 16
      %v5090 = vrot.slane %v5088, 5
      %v5091 = vor.u32 %v5087, %v5090
      %v5092 = vrot.slane %v5091, 4
      %v5094 = vshll.u32 %v4979, 16
      %v5096 = vrot.slane %v5094, 5
      %v5097 = vsel %vm975, %v5092, %v5096
      %v5098 = vshrl.u32 %v4979, 16
      %v5100 = vrot.slane %v5098, 4
      %v5101 = vor.u32 %v5100, %v5096
      %v5102 = vrot.slane %v5101, 4
      %v5104 = vshll.u32 %v5007, 16
      %v5106 = vrot.slane %v5104, 5
      %v5107 = vsel %vm975, %v5102, %v5106
      %v5109 = vshrl.u32 %v4980, 16
      %v5111 = vrot.slane %v5109, 4
      %v5112 = vshll.u32 %v4980, 16
      %v5114 = vrot.slane %v5112, 5
      %v5115 = vor.u32 %v5111, %v5114
      %v5116 = vrot.slane %v5115, 4
      %v5118 = vshll.u32 %v4981, 16
      %v5120 = vrot.slane %v5118, 5
      %v5121 = vsel %vm975, %v5116, %v5120
      %v5122 = vshrl.u32 %v4981, 16
      %v5124 = vrot.slane %v5122, 4
      %v5125 = vor.u32 %v5124, %v5120
      %v5126 = vrot.slane %v5125, 4
      %v5128 = vshll.u32 %v5008, 16
      %v5130 = vrot.slane %v5128, 5
      %v5131 = vsel %vm975, %v5126, %v5130
      %v5133 = vshrl.u32 %v4982, 16
      %v5135 = vrot.slane %v5133, 4
      %v5136 = vshll.u32 %v4982, 16
      %v5138 = vrot.slane %v5136, 5
      %v5139 = vor.u32 %v5135, %v5138
      %v5140 = vrot.slane %v5139, 4
      %v5142 = vshll.u32 %v4983, 16
      %v5144 = vrot.slane %v5142, 5
      %v5145 = vsel %vm975, %v5140, %v5144
      %v5146 = vshrl.u32 %v4983, 16
      %v5148 = vrot.slane %v5146, 4
      %v5149 = vor.u32 %v5148, %v5144
      %v5150 = vrot.slane %v5149, 4
      %v5152 = vshll.u32 %v5009, 16
      %v5154 = vrot.slane %v5152, 5
      %v5155 = vsel %vm975, %v5150, %v5154
      %v5157 = vshrl.u32 %v4984, 16
      %v5159 = vrot.slane %v5157, 4
      %v5160 = vshll.u32 %v4984, 16
      %v5162 = vrot.slane %v5160, 5
      %v5163 = vor.u32 %v5159, %v5162
      %v5164 = vrot.slane %v5163, 4
      %v5166 = vshll.u32 %v4985, 16
      %v5168 = vrot.slane %v5166, 5
      %v5169 = vsel %vm975, %v5164, %v5168
      %v5170 = vshrl.u32 %v4985, 16
      %v5172 = vrot.slane %v5170, 4
      %v5173 = vor.u32 %v5172, %v5168
      %v5174 = vrot.slane %v5173, 4
      %v5176 = vshll.u32 %v5010, 16
      %v5178 = vrot.slane %v5176, 5
      %v5179 = vsel %vm975, %v5174, %v5178
      %v5181 = vshrl.u32 %v4986, 16
      %v5183 = vrot.slane %v5181, 4
      %v5184 = vshll.u32 %v4986, 16
      %v5186 = vrot.slane %v5184, 5
      %v5187 = vor.u32 %v5183, %v5186
      %v5188 = vrot.slane %v5187, 4
      %v5190 = vshll.u32 %v4987, 16
      %v5192 = vrot.slane %v5190, 5
      %v5193 = vsel %vm975, %v5188, %v5192
      %v5194 = vshrl.u32 %v4987, 16
      %v5196 = vrot.slane %v5194, 4
      %v5197 = vor.u32 %v5196, %v5192
      %v5198 = vrot.slane %v5197, 4
      %v5200 = vshll.u32 %v5011, 16
      %v5202 = vrot.slane %v5200, 5
      %v5203 = vsel %vm975, %v5198, %v5202
      %s5204 = scalar_lea.vmem %s2, 64
      %v5205 = vld [vmem:[%s5204] sm:$0xf]
      %v5206 = vld [vmem:[%s5204 + $0x4] sm:$0xf]
      %v5207 = vld [vmem:[%s5204 + $0x8] sm:$0xf]
      %v5208 = vld [vmem:[%s5204 + $0xc] sm:$0xf]
      %v5209 = vld [vmem:[%s5204 + $0x10] sm:$0xf]
      %v5210 = vld [vmem:[%s5204 + $0x14] sm:$0xf]
      %v5211 = vld [vmem:[%s5204 + $0x18] sm:$0xf]
      %v5212 = vld [vmem:[%s5204 + $0x1c] sm:$0xf]
      %v5213 = vld [vmem:[%s5204 + $0x20] sm:$0xf]
      %v5214 = vld [vmem:[%s5204 + $0x24] sm:$0xf]
      %v5215 = vld [vmem:[%s5204 + $0x28] sm:$0xf]
      %v5216 = vld [vmem:[%s5204 + $0x2c] sm:$0xf]
      %v5217 = vld [vmem:[%s5204 + $0x30] sm:$0xf]
      %v5218 = vld [vmem:[%s5204 + $0x34] sm:$0xf]
      %v5219 = vld [vmem:[%s5204 + $0x38] sm:$0xf]
      %v5220 = vld [vmem:[%s5204 + $0x3c] sm:$0xf]
      %v5221 = vunpack.c.l.b16 %v5025
      %v5222 = vunpack.c.l.b16 %v5035
      %v5223 = vunpack.c.l.b16 %v5049
      %v5224 = vunpack.c.l.b16 %v5059
      %v5225 = vunpack.c.l.b16 %v5073
      %v5226 = vunpack.c.l.b16 %v5083
      %v5227 = vunpack.c.l.b16 %v5097
      %v5228 = vunpack.c.l.b16 %v5107
      %v5229 = vunpack.c.l.b16 %v5121
      %v5230 = vunpack.c.l.b16 %v5131
      %v5231 = vunpack.c.l.b16 %v5145
      %v5232 = vunpack.c.l.b16 %v5155
      %v5233 = vunpack.c.l.b16 %v5169
      %v5234 = vunpack.c.l.b16 %v5179
      %v5235 = vunpack.c.l.b16 %v5193
      %v5236 = vunpack.c.l.b16 %v5203
      %v5237 = vpack.c.b16 %v5222, %v5221
      %v5238 = vpack.c.b16 %v5224, %v5223
      %v5239 = vpack.c.b16 %v5226, %v5225
      %v5240 = vpack.c.b16 %v5228, %v5227
      %v5241 = vpack.c.b16 %v5230, %v5229
      %v5242 = vpack.c.b16 %v5232, %v5231
      %v5243 = vpack.c.b16 %v5234, %v5233
      %v5244 = vpack.c.b16 %v5236, %v5235
      %v5269 = vunpack.c.l.b16 %v5205
      %v5270 = vunpack.c.l.b16 %v5206
      %v5271 = vunpack.c.l.b16 %v5207
      %v5272 = vunpack.c.l.b16 %v5208
      %v5273 = vunpack.c.l.b16 %v5209
      %v5274 = vunpack.c.l.b16 %v5210
      %v5275 = vunpack.c.l.b16 %v5211
      %v5276 = vunpack.c.l.b16 %v5212
      %v5277 = vunpack.c.l.b16 %v5213
      %v5278 = vunpack.c.l.b16 %v5214
      %v5279 = vunpack.c.l.b16 %v5215
      %v5280 = vunpack.c.l.b16 %v5216
      %v5281 = vunpack.c.l.b16 %v5217
      %v5282 = vunpack.c.l.b16 %v5218
      %v5283 = vunpack.c.l.b16 %v5219
      %v5284 = vunpack.c.l.b16 %v5220
      %v5285 = vpack.c.b16 %v5270, %v5269
      %v5286 = vpack.c.b16 %v5272, %v5271
      %v5287 = vpack.c.b16 %v5274, %v5273
      %v5288 = vpack.c.b16 %v5276, %v5275
      %v5289 = vpack.c.b16 %v5278, %v5277
      %v5290 = vpack.c.b16 %v5280, %v5279
      %v5291 = vpack.c.b16 %v5282, %v5281
      %v5292 = vpack.c.b16 %v5284, %v5283
      %5301 = vmatpush.bf16.msra.mxu0 %v5292
      %5302 = vmatpush.bf16.msra.mxu0 %v5291
      %5303 = vmatpush.bf16.msra.mxu0 %v5290
      %5304 = vmatpush.bf16.msra.mxu0 %v5289
      %5305 = vmatpush.bf16.msra.mxu0 %v5288
      %5306 = vmatpush.bf16.msra.mxu0 %v5287
      %5307 = vmatpush.bf16.msra.mxu0 %v5286
      %5308 = vmatpush.bf16.msra.mxu0 %v5285
      %5309 = vmatmul.bf16.gmra.mxu0 %v5237
      %v5310 = vpop.f32.mrf.mxu0
      %v5311 = vadd.f32 0.0, %v5310
      %v5312 = vpop.f32.mrf.mxu0
      %v5313 = vadd.f32 0.0, %v5312
      %5314 = vmatmul.bf16.gmra.mxu0 %v5238
      %v5315 = vpop.f32.mrf.mxu0
      %v5316 = vadd.f32 0.0, %v5315
      %v5317 = vpop.f32.mrf.mxu0
      %v5318 = vadd.f32 0.0, %v5317
      %5319 = vmatmul.bf16.gmra.mxu0 %v5239
      %v5320 = vpop.f32.mrf.mxu0
      %v5321 = vadd.f32 0.0, %v5320
      %v5322 = vpop.f32.mrf.mxu0
      %v5323 = vadd.f32 0.0, %v5322
      %5324 = vmatmul.bf16.gmra.mxu0 %v5240
      %v5325 = vpop.f32.mrf.mxu0
      %v5326 = vadd.f32 0.0, %v5325
      %v5327 = vpop.f32.mrf.mxu0
      %v5328 = vadd.f32 0.0, %v5327
      %5329 = vmatmul.bf16.gmra.mxu0 %v5241
      %v5330 = vpop.f32.mrf.mxu0
      %v5331 = vadd.f32 0.0, %v5330
      %v5332 = vpop.f32.mrf.mxu0
      %v5333 = vadd.f32 0.0, %v5332
      %5334 = vmatmul.bf16.gmra.mxu0 %v5242
      %v5335 = vpop.f32.mrf.mxu0
      %v5336 = vadd.f32 0.0, %v5335
      %v5337 = vpop.f32.mrf.mxu0
      %v5338 = vadd.f32 0.0, %v5337
      %5339 = vmatmul.bf16.gmra.mxu0 %v5243
      %v5340 = vpop.f32.mrf.mxu0
      %v5341 = vadd.f32 0.0, %v5340
      %v5342 = vpop.f32.mrf.mxu0
      %v5343 = vadd.f32 0.0, %v5342
      %5344 = vmatmul.bf16.gmra.mxu0 %v5244
      %v5345 = vpop.f32.mrf.mxu0
      %v5346 = vadd.f32 0.0, %v5345
      %v5347 = vpop.f32.mrf.mxu0
      %v5348 = vadd.f32 0.0, %v5347
      %5349 = vdwg.mxu0
      %v5366 = vunpack.c.l.b16 %v4972
      %v5367 = vunpack.c.l.b16 %v4973
      %v5368 = vunpack.c.l.b16 %v4974
      %v5369 = vunpack.c.l.b16 %v4975
      %v5370 = vunpack.c.l.b16 %v4976
      %v5371 = vunpack.c.l.b16 %v4977
      %v5372 = vunpack.c.l.b16 %v4978
      %v5373 = vunpack.c.l.b16 %v4979
      %v5374 = vunpack.c.l.b16 %v4980
      %v5375 = vunpack.c.l.b16 %v4981
      %v5376 = vunpack.c.l.b16 %v4982
      %v5377 = vunpack.c.l.b16 %v4983
      %v5378 = vunpack.c.l.b16 %v4984
      %v5379 = vunpack.c.l.b16 %v4985
      %v5380 = vunpack.c.l.b16 %v4986
      %v5381 = vunpack.c.l.b16 %v4987
      %v5382 = vpack.c.b16 %v5367, %v5366
      %v5383 = vpack.c.b16 %v5369, %v5368
      %v5384 = vpack.c.b16 %v5371, %v5370
      %v5385 = vpack.c.b16 %v5373, %v5372
      %v5386 = vpack.c.b16 %v5375, %v5374
      %v5387 = vpack.c.b16 %v5377, %v5376
      %v5388 = vpack.c.b16 %v5379, %v5378
      %v5389 = vpack.c.b16 %v5381, %v5380
      %v5414 = vunpack.c.l.b16 %v4988
      %v5415 = vunpack.c.l.b16 %v4989
      %v5416 = vunpack.c.l.b16 %v4990
      %v5417 = vunpack.c.l.b16 %v4991
      %v5418 = vunpack.c.l.b16 %v4992
      %v5419 = vunpack.c.l.b16 %v4993
      %v5420 = vunpack.c.l.b16 %v4994
      %v5421 = vunpack.c.l.b16 %v4995
      %v5422 = vunpack.c.l.b16 %v4996
      %v5423 = vunpack.c.l.b16 %v4997
      %v5424 = vunpack.c.l.b16 %v4998
      %v5425 = vunpack.c.l.b16 %v4999
      %v5426 = vunpack.c.l.b16 %v5000
      %v5427 = vunpack.c.l.b16 %v5001
      %v5428 = vunpack.c.l.b16 %v5002
      %v5429 = vunpack.c.l.b16 %v5003
      %v5430 = vpack.c.b16 %v5415, %v5414
      %v5431 = vpack.c.b16 %v5417, %v5416
      %v5432 = vpack.c.b16 %v5419, %v5418
      %v5433 = vpack.c.b16 %v5421, %v5420
      %v5434 = vpack.c.b16 %v5423, %v5422
      %v5435 = vpack.c.b16 %v5425, %v5424
      %v5436 = vpack.c.b16 %v5427, %v5426
      %v5437 = vpack.c.b16 %v5429, %v5428
      %5446 = vmatpush.bf16.msra.mxu0 %v5437
      %5447 = vmatpush.bf16.msra.mxu0 %v5436
      %5448 = vmatpush.bf16.msra.mxu0 %v5435
      %5449 = vmatpush.bf16.msra.mxu0 %v5434
      %5450 = vmatpush.bf16.msra.mxu0 %v5433
      %5451 = vmatpush.bf16.msra.mxu0 %v5432
      %5452 = vmatpush.bf16.msra.mxu0 %v5431
      %5453 = vmatpush.bf16.msra.mxu0 %v5430
      %5454 = vmatmul.bf16.gmra.mxu0 %v5382
      %v5455 = vpop.f32.mrf.mxu0
      %v5456 = vadd.f32 %v5311, %v5455
      %v5457 = vpop.f32.mrf.mxu0
      %v5458 = vadd.f32 %v5313, %v5457
      %5459 = vmatmul.bf16.gmra.mxu0 %v5383
      %v5460 = vpop.f32.mrf.mxu0
      %v5461 = vadd.f32 %v5316, %v5460
      %v5462 = vpop.f32.mrf.mxu0
      %v5463 = vadd.f32 %v5318, %v5462
      %5464 = vmatmul.bf16.gmra.mxu0 %v5384
      %v5465 = vpop.f32.mrf.mxu0
      %v5466 = vadd.f32 %v5321, %v5465
      %v5467 = vpop.f32.mrf.mxu0
      %v5468 = vadd.f32 %v5323, %v5467
      %5469 = vmatmul.bf16.gmra.mxu0 %v5385
      %v5470 = vpop.f32.mrf.mxu0
      %v5471 = vadd.f32 %v5326, %v5470
      %v5472 = vpop.f32.mrf.mxu0
      %v5473 = vadd.f32 %v5328, %v5472
      %5474 = vmatmul.bf16.gmra.mxu0 %v5386
      %v5475 = vpop.f32.mrf.mxu0
      %v5476 = vadd.f32 %v5331, %v5475
      %v5477 = vpop.f32.mrf.mxu0
      %v5478 = vadd.f32 %v5333, %v5477
      %5479 = vmatmul.bf16.gmra.mxu0 %v5387
      %v5480 = vpop.f32.mrf.mxu0
      %v5481 = vadd.f32 %v5336, %v5480
      %v5482 = vpop.f32.mrf.mxu0
      %v5483 = vadd.f32 %v5338, %v5482
      %5484 = vmatmul.bf16.gmra.mxu0 %v5388
      %v5485 = vpop.f32.mrf.mxu0
      %v5486 = vadd.f32 %v5341, %v5485
      %v5487 = vpop.f32.mrf.mxu0
      %v5488 = vadd.f32 %v5343, %v5487
      %5489 = vmatmul.bf16.gmra.mxu0 %v5389
      %v5490 = vpop.f32.mrf.mxu0
      %v5491 = vadd.f32 %v5346, %v5490
      %v5492 = vpop.f32.mrf.mxu0
      %v5493 = vadd.f32 %v5348, %v5492
      %5494 = vdwg.mxu0
      %v5495 = vld [vmem:[#allocation3] sm:$0xe]
      %v5496 = vld [vmem:[#allocation3 + $0x10] sm:$0xe]
      %v5497 = vld [vmem:[#allocation3 + $0x20] sm:$0xe]
      %v5498 = vld [vmem:[#allocation3 + $0x30] sm:$0xe]
      %v5499 = vld [vmem:[#allocation3 + $0x40] sm:$0xe]
      %v5500 = vld [vmem:[#allocation3 + $0x50] sm:$0xe]
      %v5501 = vld [vmem:[#allocation3 + $0x60] sm:$0xe]
      %v5502 = vld [vmem:[#allocation3 + $0x70] sm:$0xe]
      %v5519 = vrot.slane %v5495, 5
      %v5520 = vrot.slane %v5519, 4
      %v5521 = vrot.slane %v4973, 5
      %v5522 = vsel %vm1779, %v5520, %v5521
      %v5523 = vrot.slane %v5521, 4
      %v5524 = vrot.slane %v5004, 5
      %v5525 = vsel %vm1779, %v5523, %v5524
      %v5526 = vrot.slane %v5496, 5
      %v5527 = vrot.slane %v5526, 4
      %v5528 = vrot.slane %v4975, 5
      %v5529 = vsel %vm1779, %v5527, %v5528
      %v5530 = vrot.slane %v5528, 4
      %v5531 = vrot.slane %v5005, 5
      %v5532 = vsel %vm1779, %v5530, %v5531
      %v5533 = vrot.slane %v5497, 5
      %v5534 = vrot.slane %v5533, 4
      %v5535 = vrot.slane %v4977, 5
      %v5536 = vsel %vm1779, %v5534, %v5535
      %v5537 = vrot.slane %v5535, 4
      %v5538 = vrot.slane %v5006, 5
      %v5539 = vsel %vm1779, %v5537, %v5538
      %v5540 = vrot.slane %v5498, 5
      %v5541 = vrot.slane %v5540, 4
      %v5542 = vrot.slane %v4979, 5
      %v5543 = vsel %vm1779, %v5541, %v5542
      %v5544 = vrot.slane %v5542, 4
      %v5545 = vrot.slane %v5007, 5
      %v5546 = vsel %vm1779, %v5544, %v5545
      %v5547 = vrot.slane %v5499, 5
      %v5548 = vrot.slane %v5547, 4
      %v5549 = vrot.slane %v4981, 5
      %v5550 = vsel %vm1779, %v5548, %v5549
      %v5551 = vrot.slane %v5549, 4
      %v5552 = vrot.slane %v5008, 5
      %v5553 = vsel %vm1779, %v5551, %v5552
      %v5554 = vrot.slane %v5500, 5
      %v5555 = vrot.slane %v5554, 4
      %v5556 = vrot.slane %v4983, 5
      %v5557 = vsel %vm1779, %v5555, %v5556
      %v5558 = vrot.slane %v5556, 4
      %v5559 = vrot.slane %v5009, 5
      %v5560 = vsel %vm1779, %v5558, %v5559
      %v5561 = vrot.slane %v5501, 5
      %v5562 = vrot.slane %v5561, 4
      %v5563 = vrot.slane %v4985, 5
      %v5564 = vsel %vm1779, %v5562, %v5563
      %v5565 = vrot.slane %v5563, 4
      %v5566 = vrot.slane %v5010, 5
      %v5567 = vsel %vm1779, %v5565, %v5566
      %v5568 = vrot.slane %v5502, 5
      %v5569 = vrot.slane %v5568, 4
      %v5570 = vrot.slane %v4987, 5
      %v5571 = vsel %vm1779, %v5569, %v5570
      %v5572 = vrot.slane %v5570, 4
      %v5573 = vrot.slane %v5011, 5
      %v5574 = vsel %vm1779, %v5572, %v5573
      %s5575 = scalar_lea.vmem %s2, 128
      %v5576 = vld [vmem:[%s5575] sm:$0xf]
      %v5577 = vld [vmem:[%s5575 + $0x4] sm:$0xf]
      %v5578 = vld [vmem:[%s5575 + $0x8] sm:$0xf]
      %v5579 = vld [vmem:[%s5575 + $0xc] sm:$0xf]
      %v5580 = vld [vmem:[%s5575 + $0x10] sm:$0xf]
      %v5581 = vld [vmem:[%s5575 + $0x14] sm:$0xf]
      %v5582 = vld [vmem:[%s5575 + $0x18] sm:$0xf]
      %v5583 = vld [vmem:[%s5575 + $0x1c] sm:$0xf]
      %v5584 = vld [vmem:[%s5575 + $0x20] sm:$0xf]
      %v5585 = vld [vmem:[%s5575 + $0x24] sm:$0xf]
      %v5586 = vld [vmem:[%s5575 + $0x28] sm:$0xf]
      %v5587 = vld [vmem:[%s5575 + $0x2c] sm:$0xf]
      %v5588 = vld [vmem:[%s5575 + $0x30] sm:$0xf]
      %v5589 = vld [vmem:[%s5575 + $0x34] sm:$0xf]
      %v5590 = vld [vmem:[%s5575 + $0x38] sm:$0xf]
      %v5591 = vld [vmem:[%s5575 + $0x3c] sm:$0xf]
      %v5592 = vunpack.c.l.b16 %v5522
      %v5593 = vunpack.c.l.b16 %v5525
      %v5594 = vunpack.c.l.b16 %v5529
      %v5595 = vunpack.c.l.b16 %v5532
      %v5596 = vunpack.c.l.b16 %v5536
      %v5597 = vunpack.c.l.b16 %v5539
      %v5598 = vunpack.c.l.b16 %v5543
      %v5599 = vunpack.c.l.b16 %v5546
      %v5600 = vunpack.c.l.b16 %v5550
      %v5601 = vunpack.c.l.b16 %v5553
      %v5602 = vunpack.c.l.b16 %v5557
      %v5603 = vunpack.c.l.b16 %v5560
      %v5604 = vunpack.c.l.b16 %v5564
      %v5605 = vunpack.c.l.b16 %v5567
      %v5606 = vunpack.c.l.b16 %v5571
      %v5607 = vunpack.c.l.b16 %v5574
      %v5608 = vpack.c.b16 %v5593, %v5592
      %v5609 = vpack.c.b16 %v5595, %v5594
      %v5610 = vpack.c.b16 %v5597, %v5596
      %v5611 = vpack.c.b16 %v5599, %v5598
      %v5612 = vpack.c.b16 %v5601, %v5600
      %v5613 = vpack.c.b16 %v5603, %v5602
      %v5614 = vpack.c.b16 %v5605, %v5604
      %v5615 = vpack.c.b16 %v5607, %v5606
      %v5640 = vunpack.c.l.b16 %v5576
      %v5641 = vunpack.c.l.b16 %v5577
      %v5642 = vunpack.c.l.b16 %v5578
      %v5643 = vunpack.c.l.b16 %v5579
      %v5644 = vunpack.c.l.b16 %v5580
      %v5645 = vunpack.c.l.b16 %v5581
      %v5646 = vunpack.c.l.b16 %v5582
      %v5647 = vunpack.c.l.b16 %v5583
      %v5648 = vunpack.c.l.b16 %v5584
      %v5649 = vunpack.c.l.b16 %v5585
      %v5650 = vunpack.c.l.b16 %v5586
      %v5651 = vunpack.c.l.b16 %v5587
      %v5652 = vunpack.c.l.b16 %v5588
      %v5653 = vunpack.c.l.b16 %v5589
      %v5654 = vunpack.c.l.b16 %v5590
      %v5655 = vunpack.c.l.b16 %v5591
      %v5656 = vpack.c.b16 %v5641, %v5640
      %v5657 = vpack.c.b16 %v5643, %v5642
      %v5658 = vpack.c.b16 %v5645, %v5644
      %v5659 = vpack.c.b16 %v5647, %v5646
      %v5660 = vpack.c.b16 %v5649, %v5648
      %v5661 = vpack.c.b16 %v5651, %v5650
      %v5662 = vpack.c.b16 %v5653, %v5652
      %v5663 = vpack.c.b16 %v5655, %v5654
      %5672 = vmatpush.bf16.msra.mxu0 %v5663
      %5673 = vmatpush.bf16.msra.mxu0 %v5662
      %5674 = vmatpush.bf16.msra.mxu0 %v5661
      %5675 = vmatpush.bf16.msra.mxu0 %v5660
      %5676 = vmatpush.bf16.msra.mxu0 %v5659
      %5677 = vmatpush.bf16.msra.mxu0 %v5658
      %5678 = vmatpush.bf16.msra.mxu0 %v5657
      %5679 = vmatpush.bf16.msra.mxu0 %v5656
      %5680 = vmatmul.bf16.gmra.mxu0 %v5608
      %v5681 = vpop.f32.mrf.mxu0
      %v5682 = vadd.f32 0.0, %v5681
      %v5683 = vpop.f32.mrf.mxu0
      %v5684 = vadd.f32 0.0, %v5683
      %5685 = vmatmul.bf16.gmra.mxu0 %v5609
      %v5686 = vpop.f32.mrf.mxu0
      %v5687 = vadd.f32 0.0, %v5686
      %v5688 = vpop.f32.mrf.mxu0
      %v5689 = vadd.f32 0.0, %v5688
      %5690 = vmatmul.bf16.gmra.mxu0 %v5610
      %v5691 = vpop.f32.mrf.mxu0
      %v5692 = vadd.f32 0.0, %v5691
      %v5693 = vpop.f32.mrf.mxu0
      %v5694 = vadd.f32 0.0, %v5693
      %5695 = vmatmul.bf16.gmra.mxu0 %v5611
      %v5696 = vpop.f32.mrf.mxu0
      %v5697 = vadd.f32 0.0, %v5696
      %v5698 = vpop.f32.mrf.mxu0
      %v5699 = vadd.f32 0.0, %v5698
      %5700 = vmatmul.bf16.gmra.mxu0 %v5612
      %v5701 = vpop.f32.mrf.mxu0
      %v5702 = vadd.f32 0.0, %v5701
      %v5703 = vpop.f32.mrf.mxu0
      %v5704 = vadd.f32 0.0, %v5703
      %5705 = vmatmul.bf16.gmra.mxu0 %v5613
      %v5706 = vpop.f32.mrf.mxu0
      %v5707 = vadd.f32 0.0, %v5706
      %v5708 = vpop.f32.mrf.mxu0
      %v5709 = vadd.f32 0.0, %v5708
      %5710 = vmatmul.bf16.gmra.mxu0 %v5614
      %v5711 = vpop.f32.mrf.mxu0
      %v5712 = vadd.f32 0.0, %v5711
      %v5713 = vpop.f32.mrf.mxu0
      %v5714 = vadd.f32 0.0, %v5713
      %5715 = vmatmul.bf16.gmra.mxu0 %v5615
      %v5716 = vpop.f32.mrf.mxu0
      %v5717 = vadd.f32 0.0, %v5716
      %v5718 = vpop.f32.mrf.mxu0
      %v5719 = vadd.f32 0.0, %v5718
      %5720 = vdwg.mxu0
      %v5721 = vadd.f32 %v5456, %v5682
      %v5722 = vadd.f32 %v5458, %v5684
      %v5723 = vadd.f32 %v5461, %v5687
      %v5724 = vadd.f32 %v5463, %v5689
      %v5725 = vadd.f32 %v5466, %v5692
      %v5726 = vadd.f32 %v5468, %v5694
      %v5727 = vadd.f32 %v5471, %v5697
      %v5728 = vadd.f32 %v5473, %v5699
      %v5729 = vadd.f32 %v5476, %v5702
      %v5730 = vadd.f32 %v5478, %v5704
      %v5731 = vadd.f32 %v5481, %v5707
      %v5732 = vadd.f32 %v5483, %v5709
      %v5733 = vadd.f32 %v5486, %v5712
      %v5734 = vadd.f32 %v5488, %v5714
      %v5735 = vadd.f32 %v5491, %v5717
      %v5736 = vadd.f32 %v5493, %v5719
      %v5737 = vld [vmem:[%s2119] sm:$0xf]
      %v5738 = vld [vmem:[%s2119 + $0x4] sm:$0xf]
      %v5739 = vld [vmem:[%s2119 + $0x10] sm:$0xf]
      %v5740 = vld [vmem:[%s2119 + $0x14] sm:$0xf]
      %v5741 = vld [vmem:[%s2119 + $0x20] sm:$0xf]
      %v5742 = vld [vmem:[%s2119 + $0x24] sm:$0xf]
      %v5743 = vld [vmem:[%s2119 + $0x30] sm:$0xf]
      %v5744 = vld [vmem:[%s2119 + $0x34] sm:$0xf]
      %v5745 = vld [vmem:[%s2119 + $0x40] sm:$0xf]
      %v5746 = vld [vmem:[%s2119 + $0x44] sm:$0xf]
      %v5747 = vld [vmem:[%s2119 + $0x50] sm:$0xf]
      %v5748 = vld [vmem:[%s2119 + $0x54] sm:$0xf]
      %v5749 = vld [vmem:[%s2119 + $0x60] sm:$0xf]
      %v5750 = vld [vmem:[%s2119 + $0x64] sm:$0xf]
      %v5751 = vld [vmem:[%s2119 + $0x70] sm:$0xf]
      %v5752 = vld [vmem:[%s2119 + $0x74] sm:$0xf]
      %s5753 = scalar_lea.vmem %s2, 192
      %v5754 = vld [vmem:[%s5753] sm:$0xf]
      %v5755 = vld [vmem:[%s5753 + $0x4] sm:$0xf]
      %v5756 = vld [vmem:[%s5753 + $0x8] sm:$0xf]
      %v5757 = vld [vmem:[%s5753 + $0xc] sm:$0xf]
      %v5758 = vld [vmem:[%s5753 + $0x10] sm:$0xf]
      %v5759 = vld [vmem:[%s5753 + $0x14] sm:$0xf]
      %v5760 = vld [vmem:[%s5753 + $0x18] sm:$0xf]
      %v5761 = vld [vmem:[%s5753 + $0x1c] sm:$0xf]
      %v5762 = vld [vmem:[%s5753 + $0x20] sm:$0xf]
      %v5763 = vld [vmem:[%s5753 + $0x24] sm:$0xf]
      %v5764 = vld [vmem:[%s5753 + $0x28] sm:$0xf]
      %v5765 = vld [vmem:[%s5753 + $0x2c] sm:$0xf]
      %v5766 = vld [vmem:[%s5753 + $0x30] sm:$0xf]
      %v5767 = vld [vmem:[%s5753 + $0x34] sm:$0xf]
      %v5768 = vld [vmem:[%s5753 + $0x38] sm:$0xf]
      %v5769 = vld [vmem:[%s5753 + $0x3c] sm:$0xf]
      %v5786 = vunpack.c.l.b16 %v5737
      %v5787 = vunpack.c.l.b16 %v5738
      %v5788 = vunpack.c.l.b16 %v5739
      %v5789 = vunpack.c.l.b16 %v5740
      %v5790 = vunpack.c.l.b16 %v5741
      %v5791 = vunpack.c.l.b16 %v5742
      %v5792 = vunpack.c.l.b16 %v5743
      %v5793 = vunpack.c.l.b16 %v5744
      %v5794 = vunpack.c.l.b16 %v5745
      %v5795 = vunpack.c.l.b16 %v5746
      %v5796 = vunpack.c.l.b16 %v5747
      %v5797 = vunpack.c.l.b16 %v5748
      %v5798 = vunpack.c.l.b16 %v5749
      %v5799 = vunpack.c.l.b16 %v5750
      %v5800 = vunpack.c.l.b16 %v5751
      %v5801 = vunpack.c.l.b16 %v5752
      %v5802 = vpack.c.b16 %v5787, %v5786
      %v5803 = vpack.c.b16 %v5789, %v5788
      %v5804 = vpack.c.b16 %v5791, %v5790
      %v5805 = vpack.c.b16 %v5793, %v5792
      %v5806 = vpack.c.b16 %v5795, %v5794
      %v5807 = vpack.c.b16 %v5797, %v5796
      %v5808 = vpack.c.b16 %v5799, %v5798
      %v5809 = vpack.c.b16 %v5801, %v5800
      %v5834 = vunpack.c.l.b16 %v5754
      %v5835 = vunpack.c.l.b16 %v5755
      %v5836 = vunpack.c.l.b16 %v5756
      %v5837 = vunpack.c.l.b16 %v5757
      %v5838 = vunpack.c.l.b16 %v5758
      %v5839 = vunpack.c.l.b16 %v5759
      %v5840 = vunpack.c.l.b16 %v5760
      %v5841 = vunpack.c.l.b16 %v5761
      %v5842 = vunpack.c.l.b16 %v5762
      %v5843 = vunpack.c.l.b16 %v5763
      %v5844 = vunpack.c.l.b16 %v5764
      %v5845 = vunpack.c.l.b16 %v5765
      %v5846 = vunpack.c.l.b16 %v5766
      %v5847 = vunpack.c.l.b16 %v5767
      %v5848 = vunpack.c.l.b16 %v5768
      %v5849 = vunpack.c.l.b16 %v5769
      %v5850 = vpack.c.b16 %v5835, %v5834
      %v5851 = vpack.c.b16 %v5837, %v5836
      %v5852 = vpack.c.b16 %v5839, %v5838
      %v5853 = vpack.c.b16 %v5841, %v5840
      %v5854 = vpack.c.b16 %v5843, %v5842
      %v5855 = vpack.c.b16 %v5845, %v5844
      %v5856 = vpack.c.b16 %v5847, %v5846
      %v5857 = vpack.c.b16 %v5849, %v5848
      %5866 = vmatpush.bf16.msra.mxu0 %v5857
      %5867 = vmatpush.bf16.msra.mxu0 %v5856
      %5868 = vmatpush.bf16.msra.mxu0 %v5855
      %5869 = vmatpush.bf16.msra.mxu0 %v5854
      %5870 = vmatpush.bf16.msra.mxu0 %v5853
      %5871 = vmatpush.bf16.msra.mxu0 %v5852
      %5872 = vmatpush.bf16.msra.mxu0 %v5851
      %5873 = vmatpush.bf16.msra.mxu0 %v5850
      %5874 = vmatmul.bf16.gmra.mxu0 %v5802
      %v5875 = vpop.f32.mrf.mxu0
      %v5876 = vadd.f32 0.0, %v5875
      %v5877 = vpop.f32.mrf.mxu0
      %v5878 = vadd.f32 0.0, %v5877
      %5879 = vmatmul.bf16.gmra.mxu0 %v5803
      %v5880 = vpop.f32.mrf.mxu0
      %v5881 = vadd.f32 0.0, %v5880
      %v5882 = vpop.f32.mrf.mxu0
      %v5883 = vadd.f32 0.0, %v5882
      %5884 = vmatmul.bf16.gmra.mxu0 %v5804
      %v5885 = vpop.f32.mrf.mxu0
      %v5886 = vadd.f32 0.0, %v5885
      %v5887 = vpop.f32.mrf.mxu0
      %v5888 = vadd.f32 0.0, %v5887
      %5889 = vmatmul.bf16.gmra.mxu0 %v5805
      %v5890 = vpop.f32.mrf.mxu0
      %v5891 = vadd.f32 0.0, %v5890
      %v5892 = vpop.f32.mrf.mxu0
      %v5893 = vadd.f32 0.0, %v5892
      %5894 = vmatmul.bf16.gmra.mxu0 %v5806
      %v5895 = vpop.f32.mrf.mxu0
      %v5896 = vadd.f32 0.0, %v5895
      %v5897 = vpop.f32.mrf.mxu0
      %v5898 = vadd.f32 0.0, %v5897
      %5899 = vmatmul.bf16.gmra.mxu0 %v5807
      %v5900 = vpop.f32.mrf.mxu0
      %v5901 = vadd.f32 0.0, %v5900
      %v5902 = vpop.f32.mrf.mxu0
      %v5903 = vadd.f32 0.0, %v5902
      %5904 = vmatmul.bf16.gmra.mxu0 %v5808
      %v5905 = vpop.f32.mrf.mxu0
      %v5906 = vadd.f32 0.0, %v5905
      %v5907 = vpop.f32.mrf.mxu0
      %v5908 = vadd.f32 0.0, %v5907
      %5909 = vmatmul.bf16.gmra.mxu0 %v5809
      %v5910 = vpop.f32.mrf.mxu0
      %v5911 = vadd.f32 0.0, %v5910
      %v5912 = vpop.f32.mrf.mxu0
      %v5913 = vadd.f32 0.0, %v5912
      %5914 = vdwg.mxu0
      %v5915 = vadd.f32 %v5721, %v5876
      %v5916 = vadd.f32 %v5722, %v5878
      %v5917 = vadd.f32 %v5723, %v5881
      %v5918 = vadd.f32 %v5724, %v5883
      %v5919 = vadd.f32 %v5725, %v5886
      %v5920 = vadd.f32 %v5726, %v5888
      %v5921 = vadd.f32 %v5727, %v5891
      %v5922 = vadd.f32 %v5728, %v5893
      %v5923 = vadd.f32 %v5729, %v5896
      %v5924 = vadd.f32 %v5730, %v5898
      %v5925 = vadd.f32 %v5731, %v5901
      %v5926 = vadd.f32 %v5732, %v5903
      %v5927 = vadd.f32 %v5733, %v5906
      %v5928 = vadd.f32 %v5734, %v5908
      %v5929 = vadd.f32 %v5735, %v5911
      %v5930 = vadd.f32 %v5736, %v5913
      %v5931 = vld [vmem:[%s2119] sm:$0xf]
      %v5932 = vld [vmem:[%s2119 + $0x4] sm:$0xf]
      %v5933 = vld [vmem:[%s2119 + $0x8] sm:$0x1]
      %v5934 = vld [vmem:[%s2119 + $0x10] sm:$0xf]
      %v5935 = vld [vmem:[%s2119 + $0x14] sm:$0xf]
      %v5936 = vld [vmem:[%s2119 + $0x18] sm:$0x1]
      %v5937 = vld [vmem:[%s2119 + $0x20] sm:$0xf]
      %v5938 = vld [vmem:[%s2119 + $0x24] sm:$0xf]
      %v5939 = vld [vmem:[%s2119 + $0x28] sm:$0x1]
      %v5940 = vld [vmem:[%s2119 + $0x30] sm:$0xf]
      %v5941 = vld [vmem:[%s2119 + $0x34] sm:$0xf]
      %v5942 = vld [vmem:[%s2119 + $0x38] sm:$0x1]
      %v5943 = vld [vmem:[%s2119 + $0x40] sm:$0xf]
      %v5944 = vld [vmem:[%s2119 + $0x44] sm:$0xf]
      %v5945 = vld [vmem:[%s2119 + $0x48] sm:$0x1]
      %v5946 = vld [vmem:[%s2119 + $0x50] sm:$0xf]
      %v5947 = vld [vmem:[%s2119 + $0x54] sm:$0xf]
      %v5948 = vld [vmem:[%s2119 + $0x58] sm:$0x1]
      %v5949 = vld [vmem:[%s2119 + $0x60] sm:$0xf]
      %v5950 = vld [vmem:[%s2119 + $0x64] sm:$0xf]
      %v5951 = vld [vmem:[%s2119 + $0x68] sm:$0x1]
      %v5952 = vld [vmem:[%s2119 + $0x70] sm:$0xf]
      %v5953 = vld [vmem:[%s2119 + $0x74] sm:$0xf]
      %v5954 = vld [vmem:[%s2119 + $0x78] sm:$0x1]
      %v5956 = vshrl.u32 %v5931, 16
      %v5958 = vrot.slane %v5956, 4
      %v5959 = vshll.u32 %v5931, 16
      %v5961 = vrot.slane %v5959, 5
      %v5962 = vor.u32 %v5958, %v5961
      %v5963 = vrot.slane %v5962, 4
      %v5965 = vshll.u32 %v5932, 16
      %v5967 = vrot.slane %v5965, 5
      %v5968 = vsel %vm975, %v5963, %v5967
      %v5969 = vshrl.u32 %v5932, 16
      %v5971 = vrot.slane %v5969, 4
      %v5972 = vor.u32 %v5971, %v5967
      %v5973 = vrot.slane %v5972, 4
      %v5975 = vshll.u32 %v5933, 16
      %v5977 = vrot.slane %v5975, 5
      %v5978 = vsel %vm975, %v5973, %v5977
      %v5980 = vshrl.u32 %v5934, 16
      %v5982 = vrot.slane %v5980, 4
      %v5983 = vshll.u32 %v5934, 16
      %v5985 = vrot.slane %v5983, 5
      %v5986 = vor.u32 %v5982, %v5985
      %v5987 = vrot.slane %v5986, 4
      %v5989 = vshll.u32 %v5935, 16
      %v5991 = vrot.slane %v5989, 5
      %v5992 = vsel %vm975, %v5987, %v5991
      %v5993 = vshrl.u32 %v5935, 16
      %v5995 = vrot.slane %v5993, 4
      %v5996 = vor.u32 %v5995, %v5991
      %v5997 = vrot.slane %v5996, 4
      %v5999 = vshll.u32 %v5936, 16
      %v6001 = vrot.slane %v5999, 5
      %v6002 = vsel %vm975, %v5997, %v6001
      %v6004 = vshrl.u32 %v5937, 16
      %v6006 = vrot.slane %v6004, 4
      %v6007 = vshll.u32 %v5937, 16
      %v6009 = vrot.slane %v6007, 5
      %v6010 = vor.u32 %v6006, %v6009
      %v6011 = vrot.slane %v6010, 4
      %v6013 = vshll.u32 %v5938, 16
      %v6015 = vrot.slane %v6013, 5
      %v6016 = vsel %vm975, %v6011, %v6015
      %v6017 = vshrl.u32 %v5938, 16
      %v6019 = vrot.slane %v6017, 4
      %v6020 = vor.u32 %v6019, %v6015
      %v6021 = vrot.slane %v6020, 4
      %v6023 = vshll.u32 %v5939, 16
      %v6025 = vrot.slane %v6023, 5
      %v6026 = vsel %vm975, %v6021, %v6025
      %v6028 = vshrl.u32 %v5940, 16
      %v6030 = vrot.slane %v6028, 4
      %v6031 = vshll.u32 %v5940, 16
      %v6033 = vrot.slane %v6031, 5
      %v6034 = vor.u32 %v6030, %v6033
      %v6035 = vrot.slane %v6034, 4
      %v6037 = vshll.u32 %v5941, 16
      %v6039 = vrot.slane %v6037, 5
      %v6040 = vsel %vm975, %v6035, %v6039
      %v6041 = vshrl.u32 %v5941, 16
      %v6043 = vrot.slane %v6041, 4
      %v6044 = vor.u32 %v6043, %v6039
      %v6045 = vrot.slane %v6044, 4
      %v6047 = vshll.u32 %v5942, 16
      %v6049 = vrot.slane %v6047, 5
      %v6050 = vsel %vm975, %v6045, %v6049
      %v6052 = vshrl.u32 %v5943, 16
      %v6054 = vrot.slane %v6052, 4
      %v6055 = vshll.u32 %v5943, 16
      %v6057 = vrot.slane %v6055, 5
      %v6058 = vor.u32 %v6054, %v6057
      %v6059 = vrot.slane %v6058, 4
      %v6061 = vshll.u32 %v5944, 16
      %v6063 = vrot.slane %v6061, 5
      %v6064 = vsel %vm975, %v6059, %v6063
      %v6065 = vshrl.u32 %v5944, 16
      %v6067 = vrot.slane %v6065, 4
      %v6068 = vor.u32 %v6067, %v6063
      %v6069 = vrot.slane %v6068, 4
      %v6071 = vshll.u32 %v5945, 16
      %v6073 = vrot.slane %v6071, 5
      %v6074 = vsel %vm975, %v6069, %v6073
      %v6076 = vshrl.u32 %v5946, 16
      %v6078 = vrot.slane %v6076, 4
      %v6079 = vshll.u32 %v5946, 16
      %v6081 = vrot.slane %v6079, 5
      %v6082 = vor.u32 %v6078, %v6081
      %v6083 = vrot.slane %v6082, 4
      %v6085 = vshll.u32 %v5947, 16
      %v6087 = vrot.slane %v6085, 5
      %v6088 = vsel %vm975, %v6083, %v6087
      %v6089 = vshrl.u32 %v5947, 16
      %v6091 = vrot.slane %v6089, 4
      %v6092 = vor.u32 %v6091, %v6087
      %v6093 = vrot.slane %v6092, 4
      %v6095 = vshll.u32 %v5948, 16
      %v6097 = vrot.slane %v6095, 5
      %v6098 = vsel %vm975, %v6093, %v6097
      %v6100 = vshrl.u32 %v5949, 16
      %v6102 = vrot.slane %v6100, 4
      %v6103 = vshll.u32 %v5949, 16
      %v6105 = vrot.slane %v6103, 5
      %v6106 = vor.u32 %v6102, %v6105
      %v6107 = vrot.slane %v6106, 4
      %v6109 = vshll.u32 %v5950, 16
      %v6111 = vrot.slane %v6109, 5
      %v6112 = vsel %vm975, %v6107, %v6111
      %v6113 = vshrl.u32 %v5950, 16
      %v6115 = vrot.slane %v6113, 4
      %v6116 = vor.u32 %v6115, %v6111
      %v6117 = vrot.slane %v6116, 4
      %v6119 = vshll.u32 %v5951, 16
      %v6121 = vrot.slane %v6119, 5
      %v6122 = vsel %vm975, %v6117, %v6121
      %v6124 = vshrl.u32 %v5952, 16
      %v6126 = vrot.slane %v6124, 4
      %v6127 = vshll.u32 %v5952, 16
      %v6129 = vrot.slane %v6127, 5
      %v6130 = vor.u32 %v6126, %v6129
      %v6131 = vrot.slane %v6130, 4
      %v6133 = vshll.u32 %v5953, 16
      %v6135 = vrot.slane %v6133, 5
      %v6136 = vsel %vm975, %v6131, %v6135
      %v6137 = vshrl.u32 %v5953, 16
      %v6139 = vrot.slane %v6137, 4
      %v6140 = vor.u32 %v6139, %v6135
      %v6141 = vrot.slane %v6140, 4
      %v6143 = vshll.u32 %v5954, 16
      %v6145 = vrot.slane %v6143, 5
      %v6146 = vsel %vm975, %v6141, %v6145
      %s6147 = scalar_lea.vmem %s2, 256
      %v6148 = vld [vmem:[%s6147] sm:$0xf]
      %v6149 = vld [vmem:[%s6147 + $0x4] sm:$0xf]
      %v6150 = vld [vmem:[%s6147 + $0x8] sm:$0xf]
      %v6151 = vld [vmem:[%s6147 + $0xc] sm:$0xf]
      %v6152 = vld [vmem:[%s6147 + $0x10] sm:$0xf]
      %v6153 = vld [vmem:[%s6147 + $0x14] sm:$0xf]
      %v6154 = vld [vmem:[%s6147 + $0x18] sm:$0xf]
      %v6155 = vld [vmem:[%s6147 + $0x1c] sm:$0xf]
      %v6156 = vld [vmem:[%s6147 + $0x20] sm:$0xf]
      %v6157 = vld [vmem:[%s6147 + $0x24] sm:$0xf]
      %v6158 = vld [vmem:[%s6147 + $0x28] sm:$0xf]
      %v6159 = vld [vmem:[%s6147 + $0x2c] sm:$0xf]
      %v6160 = vld [vmem:[%s6147 + $0x30] sm:$0xf]
      %v6161 = vld [vmem:[%s6147 + $0x34] sm:$0xf]
      %v6162 = vld [vmem:[%s6147 + $0x38] sm:$0xf]
      %v6163 = vld [vmem:[%s6147 + $0x3c] sm:$0xf]
      %v6164 = vunpack.c.l.b16 %v5968
      %v6165 = vunpack.c.l.b16 %v5978
      %v6166 = vunpack.c.l.b16 %v5992
      %v6167 = vunpack.c.l.b16 %v6002
      %v6168 = vunpack.c.l.b16 %v6016
      %v6169 = vunpack.c.l.b16 %v6026
      %v6170 = vunpack.c.l.b16 %v6040
      %v6171 = vunpack.c.l.b16 %v6050
      %v6172 = vunpack.c.l.b16 %v6064
      %v6173 = vunpack.c.l.b16 %v6074
      %v6174 = vunpack.c.l.b16 %v6088
      %v6175 = vunpack.c.l.b16 %v6098
      %v6176 = vunpack.c.l.b16 %v6112
      %v6177 = vunpack.c.l.b16 %v6122
      %v6178 = vunpack.c.l.b16 %v6136
      %v6179 = vunpack.c.l.b16 %v6146
      %v6180 = vpack.c.b16 %v6165, %v6164
      %v6181 = vpack.c.b16 %v6167, %v6166
      %v6182 = vpack.c.b16 %v6169, %v6168
      %v6183 = vpack.c.b16 %v6171, %v6170
      %v6184 = vpack.c.b16 %v6173, %v6172
      %v6185 = vpack.c.b16 %v6175, %v6174
      %v6186 = vpack.c.b16 %v6177, %v6176
      %v6187 = vpack.c.b16 %v6179, %v6178
      %v6212 = vunpack.c.l.b16 %v6148
      %v6213 = vunpack.c.l.b16 %v6149
      %v6214 = vunpack.c.l.b16 %v6150
      %v6215 = vunpack.c.l.b16 %v6151
      %v6216 = vunpack.c.l.b16 %v6152
      %v6217 = vunpack.c.l.b16 %v6153
      %v6218 = vunpack.c.l.b16 %v6154
      %v6219 = vunpack.c.l.b16 %v6155
      %v6220 = vunpack.c.l.b16 %v6156
      %v6221 = vunpack.c.l.b16 %v6157
      %v6222 = vunpack.c.l.b16 %v6158
      %v6223 = vunpack.c.l.b16 %v6159
      %v6224 = vunpack.c.l.b16 %v6160
      %v6225 = vunpack.c.l.b16 %v6161
      %v6226 = vunpack.c.l.b16 %v6162
      %v6227 = vunpack.c.l.b16 %v6163
      %v6228 = vpack.c.b16 %v6213, %v6212
      %v6229 = vpack.c.b16 %v6215, %v6214
      %v6230 = vpack.c.b16 %v6217, %v6216
      %v6231 = vpack.c.b16 %v6219, %v6218
      %v6232 = vpack.c.b16 %v6221, %v6220
      %v6233 = vpack.c.b16 %v6223, %v6222
      %v6234 = vpack.c.b16 %v6225, %v6224
      %v6235 = vpack.c.b16 %v6227, %v6226
      %6244 = vmatpush.bf16.msra.mxu0 %v6235
      %6245 = vmatpush.bf16.msra.mxu0 %v6234
      %6246 = vmatpush.bf16.msra.mxu0 %v6233
      %6247 = vmatpush.bf16.msra.mxu0 %v6232
      %6248 = vmatpush.bf16.msra.mxu0 %v6231
      %6249 = vmatpush.bf16.msra.mxu0 %v6230
      %6250 = vmatpush.bf16.msra.mxu0 %v6229
      %6251 = vmatpush.bf16.msra.mxu0 %v6228
      %6252 = vmatmul.bf16.gmra.mxu0 %v6180
      %v6253 = vpop.f32.mrf.mxu0
      %v6254 = vadd.f32 0.0, %v6253
      %v6255 = vpop.f32.mrf.mxu0
      %v6256 = vadd.f32 0.0, %v6255
      %6257 = vmatmul.bf16.gmra.mxu0 %v6181
      %v6258 = vpop.f32.mrf.mxu0
      %v6259 = vadd.f32 0.0, %v6258
      %v6260 = vpop.f32.mrf.mxu0
      %v6261 = vadd.f32 0.0, %v6260
      %6262 = vmatmul.bf16.gmra.mxu0 %v6182
      %v6263 = vpop.f32.mrf.mxu0
      %v6264 = vadd.f32 0.0, %v6263
      %v6265 = vpop.f32.mrf.mxu0
      %v6266 = vadd.f32 0.0, %v6265
      %6267 = vmatmul.bf16.gmra.mxu0 %v6183
      %v6268 = vpop.f32.mrf.mxu0
      %v6269 = vadd.f32 0.0, %v6268
      %v6270 = vpop.f32.mrf.mxu0
      %v6271 = vadd.f32 0.0, %v6270
      %6272 = vmatmul.bf16.gmra.mxu0 %v6184
      %v6273 = vpop.f32.mrf.mxu0
      %v6274 = vadd.f32 0.0, %v6273
      %v6275 = vpop.f32.mrf.mxu0
      %v6276 = vadd.f32 0.0, %v6275
      %6277 = vmatmul.bf16.gmra.mxu0 %v6185
      %v6278 = vpop.f32.mrf.mxu0
      %v6279 = vadd.f32 0.0, %v6278
      %v6280 = vpop.f32.mrf.mxu0
      %v6281 = vadd.f32 0.0, %v6280
      %6282 = vmatmul.bf16.gmra.mxu0 %v6186
      %v6283 = vpop.f32.mrf.mxu0
      %v6284 = vadd.f32 0.0, %v6283
      %v6285 = vpop.f32.mrf.mxu0
      %v6286 = vadd.f32 0.0, %v6285
      %6287 = vmatmul.bf16.gmra.mxu0 %v6187
      %v6288 = vpop.f32.mrf.mxu0
      %v6289 = vadd.f32 0.0, %v6288
      %v6290 = vpop.f32.mrf.mxu0
      %v6291 = vadd.f32 0.0, %v6290
      %6292 = vdwg.mxu0
      %v6293 = vadd.f32 %v5915, %v6254
      %v6294 = vadd.f32 %v5916, %v6256
      %v6295 = vadd.f32 %v5917, %v6259
      %v6296 = vadd.f32 %v5918, %v6261
      %v6297 = vadd.f32 %v5919, %v6264
      %v6298 = vadd.f32 %v5920, %v6266
      %v6299 = vadd.f32 %v5921, %v6269
      %v6300 = vadd.f32 %v5922, %v6271
      %v6301 = vadd.f32 %v5923, %v6274
      %v6302 = vadd.f32 %v5924, %v6276
      %v6303 = vadd.f32 %v5925, %v6279
      %v6304 = vadd.f32 %v5926, %v6281
      %v6305 = vadd.f32 %v5927, %v6284
      %v6306 = vadd.f32 %v5928, %v6286
      %v6307 = vadd.f32 %v5929, %v6289
      %v6308 = vadd.f32 %v5930, %v6291
      %v6309 = vld [vmem:[%s2119] sm:$0xe]
      %v6310 = vld [vmem:[%s2119 + $0x10] sm:$0xe]
      %v6311 = vld [vmem:[%s2119 + $0x20] sm:$0xe]
      %v6312 = vld [vmem:[%s2119 + $0x30] sm:$0xe]
      %v6313 = vld [vmem:[%s2119 + $0x40] sm:$0xe]
      %v6314 = vld [vmem:[%s2119 + $0x50] sm:$0xe]
      %v6315 = vld [vmem:[%s2119 + $0x60] sm:$0xe]
      %v6316 = vld [vmem:[%s2119 + $0x70] sm:$0xe]
      %v6341 = vrot.slane %v6309, 5
      %v6342 = vrot.slane %v6341, 4
      %v6343 = vrot.slane %v5932, 5
      %v6344 = vsel %vm1779, %v6342, %v6343
      %v6345 = vrot.slane %v6343, 4
      %v6346 = vrot.slane %v5933, 5
      %v6347 = vsel %vm1779, %v6345, %v6346
      %v6348 = vrot.slane %v6310, 5
      %v6349 = vrot.slane %v6348, 4
      %v6350 = vrot.slane %v5935, 5
      %v6351 = vsel %vm1779, %v6349, %v6350
      %v6352 = vrot.slane %v6350, 4
      %v6353 = vrot.slane %v5936, 5
      %v6354 = vsel %vm1779, %v6352, %v6353
      %v6355 = vrot.slane %v6311, 5
      %v6356 = vrot.slane %v6355, 4
      %v6357 = vrot.slane %v5938, 5
      %v6358 = vsel %vm1779, %v6356, %v6357
      %v6359 = vrot.slane %v6357, 4
      %v6360 = vrot.slane %v5939, 5
      %v6361 = vsel %vm1779, %v6359, %v6360
      %v6362 = vrot.slane %v6312, 5
      %v6363 = vrot.slane %v6362, 4
      %v6364 = vrot.slane %v5941, 5
      %v6365 = vsel %vm1779, %v6363, %v6364
      %v6366 = vrot.slane %v6364, 4
      %v6367 = vrot.slane %v5942, 5
      %v6368 = vsel %vm1779, %v6366, %v6367
      %v6369 = vrot.slane %v6313, 5
      %v6370 = vrot.slane %v6369, 4
      %v6371 = vrot.slane %v5944, 5
      %v6372 = vsel %vm1779, %v6370, %v6371
      %v6373 = vrot.slane %v6371, 4
      %v6374 = vrot.slane %v5945, 5
      %v6375 = vsel %vm1779, %v6373, %v6374
      %v6376 = vrot.slane %v6314, 5
      %v6377 = vrot.slane %v6376, 4
      %v6378 = vrot.slane %v5947, 5
      %v6379 = vsel %vm1779, %v6377, %v6378
      %v6380 = vrot.slane %v6378, 4
      %v6381 = vrot.slane %v5948, 5
      %v6382 = vsel %vm1779, %v6380, %v6381
      %v6383 = vrot.slane %v6315, 5
      %v6384 = vrot.slane %v6383, 4
      %v6385 = vrot.slane %v5950, 5
      %v6386 = vsel %vm1779, %v6384, %v6385
      %v6387 = vrot.slane %v6385, 4
      %v6388 = vrot.slane %v5951, 5
      %v6389 = vsel %vm1779, %v6387, %v6388
      %v6390 = vrot.slane %v6316, 5
      %v6391 = vrot.slane %v6390, 4
      %v6392 = vrot.slane %v5953, 5
      %v6393 = vsel %vm1779, %v6391, %v6392
      %v6394 = vrot.slane %v6392, 4
      %v6395 = vrot.slane %v5954, 5
      %v6396 = vsel %vm1779, %v6394, %v6395
      %s6397 = scalar_lea.vmem %s2, 320
      %v6398 = vld [vmem:[%s6397] sm:$0xf]
      %v6399 = vld [vmem:[%s6397 + $0x4] sm:$0xf]
      %v6400 = vld [vmem:[%s6397 + $0x8] sm:$0xf]
      %v6401 = vld [vmem:[%s6397 + $0xc] sm:$0xf]
      %v6402 = vld [vmem:[%s6397 + $0x10] sm:$0xf]
      %v6403 = vld [vmem:[%s6397 + $0x14] sm:$0xf]
      %v6404 = vld [vmem:[%s6397 + $0x18] sm:$0xf]
      %v6405 = vld [vmem:[%s6397 + $0x1c] sm:$0xf]
      %v6406 = vld [vmem:[%s6397 + $0x20] sm:$0xf]
      %v6407 = vld [vmem:[%s6397 + $0x24] sm:$0xf]
      %v6408 = vld [vmem:[%s6397 + $0x28] sm:$0xf]
      %v6409 = vld [vmem:[%s6397 + $0x2c] sm:$0xf]
      %v6410 = vld [vmem:[%s6397 + $0x30] sm:$0xf]
      %v6411 = vld [vmem:[%s6397 + $0x34] sm:$0xf]
      %v6412 = vld [vmem:[%s6397 + $0x38] sm:$0xf]
      %v6413 = vld [vmem:[%s6397 + $0x3c] sm:$0xf]
      %v6414 = vunpack.c.l.b16 %v6344
      %v6415 = vunpack.c.l.b16 %v6347
      %v6416 = vunpack.c.l.b16 %v6351
      %v6417 = vunpack.c.l.b16 %v6354
      %v6418 = vunpack.c.l.b16 %v6358
      %v6419 = vunpack.c.l.b16 %v6361
      %v6420 = vunpack.c.l.b16 %v6365
      %v6421 = vunpack.c.l.b16 %v6368
      %v6422 = vunpack.c.l.b16 %v6372
      %v6423 = vunpack.c.l.b16 %v6375
      %v6424 = vunpack.c.l.b16 %v6379
      %v6425 = vunpack.c.l.b16 %v6382
      %v6426 = vunpack.c.l.b16 %v6386
      %v6427 = vunpack.c.l.b16 %v6389
      %v6428 = vunpack.c.l.b16 %v6393
      %v6429 = vunpack.c.l.b16 %v6396
      %v6430 = vpack.c.b16 %v6415, %v6414
      %v6431 = vpack.c.b16 %v6417, %v6416
      %v6432 = vpack.c.b16 %v6419, %v6418
      %v6433 = vpack.c.b16 %v6421, %v6420
      %v6434 = vpack.c.b16 %v6423, %v6422
      %v6435 = vpack.c.b16 %v6425, %v6424
      %v6436 = vpack.c.b16 %v6427, %v6426
      %v6437 = vpack.c.b16 %v6429, %v6428
      %v6462 = vunpack.c.l.b16 %v6398
      %v6463 = vunpack.c.l.b16 %v6399
      %v6464 = vunpack.c.l.b16 %v6400
      %v6465 = vunpack.c.l.b16 %v6401
      %v6466 = vunpack.c.l.b16 %v6402
      %v6467 = vunpack.c.l.b16 %v6403
      %v6468 = vunpack.c.l.b16 %v6404
      %v6469 = vunpack.c.l.b16 %v6405
      %v6470 = vunpack.c.l.b16 %v6406
      %v6471 = vunpack.c.l.b16 %v6407
      %v6472 = vunpack.c.l.b16 %v6408
      %v6473 = vunpack.c.l.b16 %v6409
      %v6474 = vunpack.c.l.b16 %v6410
      %v6475 = vunpack.c.l.b16 %v6411
      %v6476 = vunpack.c.l.b16 %v6412
      %v6477 = vunpack.c.l.b16 %v6413
      %v6478 = vpack.c.b16 %v6463, %v6462
      %v6479 = vpack.c.b16 %v6465, %v6464
      %v6480 = vpack.c.b16 %v6467, %v6466
      %v6481 = vpack.c.b16 %v6469, %v6468
      %v6482 = vpack.c.b16 %v6471, %v6470
      %v6483 = vpack.c.b16 %v6473, %v6472
      %v6484 = vpack.c.b16 %v6475, %v6474
      %v6485 = vpack.c.b16 %v6477, %v6476
      %6494 = vmatpush.bf16.msra.mxu0 %v6485
      %6495 = vmatpush.bf16.msra.mxu0 %v6484
      %6496 = vmatpush.bf16.msra.mxu0 %v6483
      %6497 = vmatpush.bf16.msra.mxu0 %v6482
      %6498 = vmatpush.bf16.msra.mxu0 %v6481
      %6499 = vmatpush.bf16.msra.mxu0 %v6480
      %6500 = vmatpush.bf16.msra.mxu0 %v6479
      %6501 = vmatpush.bf16.msra.mxu0 %v6478
      %6502 = vmatmul.bf16.gmra.mxu0 %v6430
      %v6503 = vpop.f32.mrf.mxu0
      %v6504 = vadd.f32 0.0, %v6503
      %v6505 = vpop.f32.mrf.mxu0
      %v6506 = vadd.f32 0.0, %v6505
      %6507 = vmatmul.bf16.gmra.mxu0 %v6431
      %v6508 = vpop.f32.mrf.mxu0
      %v6509 = vadd.f32 0.0, %v6508
      %v6510 = vpop.f32.mrf.mxu0
      %v6511 = vadd.f32 0.0, %v6510
      %6512 = vmatmul.bf16.gmra.mxu0 %v6432
      %v6513 = vpop.f32.mrf.mxu0
      %v6514 = vadd.f32 0.0, %v6513
      %v6515 = vpop.f32.mrf.mxu0
      %v6516 = vadd.f32 0.0, %v6515
      %6517 = vmatmul.bf16.gmra.mxu0 %v6433
      %v6518 = vpop.f32.mrf.mxu0
      %v6519 = vadd.f32 0.0, %v6518
      %v6520 = vpop.f32.mrf.mxu0
      %v6521 = vadd.f32 0.0, %v6520
      %6522 = vmatmul.bf16.gmra.mxu0 %v6434
      %v6523 = vpop.f32.mrf.mxu0
      %v6524 = vadd.f32 0.0, %v6523
      %v6525 = vpop.f32.mrf.mxu0
      %v6526 = vadd.f32 0.0, %v6525
      %6527 = vmatmul.bf16.gmra.mxu0 %v6435
      %v6528 = vpop.f32.mrf.mxu0
      %v6529 = vadd.f32 0.0, %v6528
      %v6530 = vpop.f32.mrf.mxu0
      %v6531 = vadd.f32 0.0, %v6530
      %6532 = vmatmul.bf16.gmra.mxu0 %v6436
      %v6533 = vpop.f32.mrf.mxu0
      %v6534 = vadd.f32 0.0, %v6533
      %v6535 = vpop.f32.mrf.mxu0
      %v6536 = vadd.f32 0.0, %v6535
      %6537 = vmatmul.bf16.gmra.mxu0 %v6437
      %v6538 = vpop.f32.mrf.mxu0
      %v6539 = vadd.f32 0.0, %v6538
      %v6540 = vpop.f32.mrf.mxu0
      %v6541 = vadd.f32 0.0, %v6540
      %6542 = vdwg.mxu0
      %v6543 = vadd.f32 %v6293, %v6504
      %v6544 = vadd.f32 %v6294, %v6506
      %v6545 = vadd.f32 %v6295, %v6509
      %v6546 = vadd.f32 %v6296, %v6511
      %v6547 = vadd.f32 %v6297, %v6514
      %v6548 = vadd.f32 %v6298, %v6516
      %v6549 = vadd.f32 %v6299, %v6519
      %v6550 = vadd.f32 %v6300, %v6521
      %v6551 = vadd.f32 %v6301, %v6524
      %v6552 = vadd.f32 %v6302, %v6526
      %v6553 = vadd.f32 %v6303, %v6529
      %v6554 = vadd.f32 %v6304, %v6531
      %v6555 = vadd.f32 %v6305, %v6534
      %v6556 = vadd.f32 %v6306, %v6536
      %v6557 = vadd.f32 %v6307, %v6539
      %v6558 = vadd.f32 %v6308, %v6541
      %v6559 = vld [vmem:[%s3427] sm:$0xf]
      %v6560 = vld [vmem:[%s3427 + $0x4] sm:$0xf]
      %v6561 = vld [vmem:[%s3427 + $0x10] sm:$0xf]
      %v6562 = vld [vmem:[%s3427 + $0x14] sm:$0xf]
      %v6563 = vld [vmem:[%s3427 + $0x20] sm:$0xf]
      %v6564 = vld [vmem:[%s3427 + $0x24] sm:$0xf]
      %v6565 = vld [vmem:[%s3427 + $0x30] sm:$0xf]
      %v6566 = vld [vmem:[%s3427 + $0x34] sm:$0xf]
      %v6567 = vld [vmem:[%s3427 + $0x40] sm:$0xf]
      %v6568 = vld [vmem:[%s3427 + $0x44] sm:$0xf]
      %v6569 = vld [vmem:[%s3427 + $0x50] sm:$0xf]
      %v6570 = vld [vmem:[%s3427 + $0x54] sm:$0xf]
      %v6571 = vld [vmem:[%s3427 + $0x60] sm:$0xf]
      %v6572 = vld [vmem:[%s3427 + $0x64] sm:$0xf]
      %v6573 = vld [vmem:[%s3427 + $0x70] sm:$0xf]
      %v6574 = vld [vmem:[%s3427 + $0x74] sm:$0xf]
      %s6575 = scalar_lea.vmem %s2, 384
      %v6576 = vld [vmem:[%s6575] sm:$0xf]
      %v6577 = vld [vmem:[%s6575 + $0x4] sm:$0xf]
      %v6578 = vld [vmem:[%s6575 + $0x8] sm:$0xf]
      %v6579 = vld [vmem:[%s6575 + $0xc] sm:$0xf]
      %v6580 = vld [vmem:[%s6575 + $0x10] sm:$0xf]
      %v6581 = vld [vmem:[%s6575 + $0x14] sm:$0xf]
      %v6582 = vld [vmem:[%s6575 + $0x18] sm:$0xf]
      %v6583 = vld [vmem:[%s6575 + $0x1c] sm:$0xf]
      %v6584 = vld [vmem:[%s6575 + $0x20] sm:$0xf]
      %v6585 = vld [vmem:[%s6575 + $0x24] sm:$0xf]
      %v6586 = vld [vmem:[%s6575 + $0x28] sm:$0xf]
      %v6587 = vld [vmem:[%s6575 + $0x2c] sm:$0xf]
      %v6588 = vld [vmem:[%s6575 + $0x30] sm:$0xf]
      %v6589 = vld [vmem:[%s6575 + $0x34] sm:$0xf]
      %v6590 = vld [vmem:[%s6575 + $0x38] sm:$0xf]
      %v6591 = vld [vmem:[%s6575 + $0x3c] sm:$0xf]
      %v6608 = vunpack.c.l.b16 %v6559
      %v6609 = vunpack.c.l.b16 %v6560
      %v6610 = vunpack.c.l.b16 %v6561
      %v6611 = vunpack.c.l.b16 %v6562
      %v6612 = vunpack.c.l.b16 %v6563
      %v6613 = vunpack.c.l.b16 %v6564
      %v6614 = vunpack.c.l.b16 %v6565
      %v6615 = vunpack.c.l.b16 %v6566
      %v6616 = vunpack.c.l.b16 %v6567
      %v6617 = vunpack.c.l.b16 %v6568
      %v6618 = vunpack.c.l.b16 %v6569
      %v6619 = vunpack.c.l.b16 %v6570
      %v6620 = vunpack.c.l.b16 %v6571
      %v6621 = vunpack.c.l.b16 %v6572
      %v6622 = vunpack.c.l.b16 %v6573
      %v6623 = vunpack.c.l.b16 %v6574
      %v6624 = vpack.c.b16 %v6609, %v6608
      %v6625 = vpack.c.b16 %v6611, %v6610
      %v6626 = vpack.c.b16 %v6613, %v6612
      %v6627 = vpack.c.b16 %v6615, %v6614
      %v6628 = vpack.c.b16 %v6617, %v6616
      %v6629 = vpack.c.b16 %v6619, %v6618
      %v6630 = vpack.c.b16 %v6621, %v6620
      %v6631 = vpack.c.b16 %v6623, %v6622
      %v6656 = vunpack.c.l.b16 %v6576
      %v6657 = vunpack.c.l.b16 %v6577
      %v6658 = vunpack.c.l.b16 %v6578
      %v6659 = vunpack.c.l.b16 %v6579
      %v6660 = vunpack.c.l.b16 %v6580
      %v6661 = vunpack.c.l.b16 %v6581
      %v6662 = vunpack.c.l.b16 %v6582
      %v6663 = vunpack.c.l.b16 %v6583
      %v6664 = vunpack.c.l.b16 %v6584
      %v6665 = vunpack.c.l.b16 %v6585
      %v6666 = vunpack.c.l.b16 %v6586
      %v6667 = vunpack.c.l.b16 %v6587
      %v6668 = vunpack.c.l.b16 %v6588
      %v6669 = vunpack.c.l.b16 %v6589
      %v6670 = vunpack.c.l.b16 %v6590
      %v6671 = vunpack.c.l.b16 %v6591
      %v6672 = vpack.c.b16 %v6657, %v6656
      %v6673 = vpack.c.b16 %v6659, %v6658
      %v6674 = vpack.c.b16 %v6661, %v6660
      %v6675 = vpack.c.b16 %v6663, %v6662
      %v6676 = vpack.c.b16 %v6665, %v6664
      %v6677 = vpack.c.b16 %v6667, %v6666
      %v6678 = vpack.c.b16 %v6669, %v6668
      %v6679 = vpack.c.b16 %v6671, %v6670
      %6688 = vmatpush.bf16.msra.mxu0 %v6679
      %6689 = vmatpush.bf16.msra.mxu0 %v6678
      %6690 = vmatpush.bf16.msra.mxu0 %v6677
      %6691 = vmatpush.bf16.msra.mxu0 %v6676
      %6692 = vmatpush.bf16.msra.mxu0 %v6675
      %6693 = vmatpush.bf16.msra.mxu0 %v6674
      %6694 = vmatpush.bf16.msra.mxu0 %v6673
      %6695 = vmatpush.bf16.msra.mxu0 %v6672
      %6696 = vmatmul.bf16.gmra.mxu0 %v6624
      %v6697 = vpop.f32.mrf.mxu0
      %v6698 = vadd.f32 0.0, %v6697
      %v6699 = vpop.f32.mrf.mxu0
      %v6700 = vadd.f32 0.0, %v6699
      %6701 = vmatmul.bf16.gmra.mxu0 %v6625
      %v6702 = vpop.f32.mrf.mxu0
      %v6703 = vadd.f32 0.0, %v6702
      %v6704 = vpop.f32.mrf.mxu0
      %v6705 = vadd.f32 0.0, %v6704
      %6706 = vmatmul.bf16.gmra.mxu0 %v6626
      %v6707 = vpop.f32.mrf.mxu0
      %v6708 = vadd.f32 0.0, %v6707
      %v6709 = vpop.f32.mrf.mxu0
      %v6710 = vadd.f32 0.0, %v6709
      %6711 = vmatmul.bf16.gmra.mxu0 %v6627
      %v6712 = vpop.f32.mrf.mxu0
      %v6713 = vadd.f32 0.0, %v6712
      %v6714 = vpop.f32.mrf.mxu0
      %v6715 = vadd.f32 0.0, %v6714
      %6716 = vmatmul.bf16.gmra.mxu0 %v6628
      %v6717 = vpop.f32.mrf.mxu0
      %v6718 = vadd.f32 0.0, %v6717
      %v6719 = vpop.f32.mrf.mxu0
      %v6720 = vadd.f32 0.0, %v6719
      %6721 = vmatmul.bf16.gmra.mxu0 %v6629
      %v6722 = vpop.f32.mrf.mxu0
      %v6723 = vadd.f32 0.0, %v6722
      %v6724 = vpop.f32.mrf.mxu0
      %v6725 = vadd.f32 0.0, %v6724
      %6726 = vmatmul.bf16.gmra.mxu0 %v6630
      %v6727 = vpop.f32.mrf.mxu0
      %v6728 = vadd.f32 0.0, %v6727
      %v6729 = vpop.f32.mrf.mxu0
      %v6730 = vadd.f32 0.0, %v6729
      %6731 = vmatmul.bf16.gmra.mxu0 %v6631
      %v6732 = vpop.f32.mrf.mxu0
      %v6733 = vadd.f32 0.0, %v6732
      %v6734 = vpop.f32.mrf.mxu0
      %v6735 = vadd.f32 0.0, %v6734
      %6736 = vdwg.mxu0
      %v6737 = vadd.f32 %v6543, %v6698
      %v6738 = vadd.f32 %v6544, %v6700
      %v6739 = vadd.f32 %v6545, %v6703
      %v6740 = vadd.f32 %v6546, %v6705
      %v6741 = vadd.f32 %v6547, %v6708
      %v6742 = vadd.f32 %v6548, %v6710
      %v6743 = vadd.f32 %v6549, %v6713
      %v6744 = vadd.f32 %v6550, %v6715
      %v6745 = vadd.f32 %v6551, %v6718
      %v6746 = vadd.f32 %v6552, %v6720
      %v6747 = vadd.f32 %v6553, %v6723
      %v6748 = vadd.f32 %v6554, %v6725
      %v6749 = vadd.f32 %v6555, %v6728
      %v6750 = vadd.f32 %v6556, %v6730
      %v6751 = vadd.f32 %v6557, %v6733
      %v6752 = vadd.f32 %v6558, %v6735
      %v6753 = vld [vmem:[%s3427] sm:$0xf]
      %v6754 = vld [vmem:[%s3427 + $0x4] sm:$0xf]
      %v6755 = vld [vmem:[%s3427 + $0x8] sm:$0x1]
      %v6756 = vld [vmem:[%s3427 + $0x10] sm:$0xf]
      %v6757 = vld [vmem:[%s3427 + $0x14] sm:$0xf]
      %v6758 = vld [vmem:[%s3427 + $0x18] sm:$0x1]
      %v6759 = vld [vmem:[%s3427 + $0x20] sm:$0xf]
      %v6760 = vld [vmem:[%s3427 + $0x24] sm:$0xf]
      %v6761 = vld [vmem:[%s3427 + $0x28] sm:$0x1]
      %v6762 = vld [vmem:[%s3427 + $0x30] sm:$0xf]
      %v6763 = vld [vmem:[%s3427 + $0x34] sm:$0xf]
      %v6764 = vld [vmem:[%s3427 + $0x38] sm:$0x1]
      %v6765 = vld [vmem:[%s3427 + $0x40] sm:$0xf]
      %v6766 = vld [vmem:[%s3427 + $0x44] sm:$0xf]
      %v6767 = vld [vmem:[%s3427 + $0x48] sm:$0x1]
      %v6768 = vld [vmem:[%s3427 + $0x50] sm:$0xf]
      %v6769 = vld [vmem:[%s3427 + $0x54] sm:$0xf]
      %v6770 = vld [vmem:[%s3427 + $0x58] sm:$0x1]
      %v6771 = vld [vmem:[%s3427 + $0x60] sm:$0xf]
      %v6772 = vld [vmem:[%s3427 + $0x64] sm:$0xf]
      %v6773 = vld [vmem:[%s3427 + $0x68] sm:$0x1]
      %v6774 = vld [vmem:[%s3427 + $0x70] sm:$0xf]
      %v6775 = vld [vmem:[%s3427 + $0x74] sm:$0xf]
      %v6776 = vld [vmem:[%s3427 + $0x78] sm:$0x1]
      %v6778 = vshrl.u32 %v6753, 16
      %v6780 = vrot.slane %v6778, 4
      %v6781 = vshll.u32 %v6753, 16
      %v6783 = vrot.slane %v6781, 5
      %v6784 = vor.u32 %v6780, %v6783
      %v6785 = vrot.slane %v6784, 4
      %v6787 = vshll.u32 %v6754, 16
      %v6789 = vrot.slane %v6787, 5
      %v6790 = vsel %vm975, %v6785, %v6789
      %v6791 = vshrl.u32 %v6754, 16
      %v6793 = vrot.slane %v6791, 4
      %v6794 = vor.u32 %v6793, %v6789
      %v6795 = vrot.slane %v6794, 4
      %v6797 = vshll.u32 %v6755, 16
      %v6799 = vrot.slane %v6797, 5
      %v6800 = vsel %vm975, %v6795, %v6799
      %v6802 = vshrl.u32 %v6756, 16
      %v6804 = vrot.slane %v6802, 4
      %v6805 = vshll.u32 %v6756, 16
      %v6807 = vrot.slane %v6805, 5
      %v6808 = vor.u32 %v6804, %v6807
      %v6809 = vrot.slane %v6808, 4
      %v6811 = vshll.u32 %v6757, 16
      %v6813 = vrot.slane %v6811, 5
      %v6814 = vsel %vm975, %v6809, %v6813
      %v6815 = vshrl.u32 %v6757, 16
      %v6817 = vrot.slane %v6815, 4
      %v6818 = vor.u32 %v6817, %v6813
      %v6819 = vrot.slane %v6818, 4
      %v6821 = vshll.u32 %v6758, 16
      %v6823 = vrot.slane %v6821, 5
      %v6824 = vsel %vm975, %v6819, %v6823
      %v6826 = vshrl.u32 %v6759, 16
      %v6828 = vrot.slane %v6826, 4
      %v6829 = vshll.u32 %v6759, 16
      %v6831 = vrot.slane %v6829, 5
      %v6832 = vor.u32 %v6828, %v6831
      %v6833 = vrot.slane %v6832, 4
      %v6835 = vshll.u32 %v6760, 16
      %v6837 = vrot.slane %v6835, 5
      %v6838 = vsel %vm975, %v6833, %v6837
      %v6839 = vshrl.u32 %v6760, 16
      %v6841 = vrot.slane %v6839, 4
      %v6842 = vor.u32 %v6841, %v6837
      %v6843 = vrot.slane %v6842, 4
      %v6845 = vshll.u32 %v6761, 16
      %v6847 = vrot.slane %v6845, 5
      %v6848 = vsel %vm975, %v6843, %v6847
      %v6850 = vshrl.u32 %v6762, 16
      %v6852 = vrot.slane %v6850, 4
      %v6853 = vshll.u32 %v6762, 16
      %v6855 = vrot.slane %v6853, 5
      %v6856 = vor.u32 %v6852, %v6855
      %v6857 = vrot.slane %v6856, 4
      %v6859 = vshll.u32 %v6763, 16
      %v6861 = vrot.slane %v6859, 5
      %v6862 = vsel %vm975, %v6857, %v6861
      %v6863 = vshrl.u32 %v6763, 16
      %v6865 = vrot.slane %v6863, 4
      %v6866 = vor.u32 %v6865, %v6861
      %v6867 = vrot.slane %v6866, 4
      %v6869 = vshll.u32 %v6764, 16
      %v6871 = vrot.slane %v6869, 5
      %v6872 = vsel %vm975, %v6867, %v6871
      %v6874 = vshrl.u32 %v6765, 16
      %v6876 = vrot.slane %v6874, 4
      %v6877 = vshll.u32 %v6765, 16
      %v6879 = vrot.slane %v6877, 5
      %v6880 = vor.u32 %v6876, %v6879
      %v6881 = vrot.slane %v6880, 4
      %v6883 = vshll.u32 %v6766, 16
      %v6885 = vrot.slane %v6883, 5
      %v6886 = vsel %vm975, %v6881, %v6885
      %v6887 = vshrl.u32 %v6766, 16
      %v6889 = vrot.slane %v6887, 4
      %v6890 = vor.u32 %v6889, %v6885
      %v6891 = vrot.slane %v6890, 4
      %v6893 = vshll.u32 %v6767, 16
      %v6895 = vrot.slane %v6893, 5
      %v6896 = vsel %vm975, %v6891, %v6895
      %v6898 = vshrl.u32 %v6768, 16
      %v6900 = vrot.slane %v6898, 4
      %v6901 = vshll.u32 %v6768, 16
      %v6903 = vrot.slane %v6901, 5
      %v6904 = vor.u32 %v6900, %v6903
      %v6905 = vrot.slane %v6904, 4
      %v6907 = vshll.u32 %v6769, 16
      %v6909 = vrot.slane %v6907, 5
      %v6910 = vsel %vm975, %v6905, %v6909
      %v6911 = vshrl.u32 %v6769, 16
      %v6913 = vrot.slane %v6911, 4
      %v6914 = vor.u32 %v6913, %v6909
      %v6915 = vrot.slane %v6914, 4
      %v6917 = vshll.u32 %v6770, 16
      %v6919 = vrot.slane %v6917, 5
      %v6920 = vsel %vm975, %v6915, %v6919
      %v6922 = vshrl.u32 %v6771, 16
      %v6924 = vrot.slane %v6922, 4
      %v6925 = vshll.u32 %v6771, 16
      %v6927 = vrot.slane %v6925, 5
      %v6928 = vor.u32 %v6924, %v6927
      %v6929 = vrot.slane %v6928, 4
      %v6931 = vshll.u32 %v6772, 16
      %v6933 = vrot.slane %v6931, 5
      %v6934 = vsel %vm975, %v6929, %v6933
      %v6935 = vshrl.u32 %v6772, 16
      %v6937 = vrot.slane %v6935, 4
      %v6938 = vor.u32 %v6937, %v6933
      %v6939 = vrot.slane %v6938, 4
      %v6941 = vshll.u32 %v6773, 16
      %v6943 = vrot.slane %v6941, 5
      %v6944 = vsel %vm975, %v6939, %v6943
      %v6946 = vshrl.u32 %v6774, 16
      %v6948 = vrot.slane %v6946, 4
      %v6949 = vshll.u32 %v6774, 16
      %v6951 = vrot.slane %v6949, 5
      %v6952 = vor.u32 %v6948, %v6951
      %v6953 = vrot.slane %v6952, 4
      %v6955 = vshll.u32 %v6775, 16
      %v6957 = vrot.slane %v6955, 5
      %v6958 = vsel %vm975, %v6953, %v6957
      %v6959 = vshrl.u32 %v6775, 16
      %v6961 = vrot.slane %v6959, 4
      %v6962 = vor.u32 %v6961, %v6957
      %v6963 = vrot.slane %v6962, 4
      %v6965 = vshll.u32 %v6776, 16
      %v6967 = vrot.slane %v6965, 5
      %v6968 = vsel %vm975, %v6963, %v6967
      %s6969 = scalar_lea.vmem %s2, 448
      %v6970 = vld [vmem:[%s6969] sm:$0xf]
      %v6971 = vld [vmem:[%s6969 + $0x4] sm:$0xf]
      %v6972 = vld [vmem:[%s6969 + $0x8] sm:$0xf]
      %v6973 = vld [vmem:[%s6969 + $0xc] sm:$0xf]
      %v6974 = vld [vmem:[%s6969 + $0x10] sm:$0xf]
      %v6975 = vld [vmem:[%s6969 + $0x14] sm:$0xf]
      %v6976 = vld [vmem:[%s6969 + $0x18] sm:$0xf]
      %v6977 = vld [vmem:[%s6969 + $0x1c] sm:$0xf]
      %v6978 = vld [vmem:[%s6969 + $0x20] sm:$0xf]
      %v6979 = vld [vmem:[%s6969 + $0x24] sm:$0xf]
      %v6980 = vld [vmem:[%s6969 + $0x28] sm:$0xf]
      %v6981 = vld [vmem:[%s6969 + $0x2c] sm:$0xf]
      %v6982 = vld [vmem:[%s6969 + $0x30] sm:$0xf]
      %v6983 = vld [vmem:[%s6969 + $0x34] sm:$0xf]
      %v6984 = vld [vmem:[%s6969 + $0x38] sm:$0xf]
      %v6985 = vld [vmem:[%s6969 + $0x3c] sm:$0xf]
      %v6986 = vunpack.c.l.b16 %v6790
      %v6987 = vunpack.c.l.b16 %v6800
      %v6988 = vunpack.c.l.b16 %v6814
      %v6989 = vunpack.c.l.b16 %v6824
      %v6990 = vunpack.c.l.b16 %v6838
      %v6991 = vunpack.c.l.b16 %v6848
      %v6992 = vunpack.c.l.b16 %v6862
      %v6993 = vunpack.c.l.b16 %v6872
      %v6994 = vunpack.c.l.b16 %v6886
      %v6995 = vunpack.c.l.b16 %v6896
      %v6996 = vunpack.c.l.b16 %v6910
      %v6997 = vunpack.c.l.b16 %v6920
      %v6998 = vunpack.c.l.b16 %v6934
      %v6999 = vunpack.c.l.b16 %v6944
      %v7000 = vunpack.c.l.b16 %v6958
      %v7001 = vunpack.c.l.b16 %v6968
      %v7002 = vpack.c.b16 %v6987, %v6986
      %v7003 = vpack.c.b16 %v6989, %v6988
      %v7004 = vpack.c.b16 %v6991, %v6990
      %v7005 = vpack.c.b16 %v6993, %v6992
      %v7006 = vpack.c.b16 %v6995, %v6994
      %v7007 = vpack.c.b16 %v6997, %v6996
      %v7008 = vpack.c.b16 %v6999, %v6998
      %v7009 = vpack.c.b16 %v7001, %v7000
      %v7034 = vunpack.c.l.b16 %v6970
      %v7035 = vunpack.c.l.b16 %v6971
      %v7036 = vunpack.c.l.b16 %v6972
      %v7037 = vunpack.c.l.b16 %v6973
      %v7038 = vunpack.c.l.b16 %v6974
      %v7039 = vunpack.c.l.b16 %v6975
      %v7040 = vunpack.c.l.b16 %v6976
      %v7041 = vunpack.c.l.b16 %v6977
      %v7042 = vunpack.c.l.b16 %v6978
      %v7043 = vunpack.c.l.b16 %v6979
      %v7044 = vunpack.c.l.b16 %v6980
      %v7045 = vunpack.c.l.b16 %v6981
      %v7046 = vunpack.c.l.b16 %v6982
      %v7047 = vunpack.c.l.b16 %v6983
      %v7048 = vunpack.c.l.b16 %v6984
      %v7049 = vunpack.c.l.b16 %v6985
      %v7050 = vpack.c.b16 %v7035, %v7034
      %v7051 = vpack.c.b16 %v7037, %v7036
      %v7052 = vpack.c.b16 %v7039, %v7038
      %v7053 = vpack.c.b16 %v7041, %v7040
      %v7054 = vpack.c.b16 %v7043, %v7042
      %v7055 = vpack.c.b16 %v7045, %v7044
      %v7056 = vpack.c.b16 %v7047, %v7046
      %v7057 = vpack.c.b16 %v7049, %v7048
      %7066 = vmatpush.bf16.msra.mxu0 %v7057
      %7067 = vmatpush.bf16.msra.mxu0 %v7056
      %7068 = vmatpush.bf16.msra.mxu0 %v7055
      %7069 = vmatpush.bf16.msra.mxu0 %v7054
      %7070 = vmatpush.bf16.msra.mxu0 %v7053
      %7071 = vmatpush.bf16.msra.mxu0 %v7052
      %7072 = vmatpush.bf16.msra.mxu0 %v7051
      %7073 = vmatpush.bf16.msra.mxu0 %v7050
      %7074 = vmatmul.bf16.gmra.mxu0 %v7002
      %v7075 = vpop.f32.mrf.mxu0
      %v7076 = vadd.f32 0.0, %v7075
      %v7077 = vpop.f32.mrf.mxu0
      %v7078 = vadd.f32 0.0, %v7077
      %7079 = vmatmul.bf16.gmra.mxu0 %v7003
      %v7080 = vpop.f32.mrf.mxu0
      %v7081 = vadd.f32 0.0, %v7080
      %v7082 = vpop.f32.mrf.mxu0
      %v7083 = vadd.f32 0.0, %v7082
      %7084 = vmatmul.bf16.gmra.mxu0 %v7004
      %v7085 = vpop.f32.mrf.mxu0
      %v7086 = vadd.f32 0.0, %v7085
      %v7087 = vpop.f32.mrf.mxu0
      %v7088 = vadd.f32 0.0, %v7087
      %7089 = vmatmul.bf16.gmra.mxu0 %v7005
      %v7090 = vpop.f32.mrf.mxu0
      %v7091 = vadd.f32 0.0, %v7090
      %v7092 = vpop.f32.mrf.mxu0
      %v7093 = vadd.f32 0.0, %v7092
      %7094 = vmatmul.bf16.gmra.mxu0 %v7006
      %v7095 = vpop.f32.mrf.mxu0
      %v7096 = vadd.f32 0.0, %v7095
      %v7097 = vpop.f32.mrf.mxu0
      %v7098 = vadd.f32 0.0, %v7097
      %7099 = vmatmul.bf16.gmra.mxu0 %v7007
      %v7100 = vpop.f32.mrf.mxu0
      %v7101 = vadd.f32 0.0, %v7100
      %v7102 = vpop.f32.mrf.mxu0
      %v7103 = vadd.f32 0.0, %v7102
      %7104 = vmatmul.bf16.gmra.mxu0 %v7008
      %v7105 = vpop.f32.mrf.mxu0
      %v7106 = vadd.f32 0.0, %v7105
      %v7107 = vpop.f32.mrf.mxu0
      %v7108 = vadd.f32 0.0, %v7107
      %7109 = vmatmul.bf16.gmra.mxu0 %v7009
      %v7110 = vpop.f32.mrf.mxu0
      %v7111 = vadd.f32 0.0, %v7110
      %v7112 = vpop.f32.mrf.mxu0
      %v7113 = vadd.f32 0.0, %v7112
      %7114 = vdwg.mxu0
      %v7115 = vadd.f32 %v6737, %v7076
      %v7116 = vadd.f32 %v6738, %v7078
      %v7117 = vadd.f32 %v6739, %v7081
      %v7118 = vadd.f32 %v6740, %v7083
      %v7119 = vadd.f32 %v6741, %v7086
      %v7120 = vadd.f32 %v6742, %v7088
      %v7121 = vadd.f32 %v6743, %v7091
      %v7122 = vadd.f32 %v6744, %v7093
      %v7123 = vadd.f32 %v6745, %v7096
      %v7124 = vadd.f32 %v6746, %v7098
      %v7125 = vadd.f32 %v6747, %v7101
      %v7126 = vadd.f32 %v6748, %v7103
      %v7127 = vadd.f32 %v6749, %v7106
      %v7128 = vadd.f32 %v6750, %v7108
      %v7129 = vadd.f32 %v6751, %v7111
      %v7130 = vadd.f32 %v6752, %v7113
      %v7131 = vld [vmem:[%s3427] sm:$0xe]
      %v7132 = vld [vmem:[%s3427 + $0x10] sm:$0xe]
      %v7133 = vld [vmem:[%s3427 + $0x20] sm:$0xe]
      %v7134 = vld [vmem:[%s3427 + $0x30] sm:$0xe]
      %v7135 = vld [vmem:[%s3427 + $0x40] sm:$0xe]
      %v7136 = vld [vmem:[%s3427 + $0x50] sm:$0xe]
      %v7137 = vld [vmem:[%s3427 + $0x60] sm:$0xe]
      %v7138 = vld [vmem:[%s3427 + $0x70] sm:$0xe]
      %v7163 = vrot.slane %v7131, 5
      %v7164 = vrot.slane %v7163, 4
      %v7165 = vrot.slane %v6754, 5
      %v7166 = vsel %vm1779, %v7164, %v7165
      %v7167 = vrot.slane %v7165, 4
      %v7168 = vrot.slane %v6755, 5
      %v7169 = vsel %vm1779, %v7167, %v7168
      %v7170 = vrot.slane %v7132, 5
      %v7171 = vrot.slane %v7170, 4
      %v7172 = vrot.slane %v6757, 5
      %v7173 = vsel %vm1779, %v7171, %v7172
      %v7174 = vrot.slane %v7172, 4
      %v7175 = vrot.slane %v6758, 5
      %v7176 = vsel %vm1779, %v7174, %v7175
      %v7177 = vrot.slane %v7133, 5
      %v7178 = vrot.slane %v7177, 4
      %v7179 = vrot.slane %v6760, 5
      %v7180 = vsel %vm1779, %v7178, %v7179
      %v7181 = vrot.slane %v7179, 4
      %v7182 = vrot.slane %v6761, 5
      %v7183 = vsel %vm1779, %v7181, %v7182
      %v7184 = vrot.slane %v7134, 5
      %v7185 = vrot.slane %v7184, 4
      %v7186 = vrot.slane %v6763, 5
      %v7187 = vsel %vm1779, %v7185, %v7186
      %v7188 = vrot.slane %v7186, 4
      %v7189 = vrot.slane %v6764, 5
      %v7190 = vsel %vm1779, %v7188, %v7189
      %v7191 = vrot.slane %v7135, 5
      %v7192 = vrot.slane %v7191, 4
      %v7193 = vrot.slane %v6766, 5
      %v7194 = vsel %vm1779, %v7192, %v7193
      %v7195 = vrot.slane %v7193, 4
      %v7196 = vrot.slane %v6767, 5
      %v7197 = vsel %vm1779, %v7195, %v7196
      %v7198 = vrot.slane %v7136, 5
      %v7199 = vrot.slane %v7198, 4
      %v7200 = vrot.slane %v6769, 5
      %v7201 = vsel %vm1779, %v7199, %v7200
      %v7202 = vrot.slane %v7200, 4
      %v7203 = vrot.slane %v6770, 5
      %v7204 = vsel %vm1779, %v7202, %v7203
      %v7205 = vrot.slane %v7137, 5
      %v7206 = vrot.slane %v7205, 4
      %v7207 = vrot.slane %v6772, 5
      %v7208 = vsel %vm1779, %v7206, %v7207
      %v7209 = vrot.slane %v7207, 4
      %v7210 = vrot.slane %v6773, 5
      %v7211 = vsel %vm1779, %v7209, %v7210
      %v7212 = vrot.slane %v7138, 5
      %v7213 = vrot.slane %v7212, 4
      %v7214 = vrot.slane %v6775, 5
      %v7215 = vsel %vm1779, %v7213, %v7214
      %v7216 = vrot.slane %v7214, 4
      %v7217 = vrot.slane %v6776, 5
      %v7218 = vsel %vm1779, %v7216, %v7217
      %s7219 = scalar_lea.vmem %s2, 512
      %v7220 = vld [vmem:[%s7219] sm:$0xf]
      %v7221 = vld [vmem:[%s7219 + $0x4] sm:$0xf]
      %v7222 = vld [vmem:[%s7219 + $0x8] sm:$0xf]
      %v7223 = vld [vmem:[%s7219 + $0xc] sm:$0xf]
      %v7224 = vld [vmem:[%s7219 + $0x10] sm:$0xf]
      %v7225 = vld [vmem:[%s7219 + $0x14] sm:$0xf]
      %v7226 = vld [vmem:[%s7219 + $0x18] sm:$0xf]
      %v7227 = vld [vmem:[%s7219 + $0x1c] sm:$0xf]
      %v7228 = vld [vmem:[%s7219 + $0x20] sm:$0xf]
      %v7229 = vld [vmem:[%s7219 + $0x24] sm:$0xf]
      %v7230 = vld [vmem:[%s7219 + $0x28] sm:$0xf]
      %v7231 = vld [vmem:[%s7219 + $0x2c] sm:$0xf]
      %v7232 = vld [vmem:[%s7219 + $0x30] sm:$0xf]
      %v7233 = vld [vmem:[%s7219 + $0x34] sm:$0xf]
      %v7234 = vld [vmem:[%s7219 + $0x38] sm:$0xf]
      %v7235 = vld [vmem:[%s7219 + $0x3c] sm:$0xf]
      %v7236 = vunpack.c.l.b16 %v7166
      %v7237 = vunpack.c.l.b16 %v7169
      %v7238 = vunpack.c.l.b16 %v7173
      %v7239 = vunpack.c.l.b16 %v7176
      %v7240 = vunpack.c.l.b16 %v7180
      %v7241 = vunpack.c.l.b16 %v7183
      %v7242 = vunpack.c.l.b16 %v7187
      %v7243 = vunpack.c.l.b16 %v7190
      %v7244 = vunpack.c.l.b16 %v7194
      %v7245 = vunpack.c.l.b16 %v7197
      %v7246 = vunpack.c.l.b16 %v7201
      %v7247 = vunpack.c.l.b16 %v7204
      %v7248 = vunpack.c.l.b16 %v7208
      %v7249 = vunpack.c.l.b16 %v7211
      %v7250 = vunpack.c.l.b16 %v7215
      %v7251 = vunpack.c.l.b16 %v7218
      %v7252 = vpack.c.b16 %v7237, %v7236
      %v7253 = vpack.c.b16 %v7239, %v7238
      %v7254 = vpack.c.b16 %v7241, %v7240
      %v7255 = vpack.c.b16 %v7243, %v7242
      %v7256 = vpack.c.b16 %v7245, %v7244
      %v7257 = vpack.c.b16 %v7247, %v7246
      %v7258 = vpack.c.b16 %v7249, %v7248
      %v7259 = vpack.c.b16 %v7251, %v7250
      %v7284 = vunpack.c.l.b16 %v7220
      %v7285 = vunpack.c.l.b16 %v7221
      %v7286 = vunpack.c.l.b16 %v7222
      %v7287 = vunpack.c.l.b16 %v7223
      %v7288 = vunpack.c.l.b16 %v7224
      %v7289 = vunpack.c.l.b16 %v7225
      %v7290 = vunpack.c.l.b16 %v7226
      %v7291 = vunpack.c.l.b16 %v7227
      %v7292 = vunpack.c.l.b16 %v7228
      %v7293 = vunpack.c.l.b16 %v7229
      %v7294 = vunpack.c.l.b16 %v7230
      %v7295 = vunpack.c.l.b16 %v7231
      %v7296 = vunpack.c.l.b16 %v7232
      %v7297 = vunpack.c.l.b16 %v7233
      %v7298 = vunpack.c.l.b16 %v7234
      %v7299 = vunpack.c.l.b16 %v7235
      %v7300 = vpack.c.b16 %v7285, %v7284
      %v7301 = vpack.c.b16 %v7287, %v7286
      %v7302 = vpack.c.b16 %v7289, %v7288
      %v7303 = vpack.c.b16 %v7291, %v7290
      %v7304 = vpack.c.b16 %v7293, %v7292
      %v7305 = vpack.c.b16 %v7295, %v7294
      %v7306 = vpack.c.b16 %v7297, %v7296
      %v7307 = vpack.c.b16 %v7299, %v7298
      %7316 = vmatpush.bf16.msra.mxu0 %v7307
      %7317 = vmatpush.bf16.msra.mxu0 %v7306
      %7318 = vmatpush.bf16.msra.mxu0 %v7305
      %7319 = vmatpush.bf16.msra.mxu0 %v7304
      %7320 = vmatpush.bf16.msra.mxu0 %v7303
      %7321 = vmatpush.bf16.msra.mxu0 %v7302
      %7322 = vmatpush.bf16.msra.mxu0 %v7301
      %7323 = vmatpush.bf16.msra.mxu0 %v7300
      %7324 = vmatmul.bf16.gmra.mxu0 %v7252
      %v7325 = vpop.f32.mrf.mxu0
      %v7326 = vadd.f32 0.0, %v7325
      %v7327 = vpop.f32.mrf.mxu0
      %v7328 = vadd.f32 0.0, %v7327
      %7329 = vmatmul.bf16.gmra.mxu0 %v7253
      %v7330 = vpop.f32.mrf.mxu0
      %v7331 = vadd.f32 0.0, %v7330
      %v7332 = vpop.f32.mrf.mxu0
      %v7333 = vadd.f32 0.0, %v7332
      %7334 = vmatmul.bf16.gmra.mxu0 %v7254
      %v7335 = vpop.f32.mrf.mxu0
      %v7336 = vadd.f32 0.0, %v7335
      %v7337 = vpop.f32.mrf.mxu0
      %v7338 = vadd.f32 0.0, %v7337
      %7339 = vmatmul.bf16.gmra.mxu0 %v7255
      %v7340 = vpop.f32.mrf.mxu0
      %v7341 = vadd.f32 0.0, %v7340
      %v7342 = vpop.f32.mrf.mxu0
      %v7343 = vadd.f32 0.0, %v7342
      %7344 = vmatmul.bf16.gmra.mxu0 %v7256
      %v7345 = vpop.f32.mrf.mxu0
      %v7346 = vadd.f32 0.0, %v7345
      %v7347 = vpop.f32.mrf.mxu0
      %v7348 = vadd.f32 0.0, %v7347
      %7349 = vmatmul.bf16.gmra.mxu0 %v7257
      %v7350 = vpop.f32.mrf.mxu0
      %v7351 = vadd.f32 0.0, %v7350
      %v7352 = vpop.f32.mrf.mxu0
      %v7353 = vadd.f32 0.0, %v7352
      %7354 = vmatmul.bf16.gmra.mxu0 %v7258
      %v7355 = vpop.f32.mrf.mxu0
      %v7356 = vadd.f32 0.0, %v7355
      %v7357 = vpop.f32.mrf.mxu0
      %v7358 = vadd.f32 0.0, %v7357
      %7359 = vmatmul.bf16.gmra.mxu0 %v7259
      %v7360 = vpop.f32.mrf.mxu0
      %v7361 = vadd.f32 0.0, %v7360
      %v7362 = vpop.f32.mrf.mxu0
      %v7363 = vadd.f32 0.0, %v7362
      %7364 = vdwg.mxu0
      %v7365 = vadd.f32 %v7115, %v7326
      %v7366 = vadd.f32 %v7116, %v7328
      %v7367 = vadd.f32 %v7117, %v7331
      %v7368 = vadd.f32 %v7118, %v7333
      %v7369 = vadd.f32 %v7119, %v7336
      %v7370 = vadd.f32 %v7120, %v7338
      %v7371 = vadd.f32 %v7121, %v7341
      %v7372 = vadd.f32 %v7122, %v7343
      %v7373 = vadd.f32 %v7123, %v7346
      %v7374 = vadd.f32 %v7124, %v7348
      %v7375 = vadd.f32 %v7125, %v7351
      %v7376 = vadd.f32 %v7126, %v7353
      %v7377 = vadd.f32 %v7127, %v7356
      %v7378 = vadd.f32 %v7128, %v7358
      %v7379 = vadd.f32 %v7129, %v7361
      %v7380 = vadd.f32 %v7130, %v7363
      %v7381 = vld [vmem:[%s542] sm:$0xff]
      %v7382 = vld [vmem:[%s542 + $0x8] sm:$0xff]
      %v7383 = vld [vmem:[%s542 + $0x10] sm:$0xff]
      %v7384 = vld [vmem:[%s542 + $0x18] sm:$0xff]
      %v7385 = vld [vmem:[%s542 + $0x20] sm:$0xff]
      %v7386 = vld [vmem:[%s542 + $0x28] sm:$0xff]
      %v7387 = vld [vmem:[%s542 + $0x30] sm:$0xff]
      %v7388 = vld [vmem:[%s542 + $0x38] sm:$0xff]
      %v7389 = vld [vmem:[%s542 + $0x40] sm:$0xff]
      %v7390 = vld [vmem:[%s542 + $0x48] sm:$0xff]
      %v7391 = vld [vmem:[%s542 + $0x50] sm:$0xff]
      %v7392 = vld [vmem:[%s542 + $0x58] sm:$0xff]
      %v7393 = vld [vmem:[%s542 + $0x60] sm:$0xff]
      %v7394 = vld [vmem:[%s542 + $0x68] sm:$0xff]
      %v7395 = vld [vmem:[%s542 + $0x70] sm:$0xff]
      %v7396 = vld [vmem:[%s542 + $0x78] sm:$0xff]
      %v7397 = vadd.f32 %v7365, %v7381
      %v7398 = vadd.f32 %v7366, %v7382
      %v7399 = vadd.f32 %v7367, %v7383
      %v7400 = vadd.f32 %v7368, %v7384
      %v7401 = vadd.f32 %v7369, %v7385
      %v7402 = vadd.f32 %v7370, %v7386
      %v7403 = vadd.f32 %v7371, %v7387
      %v7404 = vadd.f32 %v7372, %v7388
      %v7405 = vadd.f32 %v7373, %v7389
      %v7406 = vadd.f32 %v7374, %v7390
      %v7407 = vadd.f32 %v7375, %v7391
      %v7408 = vadd.f32 %v7376, %v7392
      %v7409 = vadd.f32 %v7377, %v7393
      %v7410 = vadd.f32 %v7378, %v7394
      %v7411 = vadd.f32 %v7379, %v7395
      %v7412 = vadd.f32 %v7380, %v7396
      %7413 = vst [vmem:[%s256] sm:$0xff] %v7397
      %7414 = vst [vmem:[%s256 + $0x8] sm:$0xff] %v7398
      %7415 = vst [vmem:[%s256 + $0x10] sm:$0xff] %v7399
      %7416 = vst [vmem:[%s256 + $0x18] sm:$0xff] %v7400
      %7417 = vst [vmem:[%s256 + $0x20] sm:$0xff] %v7401
      %7418 = vst [vmem:[%s256 + $0x28] sm:$0xff] %v7402
      %7419 = vst [vmem:[%s256 + $0x30] sm:$0xff] %v7403
      %7420 = vst [vmem:[%s256 + $0x38] sm:$0xff] %v7404
      %7421 = vst [vmem:[%s256 + $0x40] sm:$0xff] %v7405
      %7422 = vst [vmem:[%s256 + $0x48] sm:$0xff] %v7406
      %7423 = vst [vmem:[%s256 + $0x50] sm:$0xff] %v7407
      %7424 = vst [vmem:[%s256 + $0x58] sm:$0xff] %v7408
      %7425 = vst [vmem:[%s256 + $0x60] sm:$0xff] %v7409
      %7426 = vst [vmem:[%s256 + $0x68] sm:$0xff] %v7410
      %7427 = vst [vmem:[%s256 + $0x70] sm:$0xff] %v7411
      %7428 = vst [vmem:[%s256 + $0x78] sm:$0xff] %v7412
      %s7429 = smul.u32 8, %s23
      %p7430 = scmp.lt.s32.totalorder %s22, 1
      %s7431 = scalar_select %p7430, %s22, 1
      %p7432 = scmp.lt.s32.totalorder %s7429, 15
      %s7433 = scalar_select %p7432, %s7429, 15
      %s7434 = smul.addr %s7433, 2
      %s7435 = smul.addr %s7431, 32
      %s7436 = sadd.s32 %s7434, %s7435
      %s7437 = smul.addr %s7436, 8
      %s7438 = scalar_lea.vmem %s7, %s7437
      // Predicated region
      $region207: #{resblock_forward.1} parent=43 // pred_check
        %p7439 = pneg %p176
      $region208: #{resblock_forward.1} parent=43 // pred_check_branch
        %7441 = sbr.rel (%p7439) target = $region210
      $region209: #{resblock_forward.1} parent=43 // pred_region
        %s7442 = smul.u32 8, %s23
      $region210: #{resblock_forward.1} parent=43 // pred_fallthru
        _
    $region44: #{resblock_forward.1} parent=5 // pred_fallthru
      _
    %p7443 = scmp.le.s32.totalorder 2, %s13
    // Predicated region
    $region211: #{resblock_forward.1} parent=5 // pred_check
      %p7444 = pneg %p7443
    $region212: #{resblock_forward.1} parent=5 // pred_check_branch
      %7446 = sbr.rel (%p7444) target = $region214
    $region213: #{resblock_forward.1} parent=5 // pred_region
      %s7447 = ssub.s32 %s13, 2
      // Predicated region
      $region215: #{resblock_forward.1} parent=213 // pred_check
        %p7448 = pneg %p182
      $region216: #{resblock_forward.1} parent=213 // pred_check_branch
        %7450 = sbr.rel (%p7448) target = $region218
      $region217: #{resblock_forward.1} parent=213 // pred_region
        %s7451 = smul.u32 8, %s25
        %p7452 = scmp.lt.s32.totalorder %s24, 1
        %s7453 = scalar_select %p7452, %s24, 1
        %p7454 = scmp.lt.s32.totalorder %s7451, 15
        %s7455 = scalar_select %p7454, %s7451, 15
        %s7456 = smul.addr %s7455, 2
        %s7457 = smul.addr %s7453, 32
        %s7458 = sadd.s32 %s7456, %s7457
        %s7459 = smul.addr %s7458, 8
        %s7460 = scalar_lea.vmem %s7, %s7459
      $region218: #{resblock_forward.1} parent=213 // pred_fallthru
        _
    $region214: #{resblock_forward.1} parent=5 // pred_fallthru
      _
  $region6: #{resblock_forward.1} parent=0 // loop_footer
    %s17 = sadd.s32 1, %s13
  $region7: #{resblock_forward.1} parent=0 // loop_footer_branch
    %12 = sbr.rel target = $region3
  $region8: #{resblock_forward.1} parent=0 // loop_exit
    _
  %7461 = vsyncmov [#allocation4]
  %s7462 = vpop.sfrf %7461
  %p7463 = scmp.eq.s32.totalorder %s7462, 0
  %p7464 = pneg %p7463
  %7466 = shalt.err (%p7464)
  %s7467 = scalar_lea.sflag [#allocation4], 1
  %7468 = vsyncmov %s7467
  %s7469 = vpop.sfrf %7468
  %p7470 = scmp.eq.s32.totalorder %s7469, 0
  %p7471 = pneg %p7470
  %7473 = shalt.err (%p7471)
  %s7474 = scalar_lea.sflag [#allocation4], 2
  %7475 = vsyncmov %s7474
  %s7476 = vpop.sfrf %7475
  %p7477 = scmp.eq.s32.totalorder %s7476, 0
  %p7478 = pneg %p7477
  %7480 = shalt.err (%p7478)
  %s7481 = scalar_lea.sflag [#allocation4], 3
  %7482 = vsyncmov %s7481
  %s7483 = vpop.sfrf %7482
  %p7484 = scmp.eq.s32.totalorder %s7483, 0
  %p7485 = pneg %p7484
  %7487 = shalt.err (%p7485)
  %s7488 = scalar_lea.sflag [#allocation4], 4
  %7489 = vsyncmov %s7488
  %s7490 = vpop.sfrf %7489
  %p7491 = scmp.eq.s32.totalorder %s7490, 0
  %p7492 = pneg %p7491
  %7494 = shalt.err (%p7492)
  %s7495 = scalar_lea.sflag [#allocation4], 5
  %7496 = vsyncmov %s7495
  %s7497 = vpop.sfrf %7496
  %p7498 = scmp.eq.s32.totalorder %s7497, 0
  %p7499 = pneg %p7498
  %7501 = shalt.err (%p7499)

</llo_original>
